<compile_context>
chip_gen: v7x
topology: tpu7x:2x2x1
jax: 0.10.0
libtpu: 0.0.40
codegen_flags: <defaults>
</compile_context>

<pallas_src>
import numpy as np
import jax
import jax.numpy as jnp
from jax.experimental import pallas as pl
from jax.experimental.pallas import tpu as pltpu

EPS = 1e-5
LANE = 128


def _round_up(x, m):
    return (x + m - 1) // m * m


def _make_kernel(N, H, W, M, Pp):
    """Builds the Bottleneck kernel (closes over static sizes)."""

    def kernel(x_ref, w1_ref, w2_ref, w3_ref,
               g1_ref, b1_ref, g2_ref, b2_ref, g3_ref, b3_ref,
               out_ref, pad_ref, col_ref):
        x = x_ref[...]                                   # (M, Cp) f32
        inv_m = jnp.float32(1.0 / M)
        # Tile-aligned ones block for MXU-based per-channel reductions.
        ones8 = jnp.ones((8, M), jnp.float32)

        def bn(y, g_ref, b_ref):
            # Training-mode BN: batch mean + biased variance, single pass.
            # Per-channel sums done on the (otherwise idle) MXU.
            s1 = jnp.dot(ones8, y, preferred_element_type=jnp.float32)[0:1, :]
            s2 = jnp.dot(ones8, y * y,
                         preferred_element_type=jnp.float32)[0:1, :]
            mu = s1 * inv_m                              # (1, C)
            var = s2 * inv_m - mu * mu                   # biased variance
            scale = g_ref[...] * jax.lax.rsqrt(var + EPS)
            shift = b_ref[...] - mu * scale
            return y * scale + shift

        # ---- conv1 (1x1) + bn1 + relu ----
        y1 = jnp.dot(x, w1_ref[...], preferred_element_type=jnp.float32)
        h1 = jnp.maximum(bn(y1, g1_ref, b1_ref), 0.0)    # (M, Pp)

        # ---- conv2 (3x3, stride 1, pad 1) as ONE im2col matmul ----
        # Stage h1 into a zero-halo (N, H+2, W+2, Pp) scratch; zero only the
        # halo bands, then overwrite the interior.
        zrow = jnp.zeros((N, 1, W + 2, Pp), jnp.float32)
        zcol = jnp.zeros((N, H, 1, Pp), jnp.float32)
        pad_ref[:, 0:1, :, :] = zrow
        pad_ref[:, H + 1:H + 2, :, :] = zrow
        pad_ref[:, 1:H + 1, 0:1, :] = zcol
        pad_ref[:, 1:H + 1, W + 1:W + 2, :] = zcol
        pad_ref[:, 1:H + 1, 1:W + 1, :] = h1.reshape(N, H, W, Pp)

        # Build the (M, 9*Pp) im2col block: each tap is a shifted read of the
        # zero-halo scratch (no masks), written to a lane-aligned column block.
        for k in range(9):                               # static unroll
            di, dj = k // 3, k % 3
            tap = pad_ref[:, di:di + H, dj:dj + W, :]    # (N, H, W, Pp)
            col_ref[:, k * Pp:(k + 1) * Pp] = tap.reshape(M, Pp)

        y2 = jnp.dot(col_ref[...], w2_ref[...],
                     preferred_element_type=jnp.float32)  # (M,9Pp)x(9Pp,Pp)
        h2 = jnp.maximum(bn(y2, g2_ref, b2_ref), 0.0)     # (M, Pp)

        # ---- conv3 (1x1) + bn3 + residual + relu ----
        y3 = jnp.dot(h2, w3_ref[...], preferred_element_type=jnp.float32)
        z = bn(y3, g3_ref, b3_ref)
        out_ref[...] = jnp.maximum(z + x, 0.0)            # lane-dense store

    return kernel


def bottleneck_forward(x_nchw, params):
    """Bottleneck(in_planes=planes*4, planes, stride=1, downsample=None)."""
    w1, w2, w3, g1, b1, g2, b2, g3, b3 = params
    N, Cin, H, W = x_nchw.shape
    planes = w1.shape[1]
    Cout = w3.shape[1]
    assert Cout == Cin, "identity residual requires in_planes == planes * 4"
    M = N * H * W

    # Lane-dense channel padding (multiples of 128).  Padded channels stay
    # exactly zero through the whole block, so results are exact.
    Cp = _round_up(Cin, LANE)
    Pp = _round_up(planes, LANE)

    def padc(a, cols, rows=None):
        a = a.astype(jnp.float32)
        pr = 0 if rows is None else rows - a.shape[0]
        return jnp.pad(a, ((0, pr), (0, cols - a.shape[1])))

    # NCHW -> NHWC -> (M, Cp)  (glue)
    x_flat = jnp.transpose(x_nchw, (0, 2, 3, 1)).reshape(M, Cin)
    x_flat = padc(x_flat, Cp)

    w1p = padc(w1, Pp, Cp)                                      # (Cp, Pp)
    # HWIO (3,3,planes,planes) -> pad channels -> (9*Pp, Pp) im2col weight
    w2p = jnp.pad(w2.astype(jnp.float32),
                  ((0, 0), (0, 0), (0, Pp - planes), (0, Pp - planes)))
    w2cat = w2p.reshape(9 * Pp, Pp)
    w3p = padc(w3, Cp, Pp)                                      # (Pp, Cp)
    g1p, b1p = padc(g1, Pp), padc(b1, Pp)
    g2p, b2p = padc(g2, Pp), padc(b2, Pp)
    g3p, b3p = padc(g3, Cp), padc(b3, Cp)

    def full2d(shape):
        return pl.BlockSpec(shape, lambda i: (0, 0))

    in_specs = [
        full2d((M, Cp)),                 # x
        full2d((Cp, Pp)),                # w1
        full2d((9 * Pp, Pp)),            # w2 (im2col layout)
        full2d((Pp, Cp)),                # w3
        full2d((1, Pp)), full2d((1, Pp)),    # gamma1, beta1
        full2d((1, Pp)), full2d((1, Pp)),    # gamma2, beta2
        full2d((1, Cp)), full2d((1, Cp)),    # gamma3, beta3
    ]

    out_flat = pl.pallas_call(
        _make_kernel(N, H, W, M, Pp),
        out_shape=jax.ShapeDtypeStruct((M, Cp), jnp.float32),
        grid=(1,),
        in_specs=in_specs,
        out_specs=full2d((M, Cp)),
        scratch_shapes=[
            pltpu.VMEM((N, H + 2, W + 2, Pp), jnp.float32),   # zero-halo h1
            pltpu.VMEM((M, 9 * Pp), jnp.float32),             # im2col block
        ],
        compiler_params=pltpu.CompilerParams(
            dimension_semantics=("arbitrary",),
            vmem_limit_bytes=32 * 1024 * 1024),
    )(x_flat, w1p, w2cat, w3p, g1p, b1p, g2p, b2p, g3p, b3p)

    out = out_flat[:, :Cout].reshape(N, H, W, Cout)
    return jnp.transpose(out, (0, 3, 1, 2))


def bottleneck_reference(x_nchw, params):
    """Pure-JAX reference (same training-mode BN semantics)."""
    w1, w2, w3, g1, b1, g2, b2, g3, b3 = params
    x = jnp.transpose(x_nchw, (0, 2, 3, 1)).astype(jnp.float32)
    hp = jax.lax.Precision.HIGHEST

    def bn(y, g, b):
        mu = jnp.mean(y, axis=(0, 1, 2), keepdims=True)
        var = jnp.mean((y - mu) ** 2, axis=(0, 1, 2), keepdims=True)
        return g.reshape(1, 1, 1, -1) * (y - mu) / jnp.sqrt(var + EPS) \
            + b.reshape(1, 1, 1, -1)

    h1 = jax.nn.relu(bn(jnp.einsum('nhwc,cd->nhwd', x, w1, precision=hp), g1, b1))
    y2 = jax.lax.conv_general_dilated(
        h1, w2, (1, 1), 'SAME',
        dimension_numbers=('NHWC', 'HWIO', 'NHWC'), precision=hp)
    h2 = jax.nn.relu(bn(y2, g2, b2))
    y3 = bn(jnp.einsum('nhwc,cd->nhwd', h2, w3, precision=hp), g3, b3)
    return jnp.transpose(jax.nn.relu(y3 + x), (0, 3, 1, 2))


if __name__ == "__main__":
    # Bottleneck(in_planes=16, planes=4, stride=1, downsample=None)
    N, planes, H, W = 2, 4, 16, 16
    in_planes = planes * 4                   # identity residual must type-check

    key = jax.random.PRNGKey(0)
    kx, k1, k2, k3 = jax.random.split(key, 4)
    x = jax.random.normal(kx, (N, in_planes, H, W), jnp.float32)   # NCHW

    # conv weights (bias=False), deterministic init
    w1 = jax.random.normal(k1, (in_planes, planes), jnp.float32) * 0.1     # 1x1
    w2 = jax.random.normal(k2, (3, 3, planes, planes), jnp.float32) * 0.1  # 3x3 HWIO
    w3 = jax.random.normal(k3, (planes, planes * 4), jnp.float32) * 0.1    # 1x1
    # BatchNorm affine params (PyTorch default init: gamma=1, beta=0)
    g1 = jnp.ones((1, planes), jnp.float32); b1 = jnp.zeros((1, planes), jnp.float32)
    g2 = jnp.ones((1, planes), jnp.float32); b2 = jnp.zeros((1, planes), jnp.float32)
    g3 = jnp.ones((1, planes * 4), jnp.float32); b3 = jnp.zeros((1, planes * 4), jnp.float32)
    params = (w1, w2, w3, g1, b1, g2, b2, g3, b3)

    out = jax.block_until_ready(bottleneck_forward(x, params))
    ref = jax.block_until_ready(bottleneck_reference(x, params))
    np.testing.assert_allclose(np.asarray(out), np.asarray(ref), rtol=5e-3, atol=5e-3)
    print("KERNEL_OK")
</pallas_src>

<mosaic_0001>
module attributes {stable_mosaic.version = 11 : i64} {
  func.func @kernel(%arg0: i32, %arg1: memref<512x128xf32, #tpu.memory_space<vmem>>, %arg2: memref<128x128xf32, #tpu.memory_space<vmem>>, %arg3: memref<1152x128xf32, #tpu.memory_space<vmem>>, %arg4: memref<128x128xf32, #tpu.memory_space<vmem>>, %arg5: memref<1x128xf32, #tpu.memory_space<vmem>>, %arg6: memref<1x128xf32, #tpu.memory_space<vmem>>, %arg7: memref<1x128xf32, #tpu.memory_space<vmem>>, %arg8: memref<1x128xf32, #tpu.memory_space<vmem>>, %arg9: memref<1x128xf32, #tpu.memory_space<vmem>>, %arg10: memref<1x128xf32, #tpu.memory_space<vmem>>, %arg11: memref<512x128xf32, #tpu.memory_space<vmem>>, %arg12: memref<2x18x18x128xf32, #tpu.memory_space<vmem>>, %arg13: memref<512x1152xf32, #tpu.memory_space<vmem>>) attributes {dimension_semantics = [#tpu.dimension_semantics<arbitrary>], iteration_bounds = array<i64: 1>, scalar_prefetch = 0 : i64, scratch_operands = 2 : i64, tpu.core_type = #tpu.core_type<tc>, window_params = [{pipeline_mode = #tpu.pipeline_mode<synchronous>, transform_indices = @transform_0, window_bounds = array<i64: 512, 128>}, {pipeline_mode = #tpu.pipeline_mode<synchronous>, transform_indices = @transform_1, window_bounds = array<i64: 128, 128>}, {pipeline_mode = #tpu.pipeline_mode<synchronous>, transform_indices = @transform_2, window_bounds = array<i64: 1152, 128>}, {pipeline_mode = #tpu.pipeline_mode<synchronous>, transform_indices = @transform_3, window_bounds = array<i64: 128, 128>}, {pipeline_mode = #tpu.pipeline_mode<synchronous>, transform_indices = @transform_4, window_bounds = array<i64: 1, 128>}, {pipeline_mode = #tpu.pipeline_mode<synchronous>, transform_indices = @transform_5, window_bounds = array<i64: 1, 128>}, {pipeline_mode = #tpu.pipeline_mode<synchronous>, transform_indices = @transform_6, window_bounds = array<i64: 1, 128>}, {pipeline_mode = #tpu.pipeline_mode<synchronous>, transform_indices = @transform_7, window_bounds = array<i64: 1, 128>}, {pipeline_mode = #tpu.pipeline_mode<synchronous>, transform_indices = @transform_8, window_bounds = array<i64: 1, 128>}, {pipeline_mode = #tpu.pipeline_mode<synchronous>, transform_indices = @transform_9, window_bounds = array<i64: 1, 128>}, {pipeline_mode = #tpu.pipeline_mode<synchronous>, transform_indices = @transform_10, window_bounds = array<i64: 512, 128>}]} {
    %c0 = arith.constant 0 : index
    %c0_0 = arith.constant 0 : index
    %0 = vector.load %arg1[%c0, %c0_0] : memref<512x128xf32, #tpu.memory_space<vmem>>, vector<512x128xf32>
    %cst = arith.constant 1.000000e+00 : f32
    %1 = vector.broadcast %cst : f32 to vector<8x512xf32>
    %c0_1 = arith.constant 0 : index
    %c0_2 = arith.constant 0 : index
    %2 = vector.load %arg2[%c0_1, %c0_2] : memref<128x128xf32, #tpu.memory_space<vmem>>, vector<128x128xf32>
    %cst_3 = arith.constant dense<0.000000e+00> : vector<512x128xf32>
    %3 = tpu.matmul %0, %2, %cst_3 {dimension_numbers = #tpu.dot_dimension_numbers<[1], [0], [0], [1], [0, 0, 1, 1], [], []>} : vector<512x128xf32>, vector<128x128xf32>, vector<512x128xf32> -> vector<512x128xf32>
    %cst_4 = arith.constant dense<0.000000e+00> : vector<8x128xf32>
    %4 = tpu.matmul %1, %3, %cst_4 {dimension_numbers = #tpu.dot_dimension_numbers<[1], [0], [0], [1], [0, 0, 1, 1], [], []>} : vector<8x512xf32>, vector<512x128xf32>, vector<8x128xf32> -> vector<8x128xf32>
    %5 = vector.extract_strided_slice %4 {offsets = [0, 0], sizes = [1, 128], strides = [1, 1]} : vector<8x128xf32> to vector<1x128xf32>
    %6 = arith.mulf %3, %3 : vector<512x128xf32>
    %cst_5 = arith.constant dense<0.000000e+00> : vector<8x128xf32>
    %7 = tpu.matmul %1, %6, %cst_5 {dimension_numbers = #tpu.dot_dimension_numbers<[1], [0], [0], [1], [0, 0, 1, 1], [], []>} : vector<8x512xf32>, vector<512x128xf32>, vector<8x128xf32> -> vector<8x128xf32>
    %8 = vector.extract_strided_slice %7 {offsets = [0, 0], sizes = [1, 128], strides = [1, 1]} : vector<8x128xf32> to vector<1x128xf32>
    %cst_6 = arith.constant 0.001953125 : f32
    %9 = vector.broadcast %cst_6 : f32 to vector<1x128xf32>
    %10 = arith.mulf %5, %9 : vector<1x128xf32>
    %cst_7 = arith.constant 0.001953125 : f32
    %11 = vector.broadcast %cst_7 : f32 to vector<1x128xf32>
    %12 = arith.mulf %8, %11 : vector<1x128xf32>
    %13 = arith.mulf %10, %10 : vector<1x128xf32>
    %14 = arith.subf %12, %13 : vector<1x128xf32>
    %c0_8 = arith.constant 0 : index
    %c0_9 = arith.constant 0 : index
    %15 = vector.load %arg5[%c0_8, %c0_9] : memref<1x128xf32, #tpu.memory_space<vmem>>, vector<1x128xf32>
    %cst_10 = arith.constant 9.99999974E-6 : f32
    %16 = vector.broadcast %cst_10 : f32 to vector<1x128xf32>
    %17 = arith.addf %14, %16 : vector<1x128xf32>
    %18 = math.rsqrt %17 : vector<1x128xf32>
    %19 = arith.mulf %15, %18 : vector<1x128xf32>
    %c0_11 = arith.constant 0 : index
    %c0_12 = arith.constant 0 : index
    %20 = vector.load %arg6[%c0_11, %c0_12] : memref<1x128xf32, #tpu.memory_space<vmem>>, vector<1x128xf32>
    %21 = arith.mulf %10, %19 : vector<1x128xf32>
    %22 = arith.subf %20, %21 : vector<1x128xf32>
    %23 = vector.broadcast %19 : vector<1x128xf32> to vector<512x128xf32>
    %24 = arith.mulf %3, %23 : vector<512x128xf32>
    %25 = vector.broadcast %22 : vector<1x128xf32> to vector<512x128xf32>
    %26 = arith.addf %24, %25 : vector<512x128xf32>
    %cst_13 = arith.constant 0.000000e+00 : f32
    %27 = vector.broadcast %cst_13 : f32 to vector<512x128xf32>
    %28 = arith.maximumf %26, %27 : vector<512x128xf32>
    %cst_14 = arith.constant 0.000000e+00 : f32
    %29 = vector.broadcast %cst_14 : f32 to vector<2x1x18x128xf32>
    %cst_15 = arith.constant 0.000000e+00 : f32
    %30 = vector.broadcast %cst_15 : f32 to vector<2x16x1x128xf32>
    %c0_16 = arith.constant 0 : index
    %c0_17 = arith.constant 0 : index
    %c0_18 = arith.constant 0 : index
    %c0_19 = arith.constant 0 : index
    %31 = vector.load %arg12[%c0_16, %c0_17, %c0_18, %c0_19] : memref<2x18x18x128xf32, #tpu.memory_space<vmem>>, vector<2x1x18x128xf32>
    tpu.vector_store %arg12[%c0_16, %c0_17, %c0_18, %c0_19], %29 {strides = array<i32>} : memref<2x18x18x128xf32, #tpu.memory_space<vmem>>, vector<2x1x18x128xf32>,
    %c0_20 = arith.constant 0 : index
    %c17 = arith.constant 17 : index
    %c0_21 = arith.constant 0 : index
    %c0_22 = arith.constant 0 : index
    %32 = vector.load %arg12[%c0_20, %c17, %c0_21, %c0_22] : memref<2x18x18x128xf32, #tpu.memory_space<vmem>>, vector<2x1x18x128xf32>
    tpu.vector_store %arg12[%c0_20, %c17, %c0_21, %c0_22], %29 {strides = array<i32>} : memref<2x18x18x128xf32, #tpu.memory_space<vmem>>, vector<2x1x18x128xf32>,
    %c0_23 = arith.constant 0 : index
    %c1 = arith.constant 1 : index
    %c0_24 = arith.constant 0 : index
    %c0_25 = arith.constant 0 : index
    %33 = vector.load %arg12[%c0_23, %c1, %c0_24, %c0_25] : memref<2x18x18x128xf32, #tpu.memory_space<vmem>>, vector<2x16x1x128xf32>
    tpu.vector_store %arg12[%c0_23, %c1, %c0_24, %c0_25], %30 {strides = array<i32>} : memref<2x18x18x128xf32, #tpu.memory_space<vmem>>, vector<2x16x1x128xf32>,
    %c0_26 = arith.constant 0 : index
    %c1_27 = arith.constant 1 : index
    %c17_28 = arith.constant 17 : index
    %c0_29 = arith.constant 0 : index
    %34 = vector.load %arg12[%c0_26, %c1_27, %c17_28, %c0_29] : memref<2x18x18x128xf32, #tpu.memory_space<vmem>>, vector<2x16x1x128xf32>
    tpu.vector_store %arg12[%c0_26, %c1_27, %c17_28, %c0_29], %30 {strides = array<i32>} : memref<2x18x18x128xf32, #tpu.memory_space<vmem>>, vector<2x16x1x128xf32>,
    %35 = vector.shape_cast %28 : vector<512x128xf32> to vector<2x16x16x128xf32>
    %c0_30 = arith.constant 0 : index
    %c1_31 = arith.constant 1 : index
    %c1_32 = arith.constant 1 : index
    %c0_33 = arith.constant 0 : index
    %36 = vector.load %arg12[%c0_30, %c1_31, %c1_32, %c0_33] : memref<2x18x18x128xf32, #tpu.memory_space<vmem>>, vector<2x16x16x128xf32>
    tpu.vector_store %arg12[%c0_30, %c1_31, %c1_32, %c0_33], %35 {strides = array<i32>} : memref<2x18x18x128xf32, #tpu.memory_space<vmem>>, vector<2x16x16x128xf32>,
    %c0_34 = arith.constant 0 : index
    %c0_35 = arith.constant 0 : index
    %c0_36 = arith.constant 0 : index
    %c0_37 = arith.constant 0 : index
    %37 = vector.load %arg12[%c0_34, %c0_35, %c0_36, %c0_37] : memref<2x18x18x128xf32, #tpu.memory_space<vmem>>, vector<2x16x16x128xf32>
    %38 = vector.shape_cast %37 : vector<2x16x16x128xf32> to vector<512x128xf32>
    %c0_38 = arith.constant 0 : index
    %c0_39 = arith.constant 0 : index
    %39 = vector.load %arg13[%c0_38, %c0_39] : memref<512x1152xf32, #tpu.memory_space<vmem>>, vector<512x128xf32>
    tpu.vector_store %arg13[%c0_38, %c0_39], %38 {strides = array<i32>} : memref<512x1152xf32, #tpu.memory_space<vmem>>, vector<512x128xf32>,
    %c0_40 = arith.constant 0 : index
    %c0_41 = arith.constant 0 : index
    %c1_42 = arith.constant 1 : index
    %c0_43 = arith.constant 0 : index
    %40 = vector.load %arg12[%c0_40, %c0_41, %c1_42, %c0_43] : memref<2x18x18x128xf32, #tpu.memory_space<vmem>>, vector<2x16x16x128xf32>
    %41 = vector.shape_cast %40 : vector<2x16x16x128xf32> to vector<512x128xf32>
    %c0_44 = arith.constant 0 : index
    %c128 = arith.constant 128 : index
    %42 = vector.load %arg13[%c0_44, %c128] : memref<512x1152xf32, #tpu.memory_space<vmem>>, vector<512x128xf32>
    tpu.vector_store %arg13[%c0_44, %c128], %41 {strides = array<i32>} : memref<512x1152xf32, #tpu.memory_space<vmem>>, vector<512x128xf32>,
    %c0_45 = arith.constant 0 : index
    %c0_46 = arith.constant 0 : index
    %c2 = arith.constant 2 : index
    %c0_47 = arith.constant 0 : index
    %43 = vector.load %arg12[%c0_45, %c0_46, %c2, %c0_47] : memref<2x18x18x128xf32, #tpu.memory_space<vmem>>, vector<2x16x16x128xf32>
    %44 = vector.shape_cast %43 : vector<2x16x16x128xf32> to vector<512x128xf32>
    %c0_48 = arith.constant 0 : index
    %c256 = arith.constant 256 : index
    %45 = vector.load %arg13[%c0_48, %c256] : memref<512x1152xf32, #tpu.memory_space<vmem>>, vector<512x128xf32>
    tpu.vector_store %arg13[%c0_48, %c256], %44 {strides = array<i32>} : memref<512x1152xf32, #tpu.memory_space<vmem>>, vector<512x128xf32>,
    %c0_49 = arith.constant 0 : index
    %c1_50 = arith.constant 1 : index
    %c0_51 = arith.constant 0 : index
    %c0_52 = arith.constant 0 : index
    %46 = vector.load %arg12[%c0_49, %c1_50, %c0_51, %c0_52] : memref<2x18x18x128xf32, #tpu.memory_space<vmem>>, vector<2x16x16x128xf32>
    %47 = vector.shape_cast %46 : vector<2x16x16x128xf32> to vector<512x128xf32>
    %c0_53 = arith.constant 0 : index
    %c384 = arith.constant 384 : index
    %48 = vector.load %arg13[%c0_53, %c384] : memref<512x1152xf32, #tpu.memory_space<vmem>>, vector<512x128xf32>
    tpu.vector_store %arg13[%c0_53, %c384], %47 {strides = array<i32>} : memref<512x1152xf32, #tpu.memory_space<vmem>>, vector<512x128xf32>,
    %c0_54 = arith.constant 0 : index
    %c1_55 = arith.constant 1 : index
    %c1_56 = arith.constant 1 : index
    %c0_57 = arith.constant 0 : index
    %49 = vector.load %arg12[%c0_54, %c1_55, %c1_56, %c0_57] : memref<2x18x18x128xf32, #tpu.memory_space<vmem>>, vector<2x16x16x128xf32>
    %50 = vector.shape_cast %49 : vector<2x16x16x128xf32> to vector<512x128xf32>
    %c0_58 = arith.constant 0 : index
    %c512 = arith.constant 512 : index
    %51 = vector.load %arg13[%c0_58, %c512] : memref<512x1152xf32, #tpu.memory_space<vmem>>, vector<512x128xf32>
    tpu.vector_store %arg13[%c0_58, %c512], %50 {strides = array<i32>} : memref<512x1152xf32, #tpu.memory_space<vmem>>, vector<512x128xf32>,
    %c0_59 = arith.constant 0 : index
    %c1_60 = arith.constant 1 : index
    %c2_61 = arith.constant 2 : index
    %c0_62 = arith.constant 0 : index
    %52 = vector.load %arg12[%c0_59, %c1_60, %c2_61, %c0_62] : memref<2x18x18x128xf32, #tpu.memory_space<vmem>>, vector<2x16x16x128xf32>
    %53 = vector.shape_cast %52 : vector<2x16x16x128xf32> to vector<512x128xf32>
    %c0_63 = arith.constant 0 : index
    %c640 = arith.constant 640 : index
    %54 = vector.load %arg13[%c0_63, %c640] : memref<512x1152xf32, #tpu.memory_space<vmem>>, vector<512x128xf32>
    tpu.vector_store %arg13[%c0_63, %c640], %53 {strides = array<i32>} : memref<512x1152xf32, #tpu.memory_space<vmem>>, vector<512x128xf32>,
    %c0_64 = arith.constant 0 : index
    %c2_65 = arith.constant 2 : index
    %c0_66 = arith.constant 0 : index
    %c0_67 = arith.constant 0 : index
    %55 = vector.load %arg12[%c0_64, %c2_65, %c0_66, %c0_67] : memref<2x18x18x128xf32, #tpu.memory_space<vmem>>, vector<2x16x16x128xf32>
    %56 = vector.shape_cast %55 : vector<2x16x16x128xf32> to vector<512x128xf32>
    %c0_68 = arith.constant 0 : index
    %c768 = arith.constant 768 : index
    %57 = vector.load %arg13[%c0_68, %c768] : memref<512x1152xf32, #tpu.memory_space<vmem>>, vector<512x128xf32>
    tpu.vector_store %arg13[%c0_68, %c768], %56 {strides = array<i32>} : memref<512x1152xf32, #tpu.memory_space<vmem>>, vector<512x128xf32>,
    %c0_69 = arith.constant 0 : index
    %c2_70 = arith.constant 2 : index
    %c1_71 = arith.constant 1 : index
    %c0_72 = arith.constant 0 : index
    %58 = vector.load %arg12[%c0_69, %c2_70, %c1_71, %c0_72] : memref<2x18x18x128xf32, #tpu.memory_space<vmem>>, vector<2x16x16x128xf32>
    %59 = vector.shape_cast %58 : vector<2x16x16x128xf32> to vector<512x128xf32>
    %c0_73 = arith.constant 0 : index
    %c896 = arith.constant 896 : index
    %60 = vector.load %arg13[%c0_73, %c896] : memref<512x1152xf32, #tpu.memory_space<vmem>>, vector<512x128xf32>
    tpu.vector_store %arg13[%c0_73, %c896], %59 {strides = array<i32>} : memref<512x1152xf32, #tpu.memory_space<vmem>>, vector<512x128xf32>,
    %c0_74 = arith.constant 0 : index
    %c2_75 = arith.constant 2 : index
    %c2_76 = arith.constant 2 : index
    %c0_77 = arith.constant 0 : index
    %61 = vector.load %arg12[%c0_74, %c2_75, %c2_76, %c0_77] : memref<2x18x18x128xf32, #tpu.memory_space<vmem>>, vector<2x16x16x128xf32>
    %62 = vector.shape_cast %61 : vector<2x16x16x128xf32> to vector<512x128xf32>
    %c0_78 = arith.constant 0 : index
    %c1024 = arith.constant 1024 : index
    %63 = vector.load %arg13[%c0_78, %c1024] : memref<512x1152xf32, #tpu.memory_space<vmem>>, vector<512x128xf32>
    tpu.vector_store %arg13[%c0_78, %c1024], %62 {strides = array<i32>} : memref<512x1152xf32, #tpu.memory_space<vmem>>, vector<512x128xf32>,
    %c0_79 = arith.constant 0 : index
    %c0_80 = arith.constant 0 : index
    %64 = vector.load %arg13[%c0_79, %c0_80] : memref<512x1152xf32, #tpu.memory_space<vmem>>, vector<512x1152xf32>
    %c0_81 = arith.constant 0 : index
    %c0_82 = arith.constant 0 : index
    %65 = vector.load %arg3[%c0_81, %c0_82] : memref<1152x128xf32, #tpu.memory_space<vmem>>, vector<1152x128xf32>
    %cst_83 = arith.constant dense<0.000000e+00> : vector<512x128xf32>
    %66 = tpu.matmul %64, %65, %cst_83 {dimension_numbers = #tpu.dot_dimension_numbers<[1], [0], [0], [1], [0, 0, 1, 1], [], []>} : vector<512x1152xf32>, vector<1152x128xf32>, vector<512x128xf32> -> vector<512x128xf32>
    %cst_84 = arith.constant dense<0.000000e+00> : vector<8x128xf32>
    %67 = tpu.matmul %1, %66, %cst_84 {dimension_numbers = #tpu.dot_dimension_numbers<[1], [0], [0], [1], [0, 0, 1, 1], [], []>} : vector<8x512xf32>, vector<512x128xf32>, vector<8x128xf32> -> vector<8x128xf32>
    %68 = vector.extract_strided_slice %67 {offsets = [0, 0], sizes = [1, 128], strides = [1, 1]} : vector<8x128xf32> to vector<1x128xf32>
    %69 = arith.mulf %66, %66 : vector<512x128xf32>
    %cst_85 = arith.constant dense<0.000000e+00> : vector<8x128xf32>
    %70 = tpu.matmul %1, %69, %cst_85 {dimension_numbers = #tpu.dot_dimension_numbers<[1], [0], [0], [1], [0, 0, 1, 1], [], []>} : vector<8x512xf32>, vector<512x128xf32>, vector<8x128xf32> -> vector<8x128xf32>
    %71 = vector.extract_strided_slice %70 {offsets = [0, 0], sizes = [1, 128], strides = [1, 1]} : vector<8x128xf32> to vector<1x128xf32>
    %cst_86 = arith.constant 0.001953125 : f32
    %72 = vector.broadcast %cst_86 : f32 to vector<1x128xf32>
    %73 = arith.mulf %68, %72 : vector<1x128xf32>
    %cst_87 = arith.constant 0.001953125 : f32
    %74 = vector.broadcast %cst_87 : f32 to vector<1x128xf32>
    %75 = arith.mulf %71, %74 : vector<1x128xf32>
    %76 = arith.mulf %73, %73 : vector<1x128xf32>
    %77 = arith.subf %75, %76 : vector<1x128xf32>
    %c0_88 = arith.constant 0 : index
    %c0_89 = arith.constant 0 : index
    %78 = vector.load %arg7[%c0_88, %c0_89] : memref<1x128xf32, #tpu.memory_space<vmem>>, vector<1x128xf32>
    %cst_90 = arith.constant 9.99999974E-6 : f32
    %79 = vector.broadcast %cst_90 : f32 to vector<1x128xf32>
    %80 = arith.addf %77, %79 : vector<1x128xf32>
    %81 = math.rsqrt %80 : vector<1x128xf32>
    %82 = arith.mulf %78, %81 : vector<1x128xf32>
    %c0_91 = arith.constant 0 : index
    %c0_92 = arith.constant 0 : index
    %83 = vector.load %arg8[%c0_91, %c0_92] : memref<1x128xf32, #tpu.memory_space<vmem>>, vector<1x128xf32>
    %84 = arith.mulf %73, %82 : vector<1x128xf32>
    %85 = arith.subf %83, %84 : vector<1x128xf32>
    %86 = vector.broadcast %82 : vector<1x128xf32> to vector<512x128xf32>
    %87 = arith.mulf %66, %86 : vector<512x128xf32>
    %88 = vector.broadcast %85 : vector<1x128xf32> to vector<512x128xf32>
    %89 = arith.addf %87, %88 : vector<512x128xf32>
    %cst_93 = arith.constant 0.000000e+00 : f32
    %90 = vector.broadcast %cst_93 : f32 to vector<512x128xf32>
    %91 = arith.maximumf %89, %90 : vector<512x128xf32>
    %c0_94 = arith.constant 0 : index
    %c0_95 = arith.constant 0 : index
    %92 = vector.load %arg4[%c0_94, %c0_95] : memref<128x128xf32, #tpu.memory_space<vmem>>, vector<128x128xf32>
    %cst_96 = arith.constant dense<0.000000e+00> : vector<512x128xf32>
    %93 = tpu.matmul %91, %92, %cst_96 {dimension_numbers = #tpu.dot_dimension_numbers<[1], [0], [0], [1], [0, 0, 1, 1], [], []>} : vector<512x128xf32>, vector<128x128xf32>, vector<512x128xf32> -> vector<512x128xf32>
    %cst_97 = arith.constant dense<0.000000e+00> : vector<8x128xf32>
    %94 = tpu.matmul %1, %93, %cst_97 {dimension_numbers = #tpu.dot_dimension_numbers<[1], [0], [0], [1], [0, 0, 1, 1], [], []>} : vector<8x512xf32>, vector<512x128xf32>, vector<8x128xf32> -> vector<8x128xf32>
    %95 = vector.extract_strided_slice %94 {offsets = [0, 0], sizes = [1, 128], strides = [1, 1]} : vector<8x128xf32> to vector<1x128xf32>
    %96 = arith.mulf %93, %93 : vector<512x128xf32>
    %cst_98 = arith.constant dense<0.000000e+00> : vector<8x128xf32>
    %97 = tpu.matmul %1, %96, %cst_98 {dimension_numbers = #tpu.dot_dimension_numbers<[1], [0], [0], [1], [0, 0, 1, 1], [], []>} : vector<8x512xf32>, vector<512x128xf32>, vector<8x128xf32> -> vector<8x128xf32>
    %98 = vector.extract_strided_slice %97 {offsets = [0, 0], sizes = [1, 128], strides = [1, 1]} : vector<8x128xf32> to vector<1x128xf32>
    %cst_99 = arith.constant 0.001953125 : f32
    %99 = vector.broadcast %cst_99 : f32 to vector<1x128xf32>
    %100 = arith.mulf %95, %99 : vector<1x128xf32>
    %cst_100 = arith.constant 0.001953125 : f32
    %101 = vector.broadcast %cst_100 : f32 to vector<1x128xf32>
    %102 = arith.mulf %98, %101 : vector<1x128xf32>
    %103 = arith.mulf %100, %100 : vector<1x128xf32>
    %104 = arith.subf %102, %103 : vector<1x128xf32>
    %c0_101 = arith.constant 0 : index
    %c0_102 = arith.constant 0 : index
    %105 = vector.load %arg9[%c0_101, %c0_102] : memref<1x128xf32, #tpu.memory_space<vmem>>, vector<1x128xf32>
    %cst_103 = arith.constant 9.99999974E-6 : f32
    %106 = vector.broadcast %cst_103 : f32 to vector<1x128xf32>
    %107 = arith.addf %104, %106 : vector<1x128xf32>
    %108 = math.rsqrt %107 : vector<1x128xf32>
    %109 = arith.mulf %105, %108 : vector<1x128xf32>
    %c0_104 = arith.constant 0 : index
    %c0_105 = arith.constant 0 : index
    %110 = vector.load %arg10[%c0_104, %c0_105] : memref<1x128xf32, #tpu.memory_space<vmem>>, vector<1x128xf32>
    %111 = arith.mulf %100, %109 : vector<1x128xf32>
    %112 = arith.subf %110, %111 : vector<1x128xf32>
    %113 = vector.broadcast %109 : vector<1x128xf32> to vector<512x128xf32>
    %114 = arith.mulf %93, %113 : vector<512x128xf32>
    %115 = vector.broadcast %112 : vector<1x128xf32> to vector<512x128xf32>
    %116 = arith.addf %114, %115 : vector<512x128xf32>
    %117 = arith.addf %116, %0 : vector<512x128xf32>
    %cst_106 = arith.constant 0.000000e+00 : f32
    %118 = vector.broadcast %cst_106 : f32 to vector<512x128xf32>
    %119 = arith.maximumf %117, %118 : vector<512x128xf32>
    %c0_107 = arith.constant 0 : index
    %c0_108 = arith.constant 0 : index
    %120 = vector.load %arg11[%c0_107, %c0_108] : memref<512x128xf32, #tpu.memory_space<vmem>>, vector<512x128xf32>
    tpu.vector_store %arg11[%c0_107, %c0_108], %119 {strides = array<i32>} : memref<512x128xf32, #tpu.memory_space<vmem>>, vector<512x128xf32>,
    return
  }
  func.func @transform_0(%arg0: i32) -> (i32, i32) {
    %c0_i32 = arith.constant 0 : i32
    %c0_i32_0 = arith.constant 0 : i32
    %c0_i32_1 = arith.constant 0 : i32
    return %c0_i32, %c0_i32_0 : i32, i32
  }
  func.func @transform_1(%arg0: i32) -> (i32, i32) {
    %c0_i32 = arith.constant 0 : i32
    %c0_i32_0 = arith.constant 0 : i32
    %c0_i32_1 = arith.constant 0 : i32
    return %c0_i32, %c0_i32_0 : i32, i32
  }
  func.func @transform_2(%arg0: i32) -> (i32, i32) {
    %c0_i32 = arith.constant 0 : i32
    %c0_i32_0 = arith.constant 0 : i32
    %c0_i32_1 = arith.constant 0 : i32
    return %c0_i32, %c0_i32_0 : i32, i32
  }
  func.func @transform_3(%arg0: i32) -> (i32, i32) {
    %c0_i32 = arith.constant 0 : i32
    %c0_i32_0 = arith.constant 0 : i32
    %c0_i32_1 = arith.constant 0 : i32
    return %c0_i32, %c0_i32_0 : i32, i32
  }
  func.func @transform_4(%arg0: i32) -> (i32, i32) {
    %c0_i32 = arith.constant 0 : i32
    %c0_i32_0 = arith.constant 0 : i32
    %c0_i32_1 = arith.constant 0 : i32
    return %c0_i32, %c0_i32_0 : i32, i32
  }
  func.func @transform_5(%arg0: i32) -> (i32, i32) {
    %c0_i32 = arith.constant 0 : i32
    %c0_i32_0 = arith.constant 0 : i32
    %c0_i32_1 = arith.constant 0 : i32
    return %c0_i32, %c0_i32_0 : i32, i32
  }
  func.func @transform_6(%arg0: i32) -> (i32, i32) {
    %c0_i32 = arith.constant 0 : i32
    %c0_i32_0 = arith.constant 0 : i32
    %c0_i32_1 = arith.constant 0 : i32
    return %c0_i32, %c0_i32_0 : i32, i32
  }
  func.func @transform_7(%arg0: i32) -> (i32, i32) {
    %c0_i32 = arith.constant 0 : i32
    %c0_i32_0 = arith.constant 0 : i32
    %c0_i32_1 = arith.constant 0 : i32
    return %c0_i32, %c0_i32_0 : i32, i32
  }
  func.func @transform_8(%arg0: i32) -> (i32, i32) {
    %c0_i32 = arith.constant 0 : i32
    %c0_i32_0 = arith.constant 0 : i32
    %c0_i32_1 = arith.constant 0 : i32
    return %c0_i32, %c0_i32_0 : i32, i32
  }
  func.func @transform_9(%arg0: i32) -> (i32, i32) {
    %c0_i32 = arith.constant 0 : i32
    %c0_i32_0 = arith.constant 0 : i32
    %c0_i32_1 = arith.constant 0 : i32
    return %c0_i32, %c0_i32_0 : i32, i32
  }
  func.func @transform_10(%arg0: i32) -> (i32, i32) {
    %c0_i32 = arith.constant 0 : i32
    %c0_i32_0 = arith.constant 0 : i32
    %c0_i32_1 = arith.constant 0 : i32
    return %c0_i32, %c0_i32_0 : i32, i32
  }
}

</mosaic_0001>

<llo_original>
// kernel: tpu_custom_call.1
$region0: #{tpu_custom_call.1}
  #allocation0 [shape = 'u32[]', space=smem, size = 0x4, offset = 0x4, fixed_abs, tag = 'smem constant byte address 0x4 - core index']
  #allocation1 [shape = 'u32[144,128]{1,0:T(1,128)}', space=vmem, size = 0x12000, scoped, tag = 'internal scratch']
  #allocation2 [shape = 'f32[2,18,18,128]{3,2,1,0:T(8,128)}', space=vmem, size = 0x6c000, scoped, tag = 'scratch operand']
  #allocation3 [shape = 'f32[512,1152]{1,0:T(8,128)}', space=vmem, size = 0x240000, scoped, tag = 'scratch operand']
  %s0 = inlined_call_operand.hbm [shape: f32[512,128], index: 0, kind: input, shape index: {}]
  %s1 = inlined_call_operand.hbm [shape: f32[128,128], index: 1, kind: input, shape index: {}]
  %s2 = inlined_call_operand.hbm [shape: f32[1152,128], index: 2, kind: input, shape index: {}]
  %s3 = inlined_call_operand.hbm [shape: f32[128,128], index: 3, kind: input, shape index: {}]
  %s4 = inlined_call_operand.vmem [shape: f32[1,128], index: 4, kind: input, shape index: {}]
  %s5 = inlined_call_operand.vmem [shape: f32[1,128], index: 5, kind: input, shape index: {}]
  %s6 = inlined_call_operand.vmem [shape: f32[1,128], index: 6, kind: input, shape index: {}]
  %s7 = inlined_call_operand.vmem [shape: f32[1,128], index: 7, kind: input, shape index: {}]
  %s8 = inlined_call_operand.vmem [shape: f32[1,128], index: 8, kind: input, shape index: {}]
  %s9 = inlined_call_operand.vmem [shape: f32[1,128], index: 9, kind: input, shape index: {}]
  %s10 = inlined_call_operand.hbm [shape: f32[512,128], index: 10, kind: output, shape index: {}]
  %s11 = sld [smem:[#allocation0]]
  $region66: #{tpu_custom_call.1} parent=0
    _
  %s13 = ssub.s32 1, %s11
  %s14 = scalar_select 0, %s13, %s11
  $region1: #{tpu_custom_call.1} parent=0
    #allocation4 [shape = 'u8[262144]{0}', space=vmem, size = 0x40000, scoped, tag = 'input window, operand 0, single buffered']
    #allocation5 [shape = 's32[1]{0}', space=sflag, size = 0x4, scoped, tag = 'scoped memory for tpu_custom_call.1']
    #allocation6 [shape = 's32[1]{0}', space=sflag, size = 0x4, scoped, tag = 'scoped memory for tpu_custom_call.1']
    #allocation7 [shape = 'u8[65536]{0}', space=vmem, size = 0x10000, scoped, tag = 'input window, operand 1, single buffered']
    #allocation8 [shape = 's32[1]{0}', space=sflag, size = 0x4, scoped, tag = 'scoped memory for tpu_custom_call.1']
    #allocation9 [shape = 'u8[589824]{0}', space=vmem, size = 0x90000, scoped, tag = 'input window, operand 2, single buffered']
    #allocation10 [shape = 'u8[65536]{0}', space=vmem, size = 0x10000, scoped, tag = 'input window, operand 3, single buffered']
    #allocation11 [shape = 's32[1]{0}', space=sflag, size = 0x4, scoped, tag = 'scoped memory for tpu_custom_call.1']
    #allocation12 [shape = 'u8[262144]{0}', space=vmem, size = 0x40000, scoped, tag = 'output window, operand 0, single buffered']
    %15 = vsyncpa [#allocation5], 0
    %16 = vsyncpa [#allocation8], 0
    %17 = vsyncpa [#allocation11], 0
    %18 = vsyncpa [#allocation6], 0
    // Predicated region
    $region2: #{tpu_custom_call.1} parent=1 // pred_check
      _
    $region3: #{tpu_custom_call.1} parent=1 // pred_check_branch
      %20 = sbr.rel (0) target = $region5
    $region4: #{tpu_custom_call.1} parent=1 // pred_region
      %s22 = ssub.s32 8192, 8192
      %23 = vsyncadd [#allocation5], %s22
      %s24 = sshll.u32 [#allocation4], 4
      %s25 = int_to_ptr.vmem [resolvable:$true] %s24
      %30 = dma.hbm_to_vmem [thread:$0]  %s0, 8192, %s25, [#allocation5], 128, 128, 8
    $region5: #{tpu_custom_call.1} parent=1 // pred_fallthru
      _
    // Predicated region
    $region6: #{tpu_custom_call.1} parent=1 // pred_check
      _
    $region7: #{tpu_custom_call.1} parent=1 // pred_check_branch
      %32 = sbr.rel (0) target = $region9
    $region8: #{tpu_custom_call.1} parent=1 // pred_region
      %s34 = ssub.s32 2048, 2048
      %35 = vsyncadd [#allocation8], %s34
      %s36 = sshll.u32 [#allocation7], 4
      %s37 = int_to_ptr.vmem [resolvable:$true] %s36
      %42 = dma.hbm_to_vmem [thread:$0]  %s1, 2048, %s37, [#allocation8], 128, 128, 8
    $region9: #{tpu_custom_call.1} parent=1 // pred_fallthru
      _
    // Predicated region
    $region10: #{tpu_custom_call.1} parent=1 // pred_check
      _
    $region11: #{tpu_custom_call.1} parent=1 // pred_check_branch
      %44 = sbr.rel (0) target = $region13
    $region12: #{tpu_custom_call.1} parent=1 // pred_region
      %s46 = ssub.s32 18432, 18432
      %47 = vsyncadd [#allocation8], %s46
      %s48 = sshll.u32 [#allocation9], 4
      %s49 = int_to_ptr.vmem [resolvable:$true] %s48
      %54 = dma.hbm_to_vmem [thread:$0]  %s2, 18432, %s49, [#allocation8], 128, 128, 8
    $region13: #{tpu_custom_call.1} parent=1 // pred_fallthru
      _
    // Predicated region
    $region14: #{tpu_custom_call.1} parent=1 // pred_check
      _
    $region15: #{tpu_custom_call.1} parent=1 // pred_check_branch
      %56 = sbr.rel (0) target = $region17
    $region16: #{tpu_custom_call.1} parent=1 // pred_region
      %s58 = ssub.s32 2048, 2048
      %59 = vsyncadd [#allocation11], %s58
      %s60 = sshll.u32 [#allocation10], 4
      %s61 = int_to_ptr.vmem [resolvable:$true] %s60
      %66 = dma.hbm_to_vmem [thread:$0]  %s3, 2048, %s61, [#allocation11], 128, 128, 8
    $region17: #{tpu_custom_call.1} parent=1 // pred_fallthru
      _
    // Predicated region
    $region18: #{tpu_custom_call.1} parent=1 // pred_check
      _
    $region19: #{tpu_custom_call.1} parent=1 // pred_check_branch
      %68 = sbr.rel (0) target = $region21
    $region20: #{tpu_custom_call.1} parent=1 // pred_region
      _
    $region21: #{tpu_custom_call.1} parent=1 // pred_fallthru
      _
    // Predicated region
    $region22: #{tpu_custom_call.1} parent=1 // pred_check
      _
    $region23: #{tpu_custom_call.1} parent=1 // pred_check_branch
      %70 = sbr.rel (0) target = $region25
    $region24: #{tpu_custom_call.1} parent=1 // pred_region
      _
    $region25: #{tpu_custom_call.1} parent=1 // pred_fallthru
      _
    // Predicated region
    $region26: #{tpu_custom_call.1} parent=1 // pred_check
      _
    $region27: #{tpu_custom_call.1} parent=1 // pred_check_branch
      %72 = sbr.rel (0) target = $region29
    $region28: #{tpu_custom_call.1} parent=1 // pred_region
      _
    $region29: #{tpu_custom_call.1} parent=1 // pred_fallthru
      _
    // Predicated region
    $region30: #{tpu_custom_call.1} parent=1 // pred_check
      _
    $region31: #{tpu_custom_call.1} parent=1 // pred_check_branch
      %74 = sbr.rel (0) target = $region33
    $region32: #{tpu_custom_call.1} parent=1 // pred_region
      _
    $region33: #{tpu_custom_call.1} parent=1 // pred_fallthru
      _
    // Predicated region
    $region34: #{tpu_custom_call.1} parent=1 // pred_check
      _
    $region35: #{tpu_custom_call.1} parent=1 // pred_check_branch
      %76 = sbr.rel (0) target = $region37
    $region36: #{tpu_custom_call.1} parent=1 // pred_region
      _
    $region37: #{tpu_custom_call.1} parent=1 // pred_fallthru
      _
    // Predicated region
    $region38: #{tpu_custom_call.1} parent=1 // pred_check
      _
    $region39: #{tpu_custom_call.1} parent=1 // pred_check_branch
      %78 = sbr.rel (0) target = $region41
    $region40: #{tpu_custom_call.1} parent=1 // pred_region
      _
    $region41: #{tpu_custom_call.1} parent=1 // pred_fallthru
      _
    // Predicated region
    $region42: #{tpu_custom_call.1} parent=1 // pred_check
      _
    $region43: #{tpu_custom_call.1} parent=1 // pred_check_branch
      %80 = sbr.rel (0) target = $region45
    $region44: #{tpu_custom_call.1} parent=1 // pred_region
      %81 = dma.done [#allocation5], 8192
    $region45: #{tpu_custom_call.1} parent=1 // pred_fallthru
      _
    // Predicated region
    $region46: #{tpu_custom_call.1} parent=1 // pred_check
      _
    $region47: #{tpu_custom_call.1} parent=1 // pred_check_branch
      %83 = sbr.rel (0) target = $region49
    $region48: #{tpu_custom_call.1} parent=1 // pred_region
      %84 = dma.done [#allocation8], 2048
    $region49: #{tpu_custom_call.1} parent=1 // pred_fallthru
      _
    // Predicated region
    $region50: #{tpu_custom_call.1} parent=1 // pred_check
      _
    $region51: #{tpu_custom_call.1} parent=1 // pred_check_branch
      %86 = sbr.rel (0) target = $region53
    $region52: #{tpu_custom_call.1} parent=1 // pred_region
      %87 = dma.done [#allocation8], 18432
    $region53: #{tpu_custom_call.1} parent=1 // pred_fallthru
      _
    // Predicated region
    $region54: #{tpu_custom_call.1} parent=1 // pred_check
      _
    $region55: #{tpu_custom_call.1} parent=1 // pred_check_branch
      %89 = sbr.rel (0) target = $region57
    $region56: #{tpu_custom_call.1} parent=1 // pred_region
      %90 = dma.done [#allocation11], 2048
    $region57: #{tpu_custom_call.1} parent=1 // pred_fallthru
      _
    %v91 = vld [vmem:[#allocation4] sm:$0xff]
    %v92 = vld [vmem:[#allocation4 + $0x8] sm:$0xff]
    %v93 = vld [vmem:[#allocation4 + $0x10] sm:$0xff]
    %v94 = vld [vmem:[#allocation4 + $0x18] sm:$0xff]
    %v95 = vld [vmem:[#allocation4 + $0x20] sm:$0xff]
    %v96 = vld [vmem:[#allocation4 + $0x28] sm:$0xff]
    %v97 = vld [vmem:[#allocation4 + $0x30] sm:$0xff]
    %v98 = vld [vmem:[#allocation4 + $0x38] sm:$0xff]
    %v99 = vld [vmem:[#allocation4 + $0x40] sm:$0xff]
    %v100 = vld [vmem:[#allocation4 + $0x48] sm:$0xff]
    %v101 = vld [vmem:[#allocation4 + $0x50] sm:$0xff]
    %v102 = vld [vmem:[#allocation4 + $0x58] sm:$0xff]
    %v103 = vld [vmem:[#allocation4 + $0x60] sm:$0xff]
    %v104 = vld [vmem:[#allocation4 + $0x68] sm:$0xff]
    %v105 = vld [vmem:[#allocation4 + $0x70] sm:$0xff]
    %v106 = vld [vmem:[#allocation4 + $0x78] sm:$0xff]
    %v107 = vld [vmem:[#allocation4 + $0x80] sm:$0xff]
    %v108 = vld [vmem:[#allocation4 + $0x88] sm:$0xff]
    %v109 = vld [vmem:[#allocation4 + $0x90] sm:$0xff]
    %v110 = vld [vmem:[#allocation4 + $0x98] sm:$0xff]
    %v111 = vld [vmem:[#allocation4 + $0xa0] sm:$0xff]
    %v112 = vld [vmem:[#allocation4 + $0xa8] sm:$0xff]
    %v113 = vld [vmem:[#allocation4 + $0xb0] sm:$0xff]
    %v114 = vld [vmem:[#allocation4 + $0xb8] sm:$0xff]
    %v115 = vld [vmem:[#allocation4 + $0xc0] sm:$0xff]
    %v116 = vld [vmem:[#allocation4 + $0xc8] sm:$0xff]
    %v117 = vld [vmem:[#allocation4 + $0xd0] sm:$0xff]
    %v118 = vld [vmem:[#allocation4 + $0xd8] sm:$0xff]
    %v119 = vld [vmem:[#allocation4 + $0xe0] sm:$0xff]
    %v120 = vld [vmem:[#allocation4 + $0xe8] sm:$0xff]
    %v121 = vld [vmem:[#allocation4 + $0xf0] sm:$0xff]
    %v122 = vld [vmem:[#allocation4 + $0xf8] sm:$0xff]
    %v123 = vld [vmem:[#allocation4 + $0x100] sm:$0xff]
    %v124 = vld [vmem:[#allocation4 + $0x108] sm:$0xff]
    %v125 = vld [vmem:[#allocation4 + $0x110] sm:$0xff]
    %v126 = vld [vmem:[#allocation4 + $0x118] sm:$0xff]
    %v127 = vld [vmem:[#allocation4 + $0x120] sm:$0xff]
    %v128 = vld [vmem:[#allocation4 + $0x128] sm:$0xff]
    %v129 = vld [vmem:[#allocation4 + $0x130] sm:$0xff]
    %v130 = vld [vmem:[#allocation4 + $0x138] sm:$0xff]
    %v131 = vld [vmem:[#allocation4 + $0x140] sm:$0xff]
    %v132 = vld [vmem:[#allocation4 + $0x148] sm:$0xff]
    %v133 = vld [vmem:[#allocation4 + $0x150] sm:$0xff]
    %v134 = vld [vmem:[#allocation4 + $0x158] sm:$0xff]
    %v135 = vld [vmem:[#allocation4 + $0x160] sm:$0xff]
    %v136 = vld [vmem:[#allocation4 + $0x168] sm:$0xff]
    %v137 = vld [vmem:[#allocation4 + $0x170] sm:$0xff]
    %v138 = vld [vmem:[#allocation4 + $0x178] sm:$0xff]
    %v139 = vld [vmem:[#allocation4 + $0x180] sm:$0xff]
    %v140 = vld [vmem:[#allocation4 + $0x188] sm:$0xff]
    %v141 = vld [vmem:[#allocation4 + $0x190] sm:$0xff]
    %v142 = vld [vmem:[#allocation4 + $0x198] sm:$0xff]
    %v143 = vld [vmem:[#allocation4 + $0x1a0] sm:$0xff]
    %v144 = vld [vmem:[#allocation4 + $0x1a8] sm:$0xff]
    %v145 = vld [vmem:[#allocation4 + $0x1b0] sm:$0xff]
    %v146 = vld [vmem:[#allocation4 + $0x1b8] sm:$0xff]
    %v147 = vld [vmem:[#allocation4 + $0x1c0] sm:$0xff]
    %v148 = vld [vmem:[#allocation4 + $0x1c8] sm:$0xff]
    %v149 = vld [vmem:[#allocation4 + $0x1d0] sm:$0xff]
    %v150 = vld [vmem:[#allocation4 + $0x1d8] sm:$0xff]
    %v151 = vld [vmem:[#allocation4 + $0x1e0] sm:$0xff]
    %v152 = vld [vmem:[#allocation4 + $0x1e8] sm:$0xff]
    %v153 = vld [vmem:[#allocation4 + $0x1f0] sm:$0xff]
    %v154 = vld [vmem:[#allocation4 + $0x1f8] sm:$0xff]
    %v155 = vld [vmem:[#allocation7] sm:$0xff]
    %v156 = vld [vmem:[#allocation7 + $0x8] sm:$0xff]
    %v157 = vld [vmem:[#allocation7 + $0x10] sm:$0xff]
    %v158 = vld [vmem:[#allocation7 + $0x18] sm:$0xff]
    %v159 = vld [vmem:[#allocation7 + $0x20] sm:$0xff]
    %v160 = vld [vmem:[#allocation7 + $0x28] sm:$0xff]
    %v161 = vld [vmem:[#allocation7 + $0x30] sm:$0xff]
    %v162 = vld [vmem:[#allocation7 + $0x38] sm:$0xff]
    %v163 = vld [vmem:[#allocation7 + $0x40] sm:$0xff]
    %v164 = vld [vmem:[#allocation7 + $0x48] sm:$0xff]
    %v165 = vld [vmem:[#allocation7 + $0x50] sm:$0xff]
    %v166 = vld [vmem:[#allocation7 + $0x58] sm:$0xff]
    %v167 = vld [vmem:[#allocation7 + $0x60] sm:$0xff]
    %v168 = vld [vmem:[#allocation7 + $0x68] sm:$0xff]
    %v169 = vld [vmem:[#allocation7 + $0x70] sm:$0xff]
    %v170 = vld [vmem:[#allocation7 + $0x78] sm:$0xff]
    %171 = vmatprep.subr.mxu0 0.0
    %172 = vmatpush1.msra.mxu0 %v155
    %173 = vmatprep.subr.mxu0 0.0
    %174 = vmatpush1.msra.mxu0 %v156
    %175 = vmatprep.subr.mxu0 0.0
    %176 = vmatpush1.msra.mxu0 %v157
    %177 = vmatprep.subr.mxu0 0.0
    %178 = vmatpush1.msra.mxu0 %v158
    %179 = vmatprep.subr.mxu0 0.0
    %180 = vmatpush1.msra.mxu0 %v159
    %181 = vmatprep.subr.mxu0 0.0
    %182 = vmatpush1.msra.mxu0 %v160
    %183 = vmatprep.subr.mxu0 0.0
    %184 = vmatpush1.msra.mxu0 %v161
    %185 = vmatprep.subr.mxu0 0.0
    %186 = vmatpush1.msra.mxu0 %v162
    %187 = vmatprep.subr.mxu0 0.0
    %188 = vmatpush1.msra.mxu0 %v163
    %189 = vmatprep.subr.mxu0 0.0
    %190 = vmatpush1.msra.mxu0 %v164
    %191 = vmatprep.subr.mxu0 0.0
    %192 = vmatpush1.msra.mxu0 %v165
    %193 = vmatprep.subr.mxu0 0.0
    %194 = vmatpush1.msra.mxu0 %v166
    %195 = vmatprep.subr.mxu0 0.0
    %196 = vmatpush1.msra.mxu0 %v167
    %197 = vmatprep.subr.mxu0 0.0
    %198 = vmatpush1.msra.mxu0 %v168
    %199 = vmatprep.subr.mxu0 0.0
    %200 = vmatpush1.msra.mxu0 %v169
    %201 = vmatprep.subr.mxu0 0.0
    %202 = vmatpush1.msra.mxu0 %v170
    %203 = vmatprep.subr.mxu0 0.0
    %204 = vmatpush1.msra.mxu0 0.0
    %205 = vmatprep.subr.mxu0 0.0
    %206 = vmatpush1.msra.mxu0 0.0
    %207 = vmatprep.subr.mxu0 0.0
    %208 = vmatpush1.msra.mxu0 0.0
    %209 = vmatprep.subr.mxu0 0.0
    %210 = vmatpush1.msra.mxu0 0.0
    %211 = vmatprep.subr.mxu0 0.0
    %212 = vmatpush1.msra.mxu0 0.0
    %213 = vmatprep.subr.mxu0 0.0
    %214 = vmatpush1.msra.mxu0 0.0
    %215 = vmatprep.subr.mxu0 0.0
    %216 = vmatpush1.msra.mxu0 0.0
    %217 = vmatprep.subr.mxu0 0.0
    %218 = vmatpush1.msra.mxu0 0.0
    %219 = vmatprep.subr.mxu0 0.0
    %220 = vmatpush1.msra.mxu0 0.0
    %221 = vmatprep.subr.mxu0 0.0
    %222 = vmatpush1.msra.mxu0 0.0
    %223 = vmatprep.subr.mxu0 0.0
    %224 = vmatpush1.msra.mxu0 0.0
    %225 = vmatprep.subr.mxu0 0.0
    %226 = vmatpush1.msra.mxu0 0.0
    %227 = vmatprep.subr.mxu0 0.0
    %228 = vmatpush1.msra.mxu0 0.0
    %229 = vmatprep.subr.mxu0 0.0
    %230 = vmatpush1.msra.mxu0 0.0
    %231 = vmatprep.subr.mxu0 0.0
    %232 = vmatpush1.msra.mxu0 0.0
    %233 = vmatprep.subr.mxu0 0.0
    %234 = vmatpush1.msra.mxu0 0.0
    %235 = vmatprep.mubr.f32.mxu0 0.0
    %236 = vmatmul.mubr.f32.gmra.mrb[0].mxu0 %v91
    %v237 = vpop.f32.mrb[0].mxu0
    %v238 = vadd.f32 0.0, %v237
    %v239 = vpop.f32.mrb[0].mxu0
    %240 = vmatprep.mubr.f32.mxu0 0.0
    %241 = vmatmul.mubr.f32.gmra.mrb[0].mxu0 %v92
    %v242 = vpop.f32.mrb[0].mxu0
    %v243 = vadd.f32 0.0, %v242
    %v244 = vpop.f32.mrb[0].mxu0
    %245 = vmatprep.mubr.f32.mxu0 0.0
    %246 = vmatmul.mubr.f32.gmra.mrb[0].mxu0 %v93
    %v247 = vpop.f32.mrb[0].mxu0
    %v248 = vadd.f32 0.0, %v247
    %v249 = vpop.f32.mrb[0].mxu0
    %250 = vmatprep.mubr.f32.mxu0 0.0
    %251 = vmatmul.mubr.f32.gmra.mrb[0].mxu0 %v94
    %v252 = vpop.f32.mrb[0].mxu0
    %v253 = vadd.f32 0.0, %v252
    %v254 = vpop.f32.mrb[0].mxu0
    %255 = vmatprep.mubr.f32.mxu0 0.0
    %256 = vmatmul.mubr.f32.gmra.mrb[0].mxu0 %v95
    %v257 = vpop.f32.mrb[0].mxu0
    %v258 = vadd.f32 0.0, %v257
    %v259 = vpop.f32.mrb[0].mxu0
    %260 = vmatprep.mubr.f32.mxu0 0.0
    %261 = vmatmul.mubr.f32.gmra.mrb[0].mxu0 %v96
    %v262 = vpop.f32.mrb[0].mxu0
    %v263 = vadd.f32 0.0, %v262
    %v264 = vpop.f32.mrb[0].mxu0
    %265 = vmatprep.mubr.f32.mxu0 0.0
    %266 = vmatmul.mubr.f32.gmra.mrb[0].mxu0 %v97
    %v267 = vpop.f32.mrb[0].mxu0
    %v268 = vadd.f32 0.0, %v267
    %v269 = vpop.f32.mrb[0].mxu0
    %270 = vmatprep.mubr.f32.mxu0 0.0
    %271 = vmatmul.mubr.f32.gmra.mrb[0].mxu0 %v98
    %v272 = vpop.f32.mrb[0].mxu0
    %v273 = vadd.f32 0.0, %v272
    %v274 = vpop.f32.mrb[0].mxu0
    %275 = vmatprep.mubr.f32.mxu0 0.0
    %276 = vmatmul.mubr.f32.gmra.mrb[0].mxu0 %v99
    %v277 = vpop.f32.mrb[0].mxu0
    %v278 = vadd.f32 0.0, %v277
    %v279 = vpop.f32.mrb[0].mxu0
    %280 = vmatprep.mubr.f32.mxu0 0.0
    %281 = vmatmul.mubr.f32.gmra.mrb[0].mxu0 %v100
    %v282 = vpop.f32.mrb[0].mxu0
    %v283 = vadd.f32 0.0, %v282
    %v284 = vpop.f32.mrb[0].mxu0
    %285 = vmatprep.mubr.f32.mxu0 0.0
    %286 = vmatmul.mubr.f32.gmra.mrb[0].mxu0 %v101
    %v287 = vpop.f32.mrb[0].mxu0
    %v288 = vadd.f32 0.0, %v287
    %v289 = vpop.f32.mrb[0].mxu0
    %290 = vmatprep.mubr.f32.mxu0 0.0
    %291 = vmatmul.mubr.f32.gmra.mrb[0].mxu0 %v102
    %v292 = vpop.f32.mrb[0].mxu0
    %v293 = vadd.f32 0.0, %v292
    %v294 = vpop.f32.mrb[0].mxu0
    %295 = vmatprep.mubr.f32.mxu0 0.0
    %296 = vmatmul.mubr.f32.gmra.mrb[0].mxu0 %v103
    %v297 = vpop.f32.mrb[0].mxu0
    %v298 = vadd.f32 0.0, %v297
    %v299 = vpop.f32.mrb[0].mxu0
    %300 = vmatprep.mubr.f32.mxu0 0.0
    %301 = vmatmul.mubr.f32.gmra.mrb[0].mxu0 %v104
    %v302 = vpop.f32.mrb[0].mxu0
    %v303 = vadd.f32 0.0, %v302
    %v304 = vpop.f32.mrb[0].mxu0
    %305 = vmatprep.mubr.f32.mxu0 0.0
    %306 = vmatmul.mubr.f32.gmra.mrb[0].mxu0 %v105
    %v307 = vpop.f32.mrb[0].mxu0
    %v308 = vadd.f32 0.0, %v307
    %v309 = vpop.f32.mrb[0].mxu0
    %310 = vmatprep.mubr.f32.mxu0 0.0
    %311 = vmatmul.mubr.f32.gmra.mrb[0].mxu0 %v106
    %v312 = vpop.f32.mrb[0].mxu0
    %v313 = vadd.f32 0.0, %v312
    %v314 = vpop.f32.mrb[0].mxu0
    %315 = vmatprep.mubr.f32.mxu0 0.0
    %316 = vmatmul.mubr.f32.gmra.mrb[0].mxu0 %v107
    %v317 = vpop.f32.mrb[0].mxu0
    %v318 = vadd.f32 0.0, %v317
    %v319 = vpop.f32.mrb[0].mxu0
    %320 = vmatprep.mubr.f32.mxu0 0.0
    %321 = vmatmul.mubr.f32.gmra.mrb[0].mxu0 %v108
    %v322 = vpop.f32.mrb[0].mxu0
    %v323 = vadd.f32 0.0, %v322
    %v324 = vpop.f32.mrb[0].mxu0
    %325 = vmatprep.mubr.f32.mxu0 0.0
    %326 = vmatmul.mubr.f32.gmra.mrb[0].mxu0 %v109
    %v327 = vpop.f32.mrb[0].mxu0
    %v328 = vadd.f32 0.0, %v327
    %v329 = vpop.f32.mrb[0].mxu0
    %330 = vmatprep.mubr.f32.mxu0 0.0
    %331 = vmatmul.mubr.f32.gmra.mrb[0].mxu0 %v110
    %v332 = vpop.f32.mrb[0].mxu0
    %v333 = vadd.f32 0.0, %v332
    %v334 = vpop.f32.mrb[0].mxu0
    %335 = vmatprep.mubr.f32.mxu0 0.0
    %336 = vmatmul.mubr.f32.gmra.mrb[0].mxu0 %v111
    %v337 = vpop.f32.mrb[0].mxu0
    %v338 = vadd.f32 0.0, %v337
    %v339 = vpop.f32.mrb[0].mxu0
    %340 = vmatprep.mubr.f32.mxu0 0.0
    %341 = vmatmul.mubr.f32.gmra.mrb[0].mxu0 %v112
    %v342 = vpop.f32.mrb[0].mxu0
    %v343 = vadd.f32 0.0, %v342
    %v344 = vpop.f32.mrb[0].mxu0
    %345 = vmatprep.mubr.f32.mxu0 0.0
    %346 = vmatmul.mubr.f32.gmra.mrb[0].mxu0 %v113
    %v347 = vpop.f32.mrb[0].mxu0
    %v348 = vadd.f32 0.0, %v347
    %v349 = vpop.f32.mrb[0].mxu0
    %350 = vmatprep.mubr.f32.mxu0 0.0
    %351 = vmatmul.mubr.f32.gmra.mrb[0].mxu0 %v114
    %v352 = vpop.f32.mrb[0].mxu0
    %v353 = vadd.f32 0.0, %v352
    %v354 = vpop.f32.mrb[0].mxu0
    %355 = vmatprep.mubr.f32.mxu0 0.0
    %356 = vmatmul.mubr.f32.gmra.mrb[0].mxu0 %v115
    %v357 = vpop.f32.mrb[0].mxu0
    %v358 = vadd.f32 0.0, %v357
    %v359 = vpop.f32.mrb[0].mxu0
    %360 = vmatprep.mubr.f32.mxu0 0.0
    %361 = vmatmul.mubr.f32.gmra.mrb[0].mxu0 %v116
    %v362 = vpop.f32.mrb[0].mxu0
    %v363 = vadd.f32 0.0, %v362
    %v364 = vpop.f32.mrb[0].mxu0
    %365 = vmatprep.mubr.f32.mxu0 0.0
    %366 = vmatmul.mubr.f32.gmra.mrb[0].mxu0 %v117
    %v367 = vpop.f32.mrb[0].mxu0
    %v368 = vadd.f32 0.0, %v367
    %v369 = vpop.f32.mrb[0].mxu0
    %370 = vmatprep.mubr.f32.mxu0 0.0
    %371 = vmatmul.mubr.f32.gmra.mrb[0].mxu0 %v118
    %v372 = vpop.f32.mrb[0].mxu0
    %v373 = vadd.f32 0.0, %v372
    %v374 = vpop.f32.mrb[0].mxu0
    %375 = vmatprep.mubr.f32.mxu0 0.0
    %376 = vmatmul.mubr.f32.gmra.mrb[0].mxu0 %v119
    %v377 = vpop.f32.mrb[0].mxu0
    %v378 = vadd.f32 0.0, %v377
    %v379 = vpop.f32.mrb[0].mxu0
    %380 = vmatprep.mubr.f32.mxu0 0.0
    %381 = vmatmul.mubr.f32.gmra.mrb[0].mxu0 %v120
    %v382 = vpop.f32.mrb[0].mxu0
    %v383 = vadd.f32 0.0, %v382
    %v384 = vpop.f32.mrb[0].mxu0
    %385 = vmatprep.mubr.f32.mxu0 0.0
    %386 = vmatmul.mubr.f32.gmra.mrb[0].mxu0 %v121
    %v387 = vpop.f32.mrb[0].mxu0
    %v388 = vadd.f32 0.0, %v387
    %v389 = vpop.f32.mrb[0].mxu0
    %390 = vmatprep.mubr.f32.mxu0 0.0
    %391 = vmatmul.mubr.f32.gmra.mrb[0].mxu0 %v122
    %v392 = vpop.f32.mrb[0].mxu0
    %v393 = vadd.f32 0.0, %v392
    %v394 = vpop.f32.mrb[0].mxu0
    %395 = vmatprep.mubr.f32.mxu0 0.0
    %396 = vmatmul.mubr.f32.gmra.mrb[0].mxu0 %v123
    %v397 = vpop.f32.mrb[0].mxu0
    %v398 = vadd.f32 0.0, %v397
    %v399 = vpop.f32.mrb[0].mxu0
    %400 = vmatprep.mubr.f32.mxu0 0.0
    %401 = vmatmul.mubr.f32.gmra.mrb[0].mxu0 %v124
    %v402 = vpop.f32.mrb[0].mxu0
    %v403 = vadd.f32 0.0, %v402
    %v404 = vpop.f32.mrb[0].mxu0
    %405 = vmatprep.mubr.f32.mxu0 0.0
    %406 = vmatmul.mubr.f32.gmra.mrb[0].mxu0 %v125
    %v407 = vpop.f32.mrb[0].mxu0
    %v408 = vadd.f32 0.0, %v407
    %v409 = vpop.f32.mrb[0].mxu0
    %410 = vmatprep.mubr.f32.mxu0 0.0
    %411 = vmatmul.mubr.f32.gmra.mrb[0].mxu0 %v126
    %v412 = vpop.f32.mrb[0].mxu0
    %v413 = vadd.f32 0.0, %v412
    %v414 = vpop.f32.mrb[0].mxu0
    %415 = vmatprep.mubr.f32.mxu0 0.0
    %416 = vmatmul.mubr.f32.gmra.mrb[0].mxu0 %v127
    %v417 = vpop.f32.mrb[0].mxu0
    %v418 = vadd.f32 0.0, %v417
    %v419 = vpop.f32.mrb[0].mxu0
    %420 = vmatprep.mubr.f32.mxu0 0.0
    %421 = vmatmul.mubr.f32.gmra.mrb[0].mxu0 %v128
    %v422 = vpop.f32.mrb[0].mxu0
    %v423 = vadd.f32 0.0, %v422
    %v424 = vpop.f32.mrb[0].mxu0
    %425 = vmatprep.mubr.f32.mxu0 0.0
    %426 = vmatmul.mubr.f32.gmra.mrb[0].mxu0 %v129
    %v427 = vpop.f32.mrb[0].mxu0
    %v428 = vadd.f32 0.0, %v427
    %v429 = vpop.f32.mrb[0].mxu0
    %430 = vmatprep.mubr.f32.mxu0 0.0
    %431 = vmatmul.mubr.f32.gmra.mrb[0].mxu0 %v130
    %v432 = vpop.f32.mrb[0].mxu0
    %v433 = vadd.f32 0.0, %v432
    %v434 = vpop.f32.mrb[0].mxu0
    %435 = vmatprep.mubr.f32.mxu0 0.0
    %436 = vmatmul.mubr.f32.gmra.mrb[0].mxu0 %v131
    %v437 = vpop.f32.mrb[0].mxu0
    %v438 = vadd.f32 0.0, %v437
    %v439 = vpop.f32.mrb[0].mxu0
    %440 = vmatprep.mubr.f32.mxu0 0.0
    %441 = vmatmul.mubr.f32.gmra.mrb[0].mxu0 %v132
    %v442 = vpop.f32.mrb[0].mxu0
    %v443 = vadd.f32 0.0, %v442
    %v444 = vpop.f32.mrb[0].mxu0
    %445 = vmatprep.mubr.f32.mxu0 0.0
    %446 = vmatmul.mubr.f32.gmra.mrb[0].mxu0 %v133
    %v447 = vpop.f32.mrb[0].mxu0
    %v448 = vadd.f32 0.0, %v447
    %v449 = vpop.f32.mrb[0].mxu0
    %450 = vmatprep.mubr.f32.mxu0 0.0
    %451 = vmatmul.mubr.f32.gmra.mrb[0].mxu0 %v134
    %v452 = vpop.f32.mrb[0].mxu0
    %v453 = vadd.f32 0.0, %v452
    %v454 = vpop.f32.mrb[0].mxu0
    %455 = vmatprep.mubr.f32.mxu0 0.0
    %456 = vmatmul.mubr.f32.gmra.mrb[0].mxu0 %v135
    %v457 = vpop.f32.mrb[0].mxu0
    %v458 = vadd.f32 0.0, %v457
    %v459 = vpop.f32.mrb[0].mxu0
    %460 = vmatprep.mubr.f32.mxu0 0.0
    %461 = vmatmul.mubr.f32.gmra.mrb[0].mxu0 %v136
    %v462 = vpop.f32.mrb[0].mxu0
    %v463 = vadd.f32 0.0, %v462
    %v464 = vpop.f32.mrb[0].mxu0
    %465 = vmatprep.mubr.f32.mxu0 0.0
    %466 = vmatmul.mubr.f32.gmra.mrb[0].mxu0 %v137
    %v467 = vpop.f32.mrb[0].mxu0
    %v468 = vadd.f32 0.0, %v467
    %v469 = vpop.f32.mrb[0].mxu0
    %470 = vmatprep.mubr.f32.mxu0 0.0
    %471 = vmatmul.mubr.f32.gmra.mrb[0].mxu0 %v138
    %v472 = vpop.f32.mrb[0].mxu0
    %v473 = vadd.f32 0.0, %v472
    %v474 = vpop.f32.mrb[0].mxu0
    %475 = vmatprep.mubr.f32.mxu0 0.0
    %476 = vmatmul.mubr.f32.gmra.mrb[0].mxu0 %v139
    %v477 = vpop.f32.mrb[0].mxu0
    %v478 = vadd.f32 0.0, %v477
    %v479 = vpop.f32.mrb[0].mxu0
    %480 = vmatprep.mubr.f32.mxu0 0.0
    %481 = vmatmul.mubr.f32.gmra.mrb[0].mxu0 %v140
    %v482 = vpop.f32.mrb[0].mxu0
    %v483 = vadd.f32 0.0, %v482
    %v484 = vpop.f32.mrb[0].mxu0
    %485 = vmatprep.mubr.f32.mxu0 0.0
    %486 = vmatmul.mubr.f32.gmra.mrb[0].mxu0 %v141
    %v487 = vpop.f32.mrb[0].mxu0
    %v488 = vadd.f32 0.0, %v487
    %v489 = vpop.f32.mrb[0].mxu0
    %490 = vmatprep.mubr.f32.mxu0 0.0
    %491 = vmatmul.mubr.f32.gmra.mrb[0].mxu0 %v142
    %v492 = vpop.f32.mrb[0].mxu0
    %v493 = vadd.f32 0.0, %v492
    %v494 = vpop.f32.mrb[0].mxu0
    %495 = vmatprep.mubr.f32.mxu0 0.0
    %496 = vmatmul.mubr.f32.gmra.mrb[0].mxu0 %v143
    %v497 = vpop.f32.mrb[0].mxu0
    %v498 = vadd.f32 0.0, %v497
    %v499 = vpop.f32.mrb[0].mxu0
    %500 = vmatprep.mubr.f32.mxu0 0.0
    %501 = vmatmul.mubr.f32.gmra.mrb[0].mxu0 %v144
    %v502 = vpop.f32.mrb[0].mxu0
    %v503 = vadd.f32 0.0, %v502
    %v504 = vpop.f32.mrb[0].mxu0
    %505 = vmatprep.mubr.f32.mxu0 0.0
    %506 = vmatmul.mubr.f32.gmra.mrb[0].mxu0 %v145
    %v507 = vpop.f32.mrb[0].mxu0
    %v508 = vadd.f32 0.0, %v507
    %v509 = vpop.f32.mrb[0].mxu0
    %510 = vmatprep.mubr.f32.mxu0 0.0
    %511 = vmatmul.mubr.f32.gmra.mrb[0].mxu0 %v146
    %v512 = vpop.f32.mrb[0].mxu0
    %v513 = vadd.f32 0.0, %v512
    %v514 = vpop.f32.mrb[0].mxu0
    %515 = vmatprep.mubr.f32.mxu0 0.0
    %516 = vmatmul.mubr.f32.gmra.mrb[0].mxu0 %v147
    %v517 = vpop.f32.mrb[0].mxu0
    %v518 = vadd.f32 0.0, %v517
    %v519 = vpop.f32.mrb[0].mxu0
    %520 = vmatprep.mubr.f32.mxu0 0.0
    %521 = vmatmul.mubr.f32.gmra.mrb[0].mxu0 %v148
    %v522 = vpop.f32.mrb[0].mxu0
    %v523 = vadd.f32 0.0, %v522
    %v524 = vpop.f32.mrb[0].mxu0
    %525 = vmatprep.mubr.f32.mxu0 0.0
    %526 = vmatmul.mubr.f32.gmra.mrb[0].mxu0 %v149
    %v527 = vpop.f32.mrb[0].mxu0
    %v528 = vadd.f32 0.0, %v527
    %v529 = vpop.f32.mrb[0].mxu0
    %530 = vmatprep.mubr.f32.mxu0 0.0
    %531 = vmatmul.mubr.f32.gmra.mrb[0].mxu0 %v150
    %v532 = vpop.f32.mrb[0].mxu0
    %v533 = vadd.f32 0.0, %v532
    %v534 = vpop.f32.mrb[0].mxu0
    %535 = vmatprep.mubr.f32.mxu0 0.0
    %536 = vmatmul.mubr.f32.gmra.mrb[0].mxu0 %v151
    %v537 = vpop.f32.mrb[0].mxu0
    %v538 = vadd.f32 0.0, %v537
    %v539 = vpop.f32.mrb[0].mxu0
    %540 = vmatprep.mubr.f32.mxu0 0.0
    %541 = vmatmul.mubr.f32.gmra.mrb[0].mxu0 %v152
    %v542 = vpop.f32.mrb[0].mxu0
    %v543 = vadd.f32 0.0, %v542
    %v544 = vpop.f32.mrb[0].mxu0
    %545 = vmatprep.mubr.f32.mxu0 0.0
    %546 = vmatmul.mubr.f32.gmra.mrb[0].mxu0 %v153
    %v547 = vpop.f32.mrb[0].mxu0
    %v548 = vadd.f32 0.0, %v547
    %v549 = vpop.f32.mrb[0].mxu0
    %550 = vmatprep.mubr.f32.mxu0 0.0
    %551 = vmatmul.mubr.f32.gmra.mrb[0].mxu0 %v154
    %v552 = vpop.f32.mrb[0].mxu0
    %v553 = vadd.f32 0.0, %v552
    %v554 = vpop.f32.mrb[0].mxu0
    %555 = vdwg.mxu0
    %556 = vmatprep.subr.mxu0 0.0
    %557 = vmatpush1.msra.mxu0 %v238
    %558 = vmatprep.subr.mxu0 0.0
    %559 = vmatpush1.msra.mxu0 %v243
    %560 = vmatprep.subr.mxu0 0.0
    %561 = vmatpush1.msra.mxu0 %v248
    %562 = vmatprep.subr.mxu0 0.0
    %563 = vmatpush1.msra.mxu0 %v253
    %564 = vmatprep.subr.mxu0 0.0
    %565 = vmatpush1.msra.mxu0 %v258
    %566 = vmatprep.subr.mxu0 0.0
    %567 = vmatpush1.msra.mxu0 %v263
    %568 = vmatprep.subr.mxu0 0.0
    %569 = vmatpush1.msra.mxu0 %v268
    %570 = vmatprep.subr.mxu0 0.0
    %571 = vmatpush1.msra.mxu0 %v273
    %572 = vmatprep.subr.mxu0 0.0
    %573 = vmatpush1.msra.mxu0 %v278
    %574 = vmatprep.subr.mxu0 0.0
    %575 = vmatpush1.msra.mxu0 %v283
    %576 = vmatprep.subr.mxu0 0.0
    %577 = vmatpush1.msra.mxu0 %v288
    %578 = vmatprep.subr.mxu0 0.0
    %579 = vmatpush1.msra.mxu0 %v293
    %580 = vmatprep.subr.mxu0 0.0
    %581 = vmatpush1.msra.mxu0 %v298
    %582 = vmatprep.subr.mxu0 0.0
    %583 = vmatpush1.msra.mxu0 %v303
    %584 = vmatprep.subr.mxu0 0.0
    %585 = vmatpush1.msra.mxu0 %v308
    %586 = vmatprep.subr.mxu0 0.0
    %587 = vmatpush1.msra.mxu0 %v313
    %588 = vmatprep.subr.mxu0 0.0
    %589 = vmatpush1.msra.mxu0 %v318
    %590 = vmatprep.subr.mxu0 0.0
    %591 = vmatpush1.msra.mxu0 %v323
    %592 = vmatprep.subr.mxu0 0.0
    %593 = vmatpush1.msra.mxu0 %v328
    %594 = vmatprep.subr.mxu0 0.0
    %595 = vmatpush1.msra.mxu0 %v333
    %596 = vmatprep.subr.mxu0 0.0
    %597 = vmatpush1.msra.mxu0 %v338
    %598 = vmatprep.subr.mxu0 0.0
    %599 = vmatpush1.msra.mxu0 %v343
    %600 = vmatprep.subr.mxu0 0.0
    %601 = vmatpush1.msra.mxu0 %v348
    %602 = vmatprep.subr.mxu0 0.0
    %603 = vmatpush1.msra.mxu0 %v353
    %604 = vmatprep.subr.mxu0 0.0
    %605 = vmatpush1.msra.mxu0 %v358
    %606 = vmatprep.subr.mxu0 0.0
    %607 = vmatpush1.msra.mxu0 %v363
    %608 = vmatprep.subr.mxu0 0.0
    %609 = vmatpush1.msra.mxu0 %v368
    %610 = vmatprep.subr.mxu0 0.0
    %611 = vmatpush1.msra.mxu0 %v373
    %612 = vmatprep.subr.mxu0 0.0
    %613 = vmatpush1.msra.mxu0 %v378
    %614 = vmatprep.subr.mxu0 0.0
    %615 = vmatpush1.msra.mxu0 %v383
    %616 = vmatprep.subr.mxu0 0.0
    %617 = vmatpush1.msra.mxu0 %v388
    %618 = vmatprep.subr.mxu0 0.0
    %619 = vmatpush1.msra.mxu0 %v393
    %620 = vmatprep.mubr.f32.mxu0 1.0
    %621 = vmatmul.mubr.f32.gmra.mrb[0].mxu0 1.0
    %v622 = vpop.f32.mrb[0].mxu0
    %v623 = vadd.f32 0.0, %v622
    %v624 = vpop.f32.mrb[0].mxu0
    %625 = vdwg.mxu0
    %626 = vmatprep.subr.mxu0 0.0
    %627 = vmatpush1.msra.mxu0 %v398
    %628 = vmatprep.subr.mxu0 0.0
    %629 = vmatpush1.msra.mxu0 %v403
    %630 = vmatprep.subr.mxu0 0.0
    %631 = vmatpush1.msra.mxu0 %v408
    %632 = vmatprep.subr.mxu0 0.0
    %633 = vmatpush1.msra.mxu0 %v413
    %634 = vmatprep.subr.mxu0 0.0
    %635 = vmatpush1.msra.mxu0 %v418
    %636 = vmatprep.subr.mxu0 0.0
    %637 = vmatpush1.msra.mxu0 %v423
    %638 = vmatprep.subr.mxu0 0.0
    %639 = vmatpush1.msra.mxu0 %v428
    %640 = vmatprep.subr.mxu0 0.0
    %641 = vmatpush1.msra.mxu0 %v433
    %642 = vmatprep.subr.mxu0 0.0
    %643 = vmatpush1.msra.mxu0 %v438
    %644 = vmatprep.subr.mxu0 0.0
    %645 = vmatpush1.msra.mxu0 %v443
    %646 = vmatprep.subr.mxu0 0.0
    %647 = vmatpush1.msra.mxu0 %v448
    %648 = vmatprep.subr.mxu0 0.0
    %649 = vmatpush1.msra.mxu0 %v453
    %650 = vmatprep.subr.mxu0 0.0
    %651 = vmatpush1.msra.mxu0 %v458
    %652 = vmatprep.subr.mxu0 0.0
    %653 = vmatpush1.msra.mxu0 %v463
    %654 = vmatprep.subr.mxu0 0.0
    %655 = vmatpush1.msra.mxu0 %v468
    %656 = vmatprep.subr.mxu0 0.0
    %657 = vmatpush1.msra.mxu0 %v473
    %658 = vmatprep.subr.mxu0 0.0
    %659 = vmatpush1.msra.mxu0 %v478
    %660 = vmatprep.subr.mxu0 0.0
    %661 = vmatpush1.msra.mxu0 %v483
    %662 = vmatprep.subr.mxu0 0.0
    %663 = vmatpush1.msra.mxu0 %v488
    %664 = vmatprep.subr.mxu0 0.0
    %665 = vmatpush1.msra.mxu0 %v493
    %666 = vmatprep.subr.mxu0 0.0
    %667 = vmatpush1.msra.mxu0 %v498
    %668 = vmatprep.subr.mxu0 0.0
    %669 = vmatpush1.msra.mxu0 %v503
    %670 = vmatprep.subr.mxu0 0.0
    %671 = vmatpush1.msra.mxu0 %v508
    %672 = vmatprep.subr.mxu0 0.0
    %673 = vmatpush1.msra.mxu0 %v513
    %674 = vmatprep.subr.mxu0 0.0
    %675 = vmatpush1.msra.mxu0 %v518
    %676 = vmatprep.subr.mxu0 0.0
    %677 = vmatpush1.msra.mxu0 %v523
    %678 = vmatprep.subr.mxu0 0.0
    %679 = vmatpush1.msra.mxu0 %v528
    %680 = vmatprep.subr.mxu0 0.0
    %681 = vmatpush1.msra.mxu0 %v533
    %682 = vmatprep.subr.mxu0 0.0
    %683 = vmatpush1.msra.mxu0 %v538
    %684 = vmatprep.subr.mxu0 0.0
    %685 = vmatpush1.msra.mxu0 %v543
    %686 = vmatprep.subr.mxu0 0.0
    %687 = vmatpush1.msra.mxu0 %v548
    %688 = vmatprep.subr.mxu0 0.0
    %689 = vmatpush1.msra.mxu0 %v553
    %690 = vmatprep.mubr.f32.mxu0 1.0
    %691 = vmatmul.mubr.f32.gmra.mrb[0].mxu0 1.0
    %v692 = vpop.f32.mrb[0].mxu0
    %v693 = vadd.f32 %v623, %v692
    %v694 = vpop.f32.mrb[0].mxu0
    %695 = vdwg.mxu0
    %v696 = vmul.f32 %v238, %v238
    %v697 = vmul.f32 %v243, %v243
    %v698 = vmul.f32 %v248, %v248
    %v699 = vmul.f32 %v253, %v253
    %v700 = vmul.f32 %v258, %v258
    %v701 = vmul.f32 %v263, %v263
    %v702 = vmul.f32 %v268, %v268
    %v703 = vmul.f32 %v273, %v273
    %v704 = vmul.f32 %v278, %v278
    %v705 = vmul.f32 %v283, %v283
    %v706 = vmul.f32 %v288, %v288
    %v707 = vmul.f32 %v293, %v293
    %v708 = vmul.f32 %v298, %v298
    %v709 = vmul.f32 %v303, %v303
    %v710 = vmul.f32 %v308, %v308
    %v711 = vmul.f32 %v313, %v313
    %v712 = vmul.f32 %v318, %v318
    %v713 = vmul.f32 %v323, %v323
    %v714 = vmul.f32 %v328, %v328
    %v715 = vmul.f32 %v333, %v333
    %v716 = vmul.f32 %v338, %v338
    %v717 = vmul.f32 %v343, %v343
    %v718 = vmul.f32 %v348, %v348
    %v719 = vmul.f32 %v353, %v353
    %v720 = vmul.f32 %v358, %v358
    %v721 = vmul.f32 %v363, %v363
    %v722 = vmul.f32 %v368, %v368
    %v723 = vmul.f32 %v373, %v373
    %v724 = vmul.f32 %v378, %v378
    %v725 = vmul.f32 %v383, %v383
    %v726 = vmul.f32 %v388, %v388
    %v727 = vmul.f32 %v393, %v393
    %v728 = vmul.f32 %v398, %v398
    %v729 = vmul.f32 %v403, %v403
    %v730 = vmul.f32 %v408, %v408
    %v731 = vmul.f32 %v413, %v413
    %v732 = vmul.f32 %v418, %v418
    %v733 = vmul.f32 %v423, %v423
    %v734 = vmul.f32 %v428, %v428
    %v735 = vmul.f32 %v433, %v433
    %v736 = vmul.f32 %v438, %v438
    %v737 = vmul.f32 %v443, %v443
    %v738 = vmul.f32 %v448, %v448
    %v739 = vmul.f32 %v453, %v453
    %v740 = vmul.f32 %v458, %v458
    %v741 = vmul.f32 %v463, %v463
    %v742 = vmul.f32 %v468, %v468
    %v743 = vmul.f32 %v473, %v473
    %v744 = vmul.f32 %v478, %v478
    %v745 = vmul.f32 %v483, %v483
    %v746 = vmul.f32 %v488, %v488
    %v747 = vmul.f32 %v493, %v493
    %v748 = vmul.f32 %v498, %v498
    %v749 = vmul.f32 %v503, %v503
    %v750 = vmul.f32 %v508, %v508
    %v751 = vmul.f32 %v513, %v513
    %v752 = vmul.f32 %v518, %v518
    %v753 = vmul.f32 %v523, %v523
    %v754 = vmul.f32 %v528, %v528
    %v755 = vmul.f32 %v533, %v533
    %v756 = vmul.f32 %v538, %v538
    %v757 = vmul.f32 %v543, %v543
    %v758 = vmul.f32 %v548, %v548
    %v759 = vmul.f32 %v553, %v553
    %760 = vmatprep.subr.mxu0 0.0
    %761 = vmatpush1.msra.mxu0 %v696
    %762 = vmatprep.subr.mxu0 0.0
    %763 = vmatpush1.msra.mxu0 %v697
    %764 = vmatprep.subr.mxu0 0.0
    %765 = vmatpush1.msra.mxu0 %v698
    %766 = vmatprep.subr.mxu0 0.0
    %767 = vmatpush1.msra.mxu0 %v699
    %768 = vmatprep.subr.mxu0 0.0
    %769 = vmatpush1.msra.mxu0 %v700
    %770 = vmatprep.subr.mxu0 0.0
    %771 = vmatpush1.msra.mxu0 %v701
    %772 = vmatprep.subr.mxu0 0.0
    %773 = vmatpush1.msra.mxu0 %v702
    %774 = vmatprep.subr.mxu0 0.0
    %775 = vmatpush1.msra.mxu0 %v703
    %776 = vmatprep.subr.mxu0 0.0
    %777 = vmatpush1.msra.mxu0 %v704
    %778 = vmatprep.subr.mxu0 0.0
    %779 = vmatpush1.msra.mxu0 %v705
    %780 = vmatprep.subr.mxu0 0.0
    %781 = vmatpush1.msra.mxu0 %v706
    %782 = vmatprep.subr.mxu0 0.0
    %783 = vmatpush1.msra.mxu0 %v707
    %784 = vmatprep.subr.mxu0 0.0
    %785 = vmatpush1.msra.mxu0 %v708
    %786 = vmatprep.subr.mxu0 0.0
    %787 = vmatpush1.msra.mxu0 %v709
    %788 = vmatprep.subr.mxu0 0.0
    %789 = vmatpush1.msra.mxu0 %v710
    %790 = vmatprep.subr.mxu0 0.0
    %791 = vmatpush1.msra.mxu0 %v711
    %792 = vmatprep.subr.mxu0 0.0
    %793 = vmatpush1.msra.mxu0 %v712
    %794 = vmatprep.subr.mxu0 0.0
    %795 = vmatpush1.msra.mxu0 %v713
    %796 = vmatprep.subr.mxu0 0.0
    %797 = vmatpush1.msra.mxu0 %v714
    %798 = vmatprep.subr.mxu0 0.0
    %799 = vmatpush1.msra.mxu0 %v715
    %800 = vmatprep.subr.mxu0 0.0
    %801 = vmatpush1.msra.mxu0 %v716
    %802 = vmatprep.subr.mxu0 0.0
    %803 = vmatpush1.msra.mxu0 %v717
    %804 = vmatprep.subr.mxu0 0.0
    %805 = vmatpush1.msra.mxu0 %v718
    %806 = vmatprep.subr.mxu0 0.0
    %807 = vmatpush1.msra.mxu0 %v719
    %808 = vmatprep.subr.mxu0 0.0
    %809 = vmatpush1.msra.mxu0 %v720
    %810 = vmatprep.subr.mxu0 0.0
    %811 = vmatpush1.msra.mxu0 %v721
    %812 = vmatprep.subr.mxu0 0.0
    %813 = vmatpush1.msra.mxu0 %v722
    %814 = vmatprep.subr.mxu0 0.0
    %815 = vmatpush1.msra.mxu0 %v723
    %816 = vmatprep.subr.mxu0 0.0
    %817 = vmatpush1.msra.mxu0 %v724
    %818 = vmatprep.subr.mxu0 0.0
    %819 = vmatpush1.msra.mxu0 %v725
    %820 = vmatprep.subr.mxu0 0.0
    %821 = vmatpush1.msra.mxu0 %v726
    %822 = vmatprep.subr.mxu0 0.0
    %823 = vmatpush1.msra.mxu0 %v727
    %824 = vmatprep.mubr.f32.mxu0 1.0
    %825 = vmatmul.mubr.f32.gmra.mrb[0].mxu0 1.0
    %v826 = vpop.f32.mrb[0].mxu0
    %v827 = vadd.f32 0.0, %v826
    %v828 = vpop.f32.mrb[0].mxu0
    %829 = vdwg.mxu0
    %830 = vmatprep.subr.mxu0 0.0
    %831 = vmatpush1.msra.mxu0 %v728
    %832 = vmatprep.subr.mxu0 0.0
    %833 = vmatpush1.msra.mxu0 %v729
    %834 = vmatprep.subr.mxu0 0.0
    %835 = vmatpush1.msra.mxu0 %v730
    %836 = vmatprep.subr.mxu0 0.0
    %837 = vmatpush1.msra.mxu0 %v731
    %838 = vmatprep.subr.mxu0 0.0
    %839 = vmatpush1.msra.mxu0 %v732
    %840 = vmatprep.subr.mxu0 0.0
    %841 = vmatpush1.msra.mxu0 %v733
    %842 = vmatprep.subr.mxu0 0.0
    %843 = vmatpush1.msra.mxu0 %v734
    %844 = vmatprep.subr.mxu0 0.0
    %845 = vmatpush1.msra.mxu0 %v735
    %846 = vmatprep.subr.mxu0 0.0
    %847 = vmatpush1.msra.mxu0 %v736
    %848 = vmatprep.subr.mxu0 0.0
    %849 = vmatpush1.msra.mxu0 %v737
    %850 = vmatprep.subr.mxu0 0.0
    %851 = vmatpush1.msra.mxu0 %v738
    %852 = vmatprep.subr.mxu0 0.0
    %853 = vmatpush1.msra.mxu0 %v739
    %854 = vmatprep.subr.mxu0 0.0
    %855 = vmatpush1.msra.mxu0 %v740
    %856 = vmatprep.subr.mxu0 0.0
    %857 = vmatpush1.msra.mxu0 %v741
    %858 = vmatprep.subr.mxu0 0.0
    %859 = vmatpush1.msra.mxu0 %v742
    %860 = vmatprep.subr.mxu0 0.0
    %861 = vmatpush1.msra.mxu0 %v743
    %862 = vmatprep.subr.mxu0 0.0
    %863 = vmatpush1.msra.mxu0 %v744
    %864 = vmatprep.subr.mxu0 0.0
    %865 = vmatpush1.msra.mxu0 %v745
    %866 = vmatprep.subr.mxu0 0.0
    %867 = vmatpush1.msra.mxu0 %v746
    %868 = vmatprep.subr.mxu0 0.0
    %869 = vmatpush1.msra.mxu0 %v747
    %870 = vmatprep.subr.mxu0 0.0
    %871 = vmatpush1.msra.mxu0 %v748
    %872 = vmatprep.subr.mxu0 0.0
    %873 = vmatpush1.msra.mxu0 %v749
    %874 = vmatprep.subr.mxu0 0.0
    %875 = vmatpush1.msra.mxu0 %v750
    %876 = vmatprep.subr.mxu0 0.0
    %877 = vmatpush1.msra.mxu0 %v751
    %878 = vmatprep.subr.mxu0 0.0
    %879 = vmatpush1.msra.mxu0 %v752
    %880 = vmatprep.subr.mxu0 0.0
    %881 = vmatpush1.msra.mxu0 %v753
    %882 = vmatprep.subr.mxu0 0.0
    %883 = vmatpush1.msra.mxu0 %v754
    %884 = vmatprep.subr.mxu0 0.0
    %885 = vmatpush1.msra.mxu0 %v755
    %886 = vmatprep.subr.mxu0 0.0
    %887 = vmatpush1.msra.mxu0 %v756
    %888 = vmatprep.subr.mxu0 0.0
    %889 = vmatpush1.msra.mxu0 %v757
    %890 = vmatprep.subr.mxu0 0.0
    %891 = vmatpush1.msra.mxu0 %v758
    %892 = vmatprep.subr.mxu0 0.0
    %893 = vmatpush1.msra.mxu0 %v759
    %894 = vmatprep.mubr.f32.mxu0 1.0
    %895 = vmatmul.mubr.f32.gmra.mrb[0].mxu0 1.0
    %v896 = vpop.f32.mrb[0].mxu0
    %v897 = vadd.f32 %v827, %v896
    %v898 = vpop.f32.mrb[0].mxu0
    %899 = vdwg.mxu0
    %v900 = vmul.f32 %v693, 0.001953125
    %v901 = vmul.f32 %v897, 0.001953125
    %v902 = vmul.f32 %v900, %v900
    %v903 = vsub.f32 %v901, %v902
    %v904 = vld [vmem:[%s4] sm:$0x1]
    %v905 = vadd.f32 %v903, 1e-05
    %v906 = vrsqrt.pop %v905
    %v907 = vmul.f32 %v904, %v906
    %v908 = vld [vmem:[%s5] sm:$0x1]
    %v909 = vmul.f32 %v900, %v907
    %v910 = vsub.f32 %v908, %v909
    %v912 = vlaneseq
    %v913 = vshrl.u32 %v912, 7
    %v914 = vsub.s32 0, %v913
    %v915 = vrot.slane %v907, %v914
    %v917 = vmul.f32 %v238, %v915
    %v918 = vmul.f32 %v243, %v915
    %v919 = vmul.f32 %v248, %v915
    %v920 = vmul.f32 %v253, %v915
    %v921 = vmul.f32 %v258, %v915
    %v922 = vmul.f32 %v263, %v915
    %v923 = vmul.f32 %v268, %v915
    %v924 = vmul.f32 %v273, %v915
    %v925 = vmul.f32 %v278, %v915
    %v926 = vmul.f32 %v283, %v915
    %v927 = vmul.f32 %v288, %v915
    %v928 = vmul.f32 %v293, %v915
    %v929 = vmul.f32 %v298, %v915
    %v930 = vmul.f32 %v303, %v915
    %v931 = vmul.f32 %v308, %v915
    %v932 = vmul.f32 %v313, %v915
    %v933 = vmul.f32 %v318, %v915
    %v934 = vmul.f32 %v323, %v915
    %v935 = vmul.f32 %v328, %v915
    %v936 = vmul.f32 %v333, %v915
    %v937 = vmul.f32 %v338, %v915
    %v938 = vmul.f32 %v343, %v915
    %v939 = vmul.f32 %v348, %v915
    %v940 = vmul.f32 %v353, %v915
    %v941 = vmul.f32 %v358, %v915
    %v942 = vmul.f32 %v363, %v915
    %v943 = vmul.f32 %v368, %v915
    %v944 = vmul.f32 %v373, %v915
    %v945 = vmul.f32 %v378, %v915
    %v946 = vmul.f32 %v383, %v915
    %v947 = vmul.f32 %v388, %v915
    %v948 = vmul.f32 %v393, %v915
    %v949 = vmul.f32 %v398, %v915
    %v950 = vmul.f32 %v403, %v915
    %v951 = vmul.f32 %v408, %v915
    %v952 = vmul.f32 %v413, %v915
    %v953 = vmul.f32 %v418, %v915
    %v954 = vmul.f32 %v423, %v915
    %v955 = vmul.f32 %v428, %v915
    %v956 = vmul.f32 %v433, %v915
    %v957 = vmul.f32 %v438, %v915
    %v958 = vmul.f32 %v443, %v915
    %v959 = vmul.f32 %v448, %v915
    %v960 = vmul.f32 %v453, %v915
    %v961 = vmul.f32 %v458, %v915
    %v962 = vmul.f32 %v463, %v915
    %v963 = vmul.f32 %v468, %v915
    %v964 = vmul.f32 %v473, %v915
    %v965 = vmul.f32 %v478, %v915
    %v966 = vmul.f32 %v483, %v915
    %v967 = vmul.f32 %v488, %v915
    %v968 = vmul.f32 %v493, %v915
    %v969 = vmul.f32 %v498, %v915
    %v970 = vmul.f32 %v503, %v915
    %v971 = vmul.f32 %v508, %v915
    %v972 = vmul.f32 %v513, %v915
    %v973 = vmul.f32 %v518, %v915
    %v974 = vmul.f32 %v523, %v915
    %v975 = vmul.f32 %v528, %v915
    %v976 = vmul.f32 %v533, %v915
    %v977 = vmul.f32 %v538, %v915
    %v978 = vmul.f32 %v543, %v915
    %v979 = vmul.f32 %v548, %v915
    %v980 = vmul.f32 %v553, %v915
    %v982 = vlaneseq
    %v983 = vshrl.u32 %v982, 7
    %v984 = vsub.s32 0, %v983
    %v985 = vrot.slane %v910, %v984
    %v987 = vadd.f32 %v917, %v985
    %v988 = vadd.f32 %v918, %v985
    %v989 = vadd.f32 %v919, %v985
    %v990 = vadd.f32 %v920, %v985
    %v991 = vadd.f32 %v921, %v985
    %v992 = vadd.f32 %v922, %v985
    %v993 = vadd.f32 %v923, %v985
    %v994 = vadd.f32 %v924, %v985
    %v995 = vadd.f32 %v925, %v985
    %v996 = vadd.f32 %v926, %v985
    %v997 = vadd.f32 %v927, %v985
    %v998 = vadd.f32 %v928, %v985
    %v999 = vadd.f32 %v929, %v985
    %v1000 = vadd.f32 %v930, %v985
    %v1001 = vadd.f32 %v931, %v985
    %v1002 = vadd.f32 %v932, %v985
    %v1003 = vadd.f32 %v933, %v985
    %v1004 = vadd.f32 %v934, %v985
    %v1005 = vadd.f32 %v935, %v985
    %v1006 = vadd.f32 %v936, %v985
    %v1007 = vadd.f32 %v937, %v985
    %v1008 = vadd.f32 %v938, %v985
    %v1009 = vadd.f32 %v939, %v985
    %v1010 = vadd.f32 %v940, %v985
    %v1011 = vadd.f32 %v941, %v985
    %v1012 = vadd.f32 %v942, %v985
    %v1013 = vadd.f32 %v943, %v985
    %v1014 = vadd.f32 %v944, %v985
    %v1015 = vadd.f32 %v945, %v985
    %v1016 = vadd.f32 %v946, %v985
    %v1017 = vadd.f32 %v947, %v985
    %v1018 = vadd.f32 %v948, %v985
    %v1019 = vadd.f32 %v949, %v985
    %v1020 = vadd.f32 %v950, %v985
    %v1021 = vadd.f32 %v951, %v985
    %v1022 = vadd.f32 %v952, %v985
    %v1023 = vadd.f32 %v953, %v985
    %v1024 = vadd.f32 %v954, %v985
    %v1025 = vadd.f32 %v955, %v985
    %v1026 = vadd.f32 %v956, %v985
    %v1027 = vadd.f32 %v957, %v985
    %v1028 = vadd.f32 %v958, %v985
    %v1029 = vadd.f32 %v959, %v985
    %v1030 = vadd.f32 %v960, %v985
    %v1031 = vadd.f32 %v961, %v985
    %v1032 = vadd.f32 %v962, %v985
    %v1033 = vadd.f32 %v963, %v985
    %v1034 = vadd.f32 %v964, %v985
    %v1035 = vadd.f32 %v965, %v985
    %v1036 = vadd.f32 %v966, %v985
    %v1037 = vadd.f32 %v967, %v985
    %v1038 = vadd.f32 %v968, %v985
    %v1039 = vadd.f32 %v969, %v985
    %v1040 = vadd.f32 %v970, %v985
    %v1041 = vadd.f32 %v971, %v985
    %v1042 = vadd.f32 %v972, %v985
    %v1043 = vadd.f32 %v973, %v985
    %v1044 = vadd.f32 %v974, %v985
    %v1045 = vadd.f32 %v975, %v985
    %v1046 = vadd.f32 %v976, %v985
    %v1047 = vadd.f32 %v977, %v985
    %v1048 = vadd.f32 %v978, %v985
    %v1049 = vadd.f32 %v979, %v985
    %v1050 = vadd.f32 %v980, %v985
    %v1051 = vmax.f32 %v987, 0.0
    %v1052 = vmax.f32 %v988, 0.0
    %v1053 = vmax.f32 %v989, 0.0
    %v1054 = vmax.f32 %v990, 0.0
    %v1055 = vmax.f32 %v991, 0.0
    %v1056 = vmax.f32 %v992, 0.0
    %v1057 = vmax.f32 %v993, 0.0
    %v1058 = vmax.f32 %v994, 0.0
    %v1059 = vmax.f32 %v995, 0.0
    %v1060 = vmax.f32 %v996, 0.0
    %v1061 = vmax.f32 %v997, 0.0
    %v1062 = vmax.f32 %v998, 0.0
    %v1063 = vmax.f32 %v999, 0.0
    %v1064 = vmax.f32 %v1000, 0.0
    %v1065 = vmax.f32 %v1001, 0.0
    %v1066 = vmax.f32 %v1002, 0.0
    %v1067 = vmax.f32 %v1003, 0.0
    %v1068 = vmax.f32 %v1004, 0.0
    %v1069 = vmax.f32 %v1005, 0.0
    %v1070 = vmax.f32 %v1006, 0.0
    %v1071 = vmax.f32 %v1007, 0.0
    %v1072 = vmax.f32 %v1008, 0.0
    %v1073 = vmax.f32 %v1009, 0.0
    %v1074 = vmax.f32 %v1010, 0.0
    %v1075 = vmax.f32 %v1011, 0.0
    %v1076 = vmax.f32 %v1012, 0.0
    %v1077 = vmax.f32 %v1013, 0.0
    %v1078 = vmax.f32 %v1014, 0.0
    %v1079 = vmax.f32 %v1015, 0.0
    %v1080 = vmax.f32 %v1016, 0.0
    %v1081 = vmax.f32 %v1017, 0.0
    %v1082 = vmax.f32 %v1018, 0.0
    %v1083 = vmax.f32 %v1019, 0.0
    %v1084 = vmax.f32 %v1020, 0.0
    %v1085 = vmax.f32 %v1021, 0.0
    %v1086 = vmax.f32 %v1022, 0.0
    %v1087 = vmax.f32 %v1023, 0.0
    %v1088 = vmax.f32 %v1024, 0.0
    %v1089 = vmax.f32 %v1025, 0.0
    %v1090 = vmax.f32 %v1026, 0.0
    %v1091 = vmax.f32 %v1027, 0.0
    %v1092 = vmax.f32 %v1028, 0.0
    %v1093 = vmax.f32 %v1029, 0.0
    %v1094 = vmax.f32 %v1030, 0.0
    %v1095 = vmax.f32 %v1031, 0.0
    %v1096 = vmax.f32 %v1032, 0.0
    %v1097 = vmax.f32 %v1033, 0.0
    %v1098 = vmax.f32 %v1034, 0.0
    %v1099 = vmax.f32 %v1035, 0.0
    %v1100 = vmax.f32 %v1036, 0.0
    %v1101 = vmax.f32 %v1037, 0.0
    %v1102 = vmax.f32 %v1038, 0.0
    %v1103 = vmax.f32 %v1039, 0.0
    %v1104 = vmax.f32 %v1040, 0.0
    %v1105 = vmax.f32 %v1041, 0.0
    %v1106 = vmax.f32 %v1042, 0.0
    %v1107 = vmax.f32 %v1043, 0.0
    %v1108 = vmax.f32 %v1044, 0.0
    %v1109 = vmax.f32 %v1045, 0.0
    %v1110 = vmax.f32 %v1046, 0.0
    %v1111 = vmax.f32 %v1047, 0.0
    %v1112 = vmax.f32 %v1048, 0.0
    %v1113 = vmax.f32 %v1049, 0.0
    %v1114 = vmax.f32 %v1050, 0.0
    %1115 = vst [vmem:[#allocation2] sm:$0xff] 0.0
    %1116 = vst [vmem:[#allocation2 + $0x8] sm:$0xff] 0.0
    %1117 = vst [vmem:[#allocation2 + $0x10] sm:$0x3] 0.0
    %1118 = vst [vmem:[#allocation2 + $0x1b0] sm:$0xff] 0.0
    %1119 = vst [vmem:[#allocation2 + $0x1b8] sm:$0xff] 0.0
    %1120 = vst [vmem:[#allocation2 + $0x1c0] sm:$0x3] 0.0
    %s1121 = scalar_lea.vmem [#allocation2], 408
    %1122 = vst [vmem:[%s1121] sm:$0xff] 0.0
    %1123 = vst [vmem:[%s1121 + $0x8] sm:$0xff] 0.0
    %1124 = vst [vmem:[%s1121 + $0x10] sm:$0x3] 0.0
    %1125 = vst [vmem:[%s1121 + $0x1b0] sm:$0xff] 0.0
    %1126 = vst [vmem:[%s1121 + $0x1b8] sm:$0xff] 0.0
    %1127 = vst [vmem:[%s1121 + $0x1c0] sm:$0x3] 0.0
    %s1128 = scalar_lea.vmem [#allocation2], 24
    %1129 = vst [vmem:[%s1128] sm:$0x1] 0.0
    %1130 = vst [vmem:[%s1128 + $0x18] sm:$0x1] 0.0
    %1131 = vst [vmem:[%s1128 + $0x30] sm:$0x1] 0.0
    %1132 = vst [vmem:[%s1128 + $0x48] sm:$0x1] 0.0
    %1133 = vst [vmem:[%s1128 + $0x60] sm:$0x1] 0.0
    %1134 = vst [vmem:[%s1128 + $0x78] sm:$0x1] 0.0
    %1135 = vst [vmem:[%s1128 + $0x90] sm:$0x1] 0.0
    %1136 = vst [vmem:[%s1128 + $0xa8] sm:$0x1] 0.0
    %1137 = vst [vmem:[%s1128 + $0xc0] sm:$0x1] 0.0
    %1138 = vst [vmem:[%s1128 + $0xd8] sm:$0x1] 0.0
    %1139 = vst [vmem:[%s1128 + $0xf0] sm:$0x1] 0.0
    %1140 = vst [vmem:[%s1128 + $0x108] sm:$0x1] 0.0
    %1141 = vst [vmem:[%s1128 + $0x120] sm:$0x1] 0.0
    %1142 = vst [vmem:[%s1128 + $0x138] sm:$0x1] 0.0
    %1143 = vst [vmem:[%s1128 + $0x150] sm:$0x1] 0.0
    %1144 = vst [vmem:[%s1128 + $0x168] sm:$0x1] 0.0
    %1145 = vst [vmem:[%s1128 + $0x1b0] sm:$0x1] 0.0
    %1146 = vst [vmem:[%s1128 + $0x1c8] sm:$0x1] 0.0
    %1147 = vst [vmem:[%s1128 + $0x1e0] sm:$0x1] 0.0
    %1148 = vst [vmem:[%s1128 + $0x1f8] sm:$0x1] 0.0
    %1149 = vst [vmem:[%s1128 + $0x210] sm:$0x1] 0.0
    %1150 = vst [vmem:[%s1128 + $0x228] sm:$0x1] 0.0
    %1151 = vst [vmem:[%s1128 + $0x240] sm:$0x1] 0.0
    %1152 = vst [vmem:[%s1128 + $0x258] sm:$0x1] 0.0
    %1153 = vst [vmem:[%s1128 + $0x270] sm:$0x1] 0.0
    %1154 = vst [vmem:[%s1128 + $0x288] sm:$0x1] 0.0
    %1155 = vst [vmem:[%s1128 + $0x2a0] sm:$0x1] 0.0
    %1156 = vst [vmem:[%s1128 + $0x2b8] sm:$0x1] 0.0
    %1157 = vst [vmem:[%s1128 + $0x2d0] sm:$0x1] 0.0
    %1158 = vst [vmem:[%s1128 + $0x2e8] sm:$0x1] 0.0
    %1159 = vst [vmem:[%s1128 + $0x300] sm:$0x1] 0.0
    %1160 = vst [vmem:[%s1128 + $0x318] sm:$0x1] 0.0
    %1161 = vst [vmem:[%s1128 + $0x11] sm:$0x1] 0.0
    %1162 = vst [vmem:[%s1128 + $0x29] sm:$0x1] 0.0
    %1163 = vst [vmem:[%s1128 + $0x41] sm:$0x1] 0.0
    %1164 = vst [vmem:[%s1128 + $0x59] sm:$0x1] 0.0
    %1165 = vst [vmem:[%s1128 + $0x71] sm:$0x1] 0.0
    %1166 = vst [vmem:[%s1128 + $0x89] sm:$0x1] 0.0
    %1167 = vst [vmem:[%s1128 + $0xa1] sm:$0x1] 0.0
    %1168 = vst [vmem:[%s1128 + $0xb9] sm:$0x1] 0.0
    %1169 = vst [vmem:[%s1128 + $0xd1] sm:$0x1] 0.0
    %1170 = vst [vmem:[%s1128 + $0xe9] sm:$0x1] 0.0
    %1171 = vst [vmem:[%s1128 + $0x101] sm:$0x1] 0.0
    %1172 = vst [vmem:[%s1128 + $0x119] sm:$0x1] 0.0
    %1173 = vst [vmem:[%s1128 + $0x131] sm:$0x1] 0.0
    %1174 = vst [vmem:[%s1128 + $0x149] sm:$0x1] 0.0
    %1175 = vst [vmem:[%s1128 + $0x161] sm:$0x1] 0.0
    %1176 = vst [vmem:[%s1128 + $0x179] sm:$0x1] 0.0
    %1177 = vst [vmem:[%s1128 + $0x1c1] sm:$0x1] 0.0
    %1178 = vst [vmem:[%s1128 + $0x1d9] sm:$0x1] 0.0
    %1179 = vst [vmem:[%s1128 + $0x1f1] sm:$0x1] 0.0
    %1180 = vst [vmem:[%s1128 + $0x209] sm:$0x1] 0.0
    %1181 = vst [vmem:[%s1128 + $0x221] sm:$0x1] 0.0
    %1182 = vst [vmem:[%s1128 + $0x239] sm:$0x1] 0.0
    %1183 = vst [vmem:[%s1128 + $0x251] sm:$0x1] 0.0
    %1184 = vst [vmem:[%s1128 + $0x269] sm:$0x1] 0.0
    %1185 = vst [vmem:[%s1128 + $0x281] sm:$0x1] 0.0
    %1186 = vst [vmem:[%s1128 + $0x299] sm:$0x1] 0.0
    %1187 = vst [vmem:[%s1128 + $0x2b1] sm:$0x1] 0.0
    %1188 = vst [vmem:[%s1128 + $0x2c9] sm:$0x1] 0.0
    %1189 = vst [vmem:[%s1128 + $0x2e1] sm:$0x1] 0.0
    %1190 = vst [vmem:[%s1128 + $0x2f9] sm:$0x1] 0.0
    %1191 = vst [vmem:[%s1128 + $0x311] sm:$0x1] 0.0
    %1192 = vst [vmem:[%s1128 + $0x329] sm:$0x1] 0.0
    %1193 = vst [vmem:[%s1128 + $0x1] sm:$0xff] %v1051
    %1194 = vst [vmem:[%s1128 + $0x9] sm:$0xff] %v1052
    %1195 = vst [vmem:[%s1128 + $0x19] sm:$0xff] %v1053
    %1196 = vst [vmem:[%s1128 + $0x21] sm:$0xff] %v1054
    %1197 = vst [vmem:[%s1128 + $0x31] sm:$0xff] %v1055
    %1198 = vst [vmem:[%s1128 + $0x39] sm:$0xff] %v1056
    %1199 = vst [vmem:[%s1128 + $0x49] sm:$0xff] %v1057
    %1200 = vst [vmem:[%s1128 + $0x51] sm:$0xff] %v1058
    %1201 = vst [vmem:[%s1128 + $0x61] sm:$0xff] %v1059
    %1202 = vst [vmem:[%s1128 + $0x69] sm:$0xff] %v1060
    %1203 = vst [vmem:[%s1128 + $0x79] sm:$0xff] %v1061
    %1204 = vst [vmem:[%s1128 + $0x81] sm:$0xff] %v1062
    %1205 = vst [vmem:[%s1128 + $0x91] sm:$0xff] %v1063
    %1206 = vst [vmem:[%s1128 + $0x99] sm:$0xff] %v1064
    %1207 = vst [vmem:[%s1128 + $0xa9] sm:$0xff] %v1065
    %1208 = vst [vmem:[%s1128 + $0xb1] sm:$0xff] %v1066
    %1209 = vst [vmem:[%s1128 + $0xc1] sm:$0xff] %v1067
    %1210 = vst [vmem:[%s1128 + $0xc9] sm:$0xff] %v1068
    %1211 = vst [vmem:[%s1128 + $0xd9] sm:$0xff] %v1069
    %1212 = vst [vmem:[%s1128 + $0xe1] sm:$0xff] %v1070
    %1213 = vst [vmem:[%s1128 + $0xf1] sm:$0xff] %v1071
    %1214 = vst [vmem:[%s1128 + $0xf9] sm:$0xff] %v1072
    %1215 = vst [vmem:[%s1128 + $0x109] sm:$0xff] %v1073
    %1216 = vst [vmem:[%s1128 + $0x111] sm:$0xff] %v1074
    %1217 = vst [vmem:[%s1128 + $0x121] sm:$0xff] %v1075
    %1218 = vst [vmem:[%s1128 + $0x129] sm:$0xff] %v1076
    %1219 = vst [vmem:[%s1128 + $0x139] sm:$0xff] %v1077
    %1220 = vst [vmem:[%s1128 + $0x141] sm:$0xff] %v1078
    %1221 = vst [vmem:[%s1128 + $0x151] sm:$0xff] %v1079
    %1222 = vst [vmem:[%s1128 + $0x159] sm:$0xff] %v1080
    %1223 = vst [vmem:[%s1128 + $0x169] sm:$0xff] %v1081
    %1224 = vst [vmem:[%s1128 + $0x171] sm:$0xff] %v1082
    %1225 = vst [vmem:[%s1128 + $0x1b1] sm:$0xff] %v1083
    %1226 = vst [vmem:[%s1128 + $0x1b9] sm:$0xff] %v1084
    %1227 = vst [vmem:[%s1128 + $0x1c9] sm:$0xff] %v1085
    %1228 = vst [vmem:[%s1128 + $0x1d1] sm:$0xff] %v1086
    %1229 = vst [vmem:[%s1128 + $0x1e1] sm:$0xff] %v1087
    %1230 = vst [vmem:[%s1128 + $0x1e9] sm:$0xff] %v1088
    %1231 = vst [vmem:[%s1128 + $0x1f9] sm:$0xff] %v1089
    %1232 = vst [vmem:[%s1128 + $0x201] sm:$0xff] %v1090
    %1233 = vst [vmem:[%s1128 + $0x211] sm:$0xff] %v1091
    %1234 = vst [vmem:[%s1128 + $0x219] sm:$0xff] %v1092
    %1235 = vst [vmem:[%s1128 + $0x229] sm:$0xff] %v1093
    %1236 = vst [vmem:[%s1128 + $0x231] sm:$0xff] %v1094
    %1237 = vst [vmem:[%s1128 + $0x241] sm:$0xff] %v1095
    %1238 = vst [vmem:[%s1128 + $0x249] sm:$0xff] %v1096
    %1239 = vst [vmem:[%s1128 + $0x259] sm:$0xff] %v1097
    %1240 = vst [vmem:[%s1128 + $0x261] sm:$0xff] %v1098
    %1241 = vst [vmem:[%s1128 + $0x271] sm:$0xff] %v1099
    %1242 = vst [vmem:[%s1128 + $0x279] sm:$0xff] %v1100
    %1243 = vst [vmem:[%s1128 + $0x289] sm:$0xff] %v1101
    %1244 = vst [vmem:[%s1128 + $0x291] sm:$0xff] %v1102
    %1245 = vst [vmem:[%s1128 + $0x2a1] sm:$0xff] %v1103
    %1246 = vst [vmem:[%s1128 + $0x2a9] sm:$0xff] %v1104
    %1247 = vst [vmem:[%s1128 + $0x2b9] sm:$0xff] %v1105
    %1248 = vst [vmem:[%s1128 + $0x2c1] sm:$0xff] %v1106
    %1249 = vst [vmem:[%s1128 + $0x2d1] sm:$0xff] %v1107
    %1250 = vst [vmem:[%s1128 + $0x2d9] sm:$0xff] %v1108
    %1251 = vst [vmem:[%s1128 + $0x2e9] sm:$0xff] %v1109
    %1252 = vst [vmem:[%s1128 + $0x2f1] sm:$0xff] %v1110
    %1253 = vst [vmem:[%s1128 + $0x301] sm:$0xff] %v1111
    %1254 = vst [vmem:[%s1128 + $0x309] sm:$0xff] %v1112
    %1255 = vst [vmem:[%s1128 + $0x319] sm:$0xff] %v1113
    %1256 = vst [vmem:[%s1128 + $0x321] sm:$0xff] %v1114
    %v1257 = vld [vmem:[#allocation2] sm:$0xff]
    %v1258 = vld [vmem:[#allocation2 + $0x8] sm:$0xff]
    %v1259 = vld [vmem:[#allocation2 + $0x18] sm:$0xff]
    %v1260 = vld [vmem:[#allocation2 + $0x20] sm:$0xff]
    %v1261 = vld [vmem:[#allocation2 + $0x30] sm:$0xff]
    %v1262 = vld [vmem:[#allocation2 + $0x38] sm:$0xff]
    %v1263 = vld [vmem:[#allocation2 + $0x48] sm:$0xff]
    %v1264 = vld [vmem:[#allocation2 + $0x50] sm:$0xff]
    %v1265 = vld [vmem:[#allocation2 + $0x60] sm:$0xff]
    %v1266 = vld [vmem:[#allocation2 + $0x68] sm:$0xff]
    %v1267 = vld [vmem:[#allocation2 + $0x78] sm:$0xff]
    %v1268 = vld [vmem:[#allocation2 + $0x80] sm:$0xff]
    %v1269 = vld [vmem:[#allocation2 + $0x90] sm:$0xff]
    %v1270 = vld [vmem:[#allocation2 + $0x98] sm:$0xff]
    %v1271 = vld [vmem:[#allocation2 + $0xa8] sm:$0xff]
    %v1272 = vld [vmem:[#allocation2 + $0xb0] sm:$0xff]
    %v1273 = vld [vmem:[#allocation2 + $0xc0] sm:$0xff]
    %v1274 = vld [vmem:[#allocation2 + $0xc8] sm:$0xff]
    %v1275 = vld [vmem:[#allocation2 + $0xd8] sm:$0xff]
    %v1276 = vld [vmem:[#allocation2 + $0xe0] sm:$0xff]
    %v1277 = vld [vmem:[#allocation2 + $0xf0] sm:$0xff]
    %v1278 = vld [vmem:[#allocation2 + $0xf8] sm:$0xff]
    %v1279 = vld [vmem:[#allocation2 + $0x108] sm:$0xff]
    %v1280 = vld [vmem:[#allocation2 + $0x110] sm:$0xff]
    %v1281 = vld [vmem:[#allocation2 + $0x120] sm:$0xff]
    %v1282 = vld [vmem:[#allocation2 + $0x128] sm:$0xff]
    %v1283 = vld [vmem:[#allocation2 + $0x138] sm:$0xff]
    %v1284 = vld [vmem:[#allocation2 + $0x140] sm:$0xff]
    %v1285 = vld [vmem:[#allocation2 + $0x150] sm:$0xff]
    %v1286 = vld [vmem:[#allocation2 + $0x158] sm:$0xff]
    %v1287 = vld [vmem:[#allocation2 + $0x168] sm:$0xff]
    %v1288 = vld [vmem:[#allocation2 + $0x170] sm:$0xff]
    %v1289 = vld [vmem:[#allocation2 + $0x1b0] sm:$0xff]
    %v1290 = vld [vmem:[#allocation2 + $0x1b8] sm:$0xff]
    %v1291 = vld [vmem:[#allocation2 + $0x1c8] sm:$0xff]
    %v1292 = vld [vmem:[#allocation2 + $0x1d0] sm:$0xff]
    %v1293 = vld [vmem:[#allocation2 + $0x1e0] sm:$0xff]
    %v1294 = vld [vmem:[#allocation2 + $0x1e8] sm:$0xff]
    %v1295 = vld [vmem:[#allocation2 + $0x1f8] sm:$0xff]
    %v1296 = vld [vmem:[#allocation2 + $0x200] sm:$0xff]
    %v1297 = vld [vmem:[#allocation2 + $0x210] sm:$0xff]
    %v1298 = vld [vmem:[#allocation2 + $0x218] sm:$0xff]
    %v1299 = vld [vmem:[#allocation2 + $0x228] sm:$0xff]
    %v1300 = vld [vmem:[#allocation2 + $0x230] sm:$0xff]
    %v1301 = vld [vmem:[#allocation2 + $0x240] sm:$0xff]
    %v1302 = vld [vmem:[#allocation2 + $0x248] sm:$0xff]
    %v1303 = vld [vmem:[#allocation2 + $0x258] sm:$0xff]
    %v1304 = vld [vmem:[#allocation2 + $0x260] sm:$0xff]
    %v1305 = vld [vmem:[#allocation2 + $0x270] sm:$0xff]
    %v1306 = vld [vmem:[#allocation2 + $0x278] sm:$0xff]
    %v1307 = vld [vmem:[#allocation2 + $0x288] sm:$0xff]
    %v1308 = vld [vmem:[#allocation2 + $0x290] sm:$0xff]
    %v1309 = vld [vmem:[#allocation2 + $0x2a0] sm:$0xff]
    %v1310 = vld [vmem:[#allocation2 + $0x2a8] sm:$0xff]
    %v1311 = vld [vmem:[#allocation2 + $0x2b8] sm:$0xff]
    %v1312 = vld [vmem:[#allocation2 + $0x2c0] sm:$0xff]
    %v1313 = vld [vmem:[#allocation2 + $0x2d0] sm:$0xff]
    %v1314 = vld [vmem:[#allocation2 + $0x2d8] sm:$0xff]
    %v1315 = vld [vmem:[#allocation2 + $0x2e8] sm:$0xff]
    %v1316 = vld [vmem:[#allocation2 + $0x2f0] sm:$0xff]
    %v1317 = vld [vmem:[#allocation2 + $0x300] sm:$0xff]
    %v1318 = vld [vmem:[#allocation2 + $0x308] sm:$0xff]
    %v1319 = vld [vmem:[#allocation2 + $0x318] sm:$0xff]
    %v1320 = vld [vmem:[#allocation2 + $0x320] sm:$0xff]
    %1321 = vst [vmem:[#allocation3] sm:$0xff] %v1257
    %1322 = vst [vmem:[#allocation3 + $0x48] sm:$0xff] %v1258
    %1323 = vst [vmem:[#allocation3 + $0x90] sm:$0xff] %v1259
    %1324 = vst [vmem:[#allocation3 + $0xd8] sm:$0xff] %v1260
    %1325 = vst [vmem:[#allocation3 + $0x120] sm:$0xff] %v1261
    %1326 = vst [vmem:[#allocation3 + $0x168] sm:$0xff] %v1262
    %1327 = vst [vmem:[#allocation3 + $0x1b0] sm:$0xff] %v1263
    %1328 = vst [vmem:[#allocation3 + $0x1f8] sm:$0xff] %v1264
    %1329 = vst [vmem:[#allocation3 + $0x240] sm:$0xff] %v1265
    %1330 = vst [vmem:[#allocation3 + $0x288] sm:$0xff] %v1266
    %1331 = vst [vmem:[#allocation3 + $0x2d0] sm:$0xff] %v1267
    %1332 = vst [vmem:[#allocation3 + $0x318] sm:$0xff] %v1268
    %1333 = vst [vmem:[#allocation3 + $0x360] sm:$0xff] %v1269
    %1334 = vst [vmem:[#allocation3 + $0x3a8] sm:$0xff] %v1270
    %1335 = vst [vmem:[#allocation3 + $0x3f0] sm:$0xff] %v1271
    %1336 = vst [vmem:[#allocation3 + $0x438] sm:$0xff] %v1272
    %1337 = vst [vmem:[#allocation3 + $0x480] sm:$0xff] %v1273
    %1338 = vst [vmem:[#allocation3 + $0x4c8] sm:$0xff] %v1274
    %1339 = vst [vmem:[#allocation3 + $0x510] sm:$0xff] %v1275
    %1340 = vst [vmem:[#allocation3 + $0x558] sm:$0xff] %v1276
    %1341 = vst [vmem:[#allocation3 + $0x5a0] sm:$0xff] %v1277
    %1342 = vst [vmem:[#allocation3 + $0x5e8] sm:$0xff] %v1278
    %1343 = vst [vmem:[#allocation3 + $0x630] sm:$0xff] %v1279
    %1344 = vst [vmem:[#allocation3 + $0x678] sm:$0xff] %v1280
    %1345 = vst [vmem:[#allocation3 + $0x6c0] sm:$0xff] %v1281
    %1346 = vst [vmem:[#allocation3 + $0x708] sm:$0xff] %v1282
    %1347 = vst [vmem:[#allocation3 + $0x750] sm:$0xff] %v1283
    %1348 = vst [vmem:[#allocation3 + $0x798] sm:$0xff] %v1284
    %1349 = vst [vmem:[#allocation3 + $0x7e0] sm:$0xff] %v1285
    %1350 = vst [vmem:[#allocation3 + $0x828] sm:$0xff] %v1286
    %1351 = vst [vmem:[#allocation3 + $0x870] sm:$0xff] %v1287
    %1352 = vst [vmem:[#allocation3 + $0x8b8] sm:$0xff] %v1288
    %1353 = vst [vmem:[#allocation3 + $0x900] sm:$0xff] %v1289
    %1354 = vst [vmem:[#allocation3 + $0x948] sm:$0xff] %v1290
    %1355 = vst [vmem:[#allocation3 + $0x990] sm:$0xff] %v1291
    %1356 = vst [vmem:[#allocation3 + $0x9d8] sm:$0xff] %v1292
    %1357 = vst [vmem:[#allocation3 + $0xa20] sm:$0xff] %v1293
    %1358 = vst [vmem:[#allocation3 + $0xa68] sm:$0xff] %v1294
    %1359 = vst [vmem:[#allocation3 + $0xab0] sm:$0xff] %v1295
    %1360 = vst [vmem:[#allocation3 + $0xaf8] sm:$0xff] %v1296
    %1361 = vst [vmem:[#allocation3 + $0xb40] sm:$0xff] %v1297
    %1362 = vst [vmem:[#allocation3 + $0xb88] sm:$0xff] %v1298
    %1363 = vst [vmem:[#allocation3 + $0xbd0] sm:$0xff] %v1299
    %1364 = vst [vmem:[#allocation3 + $0xc18] sm:$0xff] %v1300
    %1365 = vst [vmem:[#allocation3 + $0xc60] sm:$0xff] %v1301
    %1366 = vst [vmem:[#allocation3 + $0xca8] sm:$0xff] %v1302
    %1367 = vst [vmem:[#allocation3 + $0xcf0] sm:$0xff] %v1303
    %1368 = vst [vmem:[#allocation3 + $0xd38] sm:$0xff] %v1304
    %1369 = vst [vmem:[#allocation3 + $0xd80] sm:$0xff] %v1305
    %1370 = vst [vmem:[#allocation3 + $0xdc8] sm:$0xff] %v1306
    %1371 = vst [vmem:[#allocation3 + $0xe10] sm:$0xff] %v1307
    %1372 = vst [vmem:[#allocation3 + $0xe58] sm:$0xff] %v1308
    %1373 = vst [vmem:[#allocation3 + $0xea0] sm:$0xff] %v1309
    %1374 = vst [vmem:[#allocation3 + $0xee8] sm:$0xff] %v1310
    %1375 = vst [vmem:[#allocation3 + $0xf30] sm:$0xff] %v1311
    %1376 = vst [vmem:[#allocation3 + $0xf78] sm:$0xff] %v1312
    %1377 = vst [vmem:[#allocation3 + $0xfc0] sm:$0xff] %v1313
    %1378 = vst [vmem:[#allocation3 + $0x1008] sm:$0xff] %v1314
    %1379 = vst [vmem:[#allocation3 + $0x1050] sm:$0xff] %v1315
    %1380 = vst [vmem:[#allocation3 + $0x1098] sm:$0xff] %v1316
    %1381 = vst [vmem:[#allocation3 + $0x10e0] sm:$0xff] %v1317
    %1382 = vst [vmem:[#allocation3 + $0x1128] sm:$0xff] %v1318
    %1383 = vst [vmem:[#allocation3 + $0x1170] sm:$0xff] %v1319
    %1384 = vst [vmem:[#allocation3 + $0x11b8] sm:$0xff] %v1320
    %v1385 = vld [vmem:[#allocation2 + $0x1] sm:$0xff]
    %v1386 = vld [vmem:[#allocation2 + $0x9] sm:$0xff]
    %v1387 = vld [vmem:[#allocation2 + $0x19] sm:$0xff]
    %v1388 = vld [vmem:[#allocation2 + $0x21] sm:$0xff]
    %v1389 = vld [vmem:[#allocation2 + $0x31] sm:$0xff]
    %v1390 = vld [vmem:[#allocation2 + $0x39] sm:$0xff]
    %v1391 = vld [vmem:[#allocation2 + $0x49] sm:$0xff]
    %v1392 = vld [vmem:[#allocation2 + $0x51] sm:$0xff]
    %v1393 = vld [vmem:[#allocation2 + $0x61] sm:$0xff]
    %v1394 = vld [vmem:[#allocation2 + $0x69] sm:$0xff]
    %v1395 = vld [vmem:[#allocation2 + $0x79] sm:$0xff]
    %v1396 = vld [vmem:[#allocation2 + $0x81] sm:$0xff]
    %v1397 = vld [vmem:[#allocation2 + $0x91] sm:$0xff]
    %v1398 = vld [vmem:[#allocation2 + $0x99] sm:$0xff]
    %v1399 = vld [vmem:[#allocation2 + $0xa9] sm:$0xff]
    %v1400 = vld [vmem:[#allocation2 + $0xb1] sm:$0xff]
    %v1401 = vld [vmem:[#allocation2 + $0xc1] sm:$0xff]
    %v1402 = vld [vmem:[#allocation2 + $0xc9] sm:$0xff]
    %v1403 = vld [vmem:[#allocation2 + $0xd9] sm:$0xff]
    %v1404 = vld [vmem:[#allocation2 + $0xe1] sm:$0xff]
    %v1405 = vld [vmem:[#allocation2 + $0xf1] sm:$0xff]
    %v1406 = vld [vmem:[#allocation2 + $0xf9] sm:$0xff]
    %v1407 = vld [vmem:[#allocation2 + $0x109] sm:$0xff]
    %v1408 = vld [vmem:[#allocation2 + $0x111] sm:$0xff]
    %v1409 = vld [vmem:[#allocation2 + $0x121] sm:$0xff]
    %v1410 = vld [vmem:[#allocation2 + $0x129] sm:$0xff]
    %v1411 = vld [vmem:[#allocation2 + $0x139] sm:$0xff]
    %v1412 = vld [vmem:[#allocation2 + $0x141] sm:$0xff]
    %v1413 = vld [vmem:[#allocation2 + $0x151] sm:$0xff]
    %v1414 = vld [vmem:[#allocation2 + $0x159] sm:$0xff]
    %v1415 = vld [vmem:[#allocation2 + $0x169] sm:$0xff]
    %v1416 = vld [vmem:[#allocation2 + $0x171] sm:$0xff]
    %v1417 = vld [vmem:[#allocation2 + $0x1b1] sm:$0xff]
    %v1418 = vld [vmem:[#allocation2 + $0x1b9] sm:$0xff]
    %v1419 = vld [vmem:[#allocation2 + $0x1c9] sm:$0xff]
    %v1420 = vld [vmem:[#allocation2 + $0x1d1] sm:$0xff]
    %v1421 = vld [vmem:[#allocation2 + $0x1e1] sm:$0xff]
    %v1422 = vld [vmem:[#allocation2 + $0x1e9] sm:$0xff]
    %v1423 = vld [vmem:[#allocation2 + $0x1f9] sm:$0xff]
    %v1424 = vld [vmem:[#allocation2 + $0x201] sm:$0xff]
    %v1425 = vld [vmem:[#allocation2 + $0x211] sm:$0xff]
    %v1426 = vld [vmem:[#allocation2 + $0x219] sm:$0xff]
    %v1427 = vld [vmem:[#allocation2 + $0x229] sm:$0xff]
    %v1428 = vld [vmem:[#allocation2 + $0x231] sm:$0xff]
    %v1429 = vld [vmem:[#allocation2 + $0x241] sm:$0xff]
    %v1430 = vld [vmem:[#allocation2 + $0x249] sm:$0xff]
    %v1431 = vld [vmem:[#allocation2 + $0x259] sm:$0xff]
    %v1432 = vld [vmem:[#allocation2 + $0x261] sm:$0xff]
    %v1433 = vld [vmem:[#allocation2 + $0x271] sm:$0xff]
    %v1434 = vld [vmem:[#allocation2 + $0x279] sm:$0xff]
    %v1435 = vld [vmem:[#allocation2 + $0x289] sm:$0xff]
    %v1436 = vld [vmem:[#allocation2 + $0x291] sm:$0xff]
    %v1437 = vld [vmem:[#allocation2 + $0x2a1] sm:$0xff]
    %v1438 = vld [vmem:[#allocation2 + $0x2a9] sm:$0xff]
    %v1439 = vld [vmem:[#allocation2 + $0x2b9] sm:$0xff]
    %v1440 = vld [vmem:[#allocation2 + $0x2c1] sm:$0xff]
    %v1441 = vld [vmem:[#allocation2 + $0x2d1] sm:$0xff]
    %v1442 = vld [vmem:[#allocation2 + $0x2d9] sm:$0xff]
    %v1443 = vld [vmem:[#allocation2 + $0x2e9] sm:$0xff]
    %v1444 = vld [vmem:[#allocation2 + $0x2f1] sm:$0xff]
    %v1445 = vld [vmem:[#allocation2 + $0x301] sm:$0xff]
    %v1446 = vld [vmem:[#allocation2 + $0x309] sm:$0xff]
    %v1447 = vld [vmem:[#allocation2 + $0x319] sm:$0xff]
    %v1448 = vld [vmem:[#allocation2 + $0x321] sm:$0xff]
    %1449 = vst [vmem:[#allocation3 + $0x8] sm:$0xff] %v1385
    %1450 = vst [vmem:[#allocation3 + $0x50] sm:$0xff] %v1386
    %1451 = vst [vmem:[#allocation3 + $0x98] sm:$0xff] %v1387
    %1452 = vst [vmem:[#allocation3 + $0xe0] sm:$0xff] %v1388
    %1453 = vst [vmem:[#allocation3 + $0x128] sm:$0xff] %v1389
    %1454 = vst [vmem:[#allocation3 + $0x170] sm:$0xff] %v1390
    %1455 = vst [vmem:[#allocation3 + $0x1b8] sm:$0xff] %v1391
    %1456 = vst [vmem:[#allocation3 + $0x200] sm:$0xff] %v1392
    %1457 = vst [vmem:[#allocation3 + $0x248] sm:$0xff] %v1393
    %1458 = vst [vmem:[#allocation3 + $0x290] sm:$0xff] %v1394
    %1459 = vst [vmem:[#allocation3 + $0x2d8] sm:$0xff] %v1395
    %1460 = vst [vmem:[#allocation3 + $0x320] sm:$0xff] %v1396
    %1461 = vst [vmem:[#allocation3 + $0x368] sm:$0xff] %v1397
    %1462 = vst [vmem:[#allocation3 + $0x3b0] sm:$0xff] %v1398
    %1463 = vst [vmem:[#allocation3 + $0x3f8] sm:$0xff] %v1399
    %1464 = vst [vmem:[#allocation3 + $0x440] sm:$0xff] %v1400
    %1465 = vst [vmem:[#allocation3 + $0x488] sm:$0xff] %v1401
    %1466 = vst [vmem:[#allocation3 + $0x4d0] sm:$0xff] %v1402
    %1467 = vst [vmem:[#allocation3 + $0x518] sm:$0xff] %v1403
    %1468 = vst [vmem:[#allocation3 + $0x560] sm:$0xff] %v1404
    %1469 = vst [vmem:[#allocation3 + $0x5a8] sm:$0xff] %v1405
    %1470 = vst [vmem:[#allocation3 + $0x5f0] sm:$0xff] %v1406
    %1471 = vst [vmem:[#allocation3 + $0x638] sm:$0xff] %v1407
    %1472 = vst [vmem:[#allocation3 + $0x680] sm:$0xff] %v1408
    %1473 = vst [vmem:[#allocation3 + $0x6c8] sm:$0xff] %v1409
    %1474 = vst [vmem:[#allocation3 + $0x710] sm:$0xff] %v1410
    %1475 = vst [vmem:[#allocation3 + $0x758] sm:$0xff] %v1411
    %1476 = vst [vmem:[#allocation3 + $0x7a0] sm:$0xff] %v1412
    %1477 = vst [vmem:[#allocation3 + $0x7e8] sm:$0xff] %v1413
    %1478 = vst [vmem:[#allocation3 + $0x830] sm:$0xff] %v1414
    %1479 = vst [vmem:[#allocation3 + $0x878] sm:$0xff] %v1415
    %1480 = vst [vmem:[#allocation3 + $0x8c0] sm:$0xff] %v1416
    %1481 = vst [vmem:[#allocation3 + $0x908] sm:$0xff] %v1417
    %1482 = vst [vmem:[#allocation3 + $0x950] sm:$0xff] %v1418
    %1483 = vst [vmem:[#allocation3 + $0x998] sm:$0xff] %v1419
    %1484 = vst [vmem:[#allocation3 + $0x9e0] sm:$0xff] %v1420
    %1485 = vst [vmem:[#allocation3 + $0xa28] sm:$0xff] %v1421
    %1486 = vst [vmem:[#allocation3 + $0xa70] sm:$0xff] %v1422
    %1487 = vst [vmem:[#allocation3 + $0xab8] sm:$0xff] %v1423
    %1488 = vst [vmem:[#allocation3 + $0xb00] sm:$0xff] %v1424
    %1489 = vst [vmem:[#allocation3 + $0xb48] sm:$0xff] %v1425
    %1490 = vst [vmem:[#allocation3 + $0xb90] sm:$0xff] %v1426
    %1491 = vst [vmem:[#allocation3 + $0xbd8] sm:$0xff] %v1427
    %1492 = vst [vmem:[#allocation3 + $0xc20] sm:$0xff] %v1428
    %1493 = vst [vmem:[#allocation3 + $0xc68] sm:$0xff] %v1429
    %1494 = vst [vmem:[#allocation3 + $0xcb0] sm:$0xff] %v1430
    %1495 = vst [vmem:[#allocation3 + $0xcf8] sm:$0xff] %v1431
    %1496 = vst [vmem:[#allocation3 + $0xd40] sm:$0xff] %v1432
    %1497 = vst [vmem:[#allocation3 + $0xd88] sm:$0xff] %v1433
    %1498 = vst [vmem:[#allocation3 + $0xdd0] sm:$0xff] %v1434
    %1499 = vst [vmem:[#allocation3 + $0xe18] sm:$0xff] %v1435
    %1500 = vst [vmem:[#allocation3 + $0xe60] sm:$0xff] %v1436
    %1501 = vst [vmem:[#allocation3 + $0xea8] sm:$0xff] %v1437
    %1502 = vst [vmem:[#allocation3 + $0xef0] sm:$0xff] %v1438
    %1503 = vst [vmem:[#allocation3 + $0xf38] sm:$0xff] %v1439
    %1504 = vst [vmem:[#allocation3 + $0xf80] sm:$0xff] %v1440
    %1505 = vst [vmem:[#allocation3 + $0xfc8] sm:$0xff] %v1441
    %1506 = vst [vmem:[#allocation3 + $0x1010] sm:$0xff] %v1442
    %1507 = vst [vmem:[#allocation3 + $0x1058] sm:$0xff] %v1443
    %1508 = vst [vmem:[#allocation3 + $0x10a0] sm:$0xff] %v1444
    %1509 = vst [vmem:[#allocation3 + $0x10e8] sm:$0xff] %v1445
    %1510 = vst [vmem:[#allocation3 + $0x1130] sm:$0xff] %v1446
    %1511 = vst [vmem:[#allocation3 + $0x1178] sm:$0xff] %v1447
    %1512 = vst [vmem:[#allocation3 + $0x11c0] sm:$0xff] %v1448
    %v1513 = vld [vmem:[#allocation2 + $0x2] sm:$0xff]
    %v1514 = vld [vmem:[#allocation2 + $0xa] sm:$0xff]
    %v1515 = vld [vmem:[#allocation2 + $0x1a] sm:$0xff]
    %v1516 = vld [vmem:[#allocation2 + $0x22] sm:$0xff]
    %v1517 = vld [vmem:[#allocation2 + $0x32] sm:$0xff]
    %v1518 = vld [vmem:[#allocation2 + $0x3a] sm:$0xff]
    %v1519 = vld [vmem:[#allocation2 + $0x4a] sm:$0xff]
    %v1520 = vld [vmem:[#allocation2 + $0x52] sm:$0xff]
    %v1521 = vld [vmem:[#allocation2 + $0x62] sm:$0xff]
    %v1522 = vld [vmem:[#allocation2 + $0x6a] sm:$0xff]
    %v1523 = vld [vmem:[#allocation2 + $0x7a] sm:$0xff]
    %v1524 = vld [vmem:[#allocation2 + $0x82] sm:$0xff]
    %v1525 = vld [vmem:[#allocation2 + $0x92] sm:$0xff]
    %v1526 = vld [vmem:[#allocation2 + $0x9a] sm:$0xff]
    %v1527 = vld [vmem:[#allocation2 + $0xaa] sm:$0xff]
    %v1528 = vld [vmem:[#allocation2 + $0xb2] sm:$0xff]
    %v1529 = vld [vmem:[#allocation2 + $0xc2] sm:$0xff]
    %v1530 = vld [vmem:[#allocation2 + $0xca] sm:$0xff]
    %v1531 = vld [vmem:[#allocation2 + $0xda] sm:$0xff]
    %v1532 = vld [vmem:[#allocation2 + $0xe2] sm:$0xff]
    %v1533 = vld [vmem:[#allocation2 + $0xf2] sm:$0xff]
    %v1534 = vld [vmem:[#allocation2 + $0xfa] sm:$0xff]
    %v1535 = vld [vmem:[#allocation2 + $0x10a] sm:$0xff]
    %v1536 = vld [vmem:[#allocation2 + $0x112] sm:$0xff]
    %v1537 = vld [vmem:[#allocation2 + $0x122] sm:$0xff]
    %v1538 = vld [vmem:[#allocation2 + $0x12a] sm:$0xff]
    %v1539 = vld [vmem:[#allocation2 + $0x13a] sm:$0xff]
    %v1540 = vld [vmem:[#allocation2 + $0x142] sm:$0xff]
    %v1541 = vld [vmem:[#allocation2 + $0x152] sm:$0xff]
    %v1542 = vld [vmem:[#allocation2 + $0x15a] sm:$0xff]
    %v1543 = vld [vmem:[#allocation2 + $0x16a] sm:$0xff]
    %v1544 = vld [vmem:[#allocation2 + $0x172] sm:$0xff]
    %v1545 = vld [vmem:[#allocation2 + $0x1b2] sm:$0xff]
    %v1546 = vld [vmem:[#allocation2 + $0x1ba] sm:$0xff]
    %v1547 = vld [vmem:[#allocation2 + $0x1ca] sm:$0xff]
    %v1548 = vld [vmem:[#allocation2 + $0x1d2] sm:$0xff]
    %v1549 = vld [vmem:[#allocation2 + $0x1e2] sm:$0xff]
    %v1550 = vld [vmem:[#allocation2 + $0x1ea] sm:$0xff]
    %v1551 = vld [vmem:[#allocation2 + $0x1fa] sm:$0xff]
    %v1552 = vld [vmem:[#allocation2 + $0x202] sm:$0xff]
    %v1553 = vld [vmem:[#allocation2 + $0x212] sm:$0xff]
    %v1554 = vld [vmem:[#allocation2 + $0x21a] sm:$0xff]
    %v1555 = vld [vmem:[#allocation2 + $0x22a] sm:$0xff]
    %v1556 = vld [vmem:[#allocation2 + $0x232] sm:$0xff]
    %v1557 = vld [vmem:[#allocation2 + $0x242] sm:$0xff]
    %v1558 = vld [vmem:[#allocation2 + $0x24a] sm:$0xff]
    %v1559 = vld [vmem:[#allocation2 + $0x25a] sm:$0xff]
    %v1560 = vld [vmem:[#allocation2 + $0x262] sm:$0xff]
    %v1561 = vld [vmem:[#allocation2 + $0x272] sm:$0xff]
    %v1562 = vld [vmem:[#allocation2 + $0x27a] sm:$0xff]
    %v1563 = vld [vmem:[#allocation2 + $0x28a] sm:$0xff]
    %v1564 = vld [vmem:[#allocation2 + $0x292] sm:$0xff]
    %v1565 = vld [vmem:[#allocation2 + $0x2a2] sm:$0xff]
    %v1566 = vld [vmem:[#allocation2 + $0x2aa] sm:$0xff]
    %v1567 = vld [vmem:[#allocation2 + $0x2ba] sm:$0xff]
    %v1568 = vld [vmem:[#allocation2 + $0x2c2] sm:$0xff]
    %v1569 = vld [vmem:[#allocation2 + $0x2d2] sm:$0xff]
    %v1570 = vld [vmem:[#allocation2 + $0x2da] sm:$0xff]
    %v1571 = vld [vmem:[#allocation2 + $0x2ea] sm:$0xff]
    %v1572 = vld [vmem:[#allocation2 + $0x2f2] sm:$0xff]
    %v1573 = vld [vmem:[#allocation2 + $0x302] sm:$0xff]
    %v1574 = vld [vmem:[#allocation2 + $0x30a] sm:$0xff]
    %v1575 = vld [vmem:[#allocation2 + $0x31a] sm:$0xff]
    %v1576 = vld [vmem:[#allocation2 + $0x322] sm:$0xff]
    %1577 = vst [vmem:[#allocation3 + $0x10] sm:$0xff] %v1513
    %1578 = vst [vmem:[#allocation3 + $0x58] sm:$0xff] %v1514
    %1579 = vst [vmem:[#allocation3 + $0xa0] sm:$0xff] %v1515
    %1580 = vst [vmem:[#allocation3 + $0xe8] sm:$0xff] %v1516
    %1581 = vst [vmem:[#allocation3 + $0x130] sm:$0xff] %v1517
    %1582 = vst [vmem:[#allocation3 + $0x178] sm:$0xff] %v1518
    %1583 = vst [vmem:[#allocation3 + $0x1c0] sm:$0xff] %v1519
    %1584 = vst [vmem:[#allocation3 + $0x208] sm:$0xff] %v1520
    %1585 = vst [vmem:[#allocation3 + $0x250] sm:$0xff] %v1521
    %1586 = vst [vmem:[#allocation3 + $0x298] sm:$0xff] %v1522
    %1587 = vst [vmem:[#allocation3 + $0x2e0] sm:$0xff] %v1523
    %1588 = vst [vmem:[#allocation3 + $0x328] sm:$0xff] %v1524
    %1589 = vst [vmem:[#allocation3 + $0x370] sm:$0xff] %v1525
    %1590 = vst [vmem:[#allocation3 + $0x3b8] sm:$0xff] %v1526
    %1591 = vst [vmem:[#allocation3 + $0x400] sm:$0xff] %v1527
    %1592 = vst [vmem:[#allocation3 + $0x448] sm:$0xff] %v1528
    %1593 = vst [vmem:[#allocation3 + $0x490] sm:$0xff] %v1529
    %1594 = vst [vmem:[#allocation3 + $0x4d8] sm:$0xff] %v1530
    %1595 = vst [vmem:[#allocation3 + $0x520] sm:$0xff] %v1531
    %1596 = vst [vmem:[#allocation3 + $0x568] sm:$0xff] %v1532
    %1597 = vst [vmem:[#allocation3 + $0x5b0] sm:$0xff] %v1533
    %1598 = vst [vmem:[#allocation3 + $0x5f8] sm:$0xff] %v1534
    %1599 = vst [vmem:[#allocation3 + $0x640] sm:$0xff] %v1535
    %1600 = vst [vmem:[#allocation3 + $0x688] sm:$0xff] %v1536
    %1601 = vst [vmem:[#allocation3 + $0x6d0] sm:$0xff] %v1537
    %1602 = vst [vmem:[#allocation3 + $0x718] sm:$0xff] %v1538
    %1603 = vst [vmem:[#allocation3 + $0x760] sm:$0xff] %v1539
    %1604 = vst [vmem:[#allocation3 + $0x7a8] sm:$0xff] %v1540
    %1605 = vst [vmem:[#allocation3 + $0x7f0] sm:$0xff] %v1541
    %1606 = vst [vmem:[#allocation3 + $0x838] sm:$0xff] %v1542
    %1607 = vst [vmem:[#allocation3 + $0x880] sm:$0xff] %v1543
    %1608 = vst [vmem:[#allocation3 + $0x8c8] sm:$0xff] %v1544
    %1609 = vst [vmem:[#allocation3 + $0x910] sm:$0xff] %v1545
    %1610 = vst [vmem:[#allocation3 + $0x958] sm:$0xff] %v1546
    %1611 = vst [vmem:[#allocation3 + $0x9a0] sm:$0xff] %v1547
    %1612 = vst [vmem:[#allocation3 + $0x9e8] sm:$0xff] %v1548
    %1613 = vst [vmem:[#allocation3 + $0xa30] sm:$0xff] %v1549
    %1614 = vst [vmem:[#allocation3 + $0xa78] sm:$0xff] %v1550
    %1615 = vst [vmem:[#allocation3 + $0xac0] sm:$0xff] %v1551
    %1616 = vst [vmem:[#allocation3 + $0xb08] sm:$0xff] %v1552
    %1617 = vst [vmem:[#allocation3 + $0xb50] sm:$0xff] %v1553
    %1618 = vst [vmem:[#allocation3 + $0xb98] sm:$0xff] %v1554
    %1619 = vst [vmem:[#allocation3 + $0xbe0] sm:$0xff] %v1555
    %1620 = vst [vmem:[#allocation3 + $0xc28] sm:$0xff] %v1556
    %1621 = vst [vmem:[#allocation3 + $0xc70] sm:$0xff] %v1557
    %1622 = vst [vmem:[#allocation3 + $0xcb8] sm:$0xff] %v1558
    %1623 = vst [vmem:[#allocation3 + $0xd00] sm:$0xff] %v1559
    %1624 = vst [vmem:[#allocation3 + $0xd48] sm:$0xff] %v1560
    %1625 = vst [vmem:[#allocation3 + $0xd90] sm:$0xff] %v1561
    %1626 = vst [vmem:[#allocation3 + $0xdd8] sm:$0xff] %v1562
    %1627 = vst [vmem:[#allocation3 + $0xe20] sm:$0xff] %v1563
    %1628 = vst [vmem:[#allocation3 + $0xe68] sm:$0xff] %v1564
    %1629 = vst [vmem:[#allocation3 + $0xeb0] sm:$0xff] %v1565
    %1630 = vst [vmem:[#allocation3 + $0xef8] sm:$0xff] %v1566
    %1631 = vst [vmem:[#allocation3 + $0xf40] sm:$0xff] %v1567
    %1632 = vst [vmem:[#allocation3 + $0xf88] sm:$0xff] %v1568
    %1633 = vst [vmem:[#allocation3 + $0xfd0] sm:$0xff] %v1569
    %1634 = vst [vmem:[#allocation3 + $0x1018] sm:$0xff] %v1570
    %1635 = vst [vmem:[#allocation3 + $0x1060] sm:$0xff] %v1571
    %1636 = vst [vmem:[#allocation3 + $0x10a8] sm:$0xff] %v1572
    %1637 = vst [vmem:[#allocation3 + $0x10f0] sm:$0xff] %v1573
    %1638 = vst [vmem:[#allocation3 + $0x1138] sm:$0xff] %v1574
    %1639 = vst [vmem:[#allocation3 + $0x1180] sm:$0xff] %v1575
    %1640 = vst [vmem:[#allocation3 + $0x11c8] sm:$0xff] %v1576
    %v1641 = vld [vmem:[%s1128] sm:$0xff]
    %v1642 = vld [vmem:[%s1128 + $0x8] sm:$0xff]
    %v1643 = vld [vmem:[%s1128 + $0x18] sm:$0xff]
    %v1644 = vld [vmem:[%s1128 + $0x20] sm:$0xff]
    %v1645 = vld [vmem:[%s1128 + $0x30] sm:$0xff]
    %v1646 = vld [vmem:[%s1128 + $0x38] sm:$0xff]
    %v1647 = vld [vmem:[%s1128 + $0x48] sm:$0xff]
    %v1648 = vld [vmem:[%s1128 + $0x50] sm:$0xff]
    %v1649 = vld [vmem:[%s1128 + $0x60] sm:$0xff]
    %v1650 = vld [vmem:[%s1128 + $0x68] sm:$0xff]
    %v1651 = vld [vmem:[%s1128 + $0x78] sm:$0xff]
    %v1652 = vld [vmem:[%s1128 + $0x80] sm:$0xff]
    %v1653 = vld [vmem:[%s1128 + $0x90] sm:$0xff]
    %v1654 = vld [vmem:[%s1128 + $0x98] sm:$0xff]
    %v1655 = vld [vmem:[%s1128 + $0xa8] sm:$0xff]
    %v1656 = vld [vmem:[%s1128 + $0xb0] sm:$0xff]
    %v1657 = vld [vmem:[%s1128 + $0xc0] sm:$0xff]
    %v1658 = vld [vmem:[%s1128 + $0xc8] sm:$0xff]
    %v1659 = vld [vmem:[%s1128 + $0xd8] sm:$0xff]
    %v1660 = vld [vmem:[%s1128 + $0xe0] sm:$0xff]
    %v1661 = vld [vmem:[%s1128 + $0xf0] sm:$0xff]
    %v1662 = vld [vmem:[%s1128 + $0xf8] sm:$0xff]
    %v1663 = vld [vmem:[%s1128 + $0x108] sm:$0xff]
    %v1664 = vld [vmem:[%s1128 + $0x110] sm:$0xff]
    %v1665 = vld [vmem:[%s1128 + $0x120] sm:$0xff]
    %v1666 = vld [vmem:[%s1128 + $0x128] sm:$0xff]
    %v1667 = vld [vmem:[%s1128 + $0x138] sm:$0xff]
    %v1668 = vld [vmem:[%s1128 + $0x140] sm:$0xff]
    %v1669 = vld [vmem:[%s1128 + $0x150] sm:$0xff]
    %v1670 = vld [vmem:[%s1128 + $0x158] sm:$0xff]
    %v1671 = vld [vmem:[%s1128 + $0x168] sm:$0xff]
    %v1672 = vld [vmem:[%s1128 + $0x170] sm:$0xff]
    %v1673 = vld [vmem:[%s1128 + $0x1b0] sm:$0xff]
    %v1674 = vld [vmem:[%s1128 + $0x1b8] sm:$0xff]
    %v1675 = vld [vmem:[%s1128 + $0x1c8] sm:$0xff]
    %v1676 = vld [vmem:[%s1128 + $0x1d0] sm:$0xff]
    %v1677 = vld [vmem:[%s1128 + $0x1e0] sm:$0xff]
    %v1678 = vld [vmem:[%s1128 + $0x1e8] sm:$0xff]
    %v1679 = vld [vmem:[%s1128 + $0x1f8] sm:$0xff]
    %v1680 = vld [vmem:[%s1128 + $0x200] sm:$0xff]
    %v1681 = vld [vmem:[%s1128 + $0x210] sm:$0xff]
    %v1682 = vld [vmem:[%s1128 + $0x218] sm:$0xff]
    %v1683 = vld [vmem:[%s1128 + $0x228] sm:$0xff]
    %v1684 = vld [vmem:[%s1128 + $0x230] sm:$0xff]
    %v1685 = vld [vmem:[%s1128 + $0x240] sm:$0xff]
    %v1686 = vld [vmem:[%s1128 + $0x248] sm:$0xff]
    %v1687 = vld [vmem:[%s1128 + $0x258] sm:$0xff]
    %v1688 = vld [vmem:[%s1128 + $0x260] sm:$0xff]
    %v1689 = vld [vmem:[%s1128 + $0x270] sm:$0xff]
    %v1690 = vld [vmem:[%s1128 + $0x278] sm:$0xff]
    %v1691 = vld [vmem:[%s1128 + $0x288] sm:$0xff]
    %v1692 = vld [vmem:[%s1128 + $0x290] sm:$0xff]
    %v1693 = vld [vmem:[%s1128 + $0x2a0] sm:$0xff]
    %v1694 = vld [vmem:[%s1128 + $0x2a8] sm:$0xff]
    %v1695 = vld [vmem:[%s1128 + $0x2b8] sm:$0xff]
    %v1696 = vld [vmem:[%s1128 + $0x2c0] sm:$0xff]
    %v1697 = vld [vmem:[%s1128 + $0x2d0] sm:$0xff]
    %v1698 = vld [vmem:[%s1128 + $0x2d8] sm:$0xff]
    %v1699 = vld [vmem:[%s1128 + $0x2e8] sm:$0xff]
    %v1700 = vld [vmem:[%s1128 + $0x2f0] sm:$0xff]
    %v1701 = vld [vmem:[%s1128 + $0x300] sm:$0xff]
    %v1702 = vld [vmem:[%s1128 + $0x308] sm:$0xff]
    %v1703 = vld [vmem:[%s1128 + $0x318] sm:$0xff]
    %v1704 = vld [vmem:[%s1128 + $0x320] sm:$0xff]
    %1705 = vst [vmem:[#allocation3 + $0x18] sm:$0xff] %v1641
    %1706 = vst [vmem:[#allocation3 + $0x60] sm:$0xff] %v1642
    %1707 = vst [vmem:[#allocation3 + $0xa8] sm:$0xff] %v1643
    %1708 = vst [vmem:[#allocation3 + $0xf0] sm:$0xff] %v1644
    %1709 = vst [vmem:[#allocation3 + $0x138] sm:$0xff] %v1645
    %1710 = vst [vmem:[#allocation3 + $0x180] sm:$0xff] %v1646
    %1711 = vst [vmem:[#allocation3 + $0x1c8] sm:$0xff] %v1647
    %1712 = vst [vmem:[#allocation3 + $0x210] sm:$0xff] %v1648
    %1713 = vst [vmem:[#allocation3 + $0x258] sm:$0xff] %v1649
    %1714 = vst [vmem:[#allocation3 + $0x2a0] sm:$0xff] %v1650
    %1715 = vst [vmem:[#allocation3 + $0x2e8] sm:$0xff] %v1651
    %1716 = vst [vmem:[#allocation3 + $0x330] sm:$0xff] %v1652
    %1717 = vst [vmem:[#allocation3 + $0x378] sm:$0xff] %v1653
    %1718 = vst [vmem:[#allocation3 + $0x3c0] sm:$0xff] %v1654
    %1719 = vst [vmem:[#allocation3 + $0x408] sm:$0xff] %v1655
    %1720 = vst [vmem:[#allocation3 + $0x450] sm:$0xff] %v1656
    %1721 = vst [vmem:[#allocation3 + $0x498] sm:$0xff] %v1657
    %1722 = vst [vmem:[#allocation3 + $0x4e0] sm:$0xff] %v1658
    %1723 = vst [vmem:[#allocation3 + $0x528] sm:$0xff] %v1659
    %1724 = vst [vmem:[#allocation3 + $0x570] sm:$0xff] %v1660
    %1725 = vst [vmem:[#allocation3 + $0x5b8] sm:$0xff] %v1661
    %1726 = vst [vmem:[#allocation3 + $0x600] sm:$0xff] %v1662
    %1727 = vst [vmem:[#allocation3 + $0x648] sm:$0xff] %v1663
    %1728 = vst [vmem:[#allocation3 + $0x690] sm:$0xff] %v1664
    %1729 = vst [vmem:[#allocation3 + $0x6d8] sm:$0xff] %v1665
    %1730 = vst [vmem:[#allocation3 + $0x720] sm:$0xff] %v1666
    %1731 = vst [vmem:[#allocation3 + $0x768] sm:$0xff] %v1667
    %1732 = vst [vmem:[#allocation3 + $0x7b0] sm:$0xff] %v1668
    %1733 = vst [vmem:[#allocation3 + $0x7f8] sm:$0xff] %v1669
    %1734 = vst [vmem:[#allocation3 + $0x840] sm:$0xff] %v1670
    %1735 = vst [vmem:[#allocation3 + $0x888] sm:$0xff] %v1671
    %1736 = vst [vmem:[#allocation3 + $0x8d0] sm:$0xff] %v1672
    %1737 = vst [vmem:[#allocation3 + $0x918] sm:$0xff] %v1673
    %1738 = vst [vmem:[#allocation3 + $0x960] sm:$0xff] %v1674
    %1739 = vst [vmem:[#allocation3 + $0x9a8] sm:$0xff] %v1675
    %1740 = vst [vmem:[#allocation3 + $0x9f0] sm:$0xff] %v1676
    %1741 = vst [vmem:[#allocation3 + $0xa38] sm:$0xff] %v1677
    %1742 = vst [vmem:[#allocation3 + $0xa80] sm:$0xff] %v1678
    %1743 = vst [vmem:[#allocation3 + $0xac8] sm:$0xff] %v1679
    %1744 = vst [vmem:[#allocation3 + $0xb10] sm:$0xff] %v1680
    %1745 = vst [vmem:[#allocation3 + $0xb58] sm:$0xff] %v1681
    %1746 = vst [vmem:[#allocation3 + $0xba0] sm:$0xff] %v1682
    %1747 = vst [vmem:[#allocation3 + $0xbe8] sm:$0xff] %v1683
    %1748 = vst [vmem:[#allocation3 + $0xc30] sm:$0xff] %v1684
    %1749 = vst [vmem:[#allocation3 + $0xc78] sm:$0xff] %v1685
    %1750 = vst [vmem:[#allocation3 + $0xcc0] sm:$0xff] %v1686
    %1751 = vst [vmem:[#allocation3 + $0xd08] sm:$0xff] %v1687
    %1752 = vst [vmem:[#allocation3 + $0xd50] sm:$0xff] %v1688
    %1753 = vst [vmem:[#allocation3 + $0xd98] sm:$0xff] %v1689
    %1754 = vst [vmem:[#allocation3 + $0xde0] sm:$0xff] %v1690
    %1755 = vst [vmem:[#allocation3 + $0xe28] sm:$0xff] %v1691
    %1756 = vst [vmem:[#allocation3 + $0xe70] sm:$0xff] %v1692
    %1757 = vst [vmem:[#allocation3 + $0xeb8] sm:$0xff] %v1693
    %1758 = vst [vmem:[#allocation3 + $0xf00] sm:$0xff] %v1694
    %1759 = vst [vmem:[#allocation3 + $0xf48] sm:$0xff] %v1695
    %1760 = vst [vmem:[#allocation3 + $0xf90] sm:$0xff] %v1696
    %1761 = vst [vmem:[#allocation3 + $0xfd8] sm:$0xff] %v1697
    %1762 = vst [vmem:[#allocation3 + $0x1020] sm:$0xff] %v1698
    %1763 = vst [vmem:[#allocation3 + $0x1068] sm:$0xff] %v1699
    %1764 = vst [vmem:[#allocation3 + $0x10b0] sm:$0xff] %v1700
    %1765 = vst [vmem:[#allocation3 + $0x10f8] sm:$0xff] %v1701
    %1766 = vst [vmem:[#allocation3 + $0x1140] sm:$0xff] %v1702
    %1767 = vst [vmem:[#allocation3 + $0x1188] sm:$0xff] %v1703
    %1768 = vst [vmem:[#allocation3 + $0x11d0] sm:$0xff] %v1704
    %v1769 = vld [vmem:[%s1128 + $0x1] sm:$0xff]
    %v1770 = vld [vmem:[%s1128 + $0x9] sm:$0xff]
    %v1771 = vld [vmem:[%s1128 + $0x19] sm:$0xff]
    %v1772 = vld [vmem:[%s1128 + $0x21] sm:$0xff]
    %v1773 = vld [vmem:[%s1128 + $0x31] sm:$0xff]
    %v1774 = vld [vmem:[%s1128 + $0x39] sm:$0xff]
    %v1775 = vld [vmem:[%s1128 + $0x49] sm:$0xff]
    %v1776 = vld [vmem:[%s1128 + $0x51] sm:$0xff]
    %v1777 = vld [vmem:[%s1128 + $0x61] sm:$0xff]
    %v1778 = vld [vmem:[%s1128 + $0x69] sm:$0xff]
    %v1779 = vld [vmem:[%s1128 + $0x79] sm:$0xff]
    %v1780 = vld [vmem:[%s1128 + $0x81] sm:$0xff]
    %v1781 = vld [vmem:[%s1128 + $0x91] sm:$0xff]
    %v1782 = vld [vmem:[%s1128 + $0x99] sm:$0xff]
    %v1783 = vld [vmem:[%s1128 + $0xa9] sm:$0xff]
    %v1784 = vld [vmem:[%s1128 + $0xb1] sm:$0xff]
    %v1785 = vld [vmem:[%s1128 + $0xc1] sm:$0xff]
    %v1786 = vld [vmem:[%s1128 + $0xc9] sm:$0xff]
    %v1787 = vld [vmem:[%s1128 + $0xd9] sm:$0xff]
    %v1788 = vld [vmem:[%s1128 + $0xe1] sm:$0xff]
    %v1789 = vld [vmem:[%s1128 + $0xf1] sm:$0xff]
    %v1790 = vld [vmem:[%s1128 + $0xf9] sm:$0xff]
    %v1791 = vld [vmem:[%s1128 + $0x109] sm:$0xff]
    %v1792 = vld [vmem:[%s1128 + $0x111] sm:$0xff]
    %v1793 = vld [vmem:[%s1128 + $0x121] sm:$0xff]
    %v1794 = vld [vmem:[%s1128 + $0x129] sm:$0xff]
    %v1795 = vld [vmem:[%s1128 + $0x139] sm:$0xff]
    %v1796 = vld [vmem:[%s1128 + $0x141] sm:$0xff]
    %v1797 = vld [vmem:[%s1128 + $0x151] sm:$0xff]
    %v1798 = vld [vmem:[%s1128 + $0x159] sm:$0xff]
    %v1799 = vld [vmem:[%s1128 + $0x169] sm:$0xff]
    %v1800 = vld [vmem:[%s1128 + $0x171] sm:$0xff]
    %v1801 = vld [vmem:[%s1128 + $0x1b1] sm:$0xff]
    %v1802 = vld [vmem:[%s1128 + $0x1b9] sm:$0xff]
    %v1803 = vld [vmem:[%s1128 + $0x1c9] sm:$0xff]
    %v1804 = vld [vmem:[%s1128 + $0x1d1] sm:$0xff]
    %v1805 = vld [vmem:[%s1128 + $0x1e1] sm:$0xff]
    %v1806 = vld [vmem:[%s1128 + $0x1e9] sm:$0xff]
    %v1807 = vld [vmem:[%s1128 + $0x1f9] sm:$0xff]
    %v1808 = vld [vmem:[%s1128 + $0x201] sm:$0xff]
    %v1809 = vld [vmem:[%s1128 + $0x211] sm:$0xff]
    %v1810 = vld [vmem:[%s1128 + $0x219] sm:$0xff]
    %v1811 = vld [vmem:[%s1128 + $0x229] sm:$0xff]
    %v1812 = vld [vmem:[%s1128 + $0x231] sm:$0xff]
    %v1813 = vld [vmem:[%s1128 + $0x241] sm:$0xff]
    %v1814 = vld [vmem:[%s1128 + $0x249] sm:$0xff]
    %v1815 = vld [vmem:[%s1128 + $0x259] sm:$0xff]
    %v1816 = vld [vmem:[%s1128 + $0x261] sm:$0xff]
    %v1817 = vld [vmem:[%s1128 + $0x271] sm:$0xff]
    %v1818 = vld [vmem:[%s1128 + $0x279] sm:$0xff]
    %v1819 = vld [vmem:[%s1128 + $0x289] sm:$0xff]
    %v1820 = vld [vmem:[%s1128 + $0x291] sm:$0xff]
    %v1821 = vld [vmem:[%s1128 + $0x2a1] sm:$0xff]
    %v1822 = vld [vmem:[%s1128 + $0x2a9] sm:$0xff]
    %v1823 = vld [vmem:[%s1128 + $0x2b9] sm:$0xff]
    %v1824 = vld [vmem:[%s1128 + $0x2c1] sm:$0xff]
    %v1825 = vld [vmem:[%s1128 + $0x2d1] sm:$0xff]
    %v1826 = vld [vmem:[%s1128 + $0x2d9] sm:$0xff]
    %v1827 = vld [vmem:[%s1128 + $0x2e9] sm:$0xff]
    %v1828 = vld [vmem:[%s1128 + $0x2f1] sm:$0xff]
    %v1829 = vld [vmem:[%s1128 + $0x301] sm:$0xff]
    %v1830 = vld [vmem:[%s1128 + $0x309] sm:$0xff]
    %v1831 = vld [vmem:[%s1128 + $0x319] sm:$0xff]
    %v1832 = vld [vmem:[%s1128 + $0x321] sm:$0xff]
    %1833 = vst [vmem:[#allocation3 + $0x20] sm:$0xff] %v1769
    %1834 = vst [vmem:[#allocation3 + $0x68] sm:$0xff] %v1770
    %1835 = vst [vmem:[#allocation3 + $0xb0] sm:$0xff] %v1771
    %1836 = vst [vmem:[#allocation3 + $0xf8] sm:$0xff] %v1772
    %1837 = vst [vmem:[#allocation3 + $0x140] sm:$0xff] %v1773
    %1838 = vst [vmem:[#allocation3 + $0x188] sm:$0xff] %v1774
    %1839 = vst [vmem:[#allocation3 + $0x1d0] sm:$0xff] %v1775
    %1840 = vst [vmem:[#allocation3 + $0x218] sm:$0xff] %v1776
    %1841 = vst [vmem:[#allocation3 + $0x260] sm:$0xff] %v1777
    %1842 = vst [vmem:[#allocation3 + $0x2a8] sm:$0xff] %v1778
    %1843 = vst [vmem:[#allocation3 + $0x2f0] sm:$0xff] %v1779
    %1844 = vst [vmem:[#allocation3 + $0x338] sm:$0xff] %v1780
    %1845 = vst [vmem:[#allocation3 + $0x380] sm:$0xff] %v1781
    %1846 = vst [vmem:[#allocation3 + $0x3c8] sm:$0xff] %v1782
    %1847 = vst [vmem:[#allocation3 + $0x410] sm:$0xff] %v1783
    %1848 = vst [vmem:[#allocation3 + $0x458] sm:$0xff] %v1784
    %1849 = vst [vmem:[#allocation3 + $0x4a0] sm:$0xff] %v1785
    %1850 = vst [vmem:[#allocation3 + $0x4e8] sm:$0xff] %v1786
    %1851 = vst [vmem:[#allocation3 + $0x530] sm:$0xff] %v1787
    %1852 = vst [vmem:[#allocation3 + $0x578] sm:$0xff] %v1788
    %1853 = vst [vmem:[#allocation3 + $0x5c0] sm:$0xff] %v1789
    %1854 = vst [vmem:[#allocation3 + $0x608] sm:$0xff] %v1790
    %1855 = vst [vmem:[#allocation3 + $0x650] sm:$0xff] %v1791
    %1856 = vst [vmem:[#allocation3 + $0x698] sm:$0xff] %v1792
    %1857 = vst [vmem:[#allocation3 + $0x6e0] sm:$0xff] %v1793
    %1858 = vst [vmem:[#allocation3 + $0x728] sm:$0xff] %v1794
    %1859 = vst [vmem:[#allocation3 + $0x770] sm:$0xff] %v1795
    %1860 = vst [vmem:[#allocation3 + $0x7b8] sm:$0xff] %v1796
    %1861 = vst [vmem:[#allocation3 + $0x800] sm:$0xff] %v1797
    %1862 = vst [vmem:[#allocation3 + $0x848] sm:$0xff] %v1798
    %1863 = vst [vmem:[#allocation3 + $0x890] sm:$0xff] %v1799
    %1864 = vst [vmem:[#allocation3 + $0x8d8] sm:$0xff] %v1800
    %1865 = vst [vmem:[#allocation3 + $0x920] sm:$0xff] %v1801
    %1866 = vst [vmem:[#allocation3 + $0x968] sm:$0xff] %v1802
    %1867 = vst [vmem:[#allocation3 + $0x9b0] sm:$0xff] %v1803
    %1868 = vst [vmem:[#allocation3 + $0x9f8] sm:$0xff] %v1804
    %1869 = vst [vmem:[#allocation3 + $0xa40] sm:$0xff] %v1805
    %1870 = vst [vmem:[#allocation3 + $0xa88] sm:$0xff] %v1806
    %1871 = vst [vmem:[#allocation3 + $0xad0] sm:$0xff] %v1807
    %1872 = vst [vmem:[#allocation3 + $0xb18] sm:$0xff] %v1808
    %1873 = vst [vmem:[#allocation3 + $0xb60] sm:$0xff] %v1809
    %1874 = vst [vmem:[#allocation3 + $0xba8] sm:$0xff] %v1810
    %1875 = vst [vmem:[#allocation3 + $0xbf0] sm:$0xff] %v1811
    %1876 = vst [vmem:[#allocation3 + $0xc38] sm:$0xff] %v1812
    %1877 = vst [vmem:[#allocation3 + $0xc80] sm:$0xff] %v1813
    %1878 = vst [vmem:[#allocation3 + $0xcc8] sm:$0xff] %v1814
    %1879 = vst [vmem:[#allocation3 + $0xd10] sm:$0xff] %v1815
    %1880 = vst [vmem:[#allocation3 + $0xd58] sm:$0xff] %v1816
    %1881 = vst [vmem:[#allocation3 + $0xda0] sm:$0xff] %v1817
    %1882 = vst [vmem:[#allocation3 + $0xde8] sm:$0xff] %v1818
    %1883 = vst [vmem:[#allocation3 + $0xe30] sm:$0xff] %v1819
    %1884 = vst [vmem:[#allocation3 + $0xe78] sm:$0xff] %v1820
    %1885 = vst [vmem:[#allocation3 + $0xec0] sm:$0xff] %v1821
    %1886 = vst [vmem:[#allocation3 + $0xf08] sm:$0xff] %v1822
    %1887 = vst [vmem:[#allocation3 + $0xf50] sm:$0xff] %v1823
    %1888 = vst [vmem:[#allocation3 + $0xf98] sm:$0xff] %v1824
    %1889 = vst [vmem:[#allocation3 + $0xfe0] sm:$0xff] %v1825
    %1890 = vst [vmem:[#allocation3 + $0x1028] sm:$0xff] %v1826
    %1891 = vst [vmem:[#allocation3 + $0x1070] sm:$0xff] %v1827
    %1892 = vst [vmem:[#allocation3 + $0x10b8] sm:$0xff] %v1828
    %1893 = vst [vmem:[#allocation3 + $0x1100] sm:$0xff] %v1829
    %1894 = vst [vmem:[#allocation3 + $0x1148] sm:$0xff] %v1830
    %1895 = vst [vmem:[#allocation3 + $0x1190] sm:$0xff] %v1831
    %1896 = vst [vmem:[#allocation3 + $0x11d8] sm:$0xff] %v1832
    %v1897 = vld [vmem:[%s1128 + $0x2] sm:$0xff]
    %v1898 = vld [vmem:[%s1128 + $0xa] sm:$0xff]
    %v1899 = vld [vmem:[%s1128 + $0x1a] sm:$0xff]
    %v1900 = vld [vmem:[%s1128 + $0x22] sm:$0xff]
    %v1901 = vld [vmem:[%s1128 + $0x32] sm:$0xff]
    %v1902 = vld [vmem:[%s1128 + $0x3a] sm:$0xff]
    %v1903 = vld [vmem:[%s1128 + $0x4a] sm:$0xff]
    %v1904 = vld [vmem:[%s1128 + $0x52] sm:$0xff]
    %v1905 = vld [vmem:[%s1128 + $0x62] sm:$0xff]
    %v1906 = vld [vmem:[%s1128 + $0x6a] sm:$0xff]
    %v1907 = vld [vmem:[%s1128 + $0x7a] sm:$0xff]
    %v1908 = vld [vmem:[%s1128 + $0x82] sm:$0xff]
    %v1909 = vld [vmem:[%s1128 + $0x92] sm:$0xff]
    %v1910 = vld [vmem:[%s1128 + $0x9a] sm:$0xff]
    %v1911 = vld [vmem:[%s1128 + $0xaa] sm:$0xff]
    %v1912 = vld [vmem:[%s1128 + $0xb2] sm:$0xff]
    %v1913 = vld [vmem:[%s1128 + $0xc2] sm:$0xff]
    %v1914 = vld [vmem:[%s1128 + $0xca] sm:$0xff]
    %v1915 = vld [vmem:[%s1128 + $0xda] sm:$0xff]
    %v1916 = vld [vmem:[%s1128 + $0xe2] sm:$0xff]
    %v1917 = vld [vmem:[%s1128 + $0xf2] sm:$0xff]
    %v1918 = vld [vmem:[%s1128 + $0xfa] sm:$0xff]
    %v1919 = vld [vmem:[%s1128 + $0x10a] sm:$0xff]
    %v1920 = vld [vmem:[%s1128 + $0x112] sm:$0xff]
    %v1921 = vld [vmem:[%s1128 + $0x122] sm:$0xff]
    %v1922 = vld [vmem:[%s1128 + $0x12a] sm:$0xff]
    %v1923 = vld [vmem:[%s1128 + $0x13a] sm:$0xff]
    %v1924 = vld [vmem:[%s1128 + $0x142] sm:$0xff]
    %v1925 = vld [vmem:[%s1128 + $0x152] sm:$0xff]
    %v1926 = vld [vmem:[%s1128 + $0x15a] sm:$0xff]
    %v1927 = vld [vmem:[%s1128 + $0x16a] sm:$0xff]
    %v1928 = vld [vmem:[%s1128 + $0x172] sm:$0xff]
    %v1929 = vld [vmem:[%s1128 + $0x1b2] sm:$0xff]
    %v1930 = vld [vmem:[%s1128 + $0x1ba] sm:$0xff]
    %v1931 = vld [vmem:[%s1128 + $0x1ca] sm:$0xff]
    %v1932 = vld [vmem:[%s1128 + $0x1d2] sm:$0xff]
    %v1933 = vld [vmem:[%s1128 + $0x1e2] sm:$0xff]
    %v1934 = vld [vmem:[%s1128 + $0x1ea] sm:$0xff]
    %v1935 = vld [vmem:[%s1128 + $0x1fa] sm:$0xff]
    %v1936 = vld [vmem:[%s1128 + $0x202] sm:$0xff]
    %v1937 = vld [vmem:[%s1128 + $0x212] sm:$0xff]
    %v1938 = vld [vmem:[%s1128 + $0x21a] sm:$0xff]
    %v1939 = vld [vmem:[%s1128 + $0x22a] sm:$0xff]
    %v1940 = vld [vmem:[%s1128 + $0x232] sm:$0xff]
    %v1941 = vld [vmem:[%s1128 + $0x242] sm:$0xff]
    %v1942 = vld [vmem:[%s1128 + $0x24a] sm:$0xff]
    %v1943 = vld [vmem:[%s1128 + $0x25a] sm:$0xff]
    %v1944 = vld [vmem:[%s1128 + $0x262] sm:$0xff]
    %v1945 = vld [vmem:[%s1128 + $0x272] sm:$0xff]
    %v1946 = vld [vmem:[%s1128 + $0x27a] sm:$0xff]
    %v1947 = vld [vmem:[%s1128 + $0x28a] sm:$0xff]
    %v1948 = vld [vmem:[%s1128 + $0x292] sm:$0xff]
    %v1949 = vld [vmem:[%s1128 + $0x2a2] sm:$0xff]
    %v1950 = vld [vmem:[%s1128 + $0x2aa] sm:$0xff]
    %v1951 = vld [vmem:[%s1128 + $0x2ba] sm:$0xff]
    %v1952 = vld [vmem:[%s1128 + $0x2c2] sm:$0xff]
    %v1953 = vld [vmem:[%s1128 + $0x2d2] sm:$0xff]
    %v1954 = vld [vmem:[%s1128 + $0x2da] sm:$0xff]
    %v1955 = vld [vmem:[%s1128 + $0x2ea] sm:$0xff]
    %v1956 = vld [vmem:[%s1128 + $0x2f2] sm:$0xff]
    %v1957 = vld [vmem:[%s1128 + $0x302] sm:$0xff]
    %v1958 = vld [vmem:[%s1128 + $0x30a] sm:$0xff]
    %v1959 = vld [vmem:[%s1128 + $0x31a] sm:$0xff]
    %v1960 = vld [vmem:[%s1128 + $0x322] sm:$0xff]
    %1961 = vst [vmem:[#allocation3 + $0x28] sm:$0xff] %v1897
    %1962 = vst [vmem:[#allocation3 + $0x70] sm:$0xff] %v1898
    %1963 = vst [vmem:[#allocation3 + $0xb8] sm:$0xff] %v1899
    %1964 = vst [vmem:[#allocation3 + $0x100] sm:$0xff] %v1900
    %1965 = vst [vmem:[#allocation3 + $0x148] sm:$0xff] %v1901
    %1966 = vst [vmem:[#allocation3 + $0x190] sm:$0xff] %v1902
    %1967 = vst [vmem:[#allocation3 + $0x1d8] sm:$0xff] %v1903
    %1968 = vst [vmem:[#allocation3 + $0x220] sm:$0xff] %v1904
    %1969 = vst [vmem:[#allocation3 + $0x268] sm:$0xff] %v1905
    %1970 = vst [vmem:[#allocation3 + $0x2b0] sm:$0xff] %v1906
    %1971 = vst [vmem:[#allocation3 + $0x2f8] sm:$0xff] %v1907
    %1972 = vst [vmem:[#allocation3 + $0x340] sm:$0xff] %v1908
    %1973 = vst [vmem:[#allocation3 + $0x388] sm:$0xff] %v1909
    %1974 = vst [vmem:[#allocation3 + $0x3d0] sm:$0xff] %v1910
    %1975 = vst [vmem:[#allocation3 + $0x418] sm:$0xff] %v1911
    %1976 = vst [vmem:[#allocation3 + $0x460] sm:$0xff] %v1912
    %1977 = vst [vmem:[#allocation3 + $0x4a8] sm:$0xff] %v1913
    %1978 = vst [vmem:[#allocation3 + $0x4f0] sm:$0xff] %v1914
    %1979 = vst [vmem:[#allocation3 + $0x538] sm:$0xff] %v1915
    %1980 = vst [vmem:[#allocation3 + $0x580] sm:$0xff] %v1916
    %1981 = vst [vmem:[#allocation3 + $0x5c8] sm:$0xff] %v1917
    %1982 = vst [vmem:[#allocation3 + $0x610] sm:$0xff] %v1918
    %1983 = vst [vmem:[#allocation3 + $0x658] sm:$0xff] %v1919
    %1984 = vst [vmem:[#allocation3 + $0x6a0] sm:$0xff] %v1920
    %1985 = vst [vmem:[#allocation3 + $0x6e8] sm:$0xff] %v1921
    %1986 = vst [vmem:[#allocation3 + $0x730] sm:$0xff] %v1922
    %1987 = vst [vmem:[#allocation3 + $0x778] sm:$0xff] %v1923
    %1988 = vst [vmem:[#allocation3 + $0x7c0] sm:$0xff] %v1924
    %1989 = vst [vmem:[#allocation3 + $0x808] sm:$0xff] %v1925
    %1990 = vst [vmem:[#allocation3 + $0x850] sm:$0xff] %v1926
    %1991 = vst [vmem:[#allocation3 + $0x898] sm:$0xff] %v1927
    %1992 = vst [vmem:[#allocation3 + $0x8e0] sm:$0xff] %v1928
    %1993 = vst [vmem:[#allocation3 + $0x928] sm:$0xff] %v1929
    %1994 = vst [vmem:[#allocation3 + $0x970] sm:$0xff] %v1930
    %1995 = vst [vmem:[#allocation3 + $0x9b8] sm:$0xff] %v1931
    %1996 = vst [vmem:[#allocation3 + $0xa00] sm:$0xff] %v1932
    %1997 = vst [vmem:[#allocation3 + $0xa48] sm:$0xff] %v1933
    %1998 = vst [vmem:[#allocation3 + $0xa90] sm:$0xff] %v1934
    %1999 = vst [vmem:[#allocation3 + $0xad8] sm:$0xff] %v1935
    %2000 = vst [vmem:[#allocation3 + $0xb20] sm:$0xff] %v1936
    %2001 = vst [vmem:[#allocation3 + $0xb68] sm:$0xff] %v1937
    %2002 = vst [vmem:[#allocation3 + $0xbb0] sm:$0xff] %v1938
    %2003 = vst [vmem:[#allocation3 + $0xbf8] sm:$0xff] %v1939
    %2004 = vst [vmem:[#allocation3 + $0xc40] sm:$0xff] %v1940
    %2005 = vst [vmem:[#allocation3 + $0xc88] sm:$0xff] %v1941
    %2006 = vst [vmem:[#allocation3 + $0xcd0] sm:$0xff] %v1942
    %2007 = vst [vmem:[#allocation3 + $0xd18] sm:$0xff] %v1943
    %2008 = vst [vmem:[#allocation3 + $0xd60] sm:$0xff] %v1944
    %2009 = vst [vmem:[#allocation3 + $0xda8] sm:$0xff] %v1945
    %2010 = vst [vmem:[#allocation3 + $0xdf0] sm:$0xff] %v1946
    %2011 = vst [vmem:[#allocation3 + $0xe38] sm:$0xff] %v1947
    %2012 = vst [vmem:[#allocation3 + $0xe80] sm:$0xff] %v1948
    %2013 = vst [vmem:[#allocation3 + $0xec8] sm:$0xff] %v1949
    %2014 = vst [vmem:[#allocation3 + $0xf10] sm:$0xff] %v1950
    %2015 = vst [vmem:[#allocation3 + $0xf58] sm:$0xff] %v1951
    %2016 = vst [vmem:[#allocation3 + $0xfa0] sm:$0xff] %v1952
    %2017 = vst [vmem:[#allocation3 + $0xfe8] sm:$0xff] %v1953
    %2018 = vst [vmem:[#allocation3 + $0x1030] sm:$0xff] %v1954
    %2019 = vst [vmem:[#allocation3 + $0x1078] sm:$0xff] %v1955
    %2020 = vst [vmem:[#allocation3 + $0x10c0] sm:$0xff] %v1956
    %2021 = vst [vmem:[#allocation3 + $0x1108] sm:$0xff] %v1957
    %2022 = vst [vmem:[#allocation3 + $0x1150] sm:$0xff] %v1958
    %2023 = vst [vmem:[#allocation3 + $0x1198] sm:$0xff] %v1959
    %2024 = vst [vmem:[#allocation3 + $0x11e0] sm:$0xff] %v1960
    %s2025 = scalar_lea.vmem [#allocation2], 48
    %v2026 = vld [vmem:[%s2025] sm:$0xff]
    %v2027 = vld [vmem:[%s2025 + $0x8] sm:$0xff]
    %v2028 = vld [vmem:[%s2025 + $0x18] sm:$0xff]
    %v2029 = vld [vmem:[%s2025 + $0x20] sm:$0xff]
    %v2030 = vld [vmem:[%s2025 + $0x30] sm:$0xff]
    %v2031 = vld [vmem:[%s2025 + $0x38] sm:$0xff]
    %v2032 = vld [vmem:[%s2025 + $0x48] sm:$0xff]
    %v2033 = vld [vmem:[%s2025 + $0x50] sm:$0xff]
    %v2034 = vld [vmem:[%s2025 + $0x60] sm:$0xff]
    %v2035 = vld [vmem:[%s2025 + $0x68] sm:$0xff]
    %v2036 = vld [vmem:[%s2025 + $0x78] sm:$0xff]
    %v2037 = vld [vmem:[%s2025 + $0x80] sm:$0xff]
    %v2038 = vld [vmem:[%s2025 + $0x90] sm:$0xff]
    %v2039 = vld [vmem:[%s2025 + $0x98] sm:$0xff]
    %v2040 = vld [vmem:[%s2025 + $0xa8] sm:$0xff]
    %v2041 = vld [vmem:[%s2025 + $0xb0] sm:$0xff]
    %v2042 = vld [vmem:[%s2025 + $0xc0] sm:$0xff]
    %v2043 = vld [vmem:[%s2025 + $0xc8] sm:$0xff]
    %v2044 = vld [vmem:[%s2025 + $0xd8] sm:$0xff]
    %v2045 = vld [vmem:[%s2025 + $0xe0] sm:$0xff]
    %v2046 = vld [vmem:[%s2025 + $0xf0] sm:$0xff]
    %v2047 = vld [vmem:[%s2025 + $0xf8] sm:$0xff]
    %v2048 = vld [vmem:[%s2025 + $0x108] sm:$0xff]
    %v2049 = vld [vmem:[%s2025 + $0x110] sm:$0xff]
    %v2050 = vld [vmem:[%s2025 + $0x120] sm:$0xff]
    %v2051 = vld [vmem:[%s2025 + $0x128] sm:$0xff]
    %v2052 = vld [vmem:[%s2025 + $0x138] sm:$0xff]
    %v2053 = vld [vmem:[%s2025 + $0x140] sm:$0xff]
    %v2054 = vld [vmem:[%s2025 + $0x150] sm:$0xff]
    %v2055 = vld [vmem:[%s2025 + $0x158] sm:$0xff]
    %v2056 = vld [vmem:[%s2025 + $0x168] sm:$0xff]
    %v2057 = vld [vmem:[%s2025 + $0x170] sm:$0xff]
    %v2058 = vld [vmem:[%s2025 + $0x1b0] sm:$0xff]
    %v2059 = vld [vmem:[%s2025 + $0x1b8] sm:$0xff]
    %v2060 = vld [vmem:[%s2025 + $0x1c8] sm:$0xff]
    %v2061 = vld [vmem:[%s2025 + $0x1d0] sm:$0xff]
    %v2062 = vld [vmem:[%s2025 + $0x1e0] sm:$0xff]
    %v2063 = vld [vmem:[%s2025 + $0x1e8] sm:$0xff]
    %v2064 = vld [vmem:[%s2025 + $0x1f8] sm:$0xff]
    %v2065 = vld [vmem:[%s2025 + $0x200] sm:$0xff]
    %v2066 = vld [vmem:[%s2025 + $0x210] sm:$0xff]
    %v2067 = vld [vmem:[%s2025 + $0x218] sm:$0xff]
    %v2068 = vld [vmem:[%s2025 + $0x228] sm:$0xff]
    %v2069 = vld [vmem:[%s2025 + $0x230] sm:$0xff]
    %v2070 = vld [vmem:[%s2025 + $0x240] sm:$0xff]
    %v2071 = vld [vmem:[%s2025 + $0x248] sm:$0xff]
    %v2072 = vld [vmem:[%s2025 + $0x258] sm:$0xff]
    %v2073 = vld [vmem:[%s2025 + $0x260] sm:$0xff]
    %v2074 = vld [vmem:[%s2025 + $0x270] sm:$0xff]
    %v2075 = vld [vmem:[%s2025 + $0x278] sm:$0xff]
    %v2076 = vld [vmem:[%s2025 + $0x288] sm:$0xff]
    %v2077 = vld [vmem:[%s2025 + $0x290] sm:$0xff]
    %v2078 = vld [vmem:[%s2025 + $0x2a0] sm:$0xff]
    %v2079 = vld [vmem:[%s2025 + $0x2a8] sm:$0xff]
    %v2080 = vld [vmem:[%s2025 + $0x2b8] sm:$0xff]
    %v2081 = vld [vmem:[%s2025 + $0x2c0] sm:$0xff]
    %v2082 = vld [vmem:[%s2025 + $0x2d0] sm:$0xff]
    %v2083 = vld [vmem:[%s2025 + $0x2d8] sm:$0xff]
    %v2084 = vld [vmem:[%s2025 + $0x2e8] sm:$0xff]
    %v2085 = vld [vmem:[%s2025 + $0x2f0] sm:$0xff]
    %v2086 = vld [vmem:[%s2025 + $0x300] sm:$0xff]
    %v2087 = vld [vmem:[%s2025 + $0x308] sm:$0xff]
    %v2088 = vld [vmem:[%s2025 + $0x318] sm:$0xff]
    %v2089 = vld [vmem:[%s2025 + $0x320] sm:$0xff]
    %2090 = vst [vmem:[#allocation3 + $0x30] sm:$0xff] %v2026
    %2091 = vst [vmem:[#allocation3 + $0x78] sm:$0xff] %v2027
    %2092 = vst [vmem:[#allocation3 + $0xc0] sm:$0xff] %v2028
    %2093 = vst [vmem:[#allocation3 + $0x108] sm:$0xff] %v2029
    %2094 = vst [vmem:[#allocation3 + $0x150] sm:$0xff] %v2030
    %2095 = vst [vmem:[#allocation3 + $0x198] sm:$0xff] %v2031
    %2096 = vst [vmem:[#allocation3 + $0x1e0] sm:$0xff] %v2032
    %2097 = vst [vmem:[#allocation3 + $0x228] sm:$0xff] %v2033
    %2098 = vst [vmem:[#allocation3 + $0x270] sm:$0xff] %v2034
    %2099 = vst [vmem:[#allocation3 + $0x2b8] sm:$0xff] %v2035
    %2100 = vst [vmem:[#allocation3 + $0x300] sm:$0xff] %v2036
    %2101 = vst [vmem:[#allocation3 + $0x348] sm:$0xff] %v2037
    %2102 = vst [vmem:[#allocation3 + $0x390] sm:$0xff] %v2038
    %2103 = vst [vmem:[#allocation3 + $0x3d8] sm:$0xff] %v2039
    %2104 = vst [vmem:[#allocation3 + $0x420] sm:$0xff] %v2040
    %2105 = vst [vmem:[#allocation3 + $0x468] sm:$0xff] %v2041
    %2106 = vst [vmem:[#allocation3 + $0x4b0] sm:$0xff] %v2042
    %2107 = vst [vmem:[#allocation3 + $0x4f8] sm:$0xff] %v2043
    %2108 = vst [vmem:[#allocation3 + $0x540] sm:$0xff] %v2044
    %2109 = vst [vmem:[#allocation3 + $0x588] sm:$0xff] %v2045
    %2110 = vst [vmem:[#allocation3 + $0x5d0] sm:$0xff] %v2046
    %2111 = vst [vmem:[#allocation3 + $0x618] sm:$0xff] %v2047
    %2112 = vst [vmem:[#allocation3 + $0x660] sm:$0xff] %v2048
    %2113 = vst [vmem:[#allocation3 + $0x6a8] sm:$0xff] %v2049
    %2114 = vst [vmem:[#allocation3 + $0x6f0] sm:$0xff] %v2050
    %2115 = vst [vmem:[#allocation3 + $0x738] sm:$0xff] %v2051
    %2116 = vst [vmem:[#allocation3 + $0x780] sm:$0xff] %v2052
    %2117 = vst [vmem:[#allocation3 + $0x7c8] sm:$0xff] %v2053
    %2118 = vst [vmem:[#allocation3 + $0x810] sm:$0xff] %v2054
    %2119 = vst [vmem:[#allocation3 + $0x858] sm:$0xff] %v2055
    %2120 = vst [vmem:[#allocation3 + $0x8a0] sm:$0xff] %v2056
    %2121 = vst [vmem:[#allocation3 + $0x8e8] sm:$0xff] %v2057
    %2122 = vst [vmem:[#allocation3 + $0x930] sm:$0xff] %v2058
    %2123 = vst [vmem:[#allocation3 + $0x978] sm:$0xff] %v2059
    %2124 = vst [vmem:[#allocation3 + $0x9c0] sm:$0xff] %v2060
    %2125 = vst [vmem:[#allocation3 + $0xa08] sm:$0xff] %v2061
    %2126 = vst [vmem:[#allocation3 + $0xa50] sm:$0xff] %v2062
    %2127 = vst [vmem:[#allocation3 + $0xa98] sm:$0xff] %v2063
    %2128 = vst [vmem:[#allocation3 + $0xae0] sm:$0xff] %v2064
    %2129 = vst [vmem:[#allocation3 + $0xb28] sm:$0xff] %v2065
    %2130 = vst [vmem:[#allocation3 + $0xb70] sm:$0xff] %v2066
    %2131 = vst [vmem:[#allocation3 + $0xbb8] sm:$0xff] %v2067
    %2132 = vst [vmem:[#allocation3 + $0xc00] sm:$0xff] %v2068
    %2133 = vst [vmem:[#allocation3 + $0xc48] sm:$0xff] %v2069
    %2134 = vst [vmem:[#allocation3 + $0xc90] sm:$0xff] %v2070
    %2135 = vst [vmem:[#allocation3 + $0xcd8] sm:$0xff] %v2071
    %2136 = vst [vmem:[#allocation3 + $0xd20] sm:$0xff] %v2072
    %2137 = vst [vmem:[#allocation3 + $0xd68] sm:$0xff] %v2073
    %2138 = vst [vmem:[#allocation3 + $0xdb0] sm:$0xff] %v2074
    %2139 = vst [vmem:[#allocation3 + $0xdf8] sm:$0xff] %v2075
    %2140 = vst [vmem:[#allocation3 + $0xe40] sm:$0xff] %v2076
    %2141 = vst [vmem:[#allocation3 + $0xe88] sm:$0xff] %v2077
    %2142 = vst [vmem:[#allocation3 + $0xed0] sm:$0xff] %v2078
    %2143 = vst [vmem:[#allocation3 + $0xf18] sm:$0xff] %v2079
    %2144 = vst [vmem:[#allocation3 + $0xf60] sm:$0xff] %v2080
    %2145 = vst [vmem:[#allocation3 + $0xfa8] sm:$0xff] %v2081
    %2146 = vst [vmem:[#allocation3 + $0xff0] sm:$0xff] %v2082
    %2147 = vst [vmem:[#allocation3 + $0x1038] sm:$0xff] %v2083
    %2148 = vst [vmem:[#allocation3 + $0x1080] sm:$0xff] %v2084
    %2149 = vst [vmem:[#allocation3 + $0x10c8] sm:$0xff] %v2085
    %2150 = vst [vmem:[#allocation3 + $0x1110] sm:$0xff] %v2086
    %2151 = vst [vmem:[#allocation3 + $0x1158] sm:$0xff] %v2087
    %2152 = vst [vmem:[#allocation3 + $0x11a0] sm:$0xff] %v2088
    %2153 = vst [vmem:[#allocation3 + $0x11e8] sm:$0xff] %v2089
    %v2154 = vld [vmem:[%s2025 + $0x1] sm:$0xff]
    %v2155 = vld [vmem:[%s2025 + $0x9] sm:$0xff]
    %v2156 = vld [vmem:[%s2025 + $0x19] sm:$0xff]
    %v2157 = vld [vmem:[%s2025 + $0x21] sm:$0xff]
    %v2158 = vld [vmem:[%s2025 + $0x31] sm:$0xff]
    %v2159 = vld [vmem:[%s2025 + $0x39] sm:$0xff]
    %v2160 = vld [vmem:[%s2025 + $0x49] sm:$0xff]
    %v2161 = vld [vmem:[%s2025 + $0x51] sm:$0xff]
    %v2162 = vld [vmem:[%s2025 + $0x61] sm:$0xff]
    %v2163 = vld [vmem:[%s2025 + $0x69] sm:$0xff]
    %v2164 = vld [vmem:[%s2025 + $0x79] sm:$0xff]
    %v2165 = vld [vmem:[%s2025 + $0x81] sm:$0xff]
    %v2166 = vld [vmem:[%s2025 + $0x91] sm:$0xff]
    %v2167 = vld [vmem:[%s2025 + $0x99] sm:$0xff]
    %v2168 = vld [vmem:[%s2025 + $0xa9] sm:$0xff]
    %v2169 = vld [vmem:[%s2025 + $0xb1] sm:$0xff]
    %v2170 = vld [vmem:[%s2025 + $0xc1] sm:$0xff]
    %v2171 = vld [vmem:[%s2025 + $0xc9] sm:$0xff]
    %v2172 = vld [vmem:[%s2025 + $0xd9] sm:$0xff]
    %v2173 = vld [vmem:[%s2025 + $0xe1] sm:$0xff]
    %v2174 = vld [vmem:[%s2025 + $0xf1] sm:$0xff]
    %v2175 = vld [vmem:[%s2025 + $0xf9] sm:$0xff]
    %v2176 = vld [vmem:[%s2025 + $0x109] sm:$0xff]
    %v2177 = vld [vmem:[%s2025 + $0x111] sm:$0xff]
    %v2178 = vld [vmem:[%s2025 + $0x121] sm:$0xff]
    %v2179 = vld [vmem:[%s2025 + $0x129] sm:$0xff]
    %v2180 = vld [vmem:[%s2025 + $0x139] sm:$0xff]
    %v2181 = vld [vmem:[%s2025 + $0x141] sm:$0xff]
    %v2182 = vld [vmem:[%s2025 + $0x151] sm:$0xff]
    %v2183 = vld [vmem:[%s2025 + $0x159] sm:$0xff]
    %v2184 = vld [vmem:[%s2025 + $0x169] sm:$0xff]
    %v2185 = vld [vmem:[%s2025 + $0x171] sm:$0xff]
    %v2186 = vld [vmem:[%s2025 + $0x1b1] sm:$0xff]
    %v2187 = vld [vmem:[%s2025 + $0x1b9] sm:$0xff]
    %v2188 = vld [vmem:[%s2025 + $0x1c9] sm:$0xff]
    %v2189 = vld [vmem:[%s2025 + $0x1d1] sm:$0xff]
    %v2190 = vld [vmem:[%s2025 + $0x1e1] sm:$0xff]
    %v2191 = vld [vmem:[%s2025 + $0x1e9] sm:$0xff]
    %v2192 = vld [vmem:[%s2025 + $0x1f9] sm:$0xff]
    %v2193 = vld [vmem:[%s2025 + $0x201] sm:$0xff]
    %v2194 = vld [vmem:[%s2025 + $0x211] sm:$0xff]
    %v2195 = vld [vmem:[%s2025 + $0x219] sm:$0xff]
    %v2196 = vld [vmem:[%s2025 + $0x229] sm:$0xff]
    %v2197 = vld [vmem:[%s2025 + $0x231] sm:$0xff]
    %v2198 = vld [vmem:[%s2025 + $0x241] sm:$0xff]
    %v2199 = vld [vmem:[%s2025 + $0x249] sm:$0xff]
    %v2200 = vld [vmem:[%s2025 + $0x259] sm:$0xff]
    %v2201 = vld [vmem:[%s2025 + $0x261] sm:$0xff]
    %v2202 = vld [vmem:[%s2025 + $0x271] sm:$0xff]
    %v2203 = vld [vmem:[%s2025 + $0x279] sm:$0xff]
    %v2204 = vld [vmem:[%s2025 + $0x289] sm:$0xff]
    %v2205 = vld [vmem:[%s2025 + $0x291] sm:$0xff]
    %v2206 = vld [vmem:[%s2025 + $0x2a1] sm:$0xff]
    %v2207 = vld [vmem:[%s2025 + $0x2a9] sm:$0xff]
    %v2208 = vld [vmem:[%s2025 + $0x2b9] sm:$0xff]
    %v2209 = vld [vmem:[%s2025 + $0x2c1] sm:$0xff]
    %v2210 = vld [vmem:[%s2025 + $0x2d1] sm:$0xff]
    %v2211 = vld [vmem:[%s2025 + $0x2d9] sm:$0xff]
    %v2212 = vld [vmem:[%s2025 + $0x2e9] sm:$0xff]
    %v2213 = vld [vmem:[%s2025 + $0x2f1] sm:$0xff]
    %v2214 = vld [vmem:[%s2025 + $0x301] sm:$0xff]
    %v2215 = vld [vmem:[%s2025 + $0x309] sm:$0xff]
    %v2216 = vld [vmem:[%s2025 + $0x319] sm:$0xff]
    %v2217 = vld [vmem:[%s2025 + $0x321] sm:$0xff]
    %2218 = vst [vmem:[#allocation3 + $0x38] sm:$0xff] %v2154
    %2219 = vst [vmem:[#allocation3 + $0x80] sm:$0xff] %v2155
    %2220 = vst [vmem:[#allocation3 + $0xc8] sm:$0xff] %v2156
    %2221 = vst [vmem:[#allocation3 + $0x110] sm:$0xff] %v2157
    %2222 = vst [vmem:[#allocation3 + $0x158] sm:$0xff] %v2158
    %2223 = vst [vmem:[#allocation3 + $0x1a0] sm:$0xff] %v2159
    %2224 = vst [vmem:[#allocation3 + $0x1e8] sm:$0xff] %v2160
    %2225 = vst [vmem:[#allocation3 + $0x230] sm:$0xff] %v2161
    %2226 = vst [vmem:[#allocation3 + $0x278] sm:$0xff] %v2162
    %2227 = vst [vmem:[#allocation3 + $0x2c0] sm:$0xff] %v2163
    %2228 = vst [vmem:[#allocation3 + $0x308] sm:$0xff] %v2164
    %2229 = vst [vmem:[#allocation3 + $0x350] sm:$0xff] %v2165
    %2230 = vst [vmem:[#allocation3 + $0x398] sm:$0xff] %v2166
    %2231 = vst [vmem:[#allocation3 + $0x3e0] sm:$0xff] %v2167
    %2232 = vst [vmem:[#allocation3 + $0x428] sm:$0xff] %v2168
    %2233 = vst [vmem:[#allocation3 + $0x470] sm:$0xff] %v2169
    %2234 = vst [vmem:[#allocation3 + $0x4b8] sm:$0xff] %v2170
    %2235 = vst [vmem:[#allocation3 + $0x500] sm:$0xff] %v2171
    %2236 = vst [vmem:[#allocation3 + $0x548] sm:$0xff] %v2172
    %2237 = vst [vmem:[#allocation3 + $0x590] sm:$0xff] %v2173
    %2238 = vst [vmem:[#allocation3 + $0x5d8] sm:$0xff] %v2174
    %2239 = vst [vmem:[#allocation3 + $0x620] sm:$0xff] %v2175
    %2240 = vst [vmem:[#allocation3 + $0x668] sm:$0xff] %v2176
    %2241 = vst [vmem:[#allocation3 + $0x6b0] sm:$0xff] %v2177
    %2242 = vst [vmem:[#allocation3 + $0x6f8] sm:$0xff] %v2178
    %2243 = vst [vmem:[#allocation3 + $0x740] sm:$0xff] %v2179
    %2244 = vst [vmem:[#allocation3 + $0x788] sm:$0xff] %v2180
    %2245 = vst [vmem:[#allocation3 + $0x7d0] sm:$0xff] %v2181
    %2246 = vst [vmem:[#allocation3 + $0x818] sm:$0xff] %v2182
    %2247 = vst [vmem:[#allocation3 + $0x860] sm:$0xff] %v2183
    %2248 = vst [vmem:[#allocation3 + $0x8a8] sm:$0xff] %v2184
    %2249 = vst [vmem:[#allocation3 + $0x8f0] sm:$0xff] %v2185
    %2250 = vst [vmem:[#allocation3 + $0x938] sm:$0xff] %v2186
    %2251 = vst [vmem:[#allocation3 + $0x980] sm:$0xff] %v2187
    %2252 = vst [vmem:[#allocation3 + $0x9c8] sm:$0xff] %v2188
    %2253 = vst [vmem:[#allocation3 + $0xa10] sm:$0xff] %v2189
    %2254 = vst [vmem:[#allocation3 + $0xa58] sm:$0xff] %v2190
    %2255 = vst [vmem:[#allocation3 + $0xaa0] sm:$0xff] %v2191
    %2256 = vst [vmem:[#allocation3 + $0xae8] sm:$0xff] %v2192
    %2257 = vst [vmem:[#allocation3 + $0xb30] sm:$0xff] %v2193
    %2258 = vst [vmem:[#allocation3 + $0xb78] sm:$0xff] %v2194
    %2259 = vst [vmem:[#allocation3 + $0xbc0] sm:$0xff] %v2195
    %2260 = vst [vmem:[#allocation3 + $0xc08] sm:$0xff] %v2196
    %2261 = vst [vmem:[#allocation3 + $0xc50] sm:$0xff] %v2197
    %2262 = vst [vmem:[#allocation3 + $0xc98] sm:$0xff] %v2198
    %2263 = vst [vmem:[#allocation3 + $0xce0] sm:$0xff] %v2199
    %2264 = vst [vmem:[#allocation3 + $0xd28] sm:$0xff] %v2200
    %2265 = vst [vmem:[#allocation3 + $0xd70] sm:$0xff] %v2201
    %2266 = vst [vmem:[#allocation3 + $0xdb8] sm:$0xff] %v2202
    %2267 = vst [vmem:[#allocation3 + $0xe00] sm:$0xff] %v2203
    %2268 = vst [vmem:[#allocation3 + $0xe48] sm:$0xff] %v2204
    %2269 = vst [vmem:[#allocation3 + $0xe90] sm:$0xff] %v2205
    %2270 = vst [vmem:[#allocation3 + $0xed8] sm:$0xff] %v2206
    %2271 = vst [vmem:[#allocation3 + $0xf20] sm:$0xff] %v2207
    %2272 = vst [vmem:[#allocation3 + $0xf68] sm:$0xff] %v2208
    %2273 = vst [vmem:[#allocation3 + $0xfb0] sm:$0xff] %v2209
    %2274 = vst [vmem:[#allocation3 + $0xff8] sm:$0xff] %v2210
    %2275 = vst [vmem:[#allocation3 + $0x1040] sm:$0xff] %v2211
    %2276 = vst [vmem:[#allocation3 + $0x1088] sm:$0xff] %v2212
    %2277 = vst [vmem:[#allocation3 + $0x10d0] sm:$0xff] %v2213
    %2278 = vst [vmem:[#allocation3 + $0x1118] sm:$0xff] %v2214
    %2279 = vst [vmem:[#allocation3 + $0x1160] sm:$0xff] %v2215
    %2280 = vst [vmem:[#allocation3 + $0x11a8] sm:$0xff] %v2216
    %2281 = vst [vmem:[#allocation3 + $0x11f0] sm:$0xff] %v2217
    %v2282 = vld [vmem:[%s2025 + $0x2] sm:$0xff]
    %v2283 = vld [vmem:[%s2025 + $0xa] sm:$0xff]
    %v2284 = vld [vmem:[%s2025 + $0x1a] sm:$0xff]
    %v2285 = vld [vmem:[%s2025 + $0x22] sm:$0xff]
    %v2286 = vld [vmem:[%s2025 + $0x32] sm:$0xff]
    %v2287 = vld [vmem:[%s2025 + $0x3a] sm:$0xff]
    %v2288 = vld [vmem:[%s2025 + $0x4a] sm:$0xff]
    %v2289 = vld [vmem:[%s2025 + $0x52] sm:$0xff]
    %v2290 = vld [vmem:[%s2025 + $0x62] sm:$0xff]
    %v2291 = vld [vmem:[%s2025 + $0x6a] sm:$0xff]
    %v2292 = vld [vmem:[%s2025 + $0x7a] sm:$0xff]
    %v2293 = vld [vmem:[%s2025 + $0x82] sm:$0xff]
    %v2294 = vld [vmem:[%s2025 + $0x92] sm:$0xff]
    %v2295 = vld [vmem:[%s2025 + $0x9a] sm:$0xff]
    %v2296 = vld [vmem:[%s2025 + $0xaa] sm:$0xff]
    %v2297 = vld [vmem:[%s2025 + $0xb2] sm:$0xff]
    %v2298 = vld [vmem:[%s2025 + $0xc2] sm:$0xff]
    %v2299 = vld [vmem:[%s2025 + $0xca] sm:$0xff]
    %v2300 = vld [vmem:[%s2025 + $0xda] sm:$0xff]
    %v2301 = vld [vmem:[%s2025 + $0xe2] sm:$0xff]
    %v2302 = vld [vmem:[%s2025 + $0xf2] sm:$0xff]
    %v2303 = vld [vmem:[%s2025 + $0xfa] sm:$0xff]
    %v2304 = vld [vmem:[%s2025 + $0x10a] sm:$0xff]
    %v2305 = vld [vmem:[%s2025 + $0x112] sm:$0xff]
    %v2306 = vld [vmem:[%s2025 + $0x122] sm:$0xff]
    %v2307 = vld [vmem:[%s2025 + $0x12a] sm:$0xff]
    %v2308 = vld [vmem:[%s2025 + $0x13a] sm:$0xff]
    %v2309 = vld [vmem:[%s2025 + $0x142] sm:$0xff]
    %v2310 = vld [vmem:[%s2025 + $0x152] sm:$0xff]
    %v2311 = vld [vmem:[%s2025 + $0x15a] sm:$0xff]
    %v2312 = vld [vmem:[%s2025 + $0x16a] sm:$0xff]
    %v2313 = vld [vmem:[%s2025 + $0x172] sm:$0xff]
    %v2314 = vld [vmem:[%s2025 + $0x1b2] sm:$0xff]
    %v2315 = vld [vmem:[%s2025 + $0x1ba] sm:$0xff]
    %v2316 = vld [vmem:[%s2025 + $0x1ca] sm:$0xff]
    %v2317 = vld [vmem:[%s2025 + $0x1d2] sm:$0xff]
    %v2318 = vld [vmem:[%s2025 + $0x1e2] sm:$0xff]
    %v2319 = vld [vmem:[%s2025 + $0x1ea] sm:$0xff]
    %v2320 = vld [vmem:[%s2025 + $0x1fa] sm:$0xff]
    %v2321 = vld [vmem:[%s2025 + $0x202] sm:$0xff]
    %v2322 = vld [vmem:[%s2025 + $0x212] sm:$0xff]
    %v2323 = vld [vmem:[%s2025 + $0x21a] sm:$0xff]
    %v2324 = vld [vmem:[%s2025 + $0x22a] sm:$0xff]
    %v2325 = vld [vmem:[%s2025 + $0x232] sm:$0xff]
    %v2326 = vld [vmem:[%s2025 + $0x242] sm:$0xff]
    %v2327 = vld [vmem:[%s2025 + $0x24a] sm:$0xff]
    %v2328 = vld [vmem:[%s2025 + $0x25a] sm:$0xff]
    %v2329 = vld [vmem:[%s2025 + $0x262] sm:$0xff]
    %v2330 = vld [vmem:[%s2025 + $0x272] sm:$0xff]
    %v2331 = vld [vmem:[%s2025 + $0x27a] sm:$0xff]
    %v2332 = vld [vmem:[%s2025 + $0x28a] sm:$0xff]
    %v2333 = vld [vmem:[%s2025 + $0x292] sm:$0xff]
    %v2334 = vld [vmem:[%s2025 + $0x2a2] sm:$0xff]
    %v2335 = vld [vmem:[%s2025 + $0x2aa] sm:$0xff]
    %v2336 = vld [vmem:[%s2025 + $0x2ba] sm:$0xff]
    %v2337 = vld [vmem:[%s2025 + $0x2c2] sm:$0xff]
    %v2338 = vld [vmem:[%s2025 + $0x2d2] sm:$0xff]
    %v2339 = vld [vmem:[%s2025 + $0x2da] sm:$0xff]
    %v2340 = vld [vmem:[%s2025 + $0x2ea] sm:$0xff]
    %v2341 = vld [vmem:[%s2025 + $0x2f2] sm:$0xff]
    %v2342 = vld [vmem:[%s2025 + $0x302] sm:$0xff]
    %v2343 = vld [vmem:[%s2025 + $0x30a] sm:$0xff]
    %v2344 = vld [vmem:[%s2025 + $0x31a] sm:$0xff]
    %v2345 = vld [vmem:[%s2025 + $0x322] sm:$0xff]
    %2346 = vst [vmem:[#allocation3 + $0x40] sm:$0xff] %v2282
    %2347 = vst [vmem:[#allocation3 + $0x88] sm:$0xff] %v2283
    %2348 = vst [vmem:[#allocation3 + $0xd0] sm:$0xff] %v2284
    %2349 = vst [vmem:[#allocation3 + $0x118] sm:$0xff] %v2285
    %2350 = vst [vmem:[#allocation3 + $0x160] sm:$0xff] %v2286
    %2351 = vst [vmem:[#allocation3 + $0x1a8] sm:$0xff] %v2287
    %2352 = vst [vmem:[#allocation3 + $0x1f0] sm:$0xff] %v2288
    %2353 = vst [vmem:[#allocation3 + $0x238] sm:$0xff] %v2289
    %2354 = vst [vmem:[#allocation3 + $0x280] sm:$0xff] %v2290
    %2355 = vst [vmem:[#allocation3 + $0x2c8] sm:$0xff] %v2291
    %2356 = vst [vmem:[#allocation3 + $0x310] sm:$0xff] %v2292
    %2357 = vst [vmem:[#allocation3 + $0x358] sm:$0xff] %v2293
    %2358 = vst [vmem:[#allocation3 + $0x3a0] sm:$0xff] %v2294
    %2359 = vst [vmem:[#allocation3 + $0x3e8] sm:$0xff] %v2295
    %2360 = vst [vmem:[#allocation3 + $0x430] sm:$0xff] %v2296
    %2361 = vst [vmem:[#allocation3 + $0x478] sm:$0xff] %v2297
    %2362 = vst [vmem:[#allocation3 + $0x4c0] sm:$0xff] %v2298
    %2363 = vst [vmem:[#allocation3 + $0x508] sm:$0xff] %v2299
    %2364 = vst [vmem:[#allocation3 + $0x550] sm:$0xff] %v2300
    %2365 = vst [vmem:[#allocation3 + $0x598] sm:$0xff] %v2301
    %2366 = vst [vmem:[#allocation3 + $0x5e0] sm:$0xff] %v2302
    %2367 = vst [vmem:[#allocation3 + $0x628] sm:$0xff] %v2303
    %2368 = vst [vmem:[#allocation3 + $0x670] sm:$0xff] %v2304
    %2369 = vst [vmem:[#allocation3 + $0x6b8] sm:$0xff] %v2305
    %2370 = vst [vmem:[#allocation3 + $0x700] sm:$0xff] %v2306
    %2371 = vst [vmem:[#allocation3 + $0x748] sm:$0xff] %v2307
    %2372 = vst [vmem:[#allocation3 + $0x790] sm:$0xff] %v2308
    %2373 = vst [vmem:[#allocation3 + $0x7d8] sm:$0xff] %v2309
    %2374 = vst [vmem:[#allocation3 + $0x820] sm:$0xff] %v2310
    %2375 = vst [vmem:[#allocation3 + $0x868] sm:$0xff] %v2311
    %2376 = vst [vmem:[#allocation3 + $0x8b0] sm:$0xff] %v2312
    %2377 = vst [vmem:[#allocation3 + $0x8f8] sm:$0xff] %v2313
    %2378 = vst [vmem:[#allocation3 + $0x940] sm:$0xff] %v2314
    %2379 = vst [vmem:[#allocation3 + $0x988] sm:$0xff] %v2315
    %2380 = vst [vmem:[#allocation3 + $0x9d0] sm:$0xff] %v2316
    %2381 = vst [vmem:[#allocation3 + $0xa18] sm:$0xff] %v2317
    %2382 = vst [vmem:[#allocation3 + $0xa60] sm:$0xff] %v2318
    %2383 = vst [vmem:[#allocation3 + $0xaa8] sm:$0xff] %v2319
    %2384 = vst [vmem:[#allocation3 + $0xaf0] sm:$0xff] %v2320
    %2385 = vst [vmem:[#allocation3 + $0xb38] sm:$0xff] %v2321
    %2386 = vst [vmem:[#allocation3 + $0xb80] sm:$0xff] %v2322
    %2387 = vst [vmem:[#allocation3 + $0xbc8] sm:$0xff] %v2323
    %2388 = vst [vmem:[#allocation3 + $0xc10] sm:$0xff] %v2324
    %2389 = vst [vmem:[#allocation3 + $0xc58] sm:$0xff] %v2325
    %2390 = vst [vmem:[#allocation3 + $0xca0] sm:$0xff] %v2326
    %2391 = vst [vmem:[#allocation3 + $0xce8] sm:$0xff] %v2327
    %2392 = vst [vmem:[#allocation3 + $0xd30] sm:$0xff] %v2328
    %2393 = vst [vmem:[#allocation3 + $0xd78] sm:$0xff] %v2329
    %2394 = vst [vmem:[#allocation3 + $0xdc0] sm:$0xff] %v2330
    %2395 = vst [vmem:[#allocation3 + $0xe08] sm:$0xff] %v2331
    %2396 = vst [vmem:[#allocation3 + $0xe50] sm:$0xff] %v2332
    %2397 = vst [vmem:[#allocation3 + $0xe98] sm:$0xff] %v2333
    %2398 = vst [vmem:[#allocation3 + $0xee0] sm:$0xff] %v2334
    %2399 = vst [vmem:[#allocation3 + $0xf28] sm:$0xff] %v2335
    %2400 = vst [vmem:[#allocation3 + $0xf70] sm:$0xff] %v2336
    %2401 = vst [vmem:[#allocation3 + $0xfb8] sm:$0xff] %v2337
    %2402 = vst [vmem:[#allocation3 + $0x1000] sm:$0xff] %v2338
    %2403 = vst [vmem:[#allocation3 + $0x1048] sm:$0xff] %v2339
    %2404 = vst [vmem:[#allocation3 + $0x1090] sm:$0xff] %v2340
    %2405 = vst [vmem:[#allocation3 + $0x10d8] sm:$0xff] %v2341
    %2406 = vst [vmem:[#allocation3 + $0x1120] sm:$0xff] %v2342
    %2407 = vst [vmem:[#allocation3 + $0x1168] sm:$0xff] %v2343
    %2408 = vst [vmem:[#allocation3 + $0x11b0] sm:$0xff] %v2344
    %2409 = vst [vmem:[#allocation3 + $0x11f8] sm:$0xff] %v2345
    %v2410 = vld [vmem:[#allocation3] sm:$0xff]
    %v2411 = vld [vmem:[#allocation3 + $0x8] sm:$0xff]
    %v2412 = vld [vmem:[#allocation3 + $0x10] sm:$0xff]
    %v2413 = vld [vmem:[#allocation3 + $0x18] sm:$0xff]
    %v2414 = vld [vmem:[#allocation3 + $0x20] sm:$0xff]
    %v2415 = vld [vmem:[#allocation3 + $0x28] sm:$0xff]
    %v2416 = vld [vmem:[#allocation3 + $0x30] sm:$0xff]
    %v2417 = vld [vmem:[#allocation3 + $0x38] sm:$0xff]
    %v2418 = vld [vmem:[#allocation3 + $0x40] sm:$0xff]
    %v2419 = vld [vmem:[#allocation3 + $0x48] sm:$0xff]
    %v2420 = vld [vmem:[#allocation3 + $0x50] sm:$0xff]
    %v2421 = vld [vmem:[#allocation3 + $0x58] sm:$0xff]
    %v2422 = vld [vmem:[#allocation3 + $0x60] sm:$0xff]
    %v2423 = vld [vmem:[#allocation3 + $0x68] sm:$0xff]
    %v2424 = vld [vmem:[#allocation3 + $0x70] sm:$0xff]
    %v2425 = vld [vmem:[#allocation3 + $0x78] sm:$0xff]
    %v2426 = vld [vmem:[#allocation3 + $0x80] sm:$0xff]
    %v2427 = vld [vmem:[#allocation3 + $0x88] sm:$0xff]
    %v2428 = vld [vmem:[#allocation3 + $0x90] sm:$0xff]
    %v2429 = vld [vmem:[#allocation3 + $0x98] sm:$0xff]
    %v2430 = vld [vmem:[#allocation3 + $0xa0] sm:$0xff]
    %v2431 = vld [vmem:[#allocation3 + $0xa8] sm:$0xff]
    %v2432 = vld [vmem:[#allocation3 + $0xb0] sm:$0xff]
    %v2433 = vld [vmem:[#allocation3 + $0xb8] sm:$0xff]
    %v2434 = vld [vmem:[#allocation3 + $0xc0] sm:$0xff]
    %v2435 = vld [vmem:[#allocation3 + $0xc8] sm:$0xff]
    %v2436 = vld [vmem:[#allocation3 + $0xd0] sm:$0xff]
    %v2437 = vld [vmem:[#allocation3 + $0xd8] sm:$0xff]
    %v2438 = vld [vmem:[#allocation3 + $0xe0] sm:$0xff]
    %v2439 = vld [vmem:[#allocation3 + $0xe8] sm:$0xff]
    %v2440 = vld [vmem:[#allocation3 + $0xf0] sm:$0xff]
    %v2441 = vld [vmem:[#allocation3 + $0xf8] sm:$0xff]
    %v2442 = vld [vmem:[#allocation3 + $0x100] sm:$0xff]
    %v2443 = vld [vmem:[#allocation3 + $0x108] sm:$0xff]
    %v2444 = vld [vmem:[#allocation3 + $0x110] sm:$0xff]
    %v2445 = vld [vmem:[#allocation3 + $0x118] sm:$0xff]
    %v2446 = vld [vmem:[#allocation3 + $0x120] sm:$0xff]
    %v2447 = vld [vmem:[#allocation3 + $0x128] sm:$0xff]
    %v2448 = vld [vmem:[#allocation3 + $0x130] sm:$0xff]
    %v2449 = vld [vmem:[#allocation3 + $0x138] sm:$0xff]
    %v2450 = vld [vmem:[#allocation3 + $0x140] sm:$0xff]
    %v2451 = vld [vmem:[#allocation3 + $0x148] sm:$0xff]
    %v2452 = vld [vmem:[#allocation3 + $0x150] sm:$0xff]
    %v2453 = vld [vmem:[#allocation3 + $0x158] sm:$0xff]
    %v2454 = vld [vmem:[#allocation3 + $0x160] sm:$0xff]
    %v2455 = vld [vmem:[#allocation3 + $0x168] sm:$0xff]
    %v2456 = vld [vmem:[#allocation3 + $0x170] sm:$0xff]
    %v2457 = vld [vmem:[#allocation3 + $0x178] sm:$0xff]
    %v2458 = vld [vmem:[#allocation3 + $0x180] sm:$0xff]
    %v2459 = vld [vmem:[#allocation3 + $0x188] sm:$0xff]
    %v2460 = vld [vmem:[#allocation3 + $0x190] sm:$0xff]
    %v2461 = vld [vmem:[#allocation3 + $0x198] sm:$0xff]
    %v2462 = vld [vmem:[#allocation3 + $0x1a0] sm:$0xff]
    %v2463 = vld [vmem:[#allocation3 + $0x1a8] sm:$0xff]
    %v2464 = vld [vmem:[#allocation3 + $0x1b0] sm:$0xff]
    %v2465 = vld [vmem:[#allocation3 + $0x1b8] sm:$0xff]
    %v2466 = vld [vmem:[#allocation3 + $0x1c0] sm:$0xff]
    %v2467 = vld [vmem:[#allocation3 + $0x1c8] sm:$0xff]
    %v2468 = vld [vmem:[#allocation3 + $0x1d0] sm:$0xff]
    %v2469 = vld [vmem:[#allocation3 + $0x1d8] sm:$0xff]
    %v2470 = vld [vmem:[#allocation3 + $0x1e0] sm:$0xff]
    %v2471 = vld [vmem:[#allocation3 + $0x1e8] sm:$0xff]
    %v2472 = vld [vmem:[#allocation3 + $0x1f0] sm:$0xff]
    %v2473 = vld [vmem:[#allocation3 + $0x1f8] sm:$0xff]
    %v2474 = vld [vmem:[#allocation3 + $0x200] sm:$0xff]
    %v2475 = vld [vmem:[#allocation3 + $0x208] sm:$0xff]
    %v2476 = vld [vmem:[#allocation3 + $0x210] sm:$0xff]
    %v2477 = vld [vmem:[#allocation3 + $0x218] sm:$0xff]
    %v2478 = vld [vmem:[#allocation3 + $0x220] sm:$0xff]
    %v2479 = vld [vmem:[#allocation3 + $0x228] sm:$0xff]
    %v2480 = vld [vmem:[#allocation3 + $0x230] sm:$0xff]
    %v2481 = vld [vmem:[#allocation3 + $0x238] sm:$0xff]
    %v2482 = vld [vmem:[#allocation3 + $0x240] sm:$0xff]
    %v2483 = vld [vmem:[#allocation3 + $0x248] sm:$0xff]
    %v2484 = vld [vmem:[#allocation3 + $0x250] sm:$0xff]
    %v2485 = vld [vmem:[#allocation3 + $0x258] sm:$0xff]
    %v2486 = vld [vmem:[#allocation3 + $0x260] sm:$0xff]
    %v2487 = vld [vmem:[#allocation3 + $0x268] sm:$0xff]
    %v2488 = vld [vmem:[#allocation3 + $0x270] sm:$0xff]
    %v2489 = vld [vmem:[#allocation3 + $0x278] sm:$0xff]
    %v2490 = vld [vmem:[#allocation3 + $0x280] sm:$0xff]
    %v2491 = vld [vmem:[#allocation3 + $0x288] sm:$0xff]
    %v2492 = vld [vmem:[#allocation3 + $0x290] sm:$0xff]
    %v2493 = vld [vmem:[#allocation3 + $0x298] sm:$0xff]
    %v2494 = vld [vmem:[#allocation3 + $0x2a0] sm:$0xff]
    %v2495 = vld [vmem:[#allocation3 + $0x2a8] sm:$0xff]
    %v2496 = vld [vmem:[#allocation3 + $0x2b0] sm:$0xff]
    %v2497 = vld [vmem:[#allocation3 + $0x2b8] sm:$0xff]
    %v2498 = vld [vmem:[#allocation3 + $0x2c0] sm:$0xff]
    %v2499 = vld [vmem:[#allocation3 + $0x2c8] sm:$0xff]
    %v2500 = vld [vmem:[#allocation3 + $0x2d0] sm:$0xff]
    %v2501 = vld [vmem:[#allocation3 + $0x2d8] sm:$0xff]
    %v2502 = vld [vmem:[#allocation3 + $0x2e0] sm:$0xff]
    %v2503 = vld [vmem:[#allocation3 + $0x2e8] sm:$0xff]
    %v2504 = vld [vmem:[#allocation3 + $0x2f0] sm:$0xff]
    %v2505 = vld [vmem:[#allocation3 + $0x2f8] sm:$0xff]
    %v2506 = vld [vmem:[#allocation3 + $0x300] sm:$0xff]
    %v2507 = vld [vmem:[#allocation3 + $0x308] sm:$0xff]
    %v2508 = vld [vmem:[#allocation3 + $0x310] sm:$0xff]
    %v2509 = vld [vmem:[#allocation3 + $0x318] sm:$0xff]
    %v2510 = vld [vmem:[#allocation3 + $0x320] sm:$0xff]
    %v2511 = vld [vmem:[#allocation3 + $0x328] sm:$0xff]
    %v2512 = vld [vmem:[#allocation3 + $0x330] sm:$0xff]
    %v2513 = vld [vmem:[#allocation3 + $0x338] sm:$0xff]
    %v2514 = vld [vmem:[#allocation3 + $0x340] sm:$0xff]
    %v2515 = vld [vmem:[#allocation3 + $0x348] sm:$0xff]
    %v2516 = vld [vmem:[#allocation3 + $0x350] sm:$0xff]
    %v2517 = vld [vmem:[#allocation3 + $0x358] sm:$0xff]
    %v2518 = vld [vmem:[#allocation3 + $0x360] sm:$0xff]
    %v2519 = vld [vmem:[#allocation3 + $0x368] sm:$0xff]
    %v2520 = vld [vmem:[#allocation3 + $0x370] sm:$0xff]
    %v2521 = vld [vmem:[#allocation3 + $0x378] sm:$0xff]
    %v2522 = vld [vmem:[#allocation3 + $0x380] sm:$0xff]
    %v2523 = vld [vmem:[#allocation3 + $0x388] sm:$0xff]
    %v2524 = vld [vmem:[#allocation3 + $0x390] sm:$0xff]
    %v2525 = vld [vmem:[#allocation3 + $0x398] sm:$0xff]
    %v2526 = vld [vmem:[#allocation3 + $0x3a0] sm:$0xff]
    %v2527 = vld [vmem:[#allocation3 + $0x3a8] sm:$0xff]
    %v2528 = vld [vmem:[#allocation3 + $0x3b0] sm:$0xff]
    %v2529 = vld [vmem:[#allocation3 + $0x3b8] sm:$0xff]
    %v2530 = vld [vmem:[#allocation3 + $0x3c0] sm:$0xff]
    %v2531 = vld [vmem:[#allocation3 + $0x3c8] sm:$0xff]
    %v2532 = vld [vmem:[#allocation3 + $0x3d0] sm:$0xff]
    %v2533 = vld [vmem:[#allocation3 + $0x3d8] sm:$0xff]
    %v2534 = vld [vmem:[#allocation3 + $0x3e0] sm:$0xff]
    %v2535 = vld [vmem:[#allocation3 + $0x3e8] sm:$0xff]
    %v2536 = vld [vmem:[#allocation3 + $0x3f0] sm:$0xff]
    %v2537 = vld [vmem:[#allocation3 + $0x3f8] sm:$0xff]
    %v2538 = vld [vmem:[#allocation3 + $0x400] sm:$0xff]
    %v2539 = vld [vmem:[#allocation3 + $0x408] sm:$0xff]
    %v2540 = vld [vmem:[#allocation3 + $0x410] sm:$0xff]
    %v2541 = vld [vmem:[#allocation3 + $0x418] sm:$0xff]
    %v2542 = vld [vmem:[#allocation3 + $0x420] sm:$0xff]
    %v2543 = vld [vmem:[#allocation3 + $0x428] sm:$0xff]
    %v2544 = vld [vmem:[#allocation3 + $0x430] sm:$0xff]
    %v2545 = vld [vmem:[#allocation3 + $0x438] sm:$0xff]
    %v2546 = vld [vmem:[#allocation3 + $0x440] sm:$0xff]
    %v2547 = vld [vmem:[#allocation3 + $0x448] sm:$0xff]
    %v2548 = vld [vmem:[#allocation3 + $0x450] sm:$0xff]
    %v2549 = vld [vmem:[#allocation3 + $0x458] sm:$0xff]
    %v2550 = vld [vmem:[#allocation3 + $0x460] sm:$0xff]
    %v2551 = vld [vmem:[#allocation3 + $0x468] sm:$0xff]
    %v2552 = vld [vmem:[#allocation3 + $0x470] sm:$0xff]
    %v2553 = vld [vmem:[#allocation3 + $0x478] sm:$0xff]
    %v2554 = vld [vmem:[#allocation3 + $0x480] sm:$0xff]
    %v2555 = vld [vmem:[#allocation3 + $0x488] sm:$0xff]
    %v2556 = vld [vmem:[#allocation3 + $0x490] sm:$0xff]
    %v2557 = vld [vmem:[#allocation3 + $0x498] sm:$0xff]
    %v2558 = vld [vmem:[#allocation3 + $0x4a0] sm:$0xff]
    %v2559 = vld [vmem:[#allocation3 + $0x4a8] sm:$0xff]
    %v2560 = vld [vmem:[#allocation3 + $0x4b0] sm:$0xff]
    %v2561 = vld [vmem:[#allocation3 + $0x4b8] sm:$0xff]
    %v2562 = vld [vmem:[#allocation3 + $0x4c0] sm:$0xff]
    %v2563 = vld [vmem:[#allocation3 + $0x4c8] sm:$0xff]
    %v2564 = vld [vmem:[#allocation3 + $0x4d0] sm:$0xff]
    %v2565 = vld [vmem:[#allocation3 + $0x4d8] sm:$0xff]
    %v2566 = vld [vmem:[#allocation3 + $0x4e0] sm:$0xff]
    %v2567 = vld [vmem:[#allocation3 + $0x4e8] sm:$0xff]
    %v2568 = vld [vmem:[#allocation3 + $0x4f0] sm:$0xff]
    %v2569 = vld [vmem:[#allocation3 + $0x4f8] sm:$0xff]
    %v2570 = vld [vmem:[#allocation3 + $0x500] sm:$0xff]
    %v2571 = vld [vmem:[#allocation3 + $0x508] sm:$0xff]
    %v2572 = vld [vmem:[#allocation3 + $0x510] sm:$0xff]
    %v2573 = vld [vmem:[#allocation3 + $0x518] sm:$0xff]
    %v2574 = vld [vmem:[#allocation3 + $0x520] sm:$0xff]
    %v2575 = vld [vmem:[#allocation3 + $0x528] sm:$0xff]
    %v2576 = vld [vmem:[#allocation3 + $0x530] sm:$0xff]
    %v2577 = vld [vmem:[#allocation3 + $0x538] sm:$0xff]
    %v2578 = vld [vmem:[#allocation3 + $0x540] sm:$0xff]
    %v2579 = vld [vmem:[#allocation3 + $0x548] sm:$0xff]
    %v2580 = vld [vmem:[#allocation3 + $0x550] sm:$0xff]
    %v2581 = vld [vmem:[#allocation3 + $0x558] sm:$0xff]
    %v2582 = vld [vmem:[#allocation3 + $0x560] sm:$0xff]
    %v2583 = vld [vmem:[#allocation3 + $0x568] sm:$0xff]
    %v2584 = vld [vmem:[#allocation3 + $0x570] sm:$0xff]
    %v2585 = vld [vmem:[#allocation3 + $0x578] sm:$0xff]
    %v2586 = vld [vmem:[#allocation3 + $0x580] sm:$0xff]
    %v2587 = vld [vmem:[#allocation3 + $0x588] sm:$0xff]
    %v2588 = vld [vmem:[#allocation3 + $0x590] sm:$0xff]
    %v2589 = vld [vmem:[#allocation3 + $0x598] sm:$0xff]
    %v2590 = vld [vmem:[#allocation3 + $0x5a0] sm:$0xff]
    %v2591 = vld [vmem:[#allocation3 + $0x5a8] sm:$0xff]
    %v2592 = vld [vmem:[#allocation3 + $0x5b0] sm:$0xff]
    %v2593 = vld [vmem:[#allocation3 + $0x5b8] sm:$0xff]
    %v2594 = vld [vmem:[#allocation3 + $0x5c0] sm:$0xff]
    %v2595 = vld [vmem:[#allocation3 + $0x5c8] sm:$0xff]
    %v2596 = vld [vmem:[#allocation3 + $0x5d0] sm:$0xff]
    %v2597 = vld [vmem:[#allocation3 + $0x5d8] sm:$0xff]
    %v2598 = vld [vmem:[#allocation3 + $0x5e0] sm:$0xff]
    %v2599 = vld [vmem:[#allocation3 + $0x5e8] sm:$0xff]
    %v2600 = vld [vmem:[#allocation3 + $0x5f0] sm:$0xff]
    %v2601 = vld [vmem:[#allocation3 + $0x5f8] sm:$0xff]
    %v2602 = vld [vmem:[#allocation3 + $0x600] sm:$0xff]
    %v2603 = vld [vmem:[#allocation3 + $0x608] sm:$0xff]
    %v2604 = vld [vmem:[#allocation3 + $0x610] sm:$0xff]
    %v2605 = vld [vmem:[#allocation3 + $0x618] sm:$0xff]
    %v2606 = vld [vmem:[#allocation3 + $0x620] sm:$0xff]
    %v2607 = vld [vmem:[#allocation3 + $0x628] sm:$0xff]
    %v2608 = vld [vmem:[#allocation3 + $0x630] sm:$0xff]
    %v2609 = vld [vmem:[#allocation3 + $0x638] sm:$0xff]
    %v2610 = vld [vmem:[#allocation3 + $0x640] sm:$0xff]
    %v2611 = vld [vmem:[#allocation3 + $0x648] sm:$0xff]
    %v2612 = vld [vmem:[#allocation3 + $0x650] sm:$0xff]
    %v2613 = vld [vmem:[#allocation3 + $0x658] sm:$0xff]
    %v2614 = vld [vmem:[#allocation3 + $0x660] sm:$0xff]
    %v2615 = vld [vmem:[#allocation3 + $0x668] sm:$0xff]
    %v2616 = vld [vmem:[#allocation3 + $0x670] sm:$0xff]
    %v2617 = vld [vmem:[#allocation3 + $0x678] sm:$0xff]
    %v2618 = vld [vmem:[#allocation3 + $0x680] sm:$0xff]
    %v2619 = vld [vmem:[#allocation3 + $0x688] sm:$0xff]
    %v2620 = vld [vmem:[#allocation3 + $0x690] sm:$0xff]
    %v2621 = vld [vmem:[#allocation3 + $0x698] sm:$0xff]
    %v2622 = vld [vmem:[#allocation3 + $0x6a0] sm:$0xff]
    %v2623 = vld [vmem:[#allocation3 + $0x6a8] sm:$0xff]
    %v2624 = vld [vmem:[#allocation3 + $0x6b0] sm:$0xff]
    %v2625 = vld [vmem:[#allocation3 + $0x6b8] sm:$0xff]
    %v2626 = vld [vmem:[#allocation3 + $0x6c0] sm:$0xff]
    %v2627 = vld [vmem:[#allocation3 + $0x6c8] sm:$0xff]
    %v2628 = vld [vmem:[#allocation3 + $0x6d0] sm:$0xff]
    %v2629 = vld [vmem:[#allocation3 + $0x6d8] sm:$0xff]
    %v2630 = vld [vmem:[#allocation3 + $0x6e0] sm:$0xff]
    %v2631 = vld [vmem:[#allocation3 + $0x6e8] sm:$0xff]
    %v2632 = vld [vmem:[#allocation3 + $0x6f0] sm:$0xff]
    %v2633 = vld [vmem:[#allocation3 + $0x6f8] sm:$0xff]
    %v2634 = vld [vmem:[#allocation3 + $0x700] sm:$0xff]
    %v2635 = vld [vmem:[#allocation3 + $0x708] sm:$0xff]
    %v2636 = vld [vmem:[#allocation3 + $0x710] sm:$0xff]
    %v2637 = vld [vmem:[#allocation3 + $0x718] sm:$0xff]
    %v2638 = vld [vmem:[#allocation3 + $0x720] sm:$0xff]
    %v2639 = vld [vmem:[#allocation3 + $0x728] sm:$0xff]
    %v2640 = vld [vmem:[#allocation3 + $0x730] sm:$0xff]
    %v2641 = vld [vmem:[#allocation3 + $0x738] sm:$0xff]
    %v2642 = vld [vmem:[#allocation3 + $0x740] sm:$0xff]
    %v2643 = vld [vmem:[#allocation3 + $0x748] sm:$0xff]
    %v2644 = vld [vmem:[#allocation3 + $0x750] sm:$0xff]
    %v2645 = vld [vmem:[#allocation3 + $0x758] sm:$0xff]
    %v2646 = vld [vmem:[#allocation3 + $0x760] sm:$0xff]
    %v2647 = vld [vmem:[#allocation3 + $0x768] sm:$0xff]
    %v2648 = vld [vmem:[#allocation3 + $0x770] sm:$0xff]
    %v2649 = vld [vmem:[#allocation3 + $0x778] sm:$0xff]
    %v2650 = vld [vmem:[#allocation3 + $0x780] sm:$0xff]
    %v2651 = vld [vmem:[#allocation3 + $0x788] sm:$0xff]
    %v2652 = vld [vmem:[#allocation3 + $0x790] sm:$0xff]
    %v2653 = vld [vmem:[#allocation3 + $0x798] sm:$0xff]
    %v2654 = vld [vmem:[#allocation3 + $0x7a0] sm:$0xff]
    %v2655 = vld [vmem:[#allocation3 + $0x7a8] sm:$0xff]
    %v2656 = vld [vmem:[#allocation3 + $0x7b0] sm:$0xff]
    %v2657 = vld [vmem:[#allocation3 + $0x7b8] sm:$0xff]
    %v2658 = vld [vmem:[#allocation3 + $0x7c0] sm:$0xff]
    %v2659 = vld [vmem:[#allocation3 + $0x7c8] sm:$0xff]
    %v2660 = vld [vmem:[#allocation3 + $0x7d0] sm:$0xff]
    %v2661 = vld [vmem:[#allocation3 + $0x7d8] sm:$0xff]
    %v2662 = vld [vmem:[#allocation3 + $0x7e0] sm:$0xff]
    %v2663 = vld [vmem:[#allocation3 + $0x7e8] sm:$0xff]
    %v2664 = vld [vmem:[#allocation3 + $0x7f0] sm:$0xff]
    %v2665 = vld [vmem:[#allocation3 + $0x7f8] sm:$0xff]
    %v2666 = vld [vmem:[#allocation3 + $0x800] sm:$0xff]
    %v2667 = vld [vmem:[#allocation3 + $0x808] sm:$0xff]
    %v2668 = vld [vmem:[#allocation3 + $0x810] sm:$0xff]
    %v2669 = vld [vmem:[#allocation3 + $0x818] sm:$0xff]
    %v2670 = vld [vmem:[#allocation3 + $0x820] sm:$0xff]
    %v2671 = vld [vmem:[#allocation3 + $0x828] sm:$0xff]
    %v2672 = vld [vmem:[#allocation3 + $0x830] sm:$0xff]
    %v2673 = vld [vmem:[#allocation3 + $0x838] sm:$0xff]
    %v2674 = vld [vmem:[#allocation3 + $0x840] sm:$0xff]
    %v2675 = vld [vmem:[#allocation3 + $0x848] sm:$0xff]
    %v2676 = vld [vmem:[#allocation3 + $0x850] sm:$0xff]
    %v2677 = vld [vmem:[#allocation3 + $0x858] sm:$0xff]
    %v2678 = vld [vmem:[#allocation3 + $0x860] sm:$0xff]
    %v2679 = vld [vmem:[#allocation3 + $0x868] sm:$0xff]
    %v2680 = vld [vmem:[#allocation3 + $0x870] sm:$0xff]
    %v2681 = vld [vmem:[#allocation3 + $0x878] sm:$0xff]
    %v2682 = vld [vmem:[#allocation3 + $0x880] sm:$0xff]
    %v2683 = vld [vmem:[#allocation3 + $0x888] sm:$0xff]
    %v2684 = vld [vmem:[#allocation3 + $0x890] sm:$0xff]
    %v2685 = vld [vmem:[#allocation3 + $0x898] sm:$0xff]
    %v2686 = vld [vmem:[#allocation3 + $0x8a0] sm:$0xff]
    %v2687 = vld [vmem:[#allocation3 + $0x8a8] sm:$0xff]
    %v2688 = vld [vmem:[#allocation3 + $0x8b0] sm:$0xff]
    %v2689 = vld [vmem:[#allocation3 + $0x8b8] sm:$0xff]
    %v2690 = vld [vmem:[#allocation3 + $0x8c0] sm:$0xff]
    %v2691 = vld [vmem:[#allocation3 + $0x8c8] sm:$0xff]
    %v2692 = vld [vmem:[#allocation3 + $0x8d0] sm:$0xff]
    %v2693 = vld [vmem:[#allocation3 + $0x8d8] sm:$0xff]
    %v2694 = vld [vmem:[#allocation3 + $0x8e0] sm:$0xff]
    %v2695 = vld [vmem:[#allocation3 + $0x8e8] sm:$0xff]
    %v2696 = vld [vmem:[#allocation3 + $0x8f0] sm:$0xff]
    %v2697 = vld [vmem:[#allocation3 + $0x8f8] sm:$0xff]
    %v2698 = vld [vmem:[#allocation3 + $0x900] sm:$0xff]
    %v2699 = vld [vmem:[#allocation3 + $0x908] sm:$0xff]
    %v2700 = vld [vmem:[#allocation3 + $0x910] sm:$0xff]
    %v2701 = vld [vmem:[#allocation3 + $0x918] sm:$0xff]
    %v2702 = vld [vmem:[#allocation3 + $0x920] sm:$0xff]
    %v2703 = vld [vmem:[#allocation3 + $0x928] sm:$0xff]
    %v2704 = vld [vmem:[#allocation3 + $0x930] sm:$0xff]
    %v2705 = vld [vmem:[#allocation3 + $0x938] sm:$0xff]
    %v2706 = vld [vmem:[#allocation3 + $0x940] sm:$0xff]
    %v2707 = vld [vmem:[#allocation3 + $0x948] sm:$0xff]
    %v2708 = vld [vmem:[#allocation3 + $0x950] sm:$0xff]
    %v2709 = vld [vmem:[#allocation3 + $0x958] sm:$0xff]
    %v2710 = vld [vmem:[#allocation3 + $0x960] sm:$0xff]
    %v2711 = vld [vmem:[#allocation3 + $0x968] sm:$0xff]
    %v2712 = vld [vmem:[#allocation3 + $0x970] sm:$0xff]
    %v2713 = vld [vmem:[#allocation3 + $0x978] sm:$0xff]
    %v2714 = vld [vmem:[#allocation3 + $0x980] sm:$0xff]
    %v2715 = vld [vmem:[#allocation3 + $0x988] sm:$0xff]
    %v2716 = vld [vmem:[#allocation3 + $0x990] sm:$0xff]
    %v2717 = vld [vmem:[#allocation3 + $0x998] sm:$0xff]
    %v2718 = vld [vmem:[#allocation3 + $0x9a0] sm:$0xff]
    %v2719 = vld [vmem:[#allocation3 + $0x9a8] sm:$0xff]
    %v2720 = vld [vmem:[#allocation3 + $0x9b0] sm:$0xff]
    %v2721 = vld [vmem:[#allocation3 + $0x9b8] sm:$0xff]
    %v2722 = vld [vmem:[#allocation3 + $0x9c0] sm:$0xff]
    %v2723 = vld [vmem:[#allocation3 + $0x9c8] sm:$0xff]
    %v2724 = vld [vmem:[#allocation3 + $0x9d0] sm:$0xff]
    %v2725 = vld [vmem:[#allocation3 + $0x9d8] sm:$0xff]
    %v2726 = vld [vmem:[#allocation3 + $0x9e0] sm:$0xff]
    %v2727 = vld [vmem:[#allocation3 + $0x9e8] sm:$0xff]
    %v2728 = vld [vmem:[#allocation3 + $0x9f0] sm:$0xff]
    %v2729 = vld [vmem:[#allocation3 + $0x9f8] sm:$0xff]
    %v2730 = vld [vmem:[#allocation3 + $0xa00] sm:$0xff]
    %v2731 = vld [vmem:[#allocation3 + $0xa08] sm:$0xff]
    %v2732 = vld [vmem:[#allocation3 + $0xa10] sm:$0xff]
    %v2733 = vld [vmem:[#allocation3 + $0xa18] sm:$0xff]
    %v2734 = vld [vmem:[#allocation3 + $0xa20] sm:$0xff]
    %v2735 = vld [vmem:[#allocation3 + $0xa28] sm:$0xff]
    %v2736 = vld [vmem:[#allocation3 + $0xa30] sm:$0xff]
    %v2737 = vld [vmem:[#allocation3 + $0xa38] sm:$0xff]
    %v2738 = vld [vmem:[#allocation3 + $0xa40] sm:$0xff]
    %v2739 = vld [vmem:[#allocation3 + $0xa48] sm:$0xff]
    %v2740 = vld [vmem:[#allocation3 + $0xa50] sm:$0xff]
    %v2741 = vld [vmem:[#allocation3 + $0xa58] sm:$0xff]
    %v2742 = vld [vmem:[#allocation3 + $0xa60] sm:$0xff]
    %v2743 = vld [vmem:[#allocation3 + $0xa68] sm:$0xff]
    %v2744 = vld [vmem:[#allocation3 + $0xa70] sm:$0xff]
    %v2745 = vld [vmem:[#allocation3 + $0xa78] sm:$0xff]
    %v2746 = vld [vmem:[#allocation3 + $0xa80] sm:$0xff]
    %v2747 = vld [vmem:[#allocation3 + $0xa88] sm:$0xff]
    %v2748 = vld [vmem:[#allocation3 + $0xa90] sm:$0xff]
    %v2749 = vld [vmem:[#allocation3 + $0xa98] sm:$0xff]
    %v2750 = vld [vmem:[#allocation3 + $0xaa0] sm:$0xff]
    %v2751 = vld [vmem:[#allocation3 + $0xaa8] sm:$0xff]
    %v2752 = vld [vmem:[#allocation3 + $0xab0] sm:$0xff]
    %v2753 = vld [vmem:[#allocation3 + $0xab8] sm:$0xff]
    %v2754 = vld [vmem:[#allocation3 + $0xac0] sm:$0xff]
    %v2755 = vld [vmem:[#allocation3 + $0xac8] sm:$0xff]
    %v2756 = vld [vmem:[#allocation3 + $0xad0] sm:$0xff]
    %v2757 = vld [vmem:[#allocation3 + $0xad8] sm:$0xff]
    %v2758 = vld [vmem:[#allocation3 + $0xae0] sm:$0xff]
    %v2759 = vld [vmem:[#allocation3 + $0xae8] sm:$0xff]
    %v2760 = vld [vmem:[#allocation3 + $0xaf0] sm:$0xff]
    %v2761 = vld [vmem:[#allocation3 + $0xaf8] sm:$0xff]
    %v2762 = vld [vmem:[#allocation3 + $0xb00] sm:$0xff]
    %v2763 = vld [vmem:[#allocation3 + $0xb08] sm:$0xff]
    %v2764 = vld [vmem:[#allocation3 + $0xb10] sm:$0xff]
    %v2765 = vld [vmem:[#allocation3 + $0xb18] sm:$0xff]
    %v2766 = vld [vmem:[#allocation3 + $0xb20] sm:$0xff]
    %v2767 = vld [vmem:[#allocation3 + $0xb28] sm:$0xff]
    %v2768 = vld [vmem:[#allocation3 + $0xb30] sm:$0xff]
    %v2769 = vld [vmem:[#allocation3 + $0xb38] sm:$0xff]
    %v2770 = vld [vmem:[#allocation3 + $0xb40] sm:$0xff]
    %v2771 = vld [vmem:[#allocation3 + $0xb48] sm:$0xff]
    %v2772 = vld [vmem:[#allocation3 + $0xb50] sm:$0xff]
    %v2773 = vld [vmem:[#allocation3 + $0xb58] sm:$0xff]
    %v2774 = vld [vmem:[#allocation3 + $0xb60] sm:$0xff]
    %v2775 = vld [vmem:[#allocation3 + $0xb68] sm:$0xff]
    %v2776 = vld [vmem:[#allocation3 + $0xb70] sm:$0xff]
    %v2777 = vld [vmem:[#allocation3 + $0xb78] sm:$0xff]
    %v2778 = vld [vmem:[#allocation3 + $0xb80] sm:$0xff]
    %v2779 = vld [vmem:[#allocation3 + $0xb88] sm:$0xff]
    %v2780 = vld [vmem:[#allocation3 + $0xb90] sm:$0xff]
    %v2781 = vld [vmem:[#allocation3 + $0xb98] sm:$0xff]
    %v2782 = vld [vmem:[#allocation3 + $0xba0] sm:$0xff]
    %v2783 = vld [vmem:[#allocation3 + $0xba8] sm:$0xff]
    %v2784 = vld [vmem:[#allocation3 + $0xbb0] sm:$0xff]
    %v2785 = vld [vmem:[#allocation3 + $0xbb8] sm:$0xff]
    %v2786 = vld [vmem:[#allocation3 + $0xbc0] sm:$0xff]
    %v2787 = vld [vmem:[#allocation3 + $0xbc8] sm:$0xff]
    %v2788 = vld [vmem:[#allocation3 + $0xbd0] sm:$0xff]
    %v2789 = vld [vmem:[#allocation3 + $0xbd8] sm:$0xff]
    %v2790 = vld [vmem:[#allocation3 + $0xbe0] sm:$0xff]
    %v2791 = vld [vmem:[#allocation3 + $0xbe8] sm:$0xff]
    %v2792 = vld [vmem:[#allocation3 + $0xbf0] sm:$0xff]
    %v2793 = vld [vmem:[#allocation3 + $0xbf8] sm:$0xff]
    %v2794 = vld [vmem:[#allocation3 + $0xc00] sm:$0xff]
    %v2795 = vld [vmem:[#allocation3 + $0xc08] sm:$0xff]
    %v2796 = vld [vmem:[#allocation3 + $0xc10] sm:$0xff]
    %v2797 = vld [vmem:[#allocation3 + $0xc18] sm:$0xff]
    %v2798 = vld [vmem:[#allocation3 + $0xc20] sm:$0xff]
    %v2799 = vld [vmem:[#allocation3 + $0xc28] sm:$0xff]
    %v2800 = vld [vmem:[#allocation3 + $0xc30] sm:$0xff]
    %v2801 = vld [vmem:[#allocation3 + $0xc38] sm:$0xff]
    %v2802 = vld [vmem:[#allocation3 + $0xc40] sm:$0xff]
    %v2803 = vld [vmem:[#allocation3 + $0xc48] sm:$0xff]
    %v2804 = vld [vmem:[#allocation3 + $0xc50] sm:$0xff]
    %v2805 = vld [vmem:[#allocation3 + $0xc58] sm:$0xff]
    %v2806 = vld [vmem:[#allocation3 + $0xc60] sm:$0xff]
    %v2807 = vld [vmem:[#allocation3 + $0xc68] sm:$0xff]
    %v2808 = vld [vmem:[#allocation3 + $0xc70] sm:$0xff]
    %v2809 = vld [vmem:[#allocation3 + $0xc78] sm:$0xff]
    %v2810 = vld [vmem:[#allocation3 + $0xc80] sm:$0xff]
    %v2811 = vld [vmem:[#allocation3 + $0xc88] sm:$0xff]
    %v2812 = vld [vmem:[#allocation3 + $0xc90] sm:$0xff]
    %v2813 = vld [vmem:[#allocation3 + $0xc98] sm:$0xff]
    %v2814 = vld [vmem:[#allocation3 + $0xca0] sm:$0xff]
    %v2815 = vld [vmem:[#allocation3 + $0xca8] sm:$0xff]
    %v2816 = vld [vmem:[#allocation3 + $0xcb0] sm:$0xff]
    %v2817 = vld [vmem:[#allocation3 + $0xcb8] sm:$0xff]
    %v2818 = vld [vmem:[#allocation3 + $0xcc0] sm:$0xff]
    %v2819 = vld [vmem:[#allocation3 + $0xcc8] sm:$0xff]
    %v2820 = vld [vmem:[#allocation3 + $0xcd0] sm:$0xff]
    %v2821 = vld [vmem:[#allocation3 + $0xcd8] sm:$0xff]
    %v2822 = vld [vmem:[#allocation3 + $0xce0] sm:$0xff]
    %v2823 = vld [vmem:[#allocation3 + $0xce8] sm:$0xff]
    %v2824 = vld [vmem:[#allocation3 + $0xcf0] sm:$0xff]
    %v2825 = vld [vmem:[#allocation3 + $0xcf8] sm:$0xff]
    %v2826 = vld [vmem:[#allocation3 + $0xd00] sm:$0xff]
    %v2827 = vld [vmem:[#allocation3 + $0xd08] sm:$0xff]
    %v2828 = vld [vmem:[#allocation3 + $0xd10] sm:$0xff]
    %v2829 = vld [vmem:[#allocation3 + $0xd18] sm:$0xff]
    %v2830 = vld [vmem:[#allocation3 + $0xd20] sm:$0xff]
    %v2831 = vld [vmem:[#allocation3 + $0xd28] sm:$0xff]
    %v2832 = vld [vmem:[#allocation3 + $0xd30] sm:$0xff]
    %v2833 = vld [vmem:[#allocation3 + $0xd38] sm:$0xff]
    %v2834 = vld [vmem:[#allocation3 + $0xd40] sm:$0xff]
    %v2835 = vld [vmem:[#allocation3 + $0xd48] sm:$0xff]
    %v2836 = vld [vmem:[#allocation3 + $0xd50] sm:$0xff]
    %v2837 = vld [vmem:[#allocation3 + $0xd58] sm:$0xff]
    %v2838 = vld [vmem:[#allocation3 + $0xd60] sm:$0xff]
    %v2839 = vld [vmem:[#allocation3 + $0xd68] sm:$0xff]
    %v2840 = vld [vmem:[#allocation3 + $0xd70] sm:$0xff]
    %v2841 = vld [vmem:[#allocation3 + $0xd78] sm:$0xff]
    %v2842 = vld [vmem:[#allocation3 + $0xd80] sm:$0xff]
    %v2843 = vld [vmem:[#allocation3 + $0xd88] sm:$0xff]
    %v2844 = vld [vmem:[#allocation3 + $0xd90] sm:$0xff]
    %v2845 = vld [vmem:[#allocation3 + $0xd98] sm:$0xff]
    %v2846 = vld [vmem:[#allocation3 + $0xda0] sm:$0xff]
    %v2847 = vld [vmem:[#allocation3 + $0xda8] sm:$0xff]
    %v2848 = vld [vmem:[#allocation3 + $0xdb0] sm:$0xff]
    %v2849 = vld [vmem:[#allocation3 + $0xdb8] sm:$0xff]
    %v2850 = vld [vmem:[#allocation3 + $0xdc0] sm:$0xff]
    %v2851 = vld [vmem:[#allocation3 + $0xdc8] sm:$0xff]
    %v2852 = vld [vmem:[#allocation3 + $0xdd0] sm:$0xff]
    %v2853 = vld [vmem:[#allocation3 + $0xdd8] sm:$0xff]
    %v2854 = vld [vmem:[#allocation3 + $0xde0] sm:$0xff]
    %v2855 = vld [vmem:[#allocation3 + $0xde8] sm:$0xff]
    %v2856 = vld [vmem:[#allocation3 + $0xdf0] sm:$0xff]
    %v2857 = vld [vmem:[#allocation3 + $0xdf8] sm:$0xff]
    %v2858 = vld [vmem:[#allocation3 + $0xe00] sm:$0xff]
    %v2859 = vld [vmem:[#allocation3 + $0xe08] sm:$0xff]
    %v2860 = vld [vmem:[#allocation3 + $0xe10] sm:$0xff]
    %v2861 = vld [vmem:[#allocation3 + $0xe18] sm:$0xff]
    %v2862 = vld [vmem:[#allocation3 + $0xe20] sm:$0xff]
    %v2863 = vld [vmem:[#allocation3 + $0xe28] sm:$0xff]
    %v2864 = vld [vmem:[#allocation3 + $0xe30] sm:$0xff]
    %v2865 = vld [vmem:[#allocation3 + $0xe38] sm:$0xff]
    %v2866 = vld [vmem:[#allocation3 + $0xe40] sm:$0xff]
    %v2867 = vld [vmem:[#allocation3 + $0xe48] sm:$0xff]
    %v2868 = vld [vmem:[#allocation3 + $0xe50] sm:$0xff]
    %v2869 = vld [vmem:[#allocation3 + $0xe58] sm:$0xff]
    %v2870 = vld [vmem:[#allocation3 + $0xe60] sm:$0xff]
    %v2871 = vld [vmem:[#allocation3 + $0xe68] sm:$0xff]
    %v2872 = vld [vmem:[#allocation3 + $0xe70] sm:$0xff]
    %v2873 = vld [vmem:[#allocation3 + $0xe78] sm:$0xff]
    %v2874 = vld [vmem:[#allocation3 + $0xe80] sm:$0xff]
    %v2875 = vld [vmem:[#allocation3 + $0xe88] sm:$0xff]
    %v2876 = vld [vmem:[#allocation3 + $0xe90] sm:$0xff]
    %v2877 = vld [vmem:[#allocation3 + $0xe98] sm:$0xff]
    %v2878 = vld [vmem:[#allocation3 + $0xea0] sm:$0xff]
    %v2879 = vld [vmem:[#allocation3 + $0xea8] sm:$0xff]
    %v2880 = vld [vmem:[#allocation3 + $0xeb0] sm:$0xff]
    %v2881 = vld [vmem:[#allocation3 + $0xeb8] sm:$0xff]
    %v2882 = vld [vmem:[#allocation3 + $0xec0] sm:$0xff]
    %v2883 = vld [vmem:[#allocation3 + $0xec8] sm:$0xff]
    %v2884 = vld [vmem:[#allocation3 + $0xed0] sm:$0xff]
    %v2885 = vld [vmem:[#allocation3 + $0xed8] sm:$0xff]
    %v2886 = vld [vmem:[#allocation3 + $0xee0] sm:$0xff]
    %v2887 = vld [vmem:[#allocation3 + $0xee8] sm:$0xff]
    %v2888 = vld [vmem:[#allocation3 + $0xef0] sm:$0xff]
    %v2889 = vld [vmem:[#allocation3 + $0xef8] sm:$0xff]
    %v2890 = vld [vmem:[#allocation3 + $0xf00] sm:$0xff]
    %v2891 = vld [vmem:[#allocation3 + $0xf08] sm:$0xff]
    %v2892 = vld [vmem:[#allocation3 + $0xf10] sm:$0xff]
    %v2893 = vld [vmem:[#allocation3 + $0xf18] sm:$0xff]
    %v2894 = vld [vmem:[#allocation3 + $0xf20] sm:$0xff]
    %v2895 = vld [vmem:[#allocation3 + $0xf28] sm:$0xff]
    %v2896 = vld [vmem:[#allocation3 + $0xf30] sm:$0xff]
    %v2897 = vld [vmem:[#allocation3 + $0xf38] sm:$0xff]
    %v2898 = vld [vmem:[#allocation3 + $0xf40] sm:$0xff]
    %v2899 = vld [vmem:[#allocation3 + $0xf48] sm:$0xff]
    %v2900 = vld [vmem:[#allocation3 + $0xf50] sm:$0xff]
    %v2901 = vld [vmem:[#allocation3 + $0xf58] sm:$0xff]
    %v2902 = vld [vmem:[#allocation3 + $0xf60] sm:$0xff]
    %v2903 = vld [vmem:[#allocation3 + $0xf68] sm:$0xff]
    %v2904 = vld [vmem:[#allocation3 + $0xf70] sm:$0xff]
    %v2905 = vld [vmem:[#allocation3 + $0xf78] sm:$0xff]
    %v2906 = vld [vmem:[#allocation3 + $0xf80] sm:$0xff]
    %v2907 = vld [vmem:[#allocation3 + $0xf88] sm:$0xff]
    %v2908 = vld [vmem:[#allocation3 + $0xf90] sm:$0xff]
    %v2909 = vld [vmem:[#allocation3 + $0xf98] sm:$0xff]
    %v2910 = vld [vmem:[#allocation3 + $0xfa0] sm:$0xff]
    %v2911 = vld [vmem:[#allocation3 + $0xfa8] sm:$0xff]
    %v2912 = vld [vmem:[#allocation3 + $0xfb0] sm:$0xff]
    %v2913 = vld [vmem:[#allocation3 + $0xfb8] sm:$0xff]
    %v2914 = vld [vmem:[#allocation3 + $0xfc0] sm:$0xff]
    %v2915 = vld [vmem:[#allocation3 + $0xfc8] sm:$0xff]
    %v2916 = vld [vmem:[#allocation3 + $0xfd0] sm:$0xff]
    %v2917 = vld [vmem:[#allocation3 + $0xfd8] sm:$0xff]
    %v2918 = vld [vmem:[#allocation3 + $0xfe0] sm:$0xff]
    %v2919 = vld [vmem:[#allocation3 + $0xfe8] sm:$0xff]
    %v2920 = vld [vmem:[#allocation3 + $0xff0] sm:$0xff]
    %v2921 = vld [vmem:[#allocation3 + $0xff8] sm:$0xff]
    %v2922 = vld [vmem:[#allocation3 + $0x1000] sm:$0xff]
    %v2923 = vld [vmem:[#allocation3 + $0x1008] sm:$0xff]
    %v2924 = vld [vmem:[#allocation3 + $0x1010] sm:$0xff]
    %v2925 = vld [vmem:[#allocation3 + $0x1018] sm:$0xff]
    %v2926 = vld [vmem:[#allocation3 + $0x1020] sm:$0xff]
    %v2927 = vld [vmem:[#allocation3 + $0x1028] sm:$0xff]
    %v2928 = vld [vmem:[#allocation3 + $0x1030] sm:$0xff]
    %v2929 = vld [vmem:[#allocation3 + $0x1038] sm:$0xff]
    %v2930 = vld [vmem:[#allocation3 + $0x1040] sm:$0xff]
    %v2931 = vld [vmem:[#allocation3 + $0x1048] sm:$0xff]
    %v2932 = vld [vmem:[#allocation3 + $0x1050] sm:$0xff]
    %v2933 = vld [vmem:[#allocation3 + $0x1058] sm:$0xff]
    %v2934 = vld [vmem:[#allocation3 + $0x1060] sm:$0xff]
    %v2935 = vld [vmem:[#allocation3 + $0x1068] sm:$0xff]
    %v2936 = vld [vmem:[#allocation3 + $0x1070] sm:$0xff]
    %v2937 = vld [vmem:[#allocation3 + $0x1078] sm:$0xff]
    %v2938 = vld [vmem:[#allocation3 + $0x1080] sm:$0xff]
    %v2939 = vld [vmem:[#allocation3 + $0x1088] sm:$0xff]
    %v2940 = vld [vmem:[#allocation3 + $0x1090] sm:$0xff]
    %v2941 = vld [vmem:[#allocation3 + $0x1098] sm:$0xff]
    %v2942 = vld [vmem:[#allocation3 + $0x10a0] sm:$0xff]
    %v2943 = vld [vmem:[#allocation3 + $0x10a8] sm:$0xff]
    %v2944 = vld [vmem:[#allocation3 + $0x10b0] sm:$0xff]
    %v2945 = vld [vmem:[#allocation3 + $0x10b8] sm:$0xff]
    %v2946 = vld [vmem:[#allocation3 + $0x10c0] sm:$0xff]
    %v2947 = vld [vmem:[#allocation3 + $0x10c8] sm:$0xff]
    %v2948 = vld [vmem:[#allocation3 + $0x10d0] sm:$0xff]
    %v2949 = vld [vmem:[#allocation3 + $0x10d8] sm:$0xff]
    %v2950 = vld [vmem:[#allocation3 + $0x10e0] sm:$0xff]
    %v2951 = vld [vmem:[#allocation3 + $0x10e8] sm:$0xff]
    %v2952 = vld [vmem:[#allocation3 + $0x10f0] sm:$0xff]
    %v2953 = vld [vmem:[#allocation3 + $0x10f8] sm:$0xff]
    %v2954 = vld [vmem:[#allocation3 + $0x1100] sm:$0xff]
    %v2955 = vld [vmem:[#allocation3 + $0x1108] sm:$0xff]
    %v2956 = vld [vmem:[#allocation3 + $0x1110] sm:$0xff]
    %v2957 = vld [vmem:[#allocation3 + $0x1118] sm:$0xff]
    %v2958 = vld [vmem:[#allocation3 + $0x1120] sm:$0xff]
    %v2959 = vld [vmem:[#allocation3 + $0x1128] sm:$0xff]
    %v2960 = vld [vmem:[#allocation3 + $0x1130] sm:$0xff]
    %v2961 = vld [vmem:[#allocation3 + $0x1138] sm:$0xff]
    %v2962 = vld [vmem:[#allocation3 + $0x1140] sm:$0xff]
    %v2963 = vld [vmem:[#allocation3 + $0x1148] sm:$0xff]
    %v2964 = vld [vmem:[#allocation3 + $0x1150] sm:$0xff]
    %v2965 = vld [vmem:[#allocation3 + $0x1158] sm:$0xff]
    %v2966 = vld [vmem:[#allocation3 + $0x1160] sm:$0xff]
    %v2967 = vld [vmem:[#allocation3 + $0x1168] sm:$0xff]
    %v2968 = vld [vmem:[#allocation3 + $0x1170] sm:$0xff]
    %v2969 = vld [vmem:[#allocation3 + $0x1178] sm:$0xff]
    %v2970 = vld [vmem:[#allocation3 + $0x1180] sm:$0xff]
    %v2971 = vld [vmem:[#allocation3 + $0x1188] sm:$0xff]
    %v2972 = vld [vmem:[#allocation3 + $0x1190] sm:$0xff]
    %v2973 = vld [vmem:[#allocation3 + $0x1198] sm:$0xff]
    %v2974 = vld [vmem:[#allocation3 + $0x11a0] sm:$0xff]
    %v2975 = vld [vmem:[#allocation3 + $0x11a8] sm:$0xff]
    %v2976 = vld [vmem:[#allocation3 + $0x11b0] sm:$0xff]
    %v2977 = vld [vmem:[#allocation3 + $0x11b8] sm:$0xff]
    %v2978 = vld [vmem:[#allocation3 + $0x11c0] sm:$0xff]
    %v2979 = vld [vmem:[#allocation3 + $0x11c8] sm:$0xff]
    %v2980 = vld [vmem:[#allocation3 + $0x11d0] sm:$0xff]
    %v2981 = vld [vmem:[#allocation3 + $0x11d8] sm:$0xff]
    %v2982 = vld [vmem:[#allocation3 + $0x11e0] sm:$0xff]
    %v2983 = vld [vmem:[#allocation3 + $0x11e8] sm:$0xff]
    %v2984 = vld [vmem:[#allocation3 + $0x11f0] sm:$0xff]
    %v2985 = vld [vmem:[#allocation3 + $0x11f8] sm:$0xff]
    %v2986 = vld [vmem:[#allocation9] sm:$0xff]
    %v2987 = vld [vmem:[#allocation9 + $0x8] sm:$0xff]
    %v2988 = vld [vmem:[#allocation9 + $0x10] sm:$0xff]
    %v2989 = vld [vmem:[#allocation9 + $0x18] sm:$0xff]
    %v2990 = vld [vmem:[#allocation9 + $0x20] sm:$0xff]
    %v2991 = vld [vmem:[#allocation9 + $0x28] sm:$0xff]
    %v2992 = vld [vmem:[#allocation9 + $0x30] sm:$0xff]
    %v2993 = vld [vmem:[#allocation9 + $0x38] sm:$0xff]
    %v2994 = vld [vmem:[#allocation9 + $0x40] sm:$0xff]
    %v2995 = vld [vmem:[#allocation9 + $0x48] sm:$0xff]
    %v2996 = vld [vmem:[#allocation9 + $0x50] sm:$0xff]
    %v2997 = vld [vmem:[#allocation9 + $0x58] sm:$0xff]
    %v2998 = vld [vmem:[#allocation9 + $0x60] sm:$0xff]
    %v2999 = vld [vmem:[#allocation9 + $0x68] sm:$0xff]
    %v3000 = vld [vmem:[#allocation9 + $0x70] sm:$0xff]
    %v3001 = vld [vmem:[#allocation9 + $0x78] sm:$0xff]
    %v3002 = vld [vmem:[#allocation9 + $0x80] sm:$0xff]
    %v3003 = vld [vmem:[#allocation9 + $0x88] sm:$0xff]
    %v3004 = vld [vmem:[#allocation9 + $0x90] sm:$0xff]
    %v3005 = vld [vmem:[#allocation9 + $0x98] sm:$0xff]
    %v3006 = vld [vmem:[#allocation9 + $0xa0] sm:$0xff]
    %v3007 = vld [vmem:[#allocation9 + $0xa8] sm:$0xff]
    %v3008 = vld [vmem:[#allocation9 + $0xb0] sm:$0xff]
    %v3009 = vld [vmem:[#allocation9 + $0xb8] sm:$0xff]
    %v3010 = vld [vmem:[#allocation9 + $0xc0] sm:$0xff]
    %v3011 = vld [vmem:[#allocation9 + $0xc8] sm:$0xff]
    %v3012 = vld [vmem:[#allocation9 + $0xd0] sm:$0xff]
    %v3013 = vld [vmem:[#allocation9 + $0xd8] sm:$0xff]
    %v3014 = vld [vmem:[#allocation9 + $0xe0] sm:$0xff]
    %v3015 = vld [vmem:[#allocation9 + $0xe8] sm:$0xff]
    %v3016 = vld [vmem:[#allocation9 + $0xf0] sm:$0xff]
    %v3017 = vld [vmem:[#allocation9 + $0xf8] sm:$0xff]
    %v3018 = vld [vmem:[#allocation9 + $0x100] sm:$0xff]
    %v3019 = vld [vmem:[#allocation9 + $0x108] sm:$0xff]
    %v3020 = vld [vmem:[#allocation9 + $0x110] sm:$0xff]
    %v3021 = vld [vmem:[#allocation9 + $0x118] sm:$0xff]
    %v3022 = vld [vmem:[#allocation9 + $0x120] sm:$0xff]
    %v3023 = vld [vmem:[#allocation9 + $0x128] sm:$0xff]
    %v3024 = vld [vmem:[#allocation9 + $0x130] sm:$0xff]
    %v3025 = vld [vmem:[#allocation9 + $0x138] sm:$0xff]
    %v3026 = vld [vmem:[#allocation9 + $0x140] sm:$0xff]
    %v3027 = vld [vmem:[#allocation9 + $0x148] sm:$0xff]
    %v3028 = vld [vmem:[#allocation9 + $0x150] sm:$0xff]
    %v3029 = vld [vmem:[#allocation9 + $0x158] sm:$0xff]
    %v3030 = vld [vmem:[#allocation9 + $0x160] sm:$0xff]
    %v3031 = vld [vmem:[#allocation9 + $0x168] sm:$0xff]
    %v3032 = vld [vmem:[#allocation9 + $0x170] sm:$0xff]
    %v3033 = vld [vmem:[#allocation9 + $0x178] sm:$0xff]
    %v3034 = vld [vmem:[#allocation9 + $0x180] sm:$0xff]
    %v3035 = vld [vmem:[#allocation9 + $0x188] sm:$0xff]
    %v3036 = vld [vmem:[#allocation9 + $0x190] sm:$0xff]
    %v3037 = vld [vmem:[#allocation9 + $0x198] sm:$0xff]
    %v3038 = vld [vmem:[#allocation9 + $0x1a0] sm:$0xff]
    %v3039 = vld [vmem:[#allocation9 + $0x1a8] sm:$0xff]
    %v3040 = vld [vmem:[#allocation9 + $0x1b0] sm:$0xff]
    %v3041 = vld [vmem:[#allocation9 + $0x1b8] sm:$0xff]
    %v3042 = vld [vmem:[#allocation9 + $0x1c0] sm:$0xff]
    %v3043 = vld [vmem:[#allocation9 + $0x1c8] sm:$0xff]
    %v3044 = vld [vmem:[#allocation9 + $0x1d0] sm:$0xff]
    %v3045 = vld [vmem:[#allocation9 + $0x1d8] sm:$0xff]
    %v3046 = vld [vmem:[#allocation9 + $0x1e0] sm:$0xff]
    %v3047 = vld [vmem:[#allocation9 + $0x1e8] sm:$0xff]
    %v3048 = vld [vmem:[#allocation9 + $0x1f0] sm:$0xff]
    %v3049 = vld [vmem:[#allocation9 + $0x1f8] sm:$0xff]
    %v3050 = vld [vmem:[#allocation9 + $0x200] sm:$0xff]
    %v3051 = vld [vmem:[#allocation9 + $0x208] sm:$0xff]
    %v3052 = vld [vmem:[#allocation9 + $0x210] sm:$0xff]
    %v3053 = vld [vmem:[#allocation9 + $0x218] sm:$0xff]
    %v3054 = vld [vmem:[#allocation9 + $0x220] sm:$0xff]
    %v3055 = vld [vmem:[#allocation9 + $0x228] sm:$0xff]
    %v3056 = vld [vmem:[#allocation9 + $0x230] sm:$0xff]
    %v3057 = vld [vmem:[#allocation9 + $0x238] sm:$0xff]
    %v3058 = vld [vmem:[#allocation9 + $0x240] sm:$0xff]
    %v3059 = vld [vmem:[#allocation9 + $0x248] sm:$0xff]
    %v3060 = vld [vmem:[#allocation9 + $0x250] sm:$0xff]
    %v3061 = vld [vmem:[#allocation9 + $0x258] sm:$0xff]
    %v3062 = vld [vmem:[#allocation9 + $0x260] sm:$0xff]
    %v3063 = vld [vmem:[#allocation9 + $0x268] sm:$0xff]
    %v3064 = vld [vmem:[#allocation9 + $0x270] sm:$0xff]
    %v3065 = vld [vmem:[#allocation9 + $0x278] sm:$0xff]
    %v3066 = vld [vmem:[#allocation9 + $0x280] sm:$0xff]
    %v3067 = vld [vmem:[#allocation9 + $0x288] sm:$0xff]
    %v3068 = vld [vmem:[#allocation9 + $0x290] sm:$0xff]
    %v3069 = vld [vmem:[#allocation9 + $0x298] sm:$0xff]
    %v3070 = vld [vmem:[#allocation9 + $0x2a0] sm:$0xff]
    %v3071 = vld [vmem:[#allocation9 + $0x2a8] sm:$0xff]
    %v3072 = vld [vmem:[#allocation9 + $0x2b0] sm:$0xff]
    %v3073 = vld [vmem:[#allocation9 + $0x2b8] sm:$0xff]
    %v3074 = vld [vmem:[#allocation9 + $0x2c0] sm:$0xff]
    %v3075 = vld [vmem:[#allocation9 + $0x2c8] sm:$0xff]
    %v3076 = vld [vmem:[#allocation9 + $0x2d0] sm:$0xff]
    %v3077 = vld [vmem:[#allocation9 + $0x2d8] sm:$0xff]
    %v3078 = vld [vmem:[#allocation9 + $0x2e0] sm:$0xff]
    %v3079 = vld [vmem:[#allocation9 + $0x2e8] sm:$0xff]
    %v3080 = vld [vmem:[#allocation9 + $0x2f0] sm:$0xff]
    %v3081 = vld [vmem:[#allocation9 + $0x2f8] sm:$0xff]
    %v3082 = vld [vmem:[#allocation9 + $0x300] sm:$0xff]
    %v3083 = vld [vmem:[#allocation9 + $0x308] sm:$0xff]
    %v3084 = vld [vmem:[#allocation9 + $0x310] sm:$0xff]
    %v3085 = vld [vmem:[#allocation9 + $0x318] sm:$0xff]
    %v3086 = vld [vmem:[#allocation9 + $0x320] sm:$0xff]
    %v3087 = vld [vmem:[#allocation9 + $0x328] sm:$0xff]
    %v3088 = vld [vmem:[#allocation9 + $0x330] sm:$0xff]
    %v3089 = vld [vmem:[#allocation9 + $0x338] sm:$0xff]
    %v3090 = vld [vmem:[#allocation9 + $0x340] sm:$0xff]
    %v3091 = vld [vmem:[#allocation9 + $0x348] sm:$0xff]
    %v3092 = vld [vmem:[#allocation9 + $0x350] sm:$0xff]
    %v3093 = vld [vmem:[#allocation9 + $0x358] sm:$0xff]
    %v3094 = vld [vmem:[#allocation9 + $0x360] sm:$0xff]
    %v3095 = vld [vmem:[#allocation9 + $0x368] sm:$0xff]
    %v3096 = vld [vmem:[#allocation9 + $0x370] sm:$0xff]
    %v3097 = vld [vmem:[#allocation9 + $0x378] sm:$0xff]
    %v3098 = vld [vmem:[#allocation9 + $0x380] sm:$0xff]
    %v3099 = vld [vmem:[#allocation9 + $0x388] sm:$0xff]
    %v3100 = vld [vmem:[#allocation9 + $0x390] sm:$0xff]
    %v3101 = vld [vmem:[#allocation9 + $0x398] sm:$0xff]
    %v3102 = vld [vmem:[#allocation9 + $0x3a0] sm:$0xff]
    %v3103 = vld [vmem:[#allocation9 + $0x3a8] sm:$0xff]
    %v3104 = vld [vmem:[#allocation9 + $0x3b0] sm:$0xff]
    %v3105 = vld [vmem:[#allocation9 + $0x3b8] sm:$0xff]
    %v3106 = vld [vmem:[#allocation9 + $0x3c0] sm:$0xff]
    %v3107 = vld [vmem:[#allocation9 + $0x3c8] sm:$0xff]
    %v3108 = vld [vmem:[#allocation9 + $0x3d0] sm:$0xff]
    %v3109 = vld [vmem:[#allocation9 + $0x3d8] sm:$0xff]
    %v3110 = vld [vmem:[#allocation9 + $0x3e0] sm:$0xff]
    %v3111 = vld [vmem:[#allocation9 + $0x3e8] sm:$0xff]
    %v3112 = vld [vmem:[#allocation9 + $0x3f0] sm:$0xff]
    %v3113 = vld [vmem:[#allocation9 + $0x3f8] sm:$0xff]
    %v3114 = vld [vmem:[#allocation9 + $0x400] sm:$0xff]
    %v3115 = vld [vmem:[#allocation9 + $0x408] sm:$0xff]
    %v3116 = vld [vmem:[#allocation9 + $0x410] sm:$0xff]
    %v3117 = vld [vmem:[#allocation9 + $0x418] sm:$0xff]
    %v3118 = vld [vmem:[#allocation9 + $0x420] sm:$0xff]
    %v3119 = vld [vmem:[#allocation9 + $0x428] sm:$0xff]
    %v3120 = vld [vmem:[#allocation9 + $0x430] sm:$0xff]
    %v3121 = vld [vmem:[#allocation9 + $0x438] sm:$0xff]
    %v3122 = vld [vmem:[#allocation9 + $0x440] sm:$0xff]
    %v3123 = vld [vmem:[#allocation9 + $0x448] sm:$0xff]
    %v3124 = vld [vmem:[#allocation9 + $0x450] sm:$0xff]
    %v3125 = vld [vmem:[#allocation9 + $0x458] sm:$0xff]
    %v3126 = vld [vmem:[#allocation9 + $0x460] sm:$0xff]
    %v3127 = vld [vmem:[#allocation9 + $0x468] sm:$0xff]
    %v3128 = vld [vmem:[#allocation9 + $0x470] sm:$0xff]
    %v3129 = vld [vmem:[#allocation9 + $0x478] sm:$0xff]
    %3130 = vmatprep.subr.mxu0 0.0
    %3131 = vmatpush1.msra.mxu0 %v2986
    %3132 = vmatprep.subr.mxu0 0.0
    %3133 = vmatpush1.msra.mxu0 %v2987
    %3134 = vmatprep.subr.mxu0 0.0
    %3135 = vmatpush1.msra.mxu0 %v2988
    %3136 = vmatprep.subr.mxu0 0.0
    %3137 = vmatpush1.msra.mxu0 %v2989
    %3138 = vmatprep.subr.mxu0 0.0
    %3139 = vmatpush1.msra.mxu0 %v2990
    %3140 = vmatprep.subr.mxu0 0.0
    %3141 = vmatpush1.msra.mxu0 %v2991
    %3142 = vmatprep.subr.mxu0 0.0
    %3143 = vmatpush1.msra.mxu0 %v2992
    %3144 = vmatprep.subr.mxu0 0.0
    %3145 = vmatpush1.msra.mxu0 %v2993
    %3146 = vmatprep.subr.mxu0 0.0
    %3147 = vmatpush1.msra.mxu0 %v2994
    %3148 = vmatprep.subr.mxu0 0.0
    %3149 = vmatpush1.msra.mxu0 %v2995
    %3150 = vmatprep.subr.mxu0 0.0
    %3151 = vmatpush1.msra.mxu0 %v2996
    %3152 = vmatprep.subr.mxu0 0.0
    %3153 = vmatpush1.msra.mxu0 %v2997
    %3154 = vmatprep.subr.mxu0 0.0
    %3155 = vmatpush1.msra.mxu0 %v2998
    %3156 = vmatprep.subr.mxu0 0.0
    %3157 = vmatpush1.msra.mxu0 %v2999
    %3158 = vmatprep.subr.mxu0 0.0
    %3159 = vmatpush1.msra.mxu0 %v3000
    %3160 = vmatprep.subr.mxu0 0.0
    %3161 = vmatpush1.msra.mxu0 %v3001
    %3162 = vmatprep.subr.mxu0 0.0
    %3163 = vmatpush1.msra.mxu0 %v3002
    %3164 = vmatprep.subr.mxu0 0.0
    %3165 = vmatpush1.msra.mxu0 %v3003
    %3166 = vmatprep.subr.mxu0 0.0
    %3167 = vmatpush1.msra.mxu0 %v3004
    %3168 = vmatprep.subr.mxu0 0.0
    %3169 = vmatpush1.msra.mxu0 %v3005
    %3170 = vmatprep.subr.mxu0 0.0
    %3171 = vmatpush1.msra.mxu0 %v3006
    %3172 = vmatprep.subr.mxu0 0.0
    %3173 = vmatpush1.msra.mxu0 %v3007
    %3174 = vmatprep.subr.mxu0 0.0
    %3175 = vmatpush1.msra.mxu0 %v3008
    %3176 = vmatprep.subr.mxu0 0.0
    %3177 = vmatpush1.msra.mxu0 %v3009
    %3178 = vmatprep.subr.mxu0 0.0
    %3179 = vmatpush1.msra.mxu0 %v3010
    %3180 = vmatprep.subr.mxu0 0.0
    %3181 = vmatpush1.msra.mxu0 %v3011
    %3182 = vmatprep.subr.mxu0 0.0
    %3183 = vmatpush1.msra.mxu0 %v3012
    %3184 = vmatprep.subr.mxu0 0.0
    %3185 = vmatpush1.msra.mxu0 %v3013
    %3186 = vmatprep.subr.mxu0 0.0
    %3187 = vmatpush1.msra.mxu0 %v3014
    %3188 = vmatprep.subr.mxu0 0.0
    %3189 = vmatpush1.msra.mxu0 %v3015
    %3190 = vmatprep.subr.mxu0 0.0
    %3191 = vmatpush1.msra.mxu0 %v3016
    %3192 = vmatprep.subr.mxu0 0.0
    %3193 = vmatpush1.msra.mxu0 %v3017
    %3194 = vmatprep.mubr.f32.mxu0 %v2411
    %3195 = vmatmul.mubr.f32.gmra.mrb[0].mxu0 %v2410
    %v3196 = vpop.f32.mrb[0].mxu0
    %v3197 = vadd.f32 0.0, %v3196
    %v3198 = vpop.f32.mrb[0].mxu0
    %3199 = vmatprep.mubr.f32.mxu0 %v2420
    %3200 = vmatmul.mubr.f32.gmra.mrb[0].mxu0 %v2419
    %v3201 = vpop.f32.mrb[0].mxu0
    %v3202 = vadd.f32 0.0, %v3201
    %v3203 = vpop.f32.mrb[0].mxu0
    %3204 = vmatprep.mubr.f32.mxu0 %v2429
    %3205 = vmatmul.mubr.f32.gmra.mrb[0].mxu0 %v2428
    %v3206 = vpop.f32.mrb[0].mxu0
    %v3207 = vadd.f32 0.0, %v3206
    %v3208 = vpop.f32.mrb[0].mxu0
    %3209 = vmatprep.mubr.f32.mxu0 %v2438
    %3210 = vmatmul.mubr.f32.gmra.mrb[0].mxu0 %v2437
    %v3211 = vpop.f32.mrb[0].mxu0
    %v3212 = vadd.f32 0.0, %v3211
    %v3213 = vpop.f32.mrb[0].mxu0
    %3214 = vmatprep.mubr.f32.mxu0 %v2447
    %3215 = vmatmul.mubr.f32.gmra.mrb[0].mxu0 %v2446
    %v3216 = vpop.f32.mrb[0].mxu0
    %v3217 = vadd.f32 0.0, %v3216
    %v3218 = vpop.f32.mrb[0].mxu0
    %3219 = vmatprep.mubr.f32.mxu0 %v2456
    %3220 = vmatmul.mubr.f32.gmra.mrb[0].mxu0 %v2455
    %v3221 = vpop.f32.mrb[0].mxu0
    %v3222 = vadd.f32 0.0, %v3221
    %v3223 = vpop.f32.mrb[0].mxu0
    %3224 = vmatprep.mubr.f32.mxu0 %v2465
    %3225 = vmatmul.mubr.f32.gmra.mrb[0].mxu0 %v2464
    %v3226 = vpop.f32.mrb[0].mxu0
    %v3227 = vadd.f32 0.0, %v3226
    %v3228 = vpop.f32.mrb[0].mxu0
    %3229 = vmatprep.mubr.f32.mxu0 %v2474
    %3230 = vmatmul.mubr.f32.gmra.mrb[0].mxu0 %v2473
    %v3231 = vpop.f32.mrb[0].mxu0
    %v3232 = vadd.f32 0.0, %v3231
    %v3233 = vpop.f32.mrb[0].mxu0
    %3234 = vmatprep.mubr.f32.mxu0 %v2483
    %3235 = vmatmul.mubr.f32.gmra.mrb[0].mxu0 %v2482
    %v3236 = vpop.f32.mrb[0].mxu0
    %v3237 = vadd.f32 0.0, %v3236
    %v3238 = vpop.f32.mrb[0].mxu0
    %3239 = vmatprep.mubr.f32.mxu0 %v2492
    %3240 = vmatmul.mubr.f32.gmra.mrb[0].mxu0 %v2491
    %v3241 = vpop.f32.mrb[0].mxu0
    %v3242 = vadd.f32 0.0, %v3241
    %v3243 = vpop.f32.mrb[0].mxu0
    %3244 = vmatprep.mubr.f32.mxu0 %v2501
    %3245 = vmatmul.mubr.f32.gmra.mrb[0].mxu0 %v2500
    %v3246 = vpop.f32.mrb[0].mxu0
    %v3247 = vadd.f32 0.0, %v3246
    %v3248 = vpop.f32.mrb[0].mxu0
    %3249 = vmatprep.mubr.f32.mxu0 %v2510
    %3250 = vmatmul.mubr.f32.gmra.mrb[0].mxu0 %v2509
    %v3251 = vpop.f32.mrb[0].mxu0
    %v3252 = vadd.f32 0.0, %v3251
    %v3253 = vpop.f32.mrb[0].mxu0
    %3254 = vmatprep.mubr.f32.mxu0 %v2519
    %3255 = vmatmul.mubr.f32.gmra.mrb[0].mxu0 %v2518
    %v3256 = vpop.f32.mrb[0].mxu0
    %v3257 = vadd.f32 0.0, %v3256
    %v3258 = vpop.f32.mrb[0].mxu0
    %3259 = vmatprep.mubr.f32.mxu0 %v2528
    %3260 = vmatmul.mubr.f32.gmra.mrb[0].mxu0 %v2527
    %v3261 = vpop.f32.mrb[0].mxu0
    %v3262 = vadd.f32 0.0, %v3261
    %v3263 = vpop.f32.mrb[0].mxu0
    %3264 = vmatprep.mubr.f32.mxu0 %v2537
    %3265 = vmatmul.mubr.f32.gmra.mrb[0].mxu0 %v2536
    %v3266 = vpop.f32.mrb[0].mxu0
    %v3267 = vadd.f32 0.0, %v3266
    %v3268 = vpop.f32.mrb[0].mxu0
    %3269 = vmatprep.mubr.f32.mxu0 %v2546
    %3270 = vmatmul.mubr.f32.gmra.mrb[0].mxu0 %v2545
    %v3271 = vpop.f32.mrb[0].mxu0
    %v3272 = vadd.f32 0.0, %v3271
    %v3273 = vpop.f32.mrb[0].mxu0
    %3274 = vmatprep.mubr.f32.mxu0 %v2555
    %3275 = vmatmul.mubr.f32.gmra.mrb[0].mxu0 %v2554
    %v3276 = vpop.f32.mrb[0].mxu0
    %v3277 = vadd.f32 0.0, %v3276
    %v3278 = vpop.f32.mrb[0].mxu0
    %3279 = vmatprep.mubr.f32.mxu0 %v2564
    %3280 = vmatmul.mubr.f32.gmra.mrb[0].mxu0 %v2563
    %v3281 = vpop.f32.mrb[0].mxu0
    %v3282 = vadd.f32 0.0, %v3281
    %v3283 = vpop.f32.mrb[0].mxu0
    %3284 = vmatprep.mubr.f32.mxu0 %v2573
    %3285 = vmatmul.mubr.f32.gmra.mrb[0].mxu0 %v2572
    %v3286 = vpop.f32.mrb[0].mxu0
    %v3287 = vadd.f32 0.0, %v3286
    %v3288 = vpop.f32.mrb[0].mxu0
    %3289 = vmatprep.mubr.f32.mxu0 %v2582
    %3290 = vmatmul.mubr.f32.gmra.mrb[0].mxu0 %v2581
    %v3291 = vpop.f32.mrb[0].mxu0
    %v3292 = vadd.f32 0.0, %v3291
    %v3293 = vpop.f32.mrb[0].mxu0
    %3294 = vmatprep.mubr.f32.mxu0 %v2591
    %3295 = vmatmul.mubr.f32.gmra.mrb[0].mxu0 %v2590
    %v3296 = vpop.f32.mrb[0].mxu0
    %v3297 = vadd.f32 0.0, %v3296
    %v3298 = vpop.f32.mrb[0].mxu0
    %3299 = vmatprep.mubr.f32.mxu0 %v2600
    %3300 = vmatmul.mubr.f32.gmra.mrb[0].mxu0 %v2599
    %v3301 = vpop.f32.mrb[0].mxu0
    %v3302 = vadd.f32 0.0, %v3301
    %v3303 = vpop.f32.mrb[0].mxu0
    %3304 = vmatprep.mubr.f32.mxu0 %v2609
    %3305 = vmatmul.mubr.f32.gmra.mrb[0].mxu0 %v2608
    %v3306 = vpop.f32.mrb[0].mxu0
    %v3307 = vadd.f32 0.0, %v3306
    %v3308 = vpop.f32.mrb[0].mxu0
    %3309 = vmatprep.mubr.f32.mxu0 %v2618
    %3310 = vmatmul.mubr.f32.gmra.mrb[0].mxu0 %v2617
    %v3311 = vpop.f32.mrb[0].mxu0
    %v3312 = vadd.f32 0.0, %v3311
    %v3313 = vpop.f32.mrb[0].mxu0
    %3314 = vmatprep.mubr.f32.mxu0 %v2627
    %3315 = vmatmul.mubr.f32.gmra.mrb[0].mxu0 %v2626
    %v3316 = vpop.f32.mrb[0].mxu0
    %v3317 = vadd.f32 0.0, %v3316
    %v3318 = vpop.f32.mrb[0].mxu0
    %3319 = vmatprep.mubr.f32.mxu0 %v2636
    %3320 = vmatmul.mubr.f32.gmra.mrb[0].mxu0 %v2635
    %v3321 = vpop.f32.mrb[0].mxu0
    %v3322 = vadd.f32 0.0, %v3321
    %v3323 = vpop.f32.mrb[0].mxu0
    %3324 = vmatprep.mubr.f32.mxu0 %v2645
    %3325 = vmatmul.mubr.f32.gmra.mrb[0].mxu0 %v2644
    %v3326 = vpop.f32.mrb[0].mxu0
    %v3327 = vadd.f32 0.0, %v3326
    %v3328 = vpop.f32.mrb[0].mxu0
    %3329 = vmatprep.mubr.f32.mxu0 %v2654
    %3330 = vmatmul.mubr.f32.gmra.mrb[0].mxu0 %v2653
    %v3331 = vpop.f32.mrb[0].mxu0
    %v3332 = vadd.f32 0.0, %v3331
    %v3333 = vpop.f32.mrb[0].mxu0
    %3334 = vmatprep.mubr.f32.mxu0 %v2663
    %3335 = vmatmul.mubr.f32.gmra.mrb[0].mxu0 %v2662
    %v3336 = vpop.f32.mrb[0].mxu0
    %v3337 = vadd.f32 0.0, %v3336
    %v3338 = vpop.f32.mrb[0].mxu0
    %3339 = vmatprep.mubr.f32.mxu0 %v2672
    %3340 = vmatmul.mubr.f32.gmra.mrb[0].mxu0 %v2671
    %v3341 = vpop.f32.mrb[0].mxu0
    %v3342 = vadd.f32 0.0, %v3341
    %v3343 = vpop.f32.mrb[0].mxu0
    %3344 = vmatprep.mubr.f32.mxu0 %v2681
    %3345 = vmatmul.mubr.f32.gmra.mrb[0].mxu0 %v2680
    %v3346 = vpop.f32.mrb[0].mxu0
    %v3347 = vadd.f32 0.0, %v3346
    %v3348 = vpop.f32.mrb[0].mxu0
    %3349 = vmatprep.mubr.f32.mxu0 %v2690
    %3350 = vmatmul.mubr.f32.gmra.mrb[0].mxu0 %v2689
    %v3351 = vpop.f32.mrb[0].mxu0
    %v3352 = vadd.f32 0.0, %v3351
    %v3353 = vpop.f32.mrb[0].mxu0
    %3354 = vmatprep.mubr.f32.mxu0 %v2699
    %3355 = vmatmul.mubr.f32.gmra.mrb[0].mxu0 %v2698
    %v3356 = vpop.f32.mrb[0].mxu0
    %v3357 = vadd.f32 0.0, %v3356
    %v3358 = vpop.f32.mrb[0].mxu0
    %3359 = vmatprep.mubr.f32.mxu0 %v2708
    %3360 = vmatmul.mubr.f32.gmra.mrb[0].mxu0 %v2707
    %v3361 = vpop.f32.mrb[0].mxu0
    %v3362 = vadd.f32 0.0, %v3361
    %v3363 = vpop.f32.mrb[0].mxu0
    %3364 = vmatprep.mubr.f32.mxu0 %v2717
    %3365 = vmatmul.mubr.f32.gmra.mrb[0].mxu0 %v2716
    %v3366 = vpop.f32.mrb[0].mxu0
    %v3367 = vadd.f32 0.0, %v3366
    %v3368 = vpop.f32.mrb[0].mxu0
    %3369 = vmatprep.mubr.f32.mxu0 %v2726
    %3370 = vmatmul.mubr.f32.gmra.mrb[0].mxu0 %v2725
    %v3371 = vpop.f32.mrb[0].mxu0
    %v3372 = vadd.f32 0.0, %v3371
    %v3373 = vpop.f32.mrb[0].mxu0
    %3374 = vmatprep.mubr.f32.mxu0 %v2735
    %3375 = vmatmul.mubr.f32.gmra.mrb[0].mxu0 %v2734
    %v3376 = vpop.f32.mrb[0].mxu0
    %v3377 = vadd.f32 0.0, %v3376
    %v3378 = vpop.f32.mrb[0].mxu0
    %3379 = vmatprep.mubr.f32.mxu0 %v2744
    %3380 = vmatmul.mubr.f32.gmra.mrb[0].mxu0 %v2743
    %v3381 = vpop.f32.mrb[0].mxu0
    %v3382 = vadd.f32 0.0, %v3381
    %v3383 = vpop.f32.mrb[0].mxu0
    %3384 = vmatprep.mubr.f32.mxu0 %v2753
    %3385 = vmatmul.mubr.f32.gmra.mrb[0].mxu0 %v2752
    %v3386 = vpop.f32.mrb[0].mxu0
    %v3387 = vadd.f32 0.0, %v3386
    %v3388 = vpop.f32.mrb[0].mxu0
    %3389 = vmatprep.mubr.f32.mxu0 %v2762
    %3390 = vmatmul.mubr.f32.gmra.mrb[0].mxu0 %v2761
    %v3391 = vpop.f32.mrb[0].mxu0
    %v3392 = vadd.f32 0.0, %v3391
    %v3393 = vpop.f32.mrb[0].mxu0
    %3394 = vmatprep.mubr.f32.mxu0 %v2771
    %3395 = vmatmul.mubr.f32.gmra.mrb[0].mxu0 %v2770
    %v3396 = vpop.f32.mrb[0].mxu0
    %v3397 = vadd.f32 0.0, %v3396
    %v3398 = vpop.f32.mrb[0].mxu0
    %3399 = vmatprep.mubr.f32.mxu0 %v2780
    %3400 = vmatmul.mubr.f32.gmra.mrb[0].mxu0 %v2779
    %v3401 = vpop.f32.mrb[0].mxu0
    %v3402 = vadd.f32 0.0, %v3401
    %v3403 = vpop.f32.mrb[0].mxu0
    %3404 = vmatprep.mubr.f32.mxu0 %v2789
    %3405 = vmatmul.mubr.f32.gmra.mrb[0].mxu0 %v2788
    %v3406 = vpop.f32.mrb[0].mxu0
    %v3407 = vadd.f32 0.0, %v3406
    %v3408 = vpop.f32.mrb[0].mxu0
    %3409 = vmatprep.mubr.f32.mxu0 %v2798
    %3410 = vmatmul.mubr.f32.gmra.mrb[0].mxu0 %v2797
    %v3411 = vpop.f32.mrb[0].mxu0
    %v3412 = vadd.f32 0.0, %v3411
    %v3413 = vpop.f32.mrb[0].mxu0
    %3414 = vmatprep.mubr.f32.mxu0 %v2807
    %3415 = vmatmul.mubr.f32.gmra.mrb[0].mxu0 %v2806
    %v3416 = vpop.f32.mrb[0].mxu0
    %v3417 = vadd.f32 0.0, %v3416
    %v3418 = vpop.f32.mrb[0].mxu0
    %3419 = vmatprep.mubr.f32.mxu0 %v2816
    %3420 = vmatmul.mubr.f32.gmra.mrb[0].mxu0 %v2815
    %v3421 = vpop.f32.mrb[0].mxu0
    %v3422 = vadd.f32 0.0, %v3421
    %v3423 = vpop.f32.mrb[0].mxu0
    %3424 = vmatprep.mubr.f32.mxu0 %v2825
    %3425 = vmatmul.mubr.f32.gmra.mrb[0].mxu0 %v2824
    %v3426 = vpop.f32.mrb[0].mxu0
    %v3427 = vadd.f32 0.0, %v3426
    %v3428 = vpop.f32.mrb[0].mxu0
    %3429 = vmatprep.mubr.f32.mxu0 %v2834
    %3430 = vmatmul.mubr.f32.gmra.mrb[0].mxu0 %v2833
    %v3431 = vpop.f32.mrb[0].mxu0
    %v3432 = vadd.f32 0.0, %v3431
    %v3433 = vpop.f32.mrb[0].mxu0
    %3434 = vmatprep.mubr.f32.mxu0 %v2843
    %3435 = vmatmul.mubr.f32.gmra.mrb[0].mxu0 %v2842
    %v3436 = vpop.f32.mrb[0].mxu0
    %v3437 = vadd.f32 0.0, %v3436
    %v3438 = vpop.f32.mrb[0].mxu0
    %3439 = vmatprep.mubr.f32.mxu0 %v2852
    %3440 = vmatmul.mubr.f32.gmra.mrb[0].mxu0 %v2851
    %v3441 = vpop.f32.mrb[0].mxu0
    %v3442 = vadd.f32 0.0, %v3441
    %v3443 = vpop.f32.mrb[0].mxu0
    %3444 = vmatprep.mubr.f32.mxu0 %v2861
    %3445 = vmatmul.mubr.f32.gmra.mrb[0].mxu0 %v2860
    %v3446 = vpop.f32.mrb[0].mxu0
    %v3447 = vadd.f32 0.0, %v3446
    %v3448 = vpop.f32.mrb[0].mxu0
    %3449 = vmatprep.mubr.f32.mxu0 %v2870
    %3450 = vmatmul.mubr.f32.gmra.mrb[0].mxu0 %v2869
    %v3451 = vpop.f32.mrb[0].mxu0
    %v3452 = vadd.f32 0.0, %v3451
    %v3453 = vpop.f32.mrb[0].mxu0
    %3454 = vmatprep.mubr.f32.mxu0 %v2879
    %3455 = vmatmul.mubr.f32.gmra.mrb[0].mxu0 %v2878
    %v3456 = vpop.f32.mrb[0].mxu0
    %v3457 = vadd.f32 0.0, %v3456
    %v3458 = vpop.f32.mrb[0].mxu0
    %3459 = vmatprep.mubr.f32.mxu0 %v2888
    %3460 = vmatmul.mubr.f32.gmra.mrb[0].mxu0 %v2887
    %v3461 = vpop.f32.mrb[0].mxu0
    %v3462 = vadd.f32 0.0, %v3461
    %v3463 = vpop.f32.mrb[0].mxu0
    %3464 = vmatprep.mubr.f32.mxu0 %v2897
    %3465 = vmatmul.mubr.f32.gmra.mrb[0].mxu0 %v2896
    %v3466 = vpop.f32.mrb[0].mxu0
    %v3467 = vadd.f32 0.0, %v3466
    %v3468 = vpop.f32.mrb[0].mxu0
    %3469 = vmatprep.mubr.f32.mxu0 %v2906
    %3470 = vmatmul.mubr.f32.gmra.mrb[0].mxu0 %v2905
    %v3471 = vpop.f32.mrb[0].mxu0
    %v3472 = vadd.f32 0.0, %v3471
    %v3473 = vpop.f32.mrb[0].mxu0
    %3474 = vmatprep.mubr.f32.mxu0 %v2915
    %3475 = vmatmul.mubr.f32.gmra.mrb[0].mxu0 %v2914
    %v3476 = vpop.f32.mrb[0].mxu0
    %v3477 = vadd.f32 0.0, %v3476
    %v3478 = vpop.f32.mrb[0].mxu0
    %3479 = vmatprep.mubr.f32.mxu0 %v2924
    %3480 = vmatmul.mubr.f32.gmra.mrb[0].mxu0 %v2923
    %v3481 = vpop.f32.mrb[0].mxu0
    %v3482 = vadd.f32 0.0, %v3481
    %v3483 = vpop.f32.mrb[0].mxu0
    %3484 = vmatprep.mubr.f32.mxu0 %v2933
    %3485 = vmatmul.mubr.f32.gmra.mrb[0].mxu0 %v2932
    %v3486 = vpop.f32.mrb[0].mxu0
    %v3487 = vadd.f32 0.0, %v3486
    %v3488 = vpop.f32.mrb[0].mxu0
    %3489 = vmatprep.mubr.f32.mxu0 %v2942
    %3490 = vmatmul.mubr.f32.gmra.mrb[0].mxu0 %v2941
    %v3491 = vpop.f32.mrb[0].mxu0
    %v3492 = vadd.f32 0.0, %v3491
    %v3493 = vpop.f32.mrb[0].mxu0
    %3494 = vmatprep.mubr.f32.mxu0 %v2951
    %3495 = vmatmul.mubr.f32.gmra.mrb[0].mxu0 %v2950
    %v3496 = vpop.f32.mrb[0].mxu0
    %v3497 = vadd.f32 0.0, %v3496
    %v3498 = vpop.f32.mrb[0].mxu0
    %3499 = vmatprep.mubr.f32.mxu0 %v2960
    %3500 = vmatmul.mubr.f32.gmra.mrb[0].mxu0 %v2959
    %v3501 = vpop.f32.mrb[0].mxu0
    %v3502 = vadd.f32 0.0, %v3501
    %v3503 = vpop.f32.mrb[0].mxu0
    %3504 = vmatprep.mubr.f32.mxu0 %v2969
    %3505 = vmatmul.mubr.f32.gmra.mrb[0].mxu0 %v2968
    %v3506 = vpop.f32.mrb[0].mxu0
    %v3507 = vadd.f32 0.0, %v3506
    %v3508 = vpop.f32.mrb[0].mxu0
    %3509 = vmatprep.mubr.f32.mxu0 %v2978
    %3510 = vmatmul.mubr.f32.gmra.mrb[0].mxu0 %v2977
    %v3511 = vpop.f32.mrb[0].mxu0
    %v3512 = vadd.f32 0.0, %v3511
    %v3513 = vpop.f32.mrb[0].mxu0
    %3514 = vdwg.mxu0
    %3515 = vmatprep.subr.mxu0 0.0
    %3516 = vmatpush1.msra.mxu0 %v3018
    %3517 = vmatprep.subr.mxu0 0.0
    %3518 = vmatpush1.msra.mxu0 %v3019
    %3519 = vmatprep.subr.mxu0 0.0
    %3520 = vmatpush1.msra.mxu0 %v3020
    %3521 = vmatprep.subr.mxu0 0.0
    %3522 = vmatpush1.msra.mxu0 %v3021
    %3523 = vmatprep.subr.mxu0 0.0
    %3524 = vmatpush1.msra.mxu0 %v3022
    %3525 = vmatprep.subr.mxu0 0.0
    %3526 = vmatpush1.msra.mxu0 %v3023
    %3527 = vmatprep.subr.mxu0 0.0
    %3528 = vmatpush1.msra.mxu0 %v3024
    %3529 = vmatprep.subr.mxu0 0.0
    %3530 = vmatpush1.msra.mxu0 %v3025
    %3531 = vmatprep.subr.mxu0 0.0
    %3532 = vmatpush1.msra.mxu0 %v3026
    %3533 = vmatprep.subr.mxu0 0.0
    %3534 = vmatpush1.msra.mxu0 %v3027
    %3535 = vmatprep.subr.mxu0 0.0
    %3536 = vmatpush1.msra.mxu0 %v3028
    %3537 = vmatprep.subr.mxu0 0.0
    %3538 = vmatpush1.msra.mxu0 %v3029
    %3539 = vmatprep.subr.mxu0 0.0
    %3540 = vmatpush1.msra.mxu0 %v3030
    %3541 = vmatprep.subr.mxu0 0.0
    %3542 = vmatpush1.msra.mxu0 %v3031
    %3543 = vmatprep.subr.mxu0 0.0
    %3544 = vmatpush1.msra.mxu0 %v3032
    %3545 = vmatprep.subr.mxu0 0.0
    %3546 = vmatpush1.msra.mxu0 %v3033
    %3547 = vmatprep.subr.mxu0 0.0
    %3548 = vmatpush1.msra.mxu0 %v3034
    %3549 = vmatprep.subr.mxu0 0.0
    %3550 = vmatpush1.msra.mxu0 %v3035
    %3551 = vmatprep.subr.mxu0 0.0
    %3552 = vmatpush1.msra.mxu0 %v3036
    %3553 = vmatprep.subr.mxu0 0.0
    %3554 = vmatpush1.msra.mxu0 %v3037
    %3555 = vmatprep.subr.mxu0 0.0
    %3556 = vmatpush1.msra.mxu0 %v3038
    %3557 = vmatprep.subr.mxu0 0.0
    %3558 = vmatpush1.msra.mxu0 %v3039
    %3559 = vmatprep.subr.mxu0 0.0
    %3560 = vmatpush1.msra.mxu0 %v3040
    %3561 = vmatprep.subr.mxu0 0.0
    %3562 = vmatpush1.msra.mxu0 %v3041
    %3563 = vmatprep.subr.mxu0 0.0
    %3564 = vmatpush1.msra.mxu0 %v3042
    %3565 = vmatprep.subr.mxu0 0.0
    %3566 = vmatpush1.msra.mxu0 %v3043
    %3567 = vmatprep.subr.mxu0 0.0
    %3568 = vmatpush1.msra.mxu0 %v3044
    %3569 = vmatprep.subr.mxu0 0.0
    %3570 = vmatpush1.msra.mxu0 %v3045
    %3571 = vmatprep.subr.mxu0 0.0
    %3572 = vmatpush1.msra.mxu0 %v3046
    %3573 = vmatprep.subr.mxu0 0.0
    %3574 = vmatpush1.msra.mxu0 %v3047
    %3575 = vmatprep.subr.mxu0 0.0
    %3576 = vmatpush1.msra.mxu0 %v3048
    %3577 = vmatprep.subr.mxu0 0.0
    %3578 = vmatpush1.msra.mxu0 %v3049
    %3579 = vmatprep.mubr.f32.mxu0 %v2413
    %3580 = vmatmul.mubr.f32.gmra.mrb[0].mxu0 %v2412
    %v3581 = vpop.f32.mrb[0].mxu0
    %v3582 = vadd.f32 %v3197, %v3581
    %v3583 = vpop.f32.mrb[0].mxu0
    %3584 = vmatprep.mubr.f32.mxu0 %v2422
    %3585 = vmatmul.mubr.f32.gmra.mrb[0].mxu0 %v2421
    %v3586 = vpop.f32.mrb[0].mxu0
    %v3587 = vadd.f32 %v3202, %v3586
    %v3588 = vpop.f32.mrb[0].mxu0
    %3589 = vmatprep.mubr.f32.mxu0 %v2431
    %3590 = vmatmul.mubr.f32.gmra.mrb[0].mxu0 %v2430
    %v3591 = vpop.f32.mrb[0].mxu0
    %v3592 = vadd.f32 %v3207, %v3591
    %v3593 = vpop.f32.mrb[0].mxu0
    %3594 = vmatprep.mubr.f32.mxu0 %v2440
    %3595 = vmatmul.mubr.f32.gmra.mrb[0].mxu0 %v2439
    %v3596 = vpop.f32.mrb[0].mxu0
    %v3597 = vadd.f32 %v3212, %v3596
    %v3598 = vpop.f32.mrb[0].mxu0
    %3599 = vmatprep.mubr.f32.mxu0 %v2449
    %3600 = vmatmul.mubr.f32.gmra.mrb[0].mxu0 %v2448
    %v3601 = vpop.f32.mrb[0].mxu0
    %v3602 = vadd.f32 %v3217, %v3601
    %v3603 = vpop.f32.mrb[0].mxu0
    %3604 = vmatprep.mubr.f32.mxu0 %v2458
    %3605 = vmatmul.mubr.f32.gmra.mrb[0].mxu0 %v2457
    %v3606 = vpop.f32.mrb[0].mxu0
    %v3607 = vadd.f32 %v3222, %v3606
    %v3608 = vpop.f32.mrb[0].mxu0
    %3609 = vmatprep.mubr.f32.mxu0 %v2467
    %3610 = vmatmul.mubr.f32.gmra.mrb[0].mxu0 %v2466
    %v3611 = vpop.f32.mrb[0].mxu0
    %v3612 = vadd.f32 %v3227, %v3611
    %v3613 = vpop.f32.mrb[0].mxu0
    %3614 = vmatprep.mubr.f32.mxu0 %v2476
    %3615 = vmatmul.mubr.f32.gmra.mrb[0].mxu0 %v2475
    %v3616 = vpop.f32.mrb[0].mxu0
    %v3617 = vadd.f32 %v3232, %v3616
    %v3618 = vpop.f32.mrb[0].mxu0
    %3619 = vmatprep.mubr.f32.mxu0 %v2485
    %3620 = vmatmul.mubr.f32.gmra.mrb[0].mxu0 %v2484
    %v3621 = vpop.f32.mrb[0].mxu0
    %v3622 = vadd.f32 %v3237, %v3621
    %v3623 = vpop.f32.mrb[0].mxu0
    %3624 = vmatprep.mubr.f32.mxu0 %v2494
    %3625 = vmatmul.mubr.f32.gmra.mrb[0].mxu0 %v2493
    %v3626 = vpop.f32.mrb[0].mxu0
    %v3627 = vadd.f32 %v3242, %v3626
    %v3628 = vpop.f32.mrb[0].mxu0
    %3629 = vmatprep.mubr.f32.mxu0 %v2503
    %3630 = vmatmul.mubr.f32.gmra.mrb[0].mxu0 %v2502
    %v3631 = vpop.f32.mrb[0].mxu0
    %v3632 = vadd.f32 %v3247, %v3631
    %v3633 = vpop.f32.mrb[0].mxu0
    %3634 = vmatprep.mubr.f32.mxu0 %v2512
    %3635 = vmatmul.mubr.f32.gmra.mrb[0].mxu0 %v2511
    %v3636 = vpop.f32.mrb[0].mxu0
    %v3637 = vadd.f32 %v3252, %v3636
    %v3638 = vpop.f32.mrb[0].mxu0
    %3639 = vmatprep.mubr.f32.mxu0 %v2521
    %3640 = vmatmul.mubr.f32.gmra.mrb[0].mxu0 %v2520
    %v3641 = vpop.f32.mrb[0].mxu0
    %v3642 = vadd.f32 %v3257, %v3641
    %v3643 = vpop.f32.mrb[0].mxu0
    %3644 = vmatprep.mubr.f32.mxu0 %v2530
    %3645 = vmatmul.mubr.f32.gmra.mrb[0].mxu0 %v2529
    %v3646 = vpop.f32.mrb[0].mxu0
    %v3647 = vadd.f32 %v3262, %v3646
    %v3648 = vpop.f32.mrb[0].mxu0
    %3649 = vmatprep.mubr.f32.mxu0 %v2539
    %3650 = vmatmul.mubr.f32.gmra.mrb[0].mxu0 %v2538
    %v3651 = vpop.f32.mrb[0].mxu0
    %v3652 = vadd.f32 %v3267, %v3651
    %v3653 = vpop.f32.mrb[0].mxu0
    %3654 = vmatprep.mubr.f32.mxu0 %v2548
    %3655 = vmatmul.mubr.f32.gmra.mrb[0].mxu0 %v2547
    %v3656 = vpop.f32.mrb[0].mxu0
    %v3657 = vadd.f32 %v3272, %v3656
    %v3658 = vpop.f32.mrb[0].mxu0
    %3659 = vmatprep.mubr.f32.mxu0 %v2557
    %3660 = vmatmul.mubr.f32.gmra.mrb[0].mxu0 %v2556
    %v3661 = vpop.f32.mrb[0].mxu0
    %v3662 = vadd.f32 %v3277, %v3661
    %v3663 = vpop.f32.mrb[0].mxu0
    %3664 = vmatprep.mubr.f32.mxu0 %v2566
    %3665 = vmatmul.mubr.f32.gmra.mrb[0].mxu0 %v2565
    %v3666 = vpop.f32.mrb[0].mxu0
    %v3667 = vadd.f32 %v3282, %v3666
    %v3668 = vpop.f32.mrb[0].mxu0
    %3669 = vmatprep.mubr.f32.mxu0 %v2575
    %3670 = vmatmul.mubr.f32.gmra.mrb[0].mxu0 %v2574
    %v3671 = vpop.f32.mrb[0].mxu0
    %v3672 = vadd.f32 %v3287, %v3671
    %v3673 = vpop.f32.mrb[0].mxu0
    %3674 = vmatprep.mubr.f32.mxu0 %v2584
    %3675 = vmatmul.mubr.f32.gmra.mrb[0].mxu0 %v2583
    %v3676 = vpop.f32.mrb[0].mxu0
    %v3677 = vadd.f32 %v3292, %v3676
    %v3678 = vpop.f32.mrb[0].mxu0
    %3679 = vmatprep.mubr.f32.mxu0 %v2593
    %3680 = vmatmul.mubr.f32.gmra.mrb[0].mxu0 %v2592
    %v3681 = vpop.f32.mrb[0].mxu0
    %v3682 = vadd.f32 %v3297, %v3681
    %v3683 = vpop.f32.mrb[0].mxu0
    %3684 = vmatprep.mubr.f32.mxu0 %v2602
    %3685 = vmatmul.mubr.f32.gmra.mrb[0].mxu0 %v2601
    %v3686 = vpop.f32.mrb[0].mxu0
    %v3687 = vadd.f32 %v3302, %v3686
    %v3688 = vpop.f32.mrb[0].mxu0
    %3689 = vmatprep.mubr.f32.mxu0 %v2611
    %3690 = vmatmul.mubr.f32.gmra.mrb[0].mxu0 %v2610
    %v3691 = vpop.f32.mrb[0].mxu0
    %v3692 = vadd.f32 %v3307, %v3691
    %v3693 = vpop.f32.mrb[0].mxu0
    %3694 = vmatprep.mubr.f32.mxu0 %v2620
    %3695 = vmatmul.mubr.f32.gmra.mrb[0].mxu0 %v2619
    %v3696 = vpop.f32.mrb[0].mxu0
    %v3697 = vadd.f32 %v3312, %v3696
    %v3698 = vpop.f32.mrb[0].mxu0
    %3699 = vmatprep.mubr.f32.mxu0 %v2629
    %3700 = vmatmul.mubr.f32.gmra.mrb[0].mxu0 %v2628
    %v3701 = vpop.f32.mrb[0].mxu0
    %v3702 = vadd.f32 %v3317, %v3701
    %v3703 = vpop.f32.mrb[0].mxu0
    %3704 = vmatprep.mubr.f32.mxu0 %v2638
    %3705 = vmatmul.mubr.f32.gmra.mrb[0].mxu0 %v2637
    %v3706 = vpop.f32.mrb[0].mxu0
    %v3707 = vadd.f32 %v3322, %v3706
    %v3708 = vpop.f32.mrb[0].mxu0
    %3709 = vmatprep.mubr.f32.mxu0 %v2647
    %3710 = vmatmul.mubr.f32.gmra.mrb[0].mxu0 %v2646
    %v3711 = vpop.f32.mrb[0].mxu0
    %v3712 = vadd.f32 %v3327, %v3711
    %v3713 = vpop.f32.mrb[0].mxu0
    %3714 = vmatprep.mubr.f32.mxu0 %v2656
    %3715 = vmatmul.mubr.f32.gmra.mrb[0].mxu0 %v2655
    %v3716 = vpop.f32.mrb[0].mxu0
    %v3717 = vadd.f32 %v3332, %v3716
    %v3718 = vpop.f32.mrb[0].mxu0
    %3719 = vmatprep.mubr.f32.mxu0 %v2665
    %3720 = vmatmul.mubr.f32.gmra.mrb[0].mxu0 %v2664
    %v3721 = vpop.f32.mrb[0].mxu0
    %v3722 = vadd.f32 %v3337, %v3721
    %v3723 = vpop.f32.mrb[0].mxu0
    %3724 = vmatprep.mubr.f32.mxu0 %v2674
    %3725 = vmatmul.mubr.f32.gmra.mrb[0].mxu0 %v2673
    %v3726 = vpop.f32.mrb[0].mxu0
    %v3727 = vadd.f32 %v3342, %v3726
    %v3728 = vpop.f32.mrb[0].mxu0
    %3729 = vmatprep.mubr.f32.mxu0 %v2683
    %3730 = vmatmul.mubr.f32.gmra.mrb[0].mxu0 %v2682
    %v3731 = vpop.f32.mrb[0].mxu0
    %v3732 = vadd.f32 %v3347, %v3731
    %v3733 = vpop.f32.mrb[0].mxu0
    %3734 = vmatprep.mubr.f32.mxu0 %v2692
    %3735 = vmatmul.mubr.f32.gmra.mrb[0].mxu0 %v2691
    %v3736 = vpop.f32.mrb[0].mxu0
    %v3737 = vadd.f32 %v3352, %v3736
    %v3738 = vpop.f32.mrb[0].mxu0
    %3739 = vmatprep.mubr.f32.mxu0 %v2701
    %3740 = vmatmul.mubr.f32.gmra.mrb[0].mxu0 %v2700
    %v3741 = vpop.f32.mrb[0].mxu0
    %v3742 = vadd.f32 %v3357, %v3741
    %v3743 = vpop.f32.mrb[0].mxu0
    %3744 = vmatprep.mubr.f32.mxu0 %v2710
    %3745 = vmatmul.mubr.f32.gmra.mrb[0].mxu0 %v2709
    %v3746 = vpop.f32.mrb[0].mxu0
    %v3747 = vadd.f32 %v3362, %v3746
    %v3748 = vpop.f32.mrb[0].mxu0
    %3749 = vmatprep.mubr.f32.mxu0 %v2719
    %3750 = vmatmul.mubr.f32.gmra.mrb[0].mxu0 %v2718
    %v3751 = vpop.f32.mrb[0].mxu0
    %v3752 = vadd.f32 %v3367, %v3751
    %v3753 = vpop.f32.mrb[0].mxu0
    %3754 = vmatprep.mubr.f32.mxu0 %v2728
    %3755 = vmatmul.mubr.f32.gmra.mrb[0].mxu0 %v2727
    %v3756 = vpop.f32.mrb[0].mxu0
    %v3757 = vadd.f32 %v3372, %v3756
    %v3758 = vpop.f32.mrb[0].mxu0
    %3759 = vmatprep.mubr.f32.mxu0 %v2737
    %3760 = vmatmul.mubr.f32.gmra.mrb[0].mxu0 %v2736
    %v3761 = vpop.f32.mrb[0].mxu0
    %v3762 = vadd.f32 %v3377, %v3761
    %v3763 = vpop.f32.mrb[0].mxu0
    %3764 = vmatprep.mubr.f32.mxu0 %v2746
    %3765 = vmatmul.mubr.f32.gmra.mrb[0].mxu0 %v2745
    %v3766 = vpop.f32.mrb[0].mxu0
    %v3767 = vadd.f32 %v3382, %v3766
    %v3768 = vpop.f32.mrb[0].mxu0
    %3769 = vmatprep.mubr.f32.mxu0 %v2755
    %3770 = vmatmul.mubr.f32.gmra.mrb[0].mxu0 %v2754
    %v3771 = vpop.f32.mrb[0].mxu0
    %v3772 = vadd.f32 %v3387, %v3771
    %v3773 = vpop.f32.mrb[0].mxu0
    %3774 = vmatprep.mubr.f32.mxu0 %v2764
    %3775 = vmatmul.mubr.f32.gmra.mrb[0].mxu0 %v2763
    %v3776 = vpop.f32.mrb[0].mxu0
    %v3777 = vadd.f32 %v3392, %v3776
    %v3778 = vpop.f32.mrb[0].mxu0
    %3779 = vmatprep.mubr.f32.mxu0 %v2773
    %3780 = vmatmul.mubr.f32.gmra.mrb[0].mxu0 %v2772
    %v3781 = vpop.f32.mrb[0].mxu0
    %v3782 = vadd.f32 %v3397, %v3781
    %v3783 = vpop.f32.mrb[0].mxu0
    %3784 = vmatprep.mubr.f32.mxu0 %v2782
    %3785 = vmatmul.mubr.f32.gmra.mrb[0].mxu0 %v2781
    %v3786 = vpop.f32.mrb[0].mxu0
    %v3787 = vadd.f32 %v3402, %v3786
    %v3788 = vpop.f32.mrb[0].mxu0
    %3789 = vmatprep.mubr.f32.mxu0 %v2791
    %3790 = vmatmul.mubr.f32.gmra.mrb[0].mxu0 %v2790
    %v3791 = vpop.f32.mrb[0].mxu0
    %v3792 = vadd.f32 %v3407, %v3791
    %v3793 = vpop.f32.mrb[0].mxu0
    %3794 = vmatprep.mubr.f32.mxu0 %v2800
    %3795 = vmatmul.mubr.f32.gmra.mrb[0].mxu0 %v2799
    %v3796 = vpop.f32.mrb[0].mxu0
    %v3797 = vadd.f32 %v3412, %v3796
    %v3798 = vpop.f32.mrb[0].mxu0
    %3799 = vmatprep.mubr.f32.mxu0 %v2809
    %3800 = vmatmul.mubr.f32.gmra.mrb[0].mxu0 %v2808
    %v3801 = vpop.f32.mrb[0].mxu0
    %v3802 = vadd.f32 %v3417, %v3801
    %v3803 = vpop.f32.mrb[0].mxu0
    %3804 = vmatprep.mubr.f32.mxu0 %v2818
    %3805 = vmatmul.mubr.f32.gmra.mrb[0].mxu0 %v2817
    %v3806 = vpop.f32.mrb[0].mxu0
    %v3807 = vadd.f32 %v3422, %v3806
    %v3808 = vpop.f32.mrb[0].mxu0
    %3809 = vmatprep.mubr.f32.mxu0 %v2827
    %3810 = vmatmul.mubr.f32.gmra.mrb[0].mxu0 %v2826
    %v3811 = vpop.f32.mrb[0].mxu0
    %v3812 = vadd.f32 %v3427, %v3811
    %v3813 = vpop.f32.mrb[0].mxu0
    %3814 = vmatprep.mubr.f32.mxu0 %v2836
    %3815 = vmatmul.mubr.f32.gmra.mrb[0].mxu0 %v2835
    %v3816 = vpop.f32.mrb[0].mxu0
    %v3817 = vadd.f32 %v3432, %v3816
    %v3818 = vpop.f32.mrb[0].mxu0
    %3819 = vmatprep.mubr.f32.mxu0 %v2845
    %3820 = vmatmul.mubr.f32.gmra.mrb[0].mxu0 %v2844
    %v3821 = vpop.f32.mrb[0].mxu0
    %v3822 = vadd.f32 %v3437, %v3821
    %v3823 = vpop.f32.mrb[0].mxu0
    %3824 = vmatprep.mubr.f32.mxu0 %v2854
    %3825 = vmatmul.mubr.f32.gmra.mrb[0].mxu0 %v2853
    %v3826 = vpop.f32.mrb[0].mxu0
    %v3827 = vadd.f32 %v3442, %v3826
    %v3828 = vpop.f32.mrb[0].mxu0
    %3829 = vmatprep.mubr.f32.mxu0 %v2863
    %3830 = vmatmul.mubr.f32.gmra.mrb[0].mxu0 %v2862
    %v3831 = vpop.f32.mrb[0].mxu0
    %v3832 = vadd.f32 %v3447, %v3831
    %v3833 = vpop.f32.mrb[0].mxu0
    %3834 = vmatprep.mubr.f32.mxu0 %v2872
    %3835 = vmatmul.mubr.f32.gmra.mrb[0].mxu0 %v2871
    %v3836 = vpop.f32.mrb[0].mxu0
    %v3837 = vadd.f32 %v3452, %v3836
    %v3838 = vpop.f32.mrb[0].mxu0
    %3839 = vmatprep.mubr.f32.mxu0 %v2881
    %3840 = vmatmul.mubr.f32.gmra.mrb[0].mxu0 %v2880
    %v3841 = vpop.f32.mrb[0].mxu0
    %v3842 = vadd.f32 %v3457, %v3841
    %v3843 = vpop.f32.mrb[0].mxu0
    %3844 = vmatprep.mubr.f32.mxu0 %v2890
    %3845 = vmatmul.mubr.f32.gmra.mrb[0].mxu0 %v2889
    %v3846 = vpop.f32.mrb[0].mxu0
    %v3847 = vadd.f32 %v3462, %v3846
    %v3848 = vpop.f32.mrb[0].mxu0
    %3849 = vmatprep.mubr.f32.mxu0 %v2899
    %3850 = vmatmul.mubr.f32.gmra.mrb[0].mxu0 %v2898
    %v3851 = vpop.f32.mrb[0].mxu0
    %v3852 = vadd.f32 %v3467, %v3851
    %v3853 = vpop.f32.mrb[0].mxu0
    %3854 = vmatprep.mubr.f32.mxu0 %v2908
    %3855 = vmatmul.mubr.f32.gmra.mrb[0].mxu0 %v2907
    %v3856 = vpop.f32.mrb[0].mxu0
    %v3857 = vadd.f32 %v3472, %v3856
    %v3858 = vpop.f32.mrb[0].mxu0
    %3859 = vmatprep.mubr.f32.mxu0 %v2917
    %3860 = vmatmul.mubr.f32.gmra.mrb[0].mxu0 %v2916
    %v3861 = vpop.f32.mrb[0].mxu0
    %v3862 = vadd.f32 %v3477, %v3861
    %v3863 = vpop.f32.mrb[0].mxu0
    %3864 = vmatprep.mubr.f32.mxu0 %v2926
    %3865 = vmatmul.mubr.f32.gmra.mrb[0].mxu0 %v2925
    %v3866 = vpop.f32.mrb[0].mxu0
    %v3867 = vadd.f32 %v3482, %v3866
    %v3868 = vpop.f32.mrb[0].mxu0
    %3869 = vmatprep.mubr.f32.mxu0 %v2935
    %3870 = vmatmul.mubr.f32.gmra.mrb[0].mxu0 %v2934
    %v3871 = vpop.f32.mrb[0].mxu0
    %v3872 = vadd.f32 %v3487, %v3871
    %v3873 = vpop.f32.mrb[0].mxu0
    %3874 = vmatprep.mubr.f32.mxu0 %v2944
    %3875 = vmatmul.mubr.f32.gmra.mrb[0].mxu0 %v2943
    %v3876 = vpop.f32.mrb[0].mxu0
    %v3877 = vadd.f32 %v3492, %v3876
    %v3878 = vpop.f32.mrb[0].mxu0
    %3879 = vmatprep.mubr.f32.mxu0 %v2953
    %3880 = vmatmul.mubr.f32.gmra.mrb[0].mxu0 %v2952
    %v3881 = vpop.f32.mrb[0].mxu0
    %v3882 = vadd.f32 %v3497, %v3881
    %v3883 = vpop.f32.mrb[0].mxu0
    %3884 = vmatprep.mubr.f32.mxu0 %v2962
    %3885 = vmatmul.mubr.f32.gmra.mrb[0].mxu0 %v2961
    %v3886 = vpop.f32.mrb[0].mxu0
    %v3887 = vadd.f32 %v3502, %v3886
    %v3888 = vpop.f32.mrb[0].mxu0
    %3889 = vmatprep.mubr.f32.mxu0 %v2971
    %3890 = vmatmul.mubr.f32.gmra.mrb[0].mxu0 %v2970
    %v3891 = vpop.f32.mrb[0].mxu0
    %v3892 = vadd.f32 %v3507, %v3891
    %v3893 = vpop.f32.mrb[0].mxu0
    %3894 = vmatprep.mubr.f32.mxu0 %v2980
    %3895 = vmatmul.mubr.f32.gmra.mrb[0].mxu0 %v2979
    %v3896 = vpop.f32.mrb[0].mxu0
    %v3897 = vadd.f32 %v3512, %v3896
    %v3898 = vpop.f32.mrb[0].mxu0
    %3899 = vdwg.mxu0
    %3900 = vmatprep.subr.mxu0 0.0
    %3901 = vmatpush1.msra.mxu0 %v3050
    %3902 = vmatprep.subr.mxu0 0.0
    %3903 = vmatpush1.msra.mxu0 %v3051
    %3904 = vmatprep.subr.mxu0 0.0
    %3905 = vmatpush1.msra.mxu0 %v3052
    %3906 = vmatprep.subr.mxu0 0.0
    %3907 = vmatpush1.msra.mxu0 %v3053
    %3908 = vmatprep.subr.mxu0 0.0
    %3909 = vmatpush1.msra.mxu0 %v3054
    %3910 = vmatprep.subr.mxu0 0.0
    %3911 = vmatpush1.msra.mxu0 %v3055
    %3912 = vmatprep.subr.mxu0 0.0
    %3913 = vmatpush1.msra.mxu0 %v3056
    %3914 = vmatprep.subr.mxu0 0.0
    %3915 = vmatpush1.msra.mxu0 %v3057
    %3916 = vmatprep.subr.mxu0 0.0
    %3917 = vmatpush1.msra.mxu0 %v3058
    %3918 = vmatprep.subr.mxu0 0.0
    %3919 = vmatpush1.msra.mxu0 %v3059
    %3920 = vmatprep.subr.mxu0 0.0
    %3921 = vmatpush1.msra.mxu0 %v3060
    %3922 = vmatprep.subr.mxu0 0.0
    %3923 = vmatpush1.msra.mxu0 %v3061
    %3924 = vmatprep.subr.mxu0 0.0
    %3925 = vmatpush1.msra.mxu0 %v3062
    %3926 = vmatprep.subr.mxu0 0.0
    %3927 = vmatpush1.msra.mxu0 %v3063
    %3928 = vmatprep.subr.mxu0 0.0
    %3929 = vmatpush1.msra.mxu0 %v3064
    %3930 = vmatprep.subr.mxu0 0.0
    %3931 = vmatpush1.msra.mxu0 %v3065
    %3932 = vmatprep.subr.mxu0 0.0
    %3933 = vmatpush1.msra.mxu0 %v3066
    %3934 = vmatprep.subr.mxu0 0.0
    %3935 = vmatpush1.msra.mxu0 %v3067
    %3936 = vmatprep.subr.mxu0 0.0
    %3937 = vmatpush1.msra.mxu0 %v3068
    %3938 = vmatprep.subr.mxu0 0.0
    %3939 = vmatpush1.msra.mxu0 %v3069
    %3940 = vmatprep.subr.mxu0 0.0
    %3941 = vmatpush1.msra.mxu0 %v3070
    %3942 = vmatprep.subr.mxu0 0.0
    %3943 = vmatpush1.msra.mxu0 %v3071
    %3944 = vmatprep.subr.mxu0 0.0
    %3945 = vmatpush1.msra.mxu0 %v3072
    %3946 = vmatprep.subr.mxu0 0.0
    %3947 = vmatpush1.msra.mxu0 %v3073
    %3948 = vmatprep.subr.mxu0 0.0
    %3949 = vmatpush1.msra.mxu0 %v3074
    %3950 = vmatprep.subr.mxu0 0.0
    %3951 = vmatpush1.msra.mxu0 %v3075
    %3952 = vmatprep.subr.mxu0 0.0
    %3953 = vmatpush1.msra.mxu0 %v3076
    %3954 = vmatprep.subr.mxu0 0.0
    %3955 = vmatpush1.msra.mxu0 %v3077
    %3956 = vmatprep.subr.mxu0 0.0
    %3957 = vmatpush1.msra.mxu0 %v3078
    %3958 = vmatprep.subr.mxu0 0.0
    %3959 = vmatpush1.msra.mxu0 %v3079
    %3960 = vmatprep.subr.mxu0 0.0
    %3961 = vmatpush1.msra.mxu0 %v3080
    %3962 = vmatprep.subr.mxu0 0.0
    %3963 = vmatpush1.msra.mxu0 %v3081
    %3964 = vmatprep.mubr.f32.mxu0 %v2415
    %3965 = vmatmul.mubr.f32.gmra.mrb[0].mxu0 %v2414
    %v3966 = vpop.f32.mrb[0].mxu0
    %v3967 = vadd.f32 %v3582, %v3966
    %v3968 = vpop.f32.mrb[0].mxu0
    %3969 = vmatprep.mubr.f32.mxu0 %v2424
    %3970 = vmatmul.mubr.f32.gmra.mrb[0].mxu0 %v2423
    %v3971 = vpop.f32.mrb[0].mxu0
    %v3972 = vadd.f32 %v3587, %v3971
    %v3973 = vpop.f32.mrb[0].mxu0
    %3974 = vmatprep.mubr.f32.mxu0 %v2433
    %3975 = vmatmul.mubr.f32.gmra.mrb[0].mxu0 %v2432
    %v3976 = vpop.f32.mrb[0].mxu0
    %v3977 = vadd.f32 %v3592, %v3976
    %v3978 = vpop.f32.mrb[0].mxu0
    %3979 = vmatprep.mubr.f32.mxu0 %v2442
    %3980 = vmatmul.mubr.f32.gmra.mrb[0].mxu0 %v2441
    %v3981 = vpop.f32.mrb[0].mxu0
    %v3982 = vadd.f32 %v3597, %v3981
    %v3983 = vpop.f32.mrb[0].mxu0
    %3984 = vmatprep.mubr.f32.mxu0 %v2451
    %3985 = vmatmul.mubr.f32.gmra.mrb[0].mxu0 %v2450
    %v3986 = vpop.f32.mrb[0].mxu0
    %v3987 = vadd.f32 %v3602, %v3986
    %v3988 = vpop.f32.mrb[0].mxu0
    %3989 = vmatprep.mubr.f32.mxu0 %v2460
    %3990 = vmatmul.mubr.f32.gmra.mrb[0].mxu0 %v2459
    %v3991 = vpop.f32.mrb[0].mxu0
    %v3992 = vadd.f32 %v3607, %v3991
    %v3993 = vpop.f32.mrb[0].mxu0
    %3994 = vmatprep.mubr.f32.mxu0 %v2469
    %3995 = vmatmul.mubr.f32.gmra.mrb[0].mxu0 %v2468
    %v3996 = vpop.f32.mrb[0].mxu0
    %v3997 = vadd.f32 %v3612, %v3996
    %v3998 = vpop.f32.mrb[0].mxu0
    %3999 = vmatprep.mubr.f32.mxu0 %v2478
    %4000 = vmatmul.mubr.f32.gmra.mrb[0].mxu0 %v2477
    %v4001 = vpop.f32.mrb[0].mxu0
    %v4002 = vadd.f32 %v3617, %v4001
    %v4003 = vpop.f32.mrb[0].mxu0
    %4004 = vmatprep.mubr.f32.mxu0 %v2487
    %4005 = vmatmul.mubr.f32.gmra.mrb[0].mxu0 %v2486
    %v4006 = vpop.f32.mrb[0].mxu0
    %v4007 = vadd.f32 %v3622, %v4006
    %v4008 = vpop.f32.mrb[0].mxu0
    %4009 = vmatprep.mubr.f32.mxu0 %v2496
    %4010 = vmatmul.mubr.f32.gmra.mrb[0].mxu0 %v2495
    %v4011 = vpop.f32.mrb[0].mxu0
    %v4012 = vadd.f32 %v3627, %v4011
    %v4013 = vpop.f32.mrb[0].mxu0
    %4014 = vmatprep.mubr.f32.mxu0 %v2505
    %4015 = vmatmul.mubr.f32.gmra.mrb[0].mxu0 %v2504
    %v4016 = vpop.f32.mrb[0].mxu0
    %v4017 = vadd.f32 %v3632, %v4016
    %v4018 = vpop.f32.mrb[0].mxu0
    %4019 = vmatprep.mubr.f32.mxu0 %v2514
    %4020 = vmatmul.mubr.f32.gmra.mrb[0].mxu0 %v2513
    %v4021 = vpop.f32.mrb[0].mxu0
    %v4022 = vadd.f32 %v3637, %v4021
    %v4023 = vpop.f32.mrb[0].mxu0
    %4024 = vmatprep.mubr.f32.mxu0 %v2523
    %4025 = vmatmul.mubr.f32.gmra.mrb[0].mxu0 %v2522
    %v4026 = vpop.f32.mrb[0].mxu0
    %v4027 = vadd.f32 %v3642, %v4026
    %v4028 = vpop.f32.mrb[0].mxu0
    %4029 = vmatprep.mubr.f32.mxu0 %v2532
    %4030 = vmatmul.mubr.f32.gmra.mrb[0].mxu0 %v2531
    %v4031 = vpop.f32.mrb[0].mxu0
    %v4032 = vadd.f32 %v3647, %v4031
    %v4033 = vpop.f32.mrb[0].mxu0
    %4034 = vmatprep.mubr.f32.mxu0 %v2541
    %4035 = vmatmul.mubr.f32.gmra.mrb[0].mxu0 %v2540
    %v4036 = vpop.f32.mrb[0].mxu0
    %v4037 = vadd.f32 %v3652, %v4036
    %v4038 = vpop.f32.mrb[0].mxu0
    %4039 = vmatprep.mubr.f32.mxu0 %v2550
    %4040 = vmatmul.mubr.f32.gmra.mrb[0].mxu0 %v2549
    %v4041 = vpop.f32.mrb[0].mxu0
    %v4042 = vadd.f32 %v3657, %v4041
    %v4043 = vpop.f32.mrb[0].mxu0
    %4044 = vmatprep.mubr.f32.mxu0 %v2559
    %4045 = vmatmul.mubr.f32.gmra.mrb[0].mxu0 %v2558
    %v4046 = vpop.f32.mrb[0].mxu0
    %v4047 = vadd.f32 %v3662, %v4046
    %v4048 = vpop.f32.mrb[0].mxu0
    %4049 = vmatprep.mubr.f32.mxu0 %v2568
    %4050 = vmatmul.mubr.f32.gmra.mrb[0].mxu0 %v2567
    %v4051 = vpop.f32.mrb[0].mxu0
    %v4052 = vadd.f32 %v3667, %v4051
    %v4053 = vpop.f32.mrb[0].mxu0
    %4054 = vmatprep.mubr.f32.mxu0 %v2577
    %4055 = vmatmul.mubr.f32.gmra.mrb[0].mxu0 %v2576
    %v4056 = vpop.f32.mrb[0].mxu0
    %v4057 = vadd.f32 %v3672, %v4056
    %v4058 = vpop.f32.mrb[0].mxu0
    %4059 = vmatprep.mubr.f32.mxu0 %v2586
    %4060 = vmatmul.mubr.f32.gmra.mrb[0].mxu0 %v2585
    %v4061 = vpop.f32.mrb[0].mxu0
    %v4062 = vadd.f32 %v3677, %v4061
    %v4063 = vpop.f32.mrb[0].mxu0
    %4064 = vmatprep.mubr.f32.mxu0 %v2595
    %4065 = vmatmul.mubr.f32.gmra.mrb[0].mxu0 %v2594
    %v4066 = vpop.f32.mrb[0].mxu0
    %v4067 = vadd.f32 %v3682, %v4066
    %v4068 = vpop.f32.mrb[0].mxu0
    %4069 = vmatprep.mubr.f32.mxu0 %v2604
    %4070 = vmatmul.mubr.f32.gmra.mrb[0].mxu0 %v2603
    %v4071 = vpop.f32.mrb[0].mxu0
    %v4072 = vadd.f32 %v3687, %v4071
    %v4073 = vpop.f32.mrb[0].mxu0
    %4074 = vmatprep.mubr.f32.mxu0 %v2613
    %4075 = vmatmul.mubr.f32.gmra.mrb[0].mxu0 %v2612
    %v4076 = vpop.f32.mrb[0].mxu0
    %v4077 = vadd.f32 %v3692, %v4076
    %v4078 = vpop.f32.mrb[0].mxu0
    %4079 = vmatprep.mubr.f32.mxu0 %v2622
    %4080 = vmatmul.mubr.f32.gmra.mrb[0].mxu0 %v2621
    %v4081 = vpop.f32.mrb[0].mxu0
    %v4082 = vadd.f32 %v3697, %v4081
    %v4083 = vpop.f32.mrb[0].mxu0
    %4084 = vmatprep.mubr.f32.mxu0 %v2631
    %4085 = vmatmul.mubr.f32.gmra.mrb[0].mxu0 %v2630
    %v4086 = vpop.f32.mrb[0].mxu0
    %v4087 = vadd.f32 %v3702, %v4086
    %v4088 = vpop.f32.mrb[0].mxu0
    %4089 = vmatprep.mubr.f32.mxu0 %v2640
    %4090 = vmatmul.mubr.f32.gmra.mrb[0].mxu0 %v2639
    %v4091 = vpop.f32.mrb[0].mxu0
    %v4092 = vadd.f32 %v3707, %v4091
    %v4093 = vpop.f32.mrb[0].mxu0
    %4094 = vmatprep.mubr.f32.mxu0 %v2649
    %4095 = vmatmul.mubr.f32.gmra.mrb[0].mxu0 %v2648
    %v4096 = vpop.f32.mrb[0].mxu0
    %v4097 = vadd.f32 %v3712, %v4096
    %v4098 = vpop.f32.mrb[0].mxu0
    %4099 = vmatprep.mubr.f32.mxu0 %v2658
    %4100 = vmatmul.mubr.f32.gmra.mrb[0].mxu0 %v2657
    %v4101 = vpop.f32.mrb[0].mxu0
    %v4102 = vadd.f32 %v3717, %v4101
    %v4103 = vpop.f32.mrb[0].mxu0
    %4104 = vmatprep.mubr.f32.mxu0 %v2667
    %4105 = vmatmul.mubr.f32.gmra.mrb[0].mxu0 %v2666
    %v4106 = vpop.f32.mrb[0].mxu0
    %v4107 = vadd.f32 %v3722, %v4106
    %v4108 = vpop.f32.mrb[0].mxu0
    %4109 = vmatprep.mubr.f32.mxu0 %v2676
    %4110 = vmatmul.mubr.f32.gmra.mrb[0].mxu0 %v2675
    %v4111 = vpop.f32.mrb[0].mxu0
    %v4112 = vadd.f32 %v3727, %v4111
    %v4113 = vpop.f32.mrb[0].mxu0
    %4114 = vmatprep.mubr.f32.mxu0 %v2685
    %4115 = vmatmul.mubr.f32.gmra.mrb[0].mxu0 %v2684
    %v4116 = vpop.f32.mrb[0].mxu0
    %v4117 = vadd.f32 %v3732, %v4116
    %v4118 = vpop.f32.mrb[0].mxu0
    %4119 = vmatprep.mubr.f32.mxu0 %v2694
    %4120 = vmatmul.mubr.f32.gmra.mrb[0].mxu0 %v2693
    %v4121 = vpop.f32.mrb[0].mxu0
    %v4122 = vadd.f32 %v3737, %v4121
    %v4123 = vpop.f32.mrb[0].mxu0
    %4124 = vmatprep.mubr.f32.mxu0 %v2703
    %4125 = vmatmul.mubr.f32.gmra.mrb[0].mxu0 %v2702
    %v4126 = vpop.f32.mrb[0].mxu0
    %v4127 = vadd.f32 %v3742, %v4126
    %v4128 = vpop.f32.mrb[0].mxu0
    %4129 = vmatprep.mubr.f32.mxu0 %v2712
    %4130 = vmatmul.mubr.f32.gmra.mrb[0].mxu0 %v2711
    %v4131 = vpop.f32.mrb[0].mxu0
    %v4132 = vadd.f32 %v3747, %v4131
    %v4133 = vpop.f32.mrb[0].mxu0
    %4134 = vmatprep.mubr.f32.mxu0 %v2721
    %4135 = vmatmul.mubr.f32.gmra.mrb[0].mxu0 %v2720
    %v4136 = vpop.f32.mrb[0].mxu0
    %v4137 = vadd.f32 %v3752, %v4136
    %v4138 = vpop.f32.mrb[0].mxu0
    %4139 = vmatprep.mubr.f32.mxu0 %v2730
    %4140 = vmatmul.mubr.f32.gmra.mrb[0].mxu0 %v2729
    %v4141 = vpop.f32.mrb[0].mxu0
    %v4142 = vadd.f32 %v3757, %v4141
    %v4143 = vpop.f32.mrb[0].mxu0
    %4144 = vmatprep.mubr.f32.mxu0 %v2739
    %4145 = vmatmul.mubr.f32.gmra.mrb[0].mxu0 %v2738
    %v4146 = vpop.f32.mrb[0].mxu0
    %v4147 = vadd.f32 %v3762, %v4146
    %v4148 = vpop.f32.mrb[0].mxu0
    %4149 = vmatprep.mubr.f32.mxu0 %v2748
    %4150 = vmatmul.mubr.f32.gmra.mrb[0].mxu0 %v2747
    %v4151 = vpop.f32.mrb[0].mxu0
    %v4152 = vadd.f32 %v3767, %v4151
    %v4153 = vpop.f32.mrb[0].mxu0
    %4154 = vmatprep.mubr.f32.mxu0 %v2757
    %4155 = vmatmul.mubr.f32.gmra.mrb[0].mxu0 %v2756
    %v4156 = vpop.f32.mrb[0].mxu0
    %v4157 = vadd.f32 %v3772, %v4156
    %v4158 = vpop.f32.mrb[0].mxu0
    %4159 = vmatprep.mubr.f32.mxu0 %v2766
    %4160 = vmatmul.mubr.f32.gmra.mrb[0].mxu0 %v2765
    %v4161 = vpop.f32.mrb[0].mxu0
    %v4162 = vadd.f32 %v3777, %v4161
    %v4163 = vpop.f32.mrb[0].mxu0
    %4164 = vmatprep.mubr.f32.mxu0 %v2775
    %4165 = vmatmul.mubr.f32.gmra.mrb[0].mxu0 %v2774
    %v4166 = vpop.f32.mrb[0].mxu0
    %v4167 = vadd.f32 %v3782, %v4166
    %v4168 = vpop.f32.mrb[0].mxu0
    %4169 = vmatprep.mubr.f32.mxu0 %v2784
    %4170 = vmatmul.mubr.f32.gmra.mrb[0].mxu0 %v2783
    %v4171 = vpop.f32.mrb[0].mxu0
    %v4172 = vadd.f32 %v3787, %v4171
    %v4173 = vpop.f32.mrb[0].mxu0
    %4174 = vmatprep.mubr.f32.mxu0 %v2793
    %4175 = vmatmul.mubr.f32.gmra.mrb[0].mxu0 %v2792
    %v4176 = vpop.f32.mrb[0].mxu0
    %v4177 = vadd.f32 %v3792, %v4176
    %v4178 = vpop.f32.mrb[0].mxu0
    %4179 = vmatprep.mubr.f32.mxu0 %v2802
    %4180 = vmatmul.mubr.f32.gmra.mrb[0].mxu0 %v2801
    %v4181 = vpop.f32.mrb[0].mxu0
    %v4182 = vadd.f32 %v3797, %v4181
    %v4183 = vpop.f32.mrb[0].mxu0
    %4184 = vmatprep.mubr.f32.mxu0 %v2811
    %4185 = vmatmul.mubr.f32.gmra.mrb[0].mxu0 %v2810
    %v4186 = vpop.f32.mrb[0].mxu0
    %v4187 = vadd.f32 %v3802, %v4186
    %v4188 = vpop.f32.mrb[0].mxu0
    %4189 = vmatprep.mubr.f32.mxu0 %v2820
    %4190 = vmatmul.mubr.f32.gmra.mrb[0].mxu0 %v2819
    %v4191 = vpop.f32.mrb[0].mxu0
    %v4192 = vadd.f32 %v3807, %v4191
    %v4193 = vpop.f32.mrb[0].mxu0
    %4194 = vmatprep.mubr.f32.mxu0 %v2829
    %4195 = vmatmul.mubr.f32.gmra.mrb[0].mxu0 %v2828
    %v4196 = vpop.f32.mrb[0].mxu0
    %v4197 = vadd.f32 %v3812, %v4196
    %v4198 = vpop.f32.mrb[0].mxu0
    %4199 = vmatprep.mubr.f32.mxu0 %v2838
    %4200 = vmatmul.mubr.f32.gmra.mrb[0].mxu0 %v2837
    %v4201 = vpop.f32.mrb[0].mxu0
    %v4202 = vadd.f32 %v3817, %v4201
    %v4203 = vpop.f32.mrb[0].mxu0
    %4204 = vmatprep.mubr.f32.mxu0 %v2847
    %4205 = vmatmul.mubr.f32.gmra.mrb[0].mxu0 %v2846
    %v4206 = vpop.f32.mrb[0].mxu0
    %v4207 = vadd.f32 %v3822, %v4206
    %v4208 = vpop.f32.mrb[0].mxu0
    %4209 = vmatprep.mubr.f32.mxu0 %v2856
    %4210 = vmatmul.mubr.f32.gmra.mrb[0].mxu0 %v2855
    %v4211 = vpop.f32.mrb[0].mxu0
    %v4212 = vadd.f32 %v3827, %v4211
    %v4213 = vpop.f32.mrb[0].mxu0
    %4214 = vmatprep.mubr.f32.mxu0 %v2865
    %4215 = vmatmul.mubr.f32.gmra.mrb[0].mxu0 %v2864
    %v4216 = vpop.f32.mrb[0].mxu0
    %v4217 = vadd.f32 %v3832, %v4216
    %v4218 = vpop.f32.mrb[0].mxu0
    %4219 = vmatprep.mubr.f32.mxu0 %v2874
    %4220 = vmatmul.mubr.f32.gmra.mrb[0].mxu0 %v2873
    %v4221 = vpop.f32.mrb[0].mxu0
    %v4222 = vadd.f32 %v3837, %v4221
    %v4223 = vpop.f32.mrb[0].mxu0
    %4224 = vmatprep.mubr.f32.mxu0 %v2883
    %4225 = vmatmul.mubr.f32.gmra.mrb[0].mxu0 %v2882
    %v4226 = vpop.f32.mrb[0].mxu0
    %v4227 = vadd.f32 %v3842, %v4226
    %v4228 = vpop.f32.mrb[0].mxu0
    %4229 = vmatprep.mubr.f32.mxu0 %v2892
    %4230 = vmatmul.mubr.f32.gmra.mrb[0].mxu0 %v2891
    %v4231 = vpop.f32.mrb[0].mxu0
    %v4232 = vadd.f32 %v3847, %v4231
    %v4233 = vpop.f32.mrb[0].mxu0
    %4234 = vmatprep.mubr.f32.mxu0 %v2901
    %4235 = vmatmul.mubr.f32.gmra.mrb[0].mxu0 %v2900
    %v4236 = vpop.f32.mrb[0].mxu0
    %v4237 = vadd.f32 %v3852, %v4236
    %v4238 = vpop.f32.mrb[0].mxu0
    %4239 = vmatprep.mubr.f32.mxu0 %v2910
    %4240 = vmatmul.mubr.f32.gmra.mrb[0].mxu0 %v2909
    %v4241 = vpop.f32.mrb[0].mxu0
    %v4242 = vadd.f32 %v3857, %v4241
    %v4243 = vpop.f32.mrb[0].mxu0
    %4244 = vmatprep.mubr.f32.mxu0 %v2919
    %4245 = vmatmul.mubr.f32.gmra.mrb[0].mxu0 %v2918
    %v4246 = vpop.f32.mrb[0].mxu0
    %v4247 = vadd.f32 %v3862, %v4246
    %v4248 = vpop.f32.mrb[0].mxu0
    %4249 = vmatprep.mubr.f32.mxu0 %v2928
    %4250 = vmatmul.mubr.f32.gmra.mrb[0].mxu0 %v2927
    %v4251 = vpop.f32.mrb[0].mxu0
    %v4252 = vadd.f32 %v3867, %v4251
    %v4253 = vpop.f32.mrb[0].mxu0
    %4254 = vmatprep.mubr.f32.mxu0 %v2937
    %4255 = vmatmul.mubr.f32.gmra.mrb[0].mxu0 %v2936
    %v4256 = vpop.f32.mrb[0].mxu0
    %v4257 = vadd.f32 %v3872, %v4256
    %v4258 = vpop.f32.mrb[0].mxu0
    %4259 = vmatprep.mubr.f32.mxu0 %v2946
    %4260 = vmatmul.mubr.f32.gmra.mrb[0].mxu0 %v2945
    %v4261 = vpop.f32.mrb[0].mxu0
    %v4262 = vadd.f32 %v3877, %v4261
    %v4263 = vpop.f32.mrb[0].mxu0
    %4264 = vmatprep.mubr.f32.mxu0 %v2955
    %4265 = vmatmul.mubr.f32.gmra.mrb[0].mxu0 %v2954
    %v4266 = vpop.f32.mrb[0].mxu0
    %v4267 = vadd.f32 %v3882, %v4266
    %v4268 = vpop.f32.mrb[0].mxu0
    %4269 = vmatprep.mubr.f32.mxu0 %v2964
    %4270 = vmatmul.mubr.f32.gmra.mrb[0].mxu0 %v2963
    %v4271 = vpop.f32.mrb[0].mxu0
    %v4272 = vadd.f32 %v3887, %v4271
    %v4273 = vpop.f32.mrb[0].mxu0
    %4274 = vmatprep.mubr.f32.mxu0 %v2973
    %4275 = vmatmul.mubr.f32.gmra.mrb[0].mxu0 %v2972
    %v4276 = vpop.f32.mrb[0].mxu0
    %v4277 = vadd.f32 %v3892, %v4276
    %v4278 = vpop.f32.mrb[0].mxu0
    %4279 = vmatprep.mubr.f32.mxu0 %v2982
    %4280 = vmatmul.mubr.f32.gmra.mrb[0].mxu0 %v2981
    %v4281 = vpop.f32.mrb[0].mxu0
    %v4282 = vadd.f32 %v3897, %v4281
    %v4283 = vpop.f32.mrb[0].mxu0
    %4284 = vdwg.mxu0
    %4285 = vmatprep.subr.mxu0 0.0
    %4286 = vmatpush1.msra.mxu0 %v3082
    %4287 = vmatprep.subr.mxu0 0.0
    %4288 = vmatpush1.msra.mxu0 %v3083
    %4289 = vmatprep.subr.mxu0 0.0
    %4290 = vmatpush1.msra.mxu0 %v3084
    %4291 = vmatprep.subr.mxu0 0.0
    %4292 = vmatpush1.msra.mxu0 %v3085
    %4293 = vmatprep.subr.mxu0 0.0
    %4294 = vmatpush1.msra.mxu0 %v3086
    %4295 = vmatprep.subr.mxu0 0.0
    %4296 = vmatpush1.msra.mxu0 %v3087
    %4297 = vmatprep.subr.mxu0 0.0
    %4298 = vmatpush1.msra.mxu0 %v3088
    %4299 = vmatprep.subr.mxu0 0.0
    %4300 = vmatpush1.msra.mxu0 %v3089
    %4301 = vmatprep.subr.mxu0 0.0
    %4302 = vmatpush1.msra.mxu0 %v3090
    %4303 = vmatprep.subr.mxu0 0.0
    %4304 = vmatpush1.msra.mxu0 %v3091
    %4305 = vmatprep.subr.mxu0 0.0
    %4306 = vmatpush1.msra.mxu0 %v3092
    %4307 = vmatprep.subr.mxu0 0.0
    %4308 = vmatpush1.msra.mxu0 %v3093
    %4309 = vmatprep.subr.mxu0 0.0
    %4310 = vmatpush1.msra.mxu0 %v3094
    %4311 = vmatprep.subr.mxu0 0.0
    %4312 = vmatpush1.msra.mxu0 %v3095
    %4313 = vmatprep.subr.mxu0 0.0
    %4314 = vmatpush1.msra.mxu0 %v3096
    %4315 = vmatprep.subr.mxu0 0.0
    %4316 = vmatpush1.msra.mxu0 %v3097
    %4317 = vmatprep.subr.mxu0 0.0
    %4318 = vmatpush1.msra.mxu0 %v3098
    %4319 = vmatprep.subr.mxu0 0.0
    %4320 = vmatpush1.msra.mxu0 %v3099
    %4321 = vmatprep.subr.mxu0 0.0
    %4322 = vmatpush1.msra.mxu0 %v3100
    %4323 = vmatprep.subr.mxu0 0.0
    %4324 = vmatpush1.msra.mxu0 %v3101
    %4325 = vmatprep.subr.mxu0 0.0
    %4326 = vmatpush1.msra.mxu0 %v3102
    %4327 = vmatprep.subr.mxu0 0.0
    %4328 = vmatpush1.msra.mxu0 %v3103
    %4329 = vmatprep.subr.mxu0 0.0
    %4330 = vmatpush1.msra.mxu0 %v3104
    %4331 = vmatprep.subr.mxu0 0.0
    %4332 = vmatpush1.msra.mxu0 %v3105
    %4333 = vmatprep.subr.mxu0 0.0
    %4334 = vmatpush1.msra.mxu0 %v3106
    %4335 = vmatprep.subr.mxu0 0.0
    %4336 = vmatpush1.msra.mxu0 %v3107
    %4337 = vmatprep.subr.mxu0 0.0
    %4338 = vmatpush1.msra.mxu0 %v3108
    %4339 = vmatprep.subr.mxu0 0.0
    %4340 = vmatpush1.msra.mxu0 %v3109
    %4341 = vmatprep.subr.mxu0 0.0
    %4342 = vmatpush1.msra.mxu0 %v3110
    %4343 = vmatprep.subr.mxu0 0.0
    %4344 = vmatpush1.msra.mxu0 %v3111
    %4345 = vmatprep.subr.mxu0 0.0
    %4346 = vmatpush1.msra.mxu0 %v3112
    %4347 = vmatprep.subr.mxu0 0.0
    %4348 = vmatpush1.msra.mxu0 %v3113
    %4349 = vmatprep.mubr.f32.mxu0 %v2417
    %4350 = vmatmul.mubr.f32.gmra.mrb[0].mxu0 %v2416
    %v4351 = vpop.f32.mrb[0].mxu0
    %v4352 = vadd.f32 %v3967, %v4351
    %v4353 = vpop.f32.mrb[0].mxu0
    %4354 = vmatprep.mubr.f32.mxu0 %v2426
    %4355 = vmatmul.mubr.f32.gmra.mrb[0].mxu0 %v2425
    %v4356 = vpop.f32.mrb[0].mxu0
    %v4357 = vadd.f32 %v3972, %v4356
    %v4358 = vpop.f32.mrb[0].mxu0
    %4359 = vmatprep.mubr.f32.mxu0 %v2435
    %4360 = vmatmul.mubr.f32.gmra.mrb[0].mxu0 %v2434
    %v4361 = vpop.f32.mrb[0].mxu0
    %v4362 = vadd.f32 %v3977, %v4361
    %v4363 = vpop.f32.mrb[0].mxu0
    %4364 = vmatprep.mubr.f32.mxu0 %v2444
    %4365 = vmatmul.mubr.f32.gmra.mrb[0].mxu0 %v2443
    %v4366 = vpop.f32.mrb[0].mxu0
    %v4367 = vadd.f32 %v3982, %v4366
    %v4368 = vpop.f32.mrb[0].mxu0
    %4369 = vmatprep.mubr.f32.mxu0 %v2453
    %4370 = vmatmul.mubr.f32.gmra.mrb[0].mxu0 %v2452
    %v4371 = vpop.f32.mrb[0].mxu0
    %v4372 = vadd.f32 %v3987, %v4371
    %v4373 = vpop.f32.mrb[0].mxu0
    %4374 = vmatprep.mubr.f32.mxu0 %v2462
    %4375 = vmatmul.mubr.f32.gmra.mrb[0].mxu0 %v2461
    %v4376 = vpop.f32.mrb[0].mxu0
    %v4377 = vadd.f32 %v3992, %v4376
    %v4378 = vpop.f32.mrb[0].mxu0
    %4379 = vmatprep.mubr.f32.mxu0 %v2471
    %4380 = vmatmul.mubr.f32.gmra.mrb[0].mxu0 %v2470
    %v4381 = vpop.f32.mrb[0].mxu0
    %v4382 = vadd.f32 %v3997, %v4381
    %v4383 = vpop.f32.mrb[0].mxu0
    %4384 = vmatprep.mubr.f32.mxu0 %v2480
    %4385 = vmatmul.mubr.f32.gmra.mrb[0].mxu0 %v2479
    %v4386 = vpop.f32.mrb[0].mxu0
    %v4387 = vadd.f32 %v4002, %v4386
    %v4388 = vpop.f32.mrb[0].mxu0
    %4389 = vmatprep.mubr.f32.mxu0 %v2489
    %4390 = vmatmul.mubr.f32.gmra.mrb[0].mxu0 %v2488
    %v4391 = vpop.f32.mrb[0].mxu0
    %v4392 = vadd.f32 %v4007, %v4391
    %v4393 = vpop.f32.mrb[0].mxu0
    %4394 = vmatprep.mubr.f32.mxu0 %v2498
    %4395 = vmatmul.mubr.f32.gmra.mrb[0].mxu0 %v2497
    %v4396 = vpop.f32.mrb[0].mxu0
    %v4397 = vadd.f32 %v4012, %v4396
    %v4398 = vpop.f32.mrb[0].mxu0
    %4399 = vmatprep.mubr.f32.mxu0 %v2507
    %4400 = vmatmul.mubr.f32.gmra.mrb[0].mxu0 %v2506
    %v4401 = vpop.f32.mrb[0].mxu0
    %v4402 = vadd.f32 %v4017, %v4401
    %v4403 = vpop.f32.mrb[0].mxu0
    %4404 = vmatprep.mubr.f32.mxu0 %v2516
    %4405 = vmatmul.mubr.f32.gmra.mrb[0].mxu0 %v2515
    %v4406 = vpop.f32.mrb[0].mxu0
    %v4407 = vadd.f32 %v4022, %v4406
    %v4408 = vpop.f32.mrb[0].mxu0
    %4409 = vmatprep.mubr.f32.mxu0 %v2525
    %4410 = vmatmul.mubr.f32.gmra.mrb[0].mxu0 %v2524
    %v4411 = vpop.f32.mrb[0].mxu0
    %v4412 = vadd.f32 %v4027, %v4411
    %v4413 = vpop.f32.mrb[0].mxu0
    %4414 = vmatprep.mubr.f32.mxu0 %v2534
    %4415 = vmatmul.mubr.f32.gmra.mrb[0].mxu0 %v2533
    %v4416 = vpop.f32.mrb[0].mxu0
    %v4417 = vadd.f32 %v4032, %v4416
    %v4418 = vpop.f32.mrb[0].mxu0
    %4419 = vmatprep.mubr.f32.mxu0 %v2543
    %4420 = vmatmul.mubr.f32.gmra.mrb[0].mxu0 %v2542
    %v4421 = vpop.f32.mrb[0].mxu0
    %v4422 = vadd.f32 %v4037, %v4421
    %v4423 = vpop.f32.mrb[0].mxu0
    %4424 = vmatprep.mubr.f32.mxu0 %v2552
    %4425 = vmatmul.mubr.f32.gmra.mrb[0].mxu0 %v2551
    %v4426 = vpop.f32.mrb[0].mxu0
    %v4427 = vadd.f32 %v4042, %v4426
    %v4428 = vpop.f32.mrb[0].mxu0
    %4429 = vmatprep.mubr.f32.mxu0 %v2561
    %4430 = vmatmul.mubr.f32.gmra.mrb[0].mxu0 %v2560
    %v4431 = vpop.f32.mrb[0].mxu0
    %v4432 = vadd.f32 %v4047, %v4431
    %v4433 = vpop.f32.mrb[0].mxu0
    %4434 = vmatprep.mubr.f32.mxu0 %v2570
    %4435 = vmatmul.mubr.f32.gmra.mrb[0].mxu0 %v2569
    %v4436 = vpop.f32.mrb[0].mxu0
    %v4437 = vadd.f32 %v4052, %v4436
    %v4438 = vpop.f32.mrb[0].mxu0
    %4439 = vmatprep.mubr.f32.mxu0 %v2579
    %4440 = vmatmul.mubr.f32.gmra.mrb[0].mxu0 %v2578
    %v4441 = vpop.f32.mrb[0].mxu0
    %v4442 = vadd.f32 %v4057, %v4441
    %v4443 = vpop.f32.mrb[0].mxu0
    %4444 = vmatprep.mubr.f32.mxu0 %v2588
    %4445 = vmatmul.mubr.f32.gmra.mrb[0].mxu0 %v2587
    %v4446 = vpop.f32.mrb[0].mxu0
    %v4447 = vadd.f32 %v4062, %v4446
    %v4448 = vpop.f32.mrb[0].mxu0
    %4449 = vmatprep.mubr.f32.mxu0 %v2597
    %4450 = vmatmul.mubr.f32.gmra.mrb[0].mxu0 %v2596
    %v4451 = vpop.f32.mrb[0].mxu0
    %v4452 = vadd.f32 %v4067, %v4451
    %v4453 = vpop.f32.mrb[0].mxu0
    %4454 = vmatprep.mubr.f32.mxu0 %v2606
    %4455 = vmatmul.mubr.f32.gmra.mrb[0].mxu0 %v2605
    %v4456 = vpop.f32.mrb[0].mxu0
    %v4457 = vadd.f32 %v4072, %v4456
    %v4458 = vpop.f32.mrb[0].mxu0
    %4459 = vmatprep.mubr.f32.mxu0 %v2615
    %4460 = vmatmul.mubr.f32.gmra.mrb[0].mxu0 %v2614
    %v4461 = vpop.f32.mrb[0].mxu0
    %v4462 = vadd.f32 %v4077, %v4461
    %v4463 = vpop.f32.mrb[0].mxu0
    %4464 = vmatprep.mubr.f32.mxu0 %v2624
    %4465 = vmatmul.mubr.f32.gmra.mrb[0].mxu0 %v2623
    %v4466 = vpop.f32.mrb[0].mxu0
    %v4467 = vadd.f32 %v4082, %v4466
    %v4468 = vpop.f32.mrb[0].mxu0
    %4469 = vmatprep.mubr.f32.mxu0 %v2633
    %4470 = vmatmul.mubr.f32.gmra.mrb[0].mxu0 %v2632
    %v4471 = vpop.f32.mrb[0].mxu0
    %v4472 = vadd.f32 %v4087, %v4471
    %v4473 = vpop.f32.mrb[0].mxu0
    %4474 = vmatprep.mubr.f32.mxu0 %v2642
    %4475 = vmatmul.mubr.f32.gmra.mrb[0].mxu0 %v2641
    %v4476 = vpop.f32.mrb[0].mxu0
    %v4477 = vadd.f32 %v4092, %v4476
    %v4478 = vpop.f32.mrb[0].mxu0
    %4479 = vmatprep.mubr.f32.mxu0 %v2651
    %4480 = vmatmul.mubr.f32.gmra.mrb[0].mxu0 %v2650
    %v4481 = vpop.f32.mrb[0].mxu0
    %v4482 = vadd.f32 %v4097, %v4481
    %v4483 = vpop.f32.mrb[0].mxu0
    %4484 = vmatprep.mubr.f32.mxu0 %v2660
    %4485 = vmatmul.mubr.f32.gmra.mrb[0].mxu0 %v2659
    %v4486 = vpop.f32.mrb[0].mxu0
    %v4487 = vadd.f32 %v4102, %v4486
    %v4488 = vpop.f32.mrb[0].mxu0
    %4489 = vmatprep.mubr.f32.mxu0 %v2669
    %4490 = vmatmul.mubr.f32.gmra.mrb[0].mxu0 %v2668
    %v4491 = vpop.f32.mrb[0].mxu0
    %v4492 = vadd.f32 %v4107, %v4491
    %v4493 = vpop.f32.mrb[0].mxu0
    %4494 = vmatprep.mubr.f32.mxu0 %v2678
    %4495 = vmatmul.mubr.f32.gmra.mrb[0].mxu0 %v2677
    %v4496 = vpop.f32.mrb[0].mxu0
    %v4497 = vadd.f32 %v4112, %v4496
    %v4498 = vpop.f32.mrb[0].mxu0
    %4499 = vmatprep.mubr.f32.mxu0 %v2687
    %4500 = vmatmul.mubr.f32.gmra.mrb[0].mxu0 %v2686
    %v4501 = vpop.f32.mrb[0].mxu0
    %v4502 = vadd.f32 %v4117, %v4501
    %v4503 = vpop.f32.mrb[0].mxu0
    %4504 = vmatprep.mubr.f32.mxu0 %v2696
    %4505 = vmatmul.mubr.f32.gmra.mrb[0].mxu0 %v2695
    %v4506 = vpop.f32.mrb[0].mxu0
    %v4507 = vadd.f32 %v4122, %v4506
    %v4508 = vpop.f32.mrb[0].mxu0
    %4509 = vmatprep.mubr.f32.mxu0 %v2705
    %4510 = vmatmul.mubr.f32.gmra.mrb[0].mxu0 %v2704
    %v4511 = vpop.f32.mrb[0].mxu0
    %v4512 = vadd.f32 %v4127, %v4511
    %v4513 = vpop.f32.mrb[0].mxu0
    %4514 = vmatprep.mubr.f32.mxu0 %v2714
    %4515 = vmatmul.mubr.f32.gmra.mrb[0].mxu0 %v2713
    %v4516 = vpop.f32.mrb[0].mxu0
    %v4517 = vadd.f32 %v4132, %v4516
    %v4518 = vpop.f32.mrb[0].mxu0
    %4519 = vmatprep.mubr.f32.mxu0 %v2723
    %4520 = vmatmul.mubr.f32.gmra.mrb[0].mxu0 %v2722
    %v4521 = vpop.f32.mrb[0].mxu0
    %v4522 = vadd.f32 %v4137, %v4521
    %v4523 = vpop.f32.mrb[0].mxu0
    %4524 = vmatprep.mubr.f32.mxu0 %v2732
    %4525 = vmatmul.mubr.f32.gmra.mrb[0].mxu0 %v2731
    %v4526 = vpop.f32.mrb[0].mxu0
    %v4527 = vadd.f32 %v4142, %v4526
    %v4528 = vpop.f32.mrb[0].mxu0
    %4529 = vmatprep.mubr.f32.mxu0 %v2741
    %4530 = vmatmul.mubr.f32.gmra.mrb[0].mxu0 %v2740
    %v4531 = vpop.f32.mrb[0].mxu0
    %v4532 = vadd.f32 %v4147, %v4531
    %v4533 = vpop.f32.mrb[0].mxu0
    %4534 = vmatprep.mubr.f32.mxu0 %v2750
    %4535 = vmatmul.mubr.f32.gmra.mrb[0].mxu0 %v2749
    %v4536 = vpop.f32.mrb[0].mxu0
    %v4537 = vadd.f32 %v4152, %v4536
    %v4538 = vpop.f32.mrb[0].mxu0
    %4539 = vmatprep.mubr.f32.mxu0 %v2759
    %4540 = vmatmul.mubr.f32.gmra.mrb[0].mxu0 %v2758
    %v4541 = vpop.f32.mrb[0].mxu0
    %v4542 = vadd.f32 %v4157, %v4541
    %v4543 = vpop.f32.mrb[0].mxu0
    %4544 = vmatprep.mubr.f32.mxu0 %v2768
    %4545 = vmatmul.mubr.f32.gmra.mrb[0].mxu0 %v2767
    %v4546 = vpop.f32.mrb[0].mxu0
    %v4547 = vadd.f32 %v4162, %v4546
    %v4548 = vpop.f32.mrb[0].mxu0
    %4549 = vmatprep.mubr.f32.mxu0 %v2777
    %4550 = vmatmul.mubr.f32.gmra.mrb[0].mxu0 %v2776
    %v4551 = vpop.f32.mrb[0].mxu0
    %v4552 = vadd.f32 %v4167, %v4551
    %v4553 = vpop.f32.mrb[0].mxu0
    %4554 = vmatprep.mubr.f32.mxu0 %v2786
    %4555 = vmatmul.mubr.f32.gmra.mrb[0].mxu0 %v2785
    %v4556 = vpop.f32.mrb[0].mxu0
    %v4557 = vadd.f32 %v4172, %v4556
    %v4558 = vpop.f32.mrb[0].mxu0
    %4559 = vmatprep.mubr.f32.mxu0 %v2795
    %4560 = vmatmul.mubr.f32.gmra.mrb[0].mxu0 %v2794
    %v4561 = vpop.f32.mrb[0].mxu0
    %v4562 = vadd.f32 %v4177, %v4561
    %v4563 = vpop.f32.mrb[0].mxu0
    %4564 = vmatprep.mubr.f32.mxu0 %v2804
    %4565 = vmatmul.mubr.f32.gmra.mrb[0].mxu0 %v2803
    %v4566 = vpop.f32.mrb[0].mxu0
    %v4567 = vadd.f32 %v4182, %v4566
    %v4568 = vpop.f32.mrb[0].mxu0
    %4569 = vmatprep.mubr.f32.mxu0 %v2813
    %4570 = vmatmul.mubr.f32.gmra.mrb[0].mxu0 %v2812
    %v4571 = vpop.f32.mrb[0].mxu0
    %v4572 = vadd.f32 %v4187, %v4571
    %v4573 = vpop.f32.mrb[0].mxu0
    %4574 = vmatprep.mubr.f32.mxu0 %v2822
    %4575 = vmatmul.mubr.f32.gmra.mrb[0].mxu0 %v2821
    %v4576 = vpop.f32.mrb[0].mxu0
    %v4577 = vadd.f32 %v4192, %v4576
    %v4578 = vpop.f32.mrb[0].mxu0
    %4579 = vmatprep.mubr.f32.mxu0 %v2831
    %4580 = vmatmul.mubr.f32.gmra.mrb[0].mxu0 %v2830
    %v4581 = vpop.f32.mrb[0].mxu0
    %v4582 = vadd.f32 %v4197, %v4581
    %v4583 = vpop.f32.mrb[0].mxu0
    %4584 = vmatprep.mubr.f32.mxu0 %v2840
    %4585 = vmatmul.mubr.f32.gmra.mrb[0].mxu0 %v2839
    %v4586 = vpop.f32.mrb[0].mxu0
    %v4587 = vadd.f32 %v4202, %v4586
    %v4588 = vpop.f32.mrb[0].mxu0
    %4589 = vmatprep.mubr.f32.mxu0 %v2849
    %4590 = vmatmul.mubr.f32.gmra.mrb[0].mxu0 %v2848
    %v4591 = vpop.f32.mrb[0].mxu0
    %v4592 = vadd.f32 %v4207, %v4591
    %v4593 = vpop.f32.mrb[0].mxu0
    %4594 = vmatprep.mubr.f32.mxu0 %v2858
    %4595 = vmatmul.mubr.f32.gmra.mrb[0].mxu0 %v2857
    %v4596 = vpop.f32.mrb[0].mxu0
    %v4597 = vadd.f32 %v4212, %v4596
    %v4598 = vpop.f32.mrb[0].mxu0
    %4599 = vmatprep.mubr.f32.mxu0 %v2867
    %4600 = vmatmul.mubr.f32.gmra.mrb[0].mxu0 %v2866
    %v4601 = vpop.f32.mrb[0].mxu0
    %v4602 = vadd.f32 %v4217, %v4601
    %v4603 = vpop.f32.mrb[0].mxu0
    %4604 = vmatprep.mubr.f32.mxu0 %v2876
    %4605 = vmatmul.mubr.f32.gmra.mrb[0].mxu0 %v2875
    %v4606 = vpop.f32.mrb[0].mxu0
    %v4607 = vadd.f32 %v4222, %v4606
    %v4608 = vpop.f32.mrb[0].mxu0
    %4609 = vmatprep.mubr.f32.mxu0 %v2885
    %4610 = vmatmul.mubr.f32.gmra.mrb[0].mxu0 %v2884
    %v4611 = vpop.f32.mrb[0].mxu0
    %v4612 = vadd.f32 %v4227, %v4611
    %v4613 = vpop.f32.mrb[0].mxu0
    %4614 = vmatprep.mubr.f32.mxu0 %v2894
    %4615 = vmatmul.mubr.f32.gmra.mrb[0].mxu0 %v2893
    %v4616 = vpop.f32.mrb[0].mxu0
    %v4617 = vadd.f32 %v4232, %v4616
    %v4618 = vpop.f32.mrb[0].mxu0
    %4619 = vmatprep.mubr.f32.mxu0 %v2903
    %4620 = vmatmul.mubr.f32.gmra.mrb[0].mxu0 %v2902
    %v4621 = vpop.f32.mrb[0].mxu0
    %v4622 = vadd.f32 %v4237, %v4621
    %v4623 = vpop.f32.mrb[0].mxu0
    %4624 = vmatprep.mubr.f32.mxu0 %v2912
    %4625 = vmatmul.mubr.f32.gmra.mrb[0].mxu0 %v2911
    %v4626 = vpop.f32.mrb[0].mxu0
    %v4627 = vadd.f32 %v4242, %v4626
    %v4628 = vpop.f32.mrb[0].mxu0
    %4629 = vmatprep.mubr.f32.mxu0 %v2921
    %4630 = vmatmul.mubr.f32.gmra.mrb[0].mxu0 %v2920
    %v4631 = vpop.f32.mrb[0].mxu0
    %v4632 = vadd.f32 %v4247, %v4631
    %v4633 = vpop.f32.mrb[0].mxu0
    %4634 = vmatprep.mubr.f32.mxu0 %v2930
    %4635 = vmatmul.mubr.f32.gmra.mrb[0].mxu0 %v2929
    %v4636 = vpop.f32.mrb[0].mxu0
    %v4637 = vadd.f32 %v4252, %v4636
    %v4638 = vpop.f32.mrb[0].mxu0
    %4639 = vmatprep.mubr.f32.mxu0 %v2939
    %4640 = vmatmul.mubr.f32.gmra.mrb[0].mxu0 %v2938
    %v4641 = vpop.f32.mrb[0].mxu0
    %v4642 = vadd.f32 %v4257, %v4641
    %v4643 = vpop.f32.mrb[0].mxu0
    %4644 = vmatprep.mubr.f32.mxu0 %v2948
    %4645 = vmatmul.mubr.f32.gmra.mrb[0].mxu0 %v2947
    %v4646 = vpop.f32.mrb[0].mxu0
    %v4647 = vadd.f32 %v4262, %v4646
    %v4648 = vpop.f32.mrb[0].mxu0
    %4649 = vmatprep.mubr.f32.mxu0 %v2957
    %4650 = vmatmul.mubr.f32.gmra.mrb[0].mxu0 %v2956
    %v4651 = vpop.f32.mrb[0].mxu0
    %v4652 = vadd.f32 %v4267, %v4651
    %v4653 = vpop.f32.mrb[0].mxu0
    %4654 = vmatprep.mubr.f32.mxu0 %v2966
    %4655 = vmatmul.mubr.f32.gmra.mrb[0].mxu0 %v2965
    %v4656 = vpop.f32.mrb[0].mxu0
    %v4657 = vadd.f32 %v4272, %v4656
    %v4658 = vpop.f32.mrb[0].mxu0
    %4659 = vmatprep.mubr.f32.mxu0 %v2975
    %4660 = vmatmul.mubr.f32.gmra.mrb[0].mxu0 %v2974
    %v4661 = vpop.f32.mrb[0].mxu0
    %v4662 = vadd.f32 %v4277, %v4661
    %v4663 = vpop.f32.mrb[0].mxu0
    %4664 = vmatprep.mubr.f32.mxu0 %v2984
    %4665 = vmatmul.mubr.f32.gmra.mrb[0].mxu0 %v2983
    %v4666 = vpop.f32.mrb[0].mxu0
    %v4667 = vadd.f32 %v4282, %v4666
    %v4668 = vpop.f32.mrb[0].mxu0
    %4669 = vdwg.mxu0
    %4670 = vmatprep.subr.mxu0 0.0
    %4671 = vmatpush1.msra.mxu0 %v3114
    %4672 = vmatprep.subr.mxu0 0.0
    %4673 = vmatpush1.msra.mxu0 %v3115
    %4674 = vmatprep.subr.mxu0 0.0
    %4675 = vmatpush1.msra.mxu0 %v3116
    %4676 = vmatprep.subr.mxu0 0.0
    %4677 = vmatpush1.msra.mxu0 %v3117
    %4678 = vmatprep.subr.mxu0 0.0
    %4679 = vmatpush1.msra.mxu0 %v3118
    %4680 = vmatprep.subr.mxu0 0.0
    %4681 = vmatpush1.msra.mxu0 %v3119
    %4682 = vmatprep.subr.mxu0 0.0
    %4683 = vmatpush1.msra.mxu0 %v3120
    %4684 = vmatprep.subr.mxu0 0.0
    %4685 = vmatpush1.msra.mxu0 %v3121
    %4686 = vmatprep.subr.mxu0 0.0
    %4687 = vmatpush1.msra.mxu0 %v3122
    %4688 = vmatprep.subr.mxu0 0.0
    %4689 = vmatpush1.msra.mxu0 %v3123
    %4690 = vmatprep.subr.mxu0 0.0
    %4691 = vmatpush1.msra.mxu0 %v3124
    %4692 = vmatprep.subr.mxu0 0.0
    %4693 = vmatpush1.msra.mxu0 %v3125
    %4694 = vmatprep.subr.mxu0 0.0
    %4695 = vmatpush1.msra.mxu0 %v3126
    %4696 = vmatprep.subr.mxu0 0.0
    %4697 = vmatpush1.msra.mxu0 %v3127
    %4698 = vmatprep.subr.mxu0 0.0
    %4699 = vmatpush1.msra.mxu0 %v3128
    %4700 = vmatprep.subr.mxu0 0.0
    %4701 = vmatpush1.msra.mxu0 %v3129
    %4702 = vmatprep.subr.mxu0 0.0
    %4703 = vmatpush1.msra.mxu0 0.0
    %4704 = vmatprep.subr.mxu0 0.0
    %4705 = vmatpush1.msra.mxu0 0.0
    %4706 = vmatprep.subr.mxu0 0.0
    %4707 = vmatpush1.msra.mxu0 0.0
    %4708 = vmatprep.subr.mxu0 0.0
    %4709 = vmatpush1.msra.mxu0 0.0
    %4710 = vmatprep.subr.mxu0 0.0
    %4711 = vmatpush1.msra.mxu0 0.0
    %4712 = vmatprep.subr.mxu0 0.0
    %4713 = vmatpush1.msra.mxu0 0.0
    %4714 = vmatprep.subr.mxu0 0.0
    %4715 = vmatpush1.msra.mxu0 0.0
    %4716 = vmatprep.subr.mxu0 0.0
    %4717 = vmatpush1.msra.mxu0 0.0
    %4718 = vmatprep.subr.mxu0 0.0
    %4719 = vmatpush1.msra.mxu0 0.0
    %4720 = vmatprep.subr.mxu0 0.0
    %4721 = vmatpush1.msra.mxu0 0.0
    %4722 = vmatprep.subr.mxu0 0.0
    %4723 = vmatpush1.msra.mxu0 0.0
    %4724 = vmatprep.subr.mxu0 0.0
    %4725 = vmatpush1.msra.mxu0 0.0
    %4726 = vmatprep.subr.mxu0 0.0
    %4727 = vmatpush1.msra.mxu0 0.0
    %4728 = vmatprep.subr.mxu0 0.0
    %4729 = vmatpush1.msra.mxu0 0.0
    %4730 = vmatprep.subr.mxu0 0.0
    %4731 = vmatpush1.msra.mxu0 0.0
    %4732 = vmatprep.subr.mxu0 0.0
    %4733 = vmatpush1.msra.mxu0 0.0
    %4734 = vmatprep.mubr.f32.mxu0 0.0
    %4735 = vmatmul.mubr.f32.gmra.mrb[0].mxu0 %v2418
    %v4736 = vpop.f32.mrb[0].mxu0
    %v4737 = vadd.f32 %v4352, %v4736
    %v4738 = vpop.f32.mrb[0].mxu0
    %4739 = vmatprep.mubr.f32.mxu0 0.0
    %4740 = vmatmul.mubr.f32.gmra.mrb[0].mxu0 %v2427
    %v4741 = vpop.f32.mrb[0].mxu0
    %v4742 = vadd.f32 %v4357, %v4741
    %v4743 = vpop.f32.mrb[0].mxu0
    %4744 = vmatprep.mubr.f32.mxu0 0.0
    %4745 = vmatmul.mubr.f32.gmra.mrb[0].mxu0 %v2436
    %v4746 = vpop.f32.mrb[0].mxu0
    %v4747 = vadd.f32 %v4362, %v4746
    %v4748 = vpop.f32.mrb[0].mxu0
    %4749 = vmatprep.mubr.f32.mxu0 0.0
    %4750 = vmatmul.mubr.f32.gmra.mrb[0].mxu0 %v2445
    %v4751 = vpop.f32.mrb[0].mxu0
    %v4752 = vadd.f32 %v4367, %v4751
    %v4753 = vpop.f32.mrb[0].mxu0
    %4754 = vmatprep.mubr.f32.mxu0 0.0
    %4755 = vmatmul.mubr.f32.gmra.mrb[0].mxu0 %v2454
    %v4756 = vpop.f32.mrb[0].mxu0
    %v4757 = vadd.f32 %v4372, %v4756
    %v4758 = vpop.f32.mrb[0].mxu0
    %4759 = vmatprep.mubr.f32.mxu0 0.0
    %4760 = vmatmul.mubr.f32.gmra.mrb[0].mxu0 %v2463
    %v4761 = vpop.f32.mrb[0].mxu0
    %v4762 = vadd.f32 %v4377, %v4761
    %v4763 = vpop.f32.mrb[0].mxu0
    %4764 = vmatprep.mubr.f32.mxu0 0.0
    %4765 = vmatmul.mubr.f32.gmra.mrb[0].mxu0 %v2472
    %v4766 = vpop.f32.mrb[0].mxu0
    %v4767 = vadd.f32 %v4382, %v4766
    %v4768 = vpop.f32.mrb[0].mxu0
    %4769 = vmatprep.mubr.f32.mxu0 0.0
    %4770 = vmatmul.mubr.f32.gmra.mrb[0].mxu0 %v2481
    %v4771 = vpop.f32.mrb[0].mxu0
    %v4772 = vadd.f32 %v4387, %v4771
    %v4773 = vpop.f32.mrb[0].mxu0
    %4774 = vmatprep.mubr.f32.mxu0 0.0
    %4775 = vmatmul.mubr.f32.gmra.mrb[0].mxu0 %v2490
    %v4776 = vpop.f32.mrb[0].mxu0
    %v4777 = vadd.f32 %v4392, %v4776
    %v4778 = vpop.f32.mrb[0].mxu0
    %4779 = vmatprep.mubr.f32.mxu0 0.0
    %4780 = vmatmul.mubr.f32.gmra.mrb[0].mxu0 %v2499
    %v4781 = vpop.f32.mrb[0].mxu0
    %v4782 = vadd.f32 %v4397, %v4781
    %v4783 = vpop.f32.mrb[0].mxu0
    %4784 = vmatprep.mubr.f32.mxu0 0.0
    %4785 = vmatmul.mubr.f32.gmra.mrb[0].mxu0 %v2508
    %v4786 = vpop.f32.mrb[0].mxu0
    %v4787 = vadd.f32 %v4402, %v4786
    %v4788 = vpop.f32.mrb[0].mxu0
    %4789 = vmatprep.mubr.f32.mxu0 0.0
    %4790 = vmatmul.mubr.f32.gmra.mrb[0].mxu0 %v2517
    %v4791 = vpop.f32.mrb[0].mxu0
    %v4792 = vadd.f32 %v4407, %v4791
    %v4793 = vpop.f32.mrb[0].mxu0
    %4794 = vmatprep.mubr.f32.mxu0 0.0
    %4795 = vmatmul.mubr.f32.gmra.mrb[0].mxu0 %v2526
    %v4796 = vpop.f32.mrb[0].mxu0
    %v4797 = vadd.f32 %v4412, %v4796
    %v4798 = vpop.f32.mrb[0].mxu0
    %4799 = vmatprep.mubr.f32.mxu0 0.0
    %4800 = vmatmul.mubr.f32.gmra.mrb[0].mxu0 %v2535
    %v4801 = vpop.f32.mrb[0].mxu0
    %v4802 = vadd.f32 %v4417, %v4801
    %v4803 = vpop.f32.mrb[0].mxu0
    %4804 = vmatprep.mubr.f32.mxu0 0.0
    %4805 = vmatmul.mubr.f32.gmra.mrb[0].mxu0 %v2544
    %v4806 = vpop.f32.mrb[0].mxu0
    %v4807 = vadd.f32 %v4422, %v4806
    %v4808 = vpop.f32.mrb[0].mxu0
    %4809 = vmatprep.mubr.f32.mxu0 0.0
    %4810 = vmatmul.mubr.f32.gmra.mrb[0].mxu0 %v2553
    %v4811 = vpop.f32.mrb[0].mxu0
    %v4812 = vadd.f32 %v4427, %v4811
    %v4813 = vpop.f32.mrb[0].mxu0
    %4814 = vmatprep.mubr.f32.mxu0 0.0
    %4815 = vmatmul.mubr.f32.gmra.mrb[0].mxu0 %v2562
    %v4816 = vpop.f32.mrb[0].mxu0
    %v4817 = vadd.f32 %v4432, %v4816
    %v4818 = vpop.f32.mrb[0].mxu0
    %4819 = vmatprep.mubr.f32.mxu0 0.0
    %4820 = vmatmul.mubr.f32.gmra.mrb[0].mxu0 %v2571
    %v4821 = vpop.f32.mrb[0].mxu0
    %v4822 = vadd.f32 %v4437, %v4821
    %v4823 = vpop.f32.mrb[0].mxu0
    %4824 = vmatprep.mubr.f32.mxu0 0.0
    %4825 = vmatmul.mubr.f32.gmra.mrb[0].mxu0 %v2580
    %v4826 = vpop.f32.mrb[0].mxu0
    %v4827 = vadd.f32 %v4442, %v4826
    %v4828 = vpop.f32.mrb[0].mxu0
    %4829 = vmatprep.mubr.f32.mxu0 0.0
    %4830 = vmatmul.mubr.f32.gmra.mrb[0].mxu0 %v2589
    %v4831 = vpop.f32.mrb[0].mxu0
    %v4832 = vadd.f32 %v4447, %v4831
    %v4833 = vpop.f32.mrb[0].mxu0
    %4834 = vmatprep.mubr.f32.mxu0 0.0
    %4835 = vmatmul.mubr.f32.gmra.mrb[0].mxu0 %v2598
    %v4836 = vpop.f32.mrb[0].mxu0
    %v4837 = vadd.f32 %v4452, %v4836
    %v4838 = vpop.f32.mrb[0].mxu0
    %4839 = vmatprep.mubr.f32.mxu0 0.0
    %4840 = vmatmul.mubr.f32.gmra.mrb[0].mxu0 %v2607
    %v4841 = vpop.f32.mrb[0].mxu0
    %v4842 = vadd.f32 %v4457, %v4841
    %v4843 = vpop.f32.mrb[0].mxu0
    %4844 = vmatprep.mubr.f32.mxu0 0.0
    %4845 = vmatmul.mubr.f32.gmra.mrb[0].mxu0 %v2616
    %v4846 = vpop.f32.mrb[0].mxu0
    %v4847 = vadd.f32 %v4462, %v4846
    %v4848 = vpop.f32.mrb[0].mxu0
    %4849 = vmatprep.mubr.f32.mxu0 0.0
    %4850 = vmatmul.mubr.f32.gmra.mrb[0].mxu0 %v2625
    %v4851 = vpop.f32.mrb[0].mxu0
    %v4852 = vadd.f32 %v4467, %v4851
    %v4853 = vpop.f32.mrb[0].mxu0
    %4854 = vmatprep.mubr.f32.mxu0 0.0
    %4855 = vmatmul.mubr.f32.gmra.mrb[0].mxu0 %v2634
    %v4856 = vpop.f32.mrb[0].mxu0
    %v4857 = vadd.f32 %v4472, %v4856
    %v4858 = vpop.f32.mrb[0].mxu0
    %4859 = vmatprep.mubr.f32.mxu0 0.0
    %4860 = vmatmul.mubr.f32.gmra.mrb[0].mxu0 %v2643
    %v4861 = vpop.f32.mrb[0].mxu0
    %v4862 = vadd.f32 %v4477, %v4861
    %v4863 = vpop.f32.mrb[0].mxu0
    %4864 = vmatprep.mubr.f32.mxu0 0.0
    %4865 = vmatmul.mubr.f32.gmra.mrb[0].mxu0 %v2652
    %v4866 = vpop.f32.mrb[0].mxu0
    %v4867 = vadd.f32 %v4482, %v4866
    %v4868 = vpop.f32.mrb[0].mxu0
    %4869 = vmatprep.mubr.f32.mxu0 0.0
    %4870 = vmatmul.mubr.f32.gmra.mrb[0].mxu0 %v2661
    %v4871 = vpop.f32.mrb[0].mxu0
    %v4872 = vadd.f32 %v4487, %v4871
    %v4873 = vpop.f32.mrb[0].mxu0
    %4874 = vmatprep.mubr.f32.mxu0 0.0
    %4875 = vmatmul.mubr.f32.gmra.mrb[0].mxu0 %v2670
    %v4876 = vpop.f32.mrb[0].mxu0
    %v4877 = vadd.f32 %v4492, %v4876
    %v4878 = vpop.f32.mrb[0].mxu0
    %4879 = vmatprep.mubr.f32.mxu0 0.0
    %4880 = vmatmul.mubr.f32.gmra.mrb[0].mxu0 %v2679
    %v4881 = vpop.f32.mrb[0].mxu0
    %v4882 = vadd.f32 %v4497, %v4881
    %v4883 = vpop.f32.mrb[0].mxu0
    %4884 = vmatprep.mubr.f32.mxu0 0.0
    %4885 = vmatmul.mubr.f32.gmra.mrb[0].mxu0 %v2688
    %v4886 = vpop.f32.mrb[0].mxu0
    %v4887 = vadd.f32 %v4502, %v4886
    %v4888 = vpop.f32.mrb[0].mxu0
    %4889 = vmatprep.mubr.f32.mxu0 0.0
    %4890 = vmatmul.mubr.f32.gmra.mrb[0].mxu0 %v2697
    %v4891 = vpop.f32.mrb[0].mxu0
    %v4892 = vadd.f32 %v4507, %v4891
    %v4893 = vpop.f32.mrb[0].mxu0
    %4894 = vmatprep.mubr.f32.mxu0 0.0
    %4895 = vmatmul.mubr.f32.gmra.mrb[0].mxu0 %v2706
    %v4896 = vpop.f32.mrb[0].mxu0
    %v4897 = vadd.f32 %v4512, %v4896
    %v4898 = vpop.f32.mrb[0].mxu0
    %4899 = vmatprep.mubr.f32.mxu0 0.0
    %4900 = vmatmul.mubr.f32.gmra.mrb[0].mxu0 %v2715
    %v4901 = vpop.f32.mrb[0].mxu0
    %v4902 = vadd.f32 %v4517, %v4901
    %v4903 = vpop.f32.mrb[0].mxu0
    %4904 = vmatprep.mubr.f32.mxu0 0.0
    %4905 = vmatmul.mubr.f32.gmra.mrb[0].mxu0 %v2724
    %v4906 = vpop.f32.mrb[0].mxu0
    %v4907 = vadd.f32 %v4522, %v4906
    %v4908 = vpop.f32.mrb[0].mxu0
    %4909 = vmatprep.mubr.f32.mxu0 0.0
    %4910 = vmatmul.mubr.f32.gmra.mrb[0].mxu0 %v2733
    %v4911 = vpop.f32.mrb[0].mxu0
    %v4912 = vadd.f32 %v4527, %v4911
    %v4913 = vpop.f32.mrb[0].mxu0
    %4914 = vmatprep.mubr.f32.mxu0 0.0
    %4915 = vmatmul.mubr.f32.gmra.mrb[0].mxu0 %v2742
    %v4916 = vpop.f32.mrb[0].mxu0
    %v4917 = vadd.f32 %v4532, %v4916
    %v4918 = vpop.f32.mrb[0].mxu0
    %4919 = vmatprep.mubr.f32.mxu0 0.0
    %4920 = vmatmul.mubr.f32.gmra.mrb[0].mxu0 %v2751
    %v4921 = vpop.f32.mrb[0].mxu0
    %v4922 = vadd.f32 %v4537, %v4921
    %v4923 = vpop.f32.mrb[0].mxu0
    %4924 = vmatprep.mubr.f32.mxu0 0.0
    %4925 = vmatmul.mubr.f32.gmra.mrb[0].mxu0 %v2760
    %v4926 = vpop.f32.mrb[0].mxu0
    %v4927 = vadd.f32 %v4542, %v4926
    %v4928 = vpop.f32.mrb[0].mxu0
    %4929 = vmatprep.mubr.f32.mxu0 0.0
    %4930 = vmatmul.mubr.f32.gmra.mrb[0].mxu0 %v2769
    %v4931 = vpop.f32.mrb[0].mxu0
    %v4932 = vadd.f32 %v4547, %v4931
    %v4933 = vpop.f32.mrb[0].mxu0
    %4934 = vmatprep.mubr.f32.mxu0 0.0
    %4935 = vmatmul.mubr.f32.gmra.mrb[0].mxu0 %v2778
    %v4936 = vpop.f32.mrb[0].mxu0
    %v4937 = vadd.f32 %v4552, %v4936
    %v4938 = vpop.f32.mrb[0].mxu0
    %4939 = vmatprep.mubr.f32.mxu0 0.0
    %4940 = vmatmul.mubr.f32.gmra.mrb[0].mxu0 %v2787
    %v4941 = vpop.f32.mrb[0].mxu0
    %v4942 = vadd.f32 %v4557, %v4941
    %v4943 = vpop.f32.mrb[0].mxu0
    %4944 = vmatprep.mubr.f32.mxu0 0.0
    %4945 = vmatmul.mubr.f32.gmra.mrb[0].mxu0 %v2796
    %v4946 = vpop.f32.mrb[0].mxu0
    %v4947 = vadd.f32 %v4562, %v4946
    %v4948 = vpop.f32.mrb[0].mxu0
    %4949 = vmatprep.mubr.f32.mxu0 0.0
    %4950 = vmatmul.mubr.f32.gmra.mrb[0].mxu0 %v2805
    %v4951 = vpop.f32.mrb[0].mxu0
    %v4952 = vadd.f32 %v4567, %v4951
    %v4953 = vpop.f32.mrb[0].mxu0
    %4954 = vmatprep.mubr.f32.mxu0 0.0
    %4955 = vmatmul.mubr.f32.gmra.mrb[0].mxu0 %v2814
    %v4956 = vpop.f32.mrb[0].mxu0
    %v4957 = vadd.f32 %v4572, %v4956
    %v4958 = vpop.f32.mrb[0].mxu0
    %4959 = vmatprep.mubr.f32.mxu0 0.0
    %4960 = vmatmul.mubr.f32.gmra.mrb[0].mxu0 %v2823
    %v4961 = vpop.f32.mrb[0].mxu0
    %v4962 = vadd.f32 %v4577, %v4961
    %v4963 = vpop.f32.mrb[0].mxu0
    %4964 = vmatprep.mubr.f32.mxu0 0.0
    %4965 = vmatmul.mubr.f32.gmra.mrb[0].mxu0 %v2832
    %v4966 = vpop.f32.mrb[0].mxu0
    %v4967 = vadd.f32 %v4582, %v4966
    %v4968 = vpop.f32.mrb[0].mxu0
    %4969 = vmatprep.mubr.f32.mxu0 0.0
    %4970 = vmatmul.mubr.f32.gmra.mrb[0].mxu0 %v2841
    %v4971 = vpop.f32.mrb[0].mxu0
    %v4972 = vadd.f32 %v4587, %v4971
    %v4973 = vpop.f32.mrb[0].mxu0
    %4974 = vmatprep.mubr.f32.mxu0 0.0
    %4975 = vmatmul.mubr.f32.gmra.mrb[0].mxu0 %v2850
    %v4976 = vpop.f32.mrb[0].mxu0
    %v4977 = vadd.f32 %v4592, %v4976
    %v4978 = vpop.f32.mrb[0].mxu0
    %4979 = vmatprep.mubr.f32.mxu0 0.0
    %4980 = vmatmul.mubr.f32.gmra.mrb[0].mxu0 %v2859
    %v4981 = vpop.f32.mrb[0].mxu0
    %v4982 = vadd.f32 %v4597, %v4981
    %v4983 = vpop.f32.mrb[0].mxu0
    %4984 = vmatprep.mubr.f32.mxu0 0.0
    %4985 = vmatmul.mubr.f32.gmra.mrb[0].mxu0 %v2868
    %v4986 = vpop.f32.mrb[0].mxu0
    %v4987 = vadd.f32 %v4602, %v4986
    %v4988 = vpop.f32.mrb[0].mxu0
    %4989 = vmatprep.mubr.f32.mxu0 0.0
    %4990 = vmatmul.mubr.f32.gmra.mrb[0].mxu0 %v2877
    %v4991 = vpop.f32.mrb[0].mxu0
    %v4992 = vadd.f32 %v4607, %v4991
    %v4993 = vpop.f32.mrb[0].mxu0
    %4994 = vmatprep.mubr.f32.mxu0 0.0
    %4995 = vmatmul.mubr.f32.gmra.mrb[0].mxu0 %v2886
    %v4996 = vpop.f32.mrb[0].mxu0
    %v4997 = vadd.f32 %v4612, %v4996
    %v4998 = vpop.f32.mrb[0].mxu0
    %4999 = vmatprep.mubr.f32.mxu0 0.0
    %5000 = vmatmul.mubr.f32.gmra.mrb[0].mxu0 %v2895
    %v5001 = vpop.f32.mrb[0].mxu0
    %v5002 = vadd.f32 %v4617, %v5001
    %v5003 = vpop.f32.mrb[0].mxu0
    %5004 = vmatprep.mubr.f32.mxu0 0.0
    %5005 = vmatmul.mubr.f32.gmra.mrb[0].mxu0 %v2904
    %v5006 = vpop.f32.mrb[0].mxu0
    %v5007 = vadd.f32 %v4622, %v5006
    %v5008 = vpop.f32.mrb[0].mxu0
    %5009 = vmatprep.mubr.f32.mxu0 0.0
    %5010 = vmatmul.mubr.f32.gmra.mrb[0].mxu0 %v2913
    %v5011 = vpop.f32.mrb[0].mxu0
    %v5012 = vadd.f32 %v4627, %v5011
    %v5013 = vpop.f32.mrb[0].mxu0
    %5014 = vmatprep.mubr.f32.mxu0 0.0
    %5015 = vmatmul.mubr.f32.gmra.mrb[0].mxu0 %v2922
    %v5016 = vpop.f32.mrb[0].mxu0
    %v5017 = vadd.f32 %v4632, %v5016
    %v5018 = vpop.f32.mrb[0].mxu0
    %5019 = vmatprep.mubr.f32.mxu0 0.0
    %5020 = vmatmul.mubr.f32.gmra.mrb[0].mxu0 %v2931
    %v5021 = vpop.f32.mrb[0].mxu0
    %v5022 = vadd.f32 %v4637, %v5021
    %v5023 = vpop.f32.mrb[0].mxu0
    %5024 = vmatprep.mubr.f32.mxu0 0.0
    %5025 = vmatmul.mubr.f32.gmra.mrb[0].mxu0 %v2940
    %v5026 = vpop.f32.mrb[0].mxu0
    %v5027 = vadd.f32 %v4642, %v5026
    %v5028 = vpop.f32.mrb[0].mxu0
    %5029 = vmatprep.mubr.f32.mxu0 0.0
    %5030 = vmatmul.mubr.f32.gmra.mrb[0].mxu0 %v2949
    %v5031 = vpop.f32.mrb[0].mxu0
    %v5032 = vadd.f32 %v4647, %v5031
    %v5033 = vpop.f32.mrb[0].mxu0
    %5034 = vmatprep.mubr.f32.mxu0 0.0
    %5035 = vmatmul.mubr.f32.gmra.mrb[0].mxu0 %v2958
    %v5036 = vpop.f32.mrb[0].mxu0
    %v5037 = vadd.f32 %v4652, %v5036
    %v5038 = vpop.f32.mrb[0].mxu0
    %5039 = vmatprep.mubr.f32.mxu0 0.0
    %5040 = vmatmul.mubr.f32.gmra.mrb[0].mxu0 %v2967
    %v5041 = vpop.f32.mrb[0].mxu0
    %v5042 = vadd.f32 %v4657, %v5041
    %v5043 = vpop.f32.mrb[0].mxu0
    %5044 = vmatprep.mubr.f32.mxu0 0.0
    %5045 = vmatmul.mubr.f32.gmra.mrb[0].mxu0 %v2976
    %v5046 = vpop.f32.mrb[0].mxu0
    %v5047 = vadd.f32 %v4662, %v5046
    %v5048 = vpop.f32.mrb[0].mxu0
    %5049 = vmatprep.mubr.f32.mxu0 0.0
    %5050 = vmatmul.mubr.f32.gmra.mrb[0].mxu0 %v2985
    %v5051 = vpop.f32.mrb[0].mxu0
    %v5052 = vadd.f32 %v4667, %v5051
    %v5053 = vpop.f32.mrb[0].mxu0
    %5054 = vdwg.mxu0
    %5055 = vmatprep.subr.mxu0 0.0
    %5056 = vmatpush1.msra.mxu0 %v4737
    %5057 = vmatprep.subr.mxu0 0.0
    %5058 = vmatpush1.msra.mxu0 %v4742
    %5059 = vmatprep.subr.mxu0 0.0
    %5060 = vmatpush1.msra.mxu0 %v4747
    %5061 = vmatprep.subr.mxu0 0.0
    %5062 = vmatpush1.msra.mxu0 %v4752
    %5063 = vmatprep.subr.mxu0 0.0
    %5064 = vmatpush1.msra.mxu0 %v4757
    %5065 = vmatprep.subr.mxu0 0.0
    %5066 = vmatpush1.msra.mxu0 %v4762
    %5067 = vmatprep.subr.mxu0 0.0
    %5068 = vmatpush1.msra.mxu0 %v4767
    %5069 = vmatprep.subr.mxu0 0.0
    %5070 = vmatpush1.msra.mxu0 %v4772
    %5071 = vmatprep.subr.mxu0 0.0
    %5072 = vmatpush1.msra.mxu0 %v4777
    %5073 = vmatprep.subr.mxu0 0.0
    %5074 = vmatpush1.msra.mxu0 %v4782
    %5075 = vmatprep.subr.mxu0 0.0
    %5076 = vmatpush1.msra.mxu0 %v4787
    %5077 = vmatprep.subr.mxu0 0.0
    %5078 = vmatpush1.msra.mxu0 %v4792
    %5079 = vmatprep.subr.mxu0 0.0
    %5080 = vmatpush1.msra.mxu0 %v4797
    %5081 = vmatprep.subr.mxu0 0.0
    %5082 = vmatpush1.msra.mxu0 %v4802
    %5083 = vmatprep.subr.mxu0 0.0
    %5084 = vmatpush1.msra.mxu0 %v4807
    %5085 = vmatprep.subr.mxu0 0.0
    %5086 = vmatpush1.msra.mxu0 %v4812
    %5087 = vmatprep.subr.mxu0 0.0
    %5088 = vmatpush1.msra.mxu0 %v4817
    %5089 = vmatprep.subr.mxu0 0.0
    %5090 = vmatpush1.msra.mxu0 %v4822
    %5091 = vmatprep.subr.mxu0 0.0
    %5092 = vmatpush1.msra.mxu0 %v4827
    %5093 = vmatprep.subr.mxu0 0.0
    %5094 = vmatpush1.msra.mxu0 %v4832
    %5095 = vmatprep.subr.mxu0 0.0
    %5096 = vmatpush1.msra.mxu0 %v4837
    %5097 = vmatprep.subr.mxu0 0.0
    %5098 = vmatpush1.msra.mxu0 %v4842
    %5099 = vmatprep.subr.mxu0 0.0
    %5100 = vmatpush1.msra.mxu0 %v4847
    %5101 = vmatprep.subr.mxu0 0.0
    %5102 = vmatpush1.msra.mxu0 %v4852
    %5103 = vmatprep.subr.mxu0 0.0
    %5104 = vmatpush1.msra.mxu0 %v4857
    %5105 = vmatprep.subr.mxu0 0.0
    %5106 = vmatpush1.msra.mxu0 %v4862
    %5107 = vmatprep.subr.mxu0 0.0
    %5108 = vmatpush1.msra.mxu0 %v4867
    %5109 = vmatprep.subr.mxu0 0.0
    %5110 = vmatpush1.msra.mxu0 %v4872
    %5111 = vmatprep.subr.mxu0 0.0
    %5112 = vmatpush1.msra.mxu0 %v4877
    %5113 = vmatprep.subr.mxu0 0.0
    %5114 = vmatpush1.msra.mxu0 %v4882
    %5115 = vmatprep.subr.mxu0 0.0
    %5116 = vmatpush1.msra.mxu0 %v4887
    %5117 = vmatprep.subr.mxu0 0.0
    %5118 = vmatpush1.msra.mxu0 %v4892
    %5119 = vmatprep.mubr.f32.mxu0 1.0
    %5120 = vmatmul.mubr.f32.gmra.mrb[0].mxu0 1.0
    %v5121 = vpop.f32.mrb[0].mxu0
    %v5122 = vadd.f32 0.0, %v5121
    %v5123 = vpop.f32.mrb[0].mxu0
    %5124 = vdwg.mxu0
    %5125 = vmatprep.subr.mxu0 0.0
    %5126 = vmatpush1.msra.mxu0 %v4897
    %5127 = vmatprep.subr.mxu0 0.0
    %5128 = vmatpush1.msra.mxu0 %v4902
    %5129 = vmatprep.subr.mxu0 0.0
    %5130 = vmatpush1.msra.mxu0 %v4907
    %5131 = vmatprep.subr.mxu0 0.0
    %5132 = vmatpush1.msra.mxu0 %v4912
    %5133 = vmatprep.subr.mxu0 0.0
    %5134 = vmatpush1.msra.mxu0 %v4917
    %5135 = vmatprep.subr.mxu0 0.0
    %5136 = vmatpush1.msra.mxu0 %v4922
    %5137 = vmatprep.subr.mxu0 0.0
    %5138 = vmatpush1.msra.mxu0 %v4927
    %5139 = vmatprep.subr.mxu0 0.0
    %5140 = vmatpush1.msra.mxu0 %v4932
    %5141 = vmatprep.subr.mxu0 0.0
    %5142 = vmatpush1.msra.mxu0 %v4937
    %5143 = vmatprep.subr.mxu0 0.0
    %5144 = vmatpush1.msra.mxu0 %v4942
    %5145 = vmatprep.subr.mxu0 0.0
    %5146 = vmatpush1.msra.mxu0 %v4947
    %5147 = vmatprep.subr.mxu0 0.0
    %5148 = vmatpush1.msra.mxu0 %v4952
    %5149 = vmatprep.subr.mxu0 0.0
    %5150 = vmatpush1.msra.mxu0 %v4957
    %5151 = vmatprep.subr.mxu0 0.0
    %5152 = vmatpush1.msra.mxu0 %v4962
    %5153 = vmatprep.subr.mxu0 0.0
    %5154 = vmatpush1.msra.mxu0 %v4967
    %5155 = vmatprep.subr.mxu0 0.0
    %5156 = vmatpush1.msra.mxu0 %v4972
    %5157 = vmatprep.subr.mxu0 0.0
    %5158 = vmatpush1.msra.mxu0 %v4977
    %5159 = vmatprep.subr.mxu0 0.0
    %5160 = vmatpush1.msra.mxu0 %v4982
    %5161 = vmatprep.subr.mxu0 0.0
    %5162 = vmatpush1.msra.mxu0 %v4987
    %5163 = vmatprep.subr.mxu0 0.0
    %5164 = vmatpush1.msra.mxu0 %v4992
    %5165 = vmatprep.subr.mxu0 0.0
    %5166 = vmatpush1.msra.mxu0 %v4997
    %5167 = vmatprep.subr.mxu0 0.0
    %5168 = vmatpush1.msra.mxu0 %v5002
    %5169 = vmatprep.subr.mxu0 0.0
    %5170 = vmatpush1.msra.mxu0 %v5007
    %5171 = vmatprep.subr.mxu0 0.0
    %5172 = vmatpush1.msra.mxu0 %v5012
    %5173 = vmatprep.subr.mxu0 0.0
    %5174 = vmatpush1.msra.mxu0 %v5017
    %5175 = vmatprep.subr.mxu0 0.0
    %5176 = vmatpush1.msra.mxu0 %v5022
    %5177 = vmatprep.subr.mxu0 0.0
    %5178 = vmatpush1.msra.mxu0 %v5027
    %5179 = vmatprep.subr.mxu0 0.0
    %5180 = vmatpush1.msra.mxu0 %v5032
    %5181 = vmatprep.subr.mxu0 0.0
    %5182 = vmatpush1.msra.mxu0 %v5037
    %5183 = vmatprep.subr.mxu0 0.0
    %5184 = vmatpush1.msra.mxu0 %v5042
    %5185 = vmatprep.subr.mxu0 0.0
    %5186 = vmatpush1.msra.mxu0 %v5047
    %5187 = vmatprep.subr.mxu0 0.0
    %5188 = vmatpush1.msra.mxu0 %v5052
    %5189 = vmatprep.mubr.f32.mxu0 1.0
    %5190 = vmatmul.mubr.f32.gmra.mrb[0].mxu0 1.0
    %v5191 = vpop.f32.mrb[0].mxu0
    %v5192 = vadd.f32 %v5122, %v5191
    %v5193 = vpop.f32.mrb[0].mxu0
    %5194 = vdwg.mxu0
    %v5195 = vmul.f32 %v4737, %v4737
    %v5196 = vmul.f32 %v4742, %v4742
    %v5197 = vmul.f32 %v4747, %v4747
    %v5198 = vmul.f32 %v4752, %v4752
    %v5199 = vmul.f32 %v4757, %v4757
    %v5200 = vmul.f32 %v4762, %v4762
    %v5201 = vmul.f32 %v4767, %v4767
    %v5202 = vmul.f32 %v4772, %v4772
    %v5203 = vmul.f32 %v4777, %v4777
    %v5204 = vmul.f32 %v4782, %v4782
    %v5205 = vmul.f32 %v4787, %v4787
    %v5206 = vmul.f32 %v4792, %v4792
    %v5207 = vmul.f32 %v4797, %v4797
    %v5208 = vmul.f32 %v4802, %v4802
    %v5209 = vmul.f32 %v4807, %v4807
    %v5210 = vmul.f32 %v4812, %v4812
    %v5211 = vmul.f32 %v4817, %v4817
    %v5212 = vmul.f32 %v4822, %v4822
    %v5213 = vmul.f32 %v4827, %v4827
    %v5214 = vmul.f32 %v4832, %v4832
    %v5215 = vmul.f32 %v4837, %v4837
    %v5216 = vmul.f32 %v4842, %v4842
    %v5217 = vmul.f32 %v4847, %v4847
    %v5218 = vmul.f32 %v4852, %v4852
    %v5219 = vmul.f32 %v4857, %v4857
    %v5220 = vmul.f32 %v4862, %v4862
    %v5221 = vmul.f32 %v4867, %v4867
    %v5222 = vmul.f32 %v4872, %v4872
    %v5223 = vmul.f32 %v4877, %v4877
    %v5224 = vmul.f32 %v4882, %v4882
    %v5225 = vmul.f32 %v4887, %v4887
    %v5226 = vmul.f32 %v4892, %v4892
    %v5227 = vmul.f32 %v4897, %v4897
    %v5228 = vmul.f32 %v4902, %v4902
    %v5229 = vmul.f32 %v4907, %v4907
    %v5230 = vmul.f32 %v4912, %v4912
    %v5231 = vmul.f32 %v4917, %v4917
    %v5232 = vmul.f32 %v4922, %v4922
    %v5233 = vmul.f32 %v4927, %v4927
    %v5234 = vmul.f32 %v4932, %v4932
    %v5235 = vmul.f32 %v4937, %v4937
    %v5236 = vmul.f32 %v4942, %v4942
    %v5237 = vmul.f32 %v4947, %v4947
    %v5238 = vmul.f32 %v4952, %v4952
    %v5239 = vmul.f32 %v4957, %v4957
    %v5240 = vmul.f32 %v4962, %v4962
    %v5241 = vmul.f32 %v4967, %v4967
    %v5242 = vmul.f32 %v4972, %v4972
    %v5243 = vmul.f32 %v4977, %v4977
    %v5244 = vmul.f32 %v4982, %v4982
    %v5245 = vmul.f32 %v4987, %v4987
    %v5246 = vmul.f32 %v4992, %v4992
    %v5247 = vmul.f32 %v4997, %v4997
    %v5248 = vmul.f32 %v5002, %v5002
    %v5249 = vmul.f32 %v5007, %v5007
    %v5250 = vmul.f32 %v5012, %v5012
    %v5251 = vmul.f32 %v5017, %v5017
    %v5252 = vmul.f32 %v5022, %v5022
    %v5253 = vmul.f32 %v5027, %v5027
    %v5254 = vmul.f32 %v5032, %v5032
    %v5255 = vmul.f32 %v5037, %v5037
    %v5256 = vmul.f32 %v5042, %v5042
    %v5257 = vmul.f32 %v5047, %v5047
    %v5258 = vmul.f32 %v5052, %v5052
    %5259 = vmatprep.subr.mxu0 0.0
    %5260 = vmatpush1.msra.mxu0 %v5195
    %5261 = vmatprep.subr.mxu0 0.0
    %5262 = vmatpush1.msra.mxu0 %v5196
    %5263 = vmatprep.subr.mxu0 0.0
    %5264 = vmatpush1.msra.mxu0 %v5197
    %5265 = vmatprep.subr.mxu0 0.0
    %5266 = vmatpush1.msra.mxu0 %v5198
    %5267 = vmatprep.subr.mxu0 0.0
    %5268 = vmatpush1.msra.mxu0 %v5199
    %5269 = vmatprep.subr.mxu0 0.0
    %5270 = vmatpush1.msra.mxu0 %v5200
    %5271 = vmatprep.subr.mxu0 0.0
    %5272 = vmatpush1.msra.mxu0 %v5201
    %5273 = vmatprep.subr.mxu0 0.0
    %5274 = vmatpush1.msra.mxu0 %v5202
    %5275 = vmatprep.subr.mxu0 0.0
    %5276 = vmatpush1.msra.mxu0 %v5203
    %5277 = vmatprep.subr.mxu0 0.0
    %5278 = vmatpush1.msra.mxu0 %v5204
    %5279 = vmatprep.subr.mxu0 0.0
    %5280 = vmatpush1.msra.mxu0 %v5205
    %5281 = vmatprep.subr.mxu0 0.0
    %5282 = vmatpush1.msra.mxu0 %v5206
    %5283 = vmatprep.subr.mxu0 0.0
    %5284 = vmatpush1.msra.mxu0 %v5207
    %5285 = vmatprep.subr.mxu0 0.0
    %5286 = vmatpush1.msra.mxu0 %v5208
    %5287 = vmatprep.subr.mxu0 0.0
    %5288 = vmatpush1.msra.mxu0 %v5209
    %5289 = vmatprep.subr.mxu0 0.0
    %5290 = vmatpush1.msra.mxu0 %v5210
    %5291 = vmatprep.subr.mxu0 0.0
    %5292 = vmatpush1.msra.mxu0 %v5211
    %5293 = vmatprep.subr.mxu0 0.0
    %5294 = vmatpush1.msra.mxu0 %v5212
    %5295 = vmatprep.subr.mxu0 0.0
    %5296 = vmatpush1.msra.mxu0 %v5213
    %5297 = vmatprep.subr.mxu0 0.0
    %5298 = vmatpush1.msra.mxu0 %v5214
    %5299 = vmatprep.subr.mxu0 0.0
    %5300 = vmatpush1.msra.mxu0 %v5215
    %5301 = vmatprep.subr.mxu0 0.0
    %5302 = vmatpush1.msra.mxu0 %v5216
    %5303 = vmatprep.subr.mxu0 0.0
    %5304 = vmatpush1.msra.mxu0 %v5217
    %5305 = vmatprep.subr.mxu0 0.0
    %5306 = vmatpush1.msra.mxu0 %v5218
    %5307 = vmatprep.subr.mxu0 0.0
    %5308 = vmatpush1.msra.mxu0 %v5219
    %5309 = vmatprep.subr.mxu0 0.0
    %5310 = vmatpush1.msra.mxu0 %v5220
    %5311 = vmatprep.subr.mxu0 0.0
    %5312 = vmatpush1.msra.mxu0 %v5221
    %5313 = vmatprep.subr.mxu0 0.0
    %5314 = vmatpush1.msra.mxu0 %v5222
    %5315 = vmatprep.subr.mxu0 0.0
    %5316 = vmatpush1.msra.mxu0 %v5223
    %5317 = vmatprep.subr.mxu0 0.0
    %5318 = vmatpush1.msra.mxu0 %v5224
    %5319 = vmatprep.subr.mxu0 0.0
    %5320 = vmatpush1.msra.mxu0 %v5225
    %5321 = vmatprep.subr.mxu0 0.0
    %5322 = vmatpush1.msra.mxu0 %v5226
    %5323 = vmatprep.mubr.f32.mxu0 1.0
    %5324 = vmatmul.mubr.f32.gmra.mrb[0].mxu0 1.0
    %v5325 = vpop.f32.mrb[0].mxu0
    %v5326 = vadd.f32 0.0, %v5325
    %v5327 = vpop.f32.mrb[0].mxu0
    %5328 = vdwg.mxu0
    %5329 = vmatprep.subr.mxu0 0.0
    %5330 = vmatpush1.msra.mxu0 %v5227
    %5331 = vmatprep.subr.mxu0 0.0
    %5332 = vmatpush1.msra.mxu0 %v5228
    %5333 = vmatprep.subr.mxu0 0.0
    %5334 = vmatpush1.msra.mxu0 %v5229
    %5335 = vmatprep.subr.mxu0 0.0
    %5336 = vmatpush1.msra.mxu0 %v5230
    %5337 = vmatprep.subr.mxu0 0.0
    %5338 = vmatpush1.msra.mxu0 %v5231
    %5339 = vmatprep.subr.mxu0 0.0
    %5340 = vmatpush1.msra.mxu0 %v5232
    %5341 = vmatprep.subr.mxu0 0.0
    %5342 = vmatpush1.msra.mxu0 %v5233
    %5343 = vmatprep.subr.mxu0 0.0
    %5344 = vmatpush1.msra.mxu0 %v5234
    %5345 = vmatprep.subr.mxu0 0.0
    %5346 = vmatpush1.msra.mxu0 %v5235
    %5347 = vmatprep.subr.mxu0 0.0
    %5348 = vmatpush1.msra.mxu0 %v5236
    %5349 = vmatprep.subr.mxu0 0.0
    %5350 = vmatpush1.msra.mxu0 %v5237
    %5351 = vmatprep.subr.mxu0 0.0
    %5352 = vmatpush1.msra.mxu0 %v5238
    %5353 = vmatprep.subr.mxu0 0.0
    %5354 = vmatpush1.msra.mxu0 %v5239
    %5355 = vmatprep.subr.mxu0 0.0
    %5356 = vmatpush1.msra.mxu0 %v5240
    %5357 = vmatprep.subr.mxu0 0.0
    %5358 = vmatpush1.msra.mxu0 %v5241
    %5359 = vmatprep.subr.mxu0 0.0
    %5360 = vmatpush1.msra.mxu0 %v5242
    %5361 = vmatprep.subr.mxu0 0.0
    %5362 = vmatpush1.msra.mxu0 %v5243
    %5363 = vmatprep.subr.mxu0 0.0
    %5364 = vmatpush1.msra.mxu0 %v5244
    %5365 = vmatprep.subr.mxu0 0.0
    %5366 = vmatpush1.msra.mxu0 %v5245
    %5367 = vmatprep.subr.mxu0 0.0
    %5368 = vmatpush1.msra.mxu0 %v5246
    %5369 = vmatprep.subr.mxu0 0.0
    %5370 = vmatpush1.msra.mxu0 %v5247
    %5371 = vmatprep.subr.mxu0 0.0
    %5372 = vmatpush1.msra.mxu0 %v5248
    %5373 = vmatprep.subr.mxu0 0.0
    %5374 = vmatpush1.msra.mxu0 %v5249
    %5375 = vmatprep.subr.mxu0 0.0
    %5376 = vmatpush1.msra.mxu0 %v5250
    %5377 = vmatprep.subr.mxu0 0.0
    %5378 = vmatpush1.msra.mxu0 %v5251
    %5379 = vmatprep.subr.mxu0 0.0
    %5380 = vmatpush1.msra.mxu0 %v5252
    %5381 = vmatprep.subr.mxu0 0.0
    %5382 = vmatpush1.msra.mxu0 %v5253
    %5383 = vmatprep.subr.mxu0 0.0
    %5384 = vmatpush1.msra.mxu0 %v5254
    %5385 = vmatprep.subr.mxu0 0.0
    %5386 = vmatpush1.msra.mxu0 %v5255
    %5387 = vmatprep.subr.mxu0 0.0
    %5388 = vmatpush1.msra.mxu0 %v5256
    %5389 = vmatprep.subr.mxu0 0.0
    %5390 = vmatpush1.msra.mxu0 %v5257
    %5391 = vmatprep.subr.mxu0 0.0
    %5392 = vmatpush1.msra.mxu0 %v5258
    %5393 = vmatprep.mubr.f32.mxu0 1.0
    %5394 = vmatmul.mubr.f32.gmra.mrb[0].mxu0 1.0
    %v5395 = vpop.f32.mrb[0].mxu0
    %v5396 = vadd.f32 %v5326, %v5395
    %v5397 = vpop.f32.mrb[0].mxu0
    %5398 = vdwg.mxu0
    %v5399 = vmul.f32 %v5192, 0.001953125
    %v5400 = vmul.f32 %v5396, 0.001953125
    %v5401 = vmul.f32 %v5399, %v5399
    %v5402 = vsub.f32 %v5400, %v5401
    %v5403 = vld [vmem:[%s6] sm:$0x1]
    %v5404 = vadd.f32 %v5402, 1e-05
    %v5405 = vrsqrt.pop %v5404
    %v5406 = vmul.f32 %v5403, %v5405
    %v5407 = vld [vmem:[%s7] sm:$0x1]
    %v5408 = vmul.f32 %v5399, %v5406
    %v5409 = vsub.f32 %v5407, %v5408
    %v5411 = vlaneseq
    %v5412 = vshrl.u32 %v5411, 7
    %v5413 = vsub.s32 0, %v5412
    %v5414 = vrot.slane %v5406, %v5413
    %v5416 = vmul.f32 %v4737, %v5414
    %v5417 = vmul.f32 %v4742, %v5414
    %v5418 = vmul.f32 %v4747, %v5414
    %v5419 = vmul.f32 %v4752, %v5414
    %v5420 = vmul.f32 %v4757, %v5414
    %v5421 = vmul.f32 %v4762, %v5414
    %v5422 = vmul.f32 %v4767, %v5414
    %v5423 = vmul.f32 %v4772, %v5414
    %v5424 = vmul.f32 %v4777, %v5414
    %v5425 = vmul.f32 %v4782, %v5414
    %v5426 = vmul.f32 %v4787, %v5414
    %v5427 = vmul.f32 %v4792, %v5414
    %v5428 = vmul.f32 %v4797, %v5414
    %v5429 = vmul.f32 %v4802, %v5414
    %v5430 = vmul.f32 %v4807, %v5414
    %v5431 = vmul.f32 %v4812, %v5414
    %v5432 = vmul.f32 %v4817, %v5414
    %v5433 = vmul.f32 %v4822, %v5414
    %v5434 = vmul.f32 %v4827, %v5414
    %v5435 = vmul.f32 %v4832, %v5414
    %v5436 = vmul.f32 %v4837, %v5414
    %v5437 = vmul.f32 %v4842, %v5414
    %v5438 = vmul.f32 %v4847, %v5414
    %v5439 = vmul.f32 %v4852, %v5414
    %v5440 = vmul.f32 %v4857, %v5414
    %v5441 = vmul.f32 %v4862, %v5414
    %v5442 = vmul.f32 %v4867, %v5414
    %v5443 = vmul.f32 %v4872, %v5414
    %v5444 = vmul.f32 %v4877, %v5414
    %v5445 = vmul.f32 %v4882, %v5414
    %v5446 = vmul.f32 %v4887, %v5414
    %v5447 = vmul.f32 %v4892, %v5414
    %v5448 = vmul.f32 %v4897, %v5414
    %v5449 = vmul.f32 %v4902, %v5414
    %v5450 = vmul.f32 %v4907, %v5414
    %v5451 = vmul.f32 %v4912, %v5414
    %v5452 = vmul.f32 %v4917, %v5414
    %v5453 = vmul.f32 %v4922, %v5414
    %v5454 = vmul.f32 %v4927, %v5414
    %v5455 = vmul.f32 %v4932, %v5414
    %v5456 = vmul.f32 %v4937, %v5414
    %v5457 = vmul.f32 %v4942, %v5414
    %v5458 = vmul.f32 %v4947, %v5414
    %v5459 = vmul.f32 %v4952, %v5414
    %v5460 = vmul.f32 %v4957, %v5414
    %v5461 = vmul.f32 %v4962, %v5414
    %v5462 = vmul.f32 %v4967, %v5414
    %v5463 = vmul.f32 %v4972, %v5414
    %v5464 = vmul.f32 %v4977, %v5414
    %v5465 = vmul.f32 %v4982, %v5414
    %v5466 = vmul.f32 %v4987, %v5414
    %v5467 = vmul.f32 %v4992, %v5414
    %v5468 = vmul.f32 %v4997, %v5414
    %v5469 = vmul.f32 %v5002, %v5414
    %v5470 = vmul.f32 %v5007, %v5414
    %v5471 = vmul.f32 %v5012, %v5414
    %v5472 = vmul.f32 %v5017, %v5414
    %v5473 = vmul.f32 %v5022, %v5414
    %v5474 = vmul.f32 %v5027, %v5414
    %v5475 = vmul.f32 %v5032, %v5414
    %v5476 = vmul.f32 %v5037, %v5414
    %v5477 = vmul.f32 %v5042, %v5414
    %v5478 = vmul.f32 %v5047, %v5414
    %v5479 = vmul.f32 %v5052, %v5414
    %v5481 = vlaneseq
    %v5482 = vshrl.u32 %v5481, 7
    %v5483 = vsub.s32 0, %v5482
    %v5484 = vrot.slane %v5409, %v5483
    %v5486 = vadd.f32 %v5416, %v5484
    %v5487 = vadd.f32 %v5417, %v5484
    %v5488 = vadd.f32 %v5418, %v5484
    %v5489 = vadd.f32 %v5419, %v5484
    %v5490 = vadd.f32 %v5420, %v5484
    %v5491 = vadd.f32 %v5421, %v5484
    %v5492 = vadd.f32 %v5422, %v5484
    %v5493 = vadd.f32 %v5423, %v5484
    %v5494 = vadd.f32 %v5424, %v5484
    %v5495 = vadd.f32 %v5425, %v5484
    %v5496 = vadd.f32 %v5426, %v5484
    %v5497 = vadd.f32 %v5427, %v5484
    %v5498 = vadd.f32 %v5428, %v5484
    %v5499 = vadd.f32 %v5429, %v5484
    %v5500 = vadd.f32 %v5430, %v5484
    %v5501 = vadd.f32 %v5431, %v5484
    %v5502 = vadd.f32 %v5432, %v5484
    %v5503 = vadd.f32 %v5433, %v5484
    %v5504 = vadd.f32 %v5434, %v5484
    %v5505 = vadd.f32 %v5435, %v5484
    %v5506 = vadd.f32 %v5436, %v5484
    %v5507 = vadd.f32 %v5437, %v5484
    %v5508 = vadd.f32 %v5438, %v5484
    %v5509 = vadd.f32 %v5439, %v5484
    %v5510 = vadd.f32 %v5440, %v5484
    %v5511 = vadd.f32 %v5441, %v5484
    %v5512 = vadd.f32 %v5442, %v5484
    %v5513 = vadd.f32 %v5443, %v5484
    %v5514 = vadd.f32 %v5444, %v5484
    %v5515 = vadd.f32 %v5445, %v5484
    %v5516 = vadd.f32 %v5446, %v5484
    %v5517 = vadd.f32 %v5447, %v5484
    %v5518 = vadd.f32 %v5448, %v5484
    %v5519 = vadd.f32 %v5449, %v5484
    %v5520 = vadd.f32 %v5450, %v5484
    %v5521 = vadd.f32 %v5451, %v5484
    %v5522 = vadd.f32 %v5452, %v5484
    %v5523 = vadd.f32 %v5453, %v5484
    %v5524 = vadd.f32 %v5454, %v5484
    %v5525 = vadd.f32 %v5455, %v5484
    %v5526 = vadd.f32 %v5456, %v5484
    %v5527 = vadd.f32 %v5457, %v5484
    %v5528 = vadd.f32 %v5458, %v5484
    %v5529 = vadd.f32 %v5459, %v5484
    %v5530 = vadd.f32 %v5460, %v5484
    %v5531 = vadd.f32 %v5461, %v5484
    %v5532 = vadd.f32 %v5462, %v5484
    %v5533 = vadd.f32 %v5463, %v5484
    %v5534 = vadd.f32 %v5464, %v5484
    %v5535 = vadd.f32 %v5465, %v5484
    %v5536 = vadd.f32 %v5466, %v5484
    %v5537 = vadd.f32 %v5467, %v5484
    %v5538 = vadd.f32 %v5468, %v5484
    %v5539 = vadd.f32 %v5469, %v5484
    %v5540 = vadd.f32 %v5470, %v5484
    %v5541 = vadd.f32 %v5471, %v5484
    %v5542 = vadd.f32 %v5472, %v5484
    %v5543 = vadd.f32 %v5473, %v5484
    %v5544 = vadd.f32 %v5474, %v5484
    %v5545 = vadd.f32 %v5475, %v5484
    %v5546 = vadd.f32 %v5476, %v5484
    %v5547 = vadd.f32 %v5477, %v5484
    %v5548 = vadd.f32 %v5478, %v5484
    %v5549 = vadd.f32 %v5479, %v5484
    %v5550 = vmax.f32 %v5486, 0.0
    %v5551 = vmax.f32 %v5487, 0.0
    %v5552 = vmax.f32 %v5488, 0.0
    %v5553 = vmax.f32 %v5489, 0.0
    %v5554 = vmax.f32 %v5490, 0.0
    %v5555 = vmax.f32 %v5491, 0.0
    %v5556 = vmax.f32 %v5492, 0.0
    %v5557 = vmax.f32 %v5493, 0.0
    %v5558 = vmax.f32 %v5494, 0.0
    %v5559 = vmax.f32 %v5495, 0.0
    %v5560 = vmax.f32 %v5496, 0.0
    %v5561 = vmax.f32 %v5497, 0.0
    %v5562 = vmax.f32 %v5498, 0.0
    %v5563 = vmax.f32 %v5499, 0.0
    %v5564 = vmax.f32 %v5500, 0.0
    %v5565 = vmax.f32 %v5501, 0.0
    %v5566 = vmax.f32 %v5502, 0.0
    %v5567 = vmax.f32 %v5503, 0.0
    %v5568 = vmax.f32 %v5504, 0.0
    %v5569 = vmax.f32 %v5505, 0.0
    %v5570 = vmax.f32 %v5506, 0.0
    %v5571 = vmax.f32 %v5507, 0.0
    %v5572 = vmax.f32 %v5508, 0.0
    %v5573 = vmax.f32 %v5509, 0.0
    %v5574 = vmax.f32 %v5510, 0.0
    %v5575 = vmax.f32 %v5511, 0.0
    %v5576 = vmax.f32 %v5512, 0.0
    %v5577 = vmax.f32 %v5513, 0.0
    %v5578 = vmax.f32 %v5514, 0.0
    %v5579 = vmax.f32 %v5515, 0.0
    %v5580 = vmax.f32 %v5516, 0.0
    %v5581 = vmax.f32 %v5517, 0.0
    %v5582 = vmax.f32 %v5518, 0.0
    %v5583 = vmax.f32 %v5519, 0.0
    %v5584 = vmax.f32 %v5520, 0.0
    %v5585 = vmax.f32 %v5521, 0.0
    %v5586 = vmax.f32 %v5522, 0.0
    %v5587 = vmax.f32 %v5523, 0.0
    %v5588 = vmax.f32 %v5524, 0.0
    %v5589 = vmax.f32 %v5525, 0.0
    %v5590 = vmax.f32 %v5526, 0.0
    %v5591 = vmax.f32 %v5527, 0.0
    %v5592 = vmax.f32 %v5528, 0.0
    %v5593 = vmax.f32 %v5529, 0.0
    %v5594 = vmax.f32 %v5530, 0.0
    %v5595 = vmax.f32 %v5531, 0.0
    %v5596 = vmax.f32 %v5532, 0.0
    %v5597 = vmax.f32 %v5533, 0.0
    %v5598 = vmax.f32 %v5534, 0.0
    %v5599 = vmax.f32 %v5535, 0.0
    %v5600 = vmax.f32 %v5536, 0.0
    %v5601 = vmax.f32 %v5537, 0.0
    %v5602 = vmax.f32 %v5538, 0.0
    %v5603 = vmax.f32 %v5539, 0.0
    %v5604 = vmax.f32 %v5540, 0.0
    %v5605 = vmax.f32 %v5541, 0.0
    %v5606 = vmax.f32 %v5542, 0.0
    %v5607 = vmax.f32 %v5543, 0.0
    %v5608 = vmax.f32 %v5544, 0.0
    %v5609 = vmax.f32 %v5545, 0.0
    %v5610 = vmax.f32 %v5546, 0.0
    %v5611 = vmax.f32 %v5547, 0.0
    %v5612 = vmax.f32 %v5548, 0.0
    %v5613 = vmax.f32 %v5549, 0.0
    %v5614 = vld [vmem:[#allocation10] sm:$0xff]
    %v5615 = vld [vmem:[#allocation10 + $0x8] sm:$0xff]
    %v5616 = vld [vmem:[#allocation10 + $0x10] sm:$0xff]
    %v5617 = vld [vmem:[#allocation10 + $0x18] sm:$0xff]
    %v5618 = vld [vmem:[#allocation10 + $0x20] sm:$0xff]
    %v5619 = vld [vmem:[#allocation10 + $0x28] sm:$0xff]
    %v5620 = vld [vmem:[#allocation10 + $0x30] sm:$0xff]
    %v5621 = vld [vmem:[#allocation10 + $0x38] sm:$0xff]
    %v5622 = vld [vmem:[#allocation10 + $0x40] sm:$0xff]
    %v5623 = vld [vmem:[#allocation10 + $0x48] sm:$0xff]
    %v5624 = vld [vmem:[#allocation10 + $0x50] sm:$0xff]
    %v5625 = vld [vmem:[#allocation10 + $0x58] sm:$0xff]
    %v5626 = vld [vmem:[#allocation10 + $0x60] sm:$0xff]
    %v5627 = vld [vmem:[#allocation10 + $0x68] sm:$0xff]
    %v5628 = vld [vmem:[#allocation10 + $0x70] sm:$0xff]
    %v5629 = vld [vmem:[#allocation10 + $0x78] sm:$0xff]
    %5630 = vmatprep.subr.mxu0 0.0
    %5631 = vmatpush1.msra.mxu0 %v5614
    %5632 = vmatprep.subr.mxu0 0.0
    %5633 = vmatpush1.msra.mxu0 %v5615
    %5634 = vmatprep.subr.mxu0 0.0
    %5635 = vmatpush1.msra.mxu0 %v5616
    %5636 = vmatprep.subr.mxu0 0.0
    %5637 = vmatpush1.msra.mxu0 %v5617
    %5638 = vmatprep.subr.mxu0 0.0
    %5639 = vmatpush1.msra.mxu0 %v5618
    %5640 = vmatprep.subr.mxu0 0.0
    %5641 = vmatpush1.msra.mxu0 %v5619
    %5642 = vmatprep.subr.mxu0 0.0
    %5643 = vmatpush1.msra.mxu0 %v5620
    %5644 = vmatprep.subr.mxu0 0.0
    %5645 = vmatpush1.msra.mxu0 %v5621
    %5646 = vmatprep.subr.mxu0 0.0
    %5647 = vmatpush1.msra.mxu0 %v5622
    %5648 = vmatprep.subr.mxu0 0.0
    %5649 = vmatpush1.msra.mxu0 %v5623
    %5650 = vmatprep.subr.mxu0 0.0
    %5651 = vmatpush1.msra.mxu0 %v5624
    %5652 = vmatprep.subr.mxu0 0.0
    %5653 = vmatpush1.msra.mxu0 %v5625
    %5654 = vmatprep.subr.mxu0 0.0
    %5655 = vmatpush1.msra.mxu0 %v5626
    %5656 = vmatprep.subr.mxu0 0.0
    %5657 = vmatpush1.msra.mxu0 %v5627
    %5658 = vmatprep.subr.mxu0 0.0
    %5659 = vmatpush1.msra.mxu0 %v5628
    %5660 = vmatprep.subr.mxu0 0.0
    %5661 = vmatpush1.msra.mxu0 %v5629
    %5662 = vmatprep.subr.mxu0 0.0
    %5663 = vmatpush1.msra.mxu0 0.0
    %5664 = vmatprep.subr.mxu0 0.0
    %5665 = vmatpush1.msra.mxu0 0.0
    %5666 = vmatprep.subr.mxu0 0.0
    %5667 = vmatpush1.msra.mxu0 0.0
    %5668 = vmatprep.subr.mxu0 0.0
    %5669 = vmatpush1.msra.mxu0 0.0
    %5670 = vmatprep.subr.mxu0 0.0
    %5671 = vmatpush1.msra.mxu0 0.0
    %5672 = vmatprep.subr.mxu0 0.0
    %5673 = vmatpush1.msra.mxu0 0.0
    %5674 = vmatprep.subr.mxu0 0.0
    %5675 = vmatpush1.msra.mxu0 0.0
    %5676 = vmatprep.subr.mxu0 0.0
    %5677 = vmatpush1.msra.mxu0 0.0
    %5678 = vmatprep.subr.mxu0 0.0
    %5679 = vmatpush1.msra.mxu0 0.0
    %5680 = vmatprep.subr.mxu0 0.0
    %5681 = vmatpush1.msra.mxu0 0.0
    %5682 = vmatprep.subr.mxu0 0.0
    %5683 = vmatpush1.msra.mxu0 0.0
    %5684 = vmatprep.subr.mxu0 0.0
    %5685 = vmatpush1.msra.mxu0 0.0
    %5686 = vmatprep.subr.mxu0 0.0
    %5687 = vmatpush1.msra.mxu0 0.0
    %5688 = vmatprep.subr.mxu0 0.0
    %5689 = vmatpush1.msra.mxu0 0.0
    %5690 = vmatprep.subr.mxu0 0.0
    %5691 = vmatpush1.msra.mxu0 0.0
    %5692 = vmatprep.subr.mxu0 0.0
    %5693 = vmatpush1.msra.mxu0 0.0
    %5694 = vmatprep.mubr.f32.mxu0 0.0
    %5695 = vmatmul.mubr.f32.gmra.mrb[0].mxu0 %v5550
    %v5696 = vpop.f32.mrb[0].mxu0
    %v5697 = vadd.f32 0.0, %v5696
    %v5698 = vpop.f32.mrb[0].mxu0
    %5699 = vmatprep.mubr.f32.mxu0 0.0
    %5700 = vmatmul.mubr.f32.gmra.mrb[0].mxu0 %v5551
    %v5701 = vpop.f32.mrb[0].mxu0
    %v5702 = vadd.f32 0.0, %v5701
    %v5703 = vpop.f32.mrb[0].mxu0
    %5704 = vmatprep.mubr.f32.mxu0 0.0
    %5705 = vmatmul.mubr.f32.gmra.mrb[0].mxu0 %v5552
    %v5706 = vpop.f32.mrb[0].mxu0
    %v5707 = vadd.f32 0.0, %v5706
    %v5708 = vpop.f32.mrb[0].mxu0
    %5709 = vmatprep.mubr.f32.mxu0 0.0
    %5710 = vmatmul.mubr.f32.gmra.mrb[0].mxu0 %v5553
    %v5711 = vpop.f32.mrb[0].mxu0
    %v5712 = vadd.f32 0.0, %v5711
    %v5713 = vpop.f32.mrb[0].mxu0
    %5714 = vmatprep.mubr.f32.mxu0 0.0
    %5715 = vmatmul.mubr.f32.gmra.mrb[0].mxu0 %v5554
    %v5716 = vpop.f32.mrb[0].mxu0
    %v5717 = vadd.f32 0.0, %v5716
    %v5718 = vpop.f32.mrb[0].mxu0
    %5719 = vmatprep.mubr.f32.mxu0 0.0
    %5720 = vmatmul.mubr.f32.gmra.mrb[0].mxu0 %v5555
    %v5721 = vpop.f32.mrb[0].mxu0
    %v5722 = vadd.f32 0.0, %v5721
    %v5723 = vpop.f32.mrb[0].mxu0
    %5724 = vmatprep.mubr.f32.mxu0 0.0
    %5725 = vmatmul.mubr.f32.gmra.mrb[0].mxu0 %v5556
    %v5726 = vpop.f32.mrb[0].mxu0
    %v5727 = vadd.f32 0.0, %v5726
    %v5728 = vpop.f32.mrb[0].mxu0
    %5729 = vmatprep.mubr.f32.mxu0 0.0
    %5730 = vmatmul.mubr.f32.gmra.mrb[0].mxu0 %v5557
    %v5731 = vpop.f32.mrb[0].mxu0
    %v5732 = vadd.f32 0.0, %v5731
    %v5733 = vpop.f32.mrb[0].mxu0
    %5734 = vmatprep.mubr.f32.mxu0 0.0
    %5735 = vmatmul.mubr.f32.gmra.mrb[0].mxu0 %v5558
    %v5736 = vpop.f32.mrb[0].mxu0
    %v5737 = vadd.f32 0.0, %v5736
    %v5738 = vpop.f32.mrb[0].mxu0
    %5739 = vmatprep.mubr.f32.mxu0 0.0
    %5740 = vmatmul.mubr.f32.gmra.mrb[0].mxu0 %v5559
    %v5741 = vpop.f32.mrb[0].mxu0
    %v5742 = vadd.f32 0.0, %v5741
    %v5743 = vpop.f32.mrb[0].mxu0
    %5744 = vmatprep.mubr.f32.mxu0 0.0
    %5745 = vmatmul.mubr.f32.gmra.mrb[0].mxu0 %v5560
    %v5746 = vpop.f32.mrb[0].mxu0
    %v5747 = vadd.f32 0.0, %v5746
    %v5748 = vpop.f32.mrb[0].mxu0
    %5749 = vmatprep.mubr.f32.mxu0 0.0
    %5750 = vmatmul.mubr.f32.gmra.mrb[0].mxu0 %v5561
    %v5751 = vpop.f32.mrb[0].mxu0
    %v5752 = vadd.f32 0.0, %v5751
    %v5753 = vpop.f32.mrb[0].mxu0
    %5754 = vmatprep.mubr.f32.mxu0 0.0
    %5755 = vmatmul.mubr.f32.gmra.mrb[0].mxu0 %v5562
    %v5756 = vpop.f32.mrb[0].mxu0
    %v5757 = vadd.f32 0.0, %v5756
    %v5758 = vpop.f32.mrb[0].mxu0
    %5759 = vmatprep.mubr.f32.mxu0 0.0
    %5760 = vmatmul.mubr.f32.gmra.mrb[0].mxu0 %v5563
    %v5761 = vpop.f32.mrb[0].mxu0
    %v5762 = vadd.f32 0.0, %v5761
    %v5763 = vpop.f32.mrb[0].mxu0
    %5764 = vmatprep.mubr.f32.mxu0 0.0
    %5765 = vmatmul.mubr.f32.gmra.mrb[0].mxu0 %v5564
    %v5766 = vpop.f32.mrb[0].mxu0
    %v5767 = vadd.f32 0.0, %v5766
    %v5768 = vpop.f32.mrb[0].mxu0
    %5769 = vmatprep.mubr.f32.mxu0 0.0
    %5770 = vmatmul.mubr.f32.gmra.mrb[0].mxu0 %v5565
    %v5771 = vpop.f32.mrb[0].mxu0
    %v5772 = vadd.f32 0.0, %v5771
    %v5773 = vpop.f32.mrb[0].mxu0
    %5774 = vmatprep.mubr.f32.mxu0 0.0
    %5775 = vmatmul.mubr.f32.gmra.mrb[0].mxu0 %v5566
    %v5776 = vpop.f32.mrb[0].mxu0
    %v5777 = vadd.f32 0.0, %v5776
    %v5778 = vpop.f32.mrb[0].mxu0
    %5779 = vmatprep.mubr.f32.mxu0 0.0
    %5780 = vmatmul.mubr.f32.gmra.mrb[0].mxu0 %v5567
    %v5781 = vpop.f32.mrb[0].mxu0
    %v5782 = vadd.f32 0.0, %v5781
    %v5783 = vpop.f32.mrb[0].mxu0
    %5784 = vmatprep.mubr.f32.mxu0 0.0
    %5785 = vmatmul.mubr.f32.gmra.mrb[0].mxu0 %v5568
    %v5786 = vpop.f32.mrb[0].mxu0
    %v5787 = vadd.f32 0.0, %v5786
    %v5788 = vpop.f32.mrb[0].mxu0
    %5789 = vmatprep.mubr.f32.mxu0 0.0
    %5790 = vmatmul.mubr.f32.gmra.mrb[0].mxu0 %v5569
    %v5791 = vpop.f32.mrb[0].mxu0
    %v5792 = vadd.f32 0.0, %v5791
    %v5793 = vpop.f32.mrb[0].mxu0
    %5794 = vmatprep.mubr.f32.mxu0 0.0
    %5795 = vmatmul.mubr.f32.gmra.mrb[0].mxu0 %v5570
    %v5796 = vpop.f32.mrb[0].mxu0
    %v5797 = vadd.f32 0.0, %v5796
    %v5798 = vpop.f32.mrb[0].mxu0
    %5799 = vmatprep.mubr.f32.mxu0 0.0
    %5800 = vmatmul.mubr.f32.gmra.mrb[0].mxu0 %v5571
    %v5801 = vpop.f32.mrb[0].mxu0
    %v5802 = vadd.f32 0.0, %v5801
    %v5803 = vpop.f32.mrb[0].mxu0
    %5804 = vmatprep.mubr.f32.mxu0 0.0
    %5805 = vmatmul.mubr.f32.gmra.mrb[0].mxu0 %v5572
    %v5806 = vpop.f32.mrb[0].mxu0
    %v5807 = vadd.f32 0.0, %v5806
    %v5808 = vpop.f32.mrb[0].mxu0
    %5809 = vmatprep.mubr.f32.mxu0 0.0
    %5810 = vmatmul.mubr.f32.gmra.mrb[0].mxu0 %v5573
    %v5811 = vpop.f32.mrb[0].mxu0
    %v5812 = vadd.f32 0.0, %v5811
    %v5813 = vpop.f32.mrb[0].mxu0
    %5814 = vmatprep.mubr.f32.mxu0 0.0
    %5815 = vmatmul.mubr.f32.gmra.mrb[0].mxu0 %v5574
    %v5816 = vpop.f32.mrb[0].mxu0
    %v5817 = vadd.f32 0.0, %v5816
    %v5818 = vpop.f32.mrb[0].mxu0
    %5819 = vmatprep.mubr.f32.mxu0 0.0
    %5820 = vmatmul.mubr.f32.gmra.mrb[0].mxu0 %v5575
    %v5821 = vpop.f32.mrb[0].mxu0
    %v5822 = vadd.f32 0.0, %v5821
    %v5823 = vpop.f32.mrb[0].mxu0
    %5824 = vmatprep.mubr.f32.mxu0 0.0
    %5825 = vmatmul.mubr.f32.gmra.mrb[0].mxu0 %v5576
    %v5826 = vpop.f32.mrb[0].mxu0
    %v5827 = vadd.f32 0.0, %v5826
    %v5828 = vpop.f32.mrb[0].mxu0
    %5829 = vmatprep.mubr.f32.mxu0 0.0
    %5830 = vmatmul.mubr.f32.gmra.mrb[0].mxu0 %v5577
    %v5831 = vpop.f32.mrb[0].mxu0
    %v5832 = vadd.f32 0.0, %v5831
    %v5833 = vpop.f32.mrb[0].mxu0
    %5834 = vmatprep.mubr.f32.mxu0 0.0
    %5835 = vmatmul.mubr.f32.gmra.mrb[0].mxu0 %v5578
    %v5836 = vpop.f32.mrb[0].mxu0
    %v5837 = vadd.f32 0.0, %v5836
    %v5838 = vpop.f32.mrb[0].mxu0
    %5839 = vmatprep.mubr.f32.mxu0 0.0
    %5840 = vmatmul.mubr.f32.gmra.mrb[0].mxu0 %v5579
    %v5841 = vpop.f32.mrb[0].mxu0
    %v5842 = vadd.f32 0.0, %v5841
    %v5843 = vpop.f32.mrb[0].mxu0
    %5844 = vmatprep.mubr.f32.mxu0 0.0
    %5845 = vmatmul.mubr.f32.gmra.mrb[0].mxu0 %v5580
    %v5846 = vpop.f32.mrb[0].mxu0
    %v5847 = vadd.f32 0.0, %v5846
    %v5848 = vpop.f32.mrb[0].mxu0
    %5849 = vmatprep.mubr.f32.mxu0 0.0
    %5850 = vmatmul.mubr.f32.gmra.mrb[0].mxu0 %v5581
    %v5851 = vpop.f32.mrb[0].mxu0
    %v5852 = vadd.f32 0.0, %v5851
    %v5853 = vpop.f32.mrb[0].mxu0
    %5854 = vmatprep.mubr.f32.mxu0 0.0
    %5855 = vmatmul.mubr.f32.gmra.mrb[0].mxu0 %v5582
    %v5856 = vpop.f32.mrb[0].mxu0
    %v5857 = vadd.f32 0.0, %v5856
    %v5858 = vpop.f32.mrb[0].mxu0
    %5859 = vmatprep.mubr.f32.mxu0 0.0
    %5860 = vmatmul.mubr.f32.gmra.mrb[0].mxu0 %v5583
    %v5861 = vpop.f32.mrb[0].mxu0
    %v5862 = vadd.f32 0.0, %v5861
    %v5863 = vpop.f32.mrb[0].mxu0
    %5864 = vmatprep.mubr.f32.mxu0 0.0
    %5865 = vmatmul.mubr.f32.gmra.mrb[0].mxu0 %v5584
    %v5866 = vpop.f32.mrb[0].mxu0
    %v5867 = vadd.f32 0.0, %v5866
    %v5868 = vpop.f32.mrb[0].mxu0
    %5869 = vmatprep.mubr.f32.mxu0 0.0
    %5870 = vmatmul.mubr.f32.gmra.mrb[0].mxu0 %v5585
    %v5871 = vpop.f32.mrb[0].mxu0
    %v5872 = vadd.f32 0.0, %v5871
    %v5873 = vpop.f32.mrb[0].mxu0
    %5874 = vmatprep.mubr.f32.mxu0 0.0
    %5875 = vmatmul.mubr.f32.gmra.mrb[0].mxu0 %v5586
    %v5876 = vpop.f32.mrb[0].mxu0
    %v5877 = vadd.f32 0.0, %v5876
    %v5878 = vpop.f32.mrb[0].mxu0
    %5879 = vmatprep.mubr.f32.mxu0 0.0
    %5880 = vmatmul.mubr.f32.gmra.mrb[0].mxu0 %v5587
    %v5881 = vpop.f32.mrb[0].mxu0
    %v5882 = vadd.f32 0.0, %v5881
    %v5883 = vpop.f32.mrb[0].mxu0
    %5884 = vmatprep.mubr.f32.mxu0 0.0
    %5885 = vmatmul.mubr.f32.gmra.mrb[0].mxu0 %v5588
    %v5886 = vpop.f32.mrb[0].mxu0
    %v5887 = vadd.f32 0.0, %v5886
    %v5888 = vpop.f32.mrb[0].mxu0
    %5889 = vmatprep.mubr.f32.mxu0 0.0
    %5890 = vmatmul.mubr.f32.gmra.mrb[0].mxu0 %v5589
    %v5891 = vpop.f32.mrb[0].mxu0
    %v5892 = vadd.f32 0.0, %v5891
    %v5893 = vpop.f32.mrb[0].mxu0
    %5894 = vmatprep.mubr.f32.mxu0 0.0
    %5895 = vmatmul.mubr.f32.gmra.mrb[0].mxu0 %v5590
    %v5896 = vpop.f32.mrb[0].mxu0
    %v5897 = vadd.f32 0.0, %v5896
    %v5898 = vpop.f32.mrb[0].mxu0
    %5899 = vmatprep.mubr.f32.mxu0 0.0
    %5900 = vmatmul.mubr.f32.gmra.mrb[0].mxu0 %v5591
    %v5901 = vpop.f32.mrb[0].mxu0
    %v5902 = vadd.f32 0.0, %v5901
    %v5903 = vpop.f32.mrb[0].mxu0
    %5904 = vmatprep.mubr.f32.mxu0 0.0
    %5905 = vmatmul.mubr.f32.gmra.mrb[0].mxu0 %v5592
    %v5906 = vpop.f32.mrb[0].mxu0
    %v5907 = vadd.f32 0.0, %v5906
    %v5908 = vpop.f32.mrb[0].mxu0
    %5909 = vmatprep.mubr.f32.mxu0 0.0
    %5910 = vmatmul.mubr.f32.gmra.mrb[0].mxu0 %v5593
    %v5911 = vpop.f32.mrb[0].mxu0
    %v5912 = vadd.f32 0.0, %v5911
    %v5913 = vpop.f32.mrb[0].mxu0
    %5914 = vmatprep.mubr.f32.mxu0 0.0
    %5915 = vmatmul.mubr.f32.gmra.mrb[0].mxu0 %v5594
    %v5916 = vpop.f32.mrb[0].mxu0
    %v5917 = vadd.f32 0.0, %v5916
    %v5918 = vpop.f32.mrb[0].mxu0
    %5919 = vmatprep.mubr.f32.mxu0 0.0
    %5920 = vmatmul.mubr.f32.gmra.mrb[0].mxu0 %v5595
    %v5921 = vpop.f32.mrb[0].mxu0
    %v5922 = vadd.f32 0.0, %v5921
    %v5923 = vpop.f32.mrb[0].mxu0
    %5924 = vmatprep.mubr.f32.mxu0 0.0
    %5925 = vmatmul.mubr.f32.gmra.mrb[0].mxu0 %v5596
    %v5926 = vpop.f32.mrb[0].mxu0
    %v5927 = vadd.f32 0.0, %v5926
    %v5928 = vpop.f32.mrb[0].mxu0
    %5929 = vmatprep.mubr.f32.mxu0 0.0
    %5930 = vmatmul.mubr.f32.gmra.mrb[0].mxu0 %v5597
    %v5931 = vpop.f32.mrb[0].mxu0
    %v5932 = vadd.f32 0.0, %v5931
    %v5933 = vpop.f32.mrb[0].mxu0
    %5934 = vmatprep.mubr.f32.mxu0 0.0
    %5935 = vmatmul.mubr.f32.gmra.mrb[0].mxu0 %v5598
    %v5936 = vpop.f32.mrb[0].mxu0
    %v5937 = vadd.f32 0.0, %v5936
    %v5938 = vpop.f32.mrb[0].mxu0
    %5939 = vmatprep.mubr.f32.mxu0 0.0
    %5940 = vmatmul.mubr.f32.gmra.mrb[0].mxu0 %v5599
    %v5941 = vpop.f32.mrb[0].mxu0
    %v5942 = vadd.f32 0.0, %v5941
    %v5943 = vpop.f32.mrb[0].mxu0
    %5944 = vmatprep.mubr.f32.mxu0 0.0
    %5945 = vmatmul.mubr.f32.gmra.mrb[0].mxu0 %v5600
    %v5946 = vpop.f32.mrb[0].mxu0
    %v5947 = vadd.f32 0.0, %v5946
    %v5948 = vpop.f32.mrb[0].mxu0
    %5949 = vmatprep.mubr.f32.mxu0 0.0
    %5950 = vmatmul.mubr.f32.gmra.mrb[0].mxu0 %v5601
    %v5951 = vpop.f32.mrb[0].mxu0
    %v5952 = vadd.f32 0.0, %v5951
    %v5953 = vpop.f32.mrb[0].mxu0
    %5954 = vmatprep.mubr.f32.mxu0 0.0
    %5955 = vmatmul.mubr.f32.gmra.mrb[0].mxu0 %v5602
    %v5956 = vpop.f32.mrb[0].mxu0
    %v5957 = vadd.f32 0.0, %v5956
    %v5958 = vpop.f32.mrb[0].mxu0
    %5959 = vmatprep.mubr.f32.mxu0 0.0
    %5960 = vmatmul.mubr.f32.gmra.mrb[0].mxu0 %v5603
    %v5961 = vpop.f32.mrb[0].mxu0
    %v5962 = vadd.f32 0.0, %v5961
    %v5963 = vpop.f32.mrb[0].mxu0
    %5964 = vmatprep.mubr.f32.mxu0 0.0
    %5965 = vmatmul.mubr.f32.gmra.mrb[0].mxu0 %v5604
    %v5966 = vpop.f32.mrb[0].mxu0
    %v5967 = vadd.f32 0.0, %v5966
    %v5968 = vpop.f32.mrb[0].mxu0
    %5969 = vmatprep.mubr.f32.mxu0 0.0
    %5970 = vmatmul.mubr.f32.gmra.mrb[0].mxu0 %v5605
    %v5971 = vpop.f32.mrb[0].mxu0
    %v5972 = vadd.f32 0.0, %v5971
    %v5973 = vpop.f32.mrb[0].mxu0
    %5974 = vmatprep.mubr.f32.mxu0 0.0
    %5975 = vmatmul.mubr.f32.gmra.mrb[0].mxu0 %v5606
    %v5976 = vpop.f32.mrb[0].mxu0
    %v5977 = vadd.f32 0.0, %v5976
    %v5978 = vpop.f32.mrb[0].mxu0
    %5979 = vmatprep.mubr.f32.mxu0 0.0
    %5980 = vmatmul.mubr.f32.gmra.mrb[0].mxu0 %v5607
    %v5981 = vpop.f32.mrb[0].mxu0
    %v5982 = vadd.f32 0.0, %v5981
    %v5983 = vpop.f32.mrb[0].mxu0
    %5984 = vmatprep.mubr.f32.mxu0 0.0
    %5985 = vmatmul.mubr.f32.gmra.mrb[0].mxu0 %v5608
    %v5986 = vpop.f32.mrb[0].mxu0
    %v5987 = vadd.f32 0.0, %v5986
    %v5988 = vpop.f32.mrb[0].mxu0
    %5989 = vmatprep.mubr.f32.mxu0 0.0
    %5990 = vmatmul.mubr.f32.gmra.mrb[0].mxu0 %v5609
    %v5991 = vpop.f32.mrb[0].mxu0
    %v5992 = vadd.f32 0.0, %v5991
    %v5993 = vpop.f32.mrb[0].mxu0
    %5994 = vmatprep.mubr.f32.mxu0 0.0
    %5995 = vmatmul.mubr.f32.gmra.mrb[0].mxu0 %v5610
    %v5996 = vpop.f32.mrb[0].mxu0
    %v5997 = vadd.f32 0.0, %v5996
    %v5998 = vpop.f32.mrb[0].mxu0
    %5999 = vmatprep.mubr.f32.mxu0 0.0
    %6000 = vmatmul.mubr.f32.gmra.mrb[0].mxu0 %v5611
    %v6001 = vpop.f32.mrb[0].mxu0
    %v6002 = vadd.f32 0.0, %v6001
    %v6003 = vpop.f32.mrb[0].mxu0
    %6004 = vmatprep.mubr.f32.mxu0 0.0
    %6005 = vmatmul.mubr.f32.gmra.mrb[0].mxu0 %v5612
    %v6006 = vpop.f32.mrb[0].mxu0
    %v6007 = vadd.f32 0.0, %v6006
    %v6008 = vpop.f32.mrb[0].mxu0
    %6009 = vmatprep.mubr.f32.mxu0 0.0
    %6010 = vmatmul.mubr.f32.gmra.mrb[0].mxu0 %v5613
    %v6011 = vpop.f32.mrb[0].mxu0
    %v6012 = vadd.f32 0.0, %v6011
    %v6013 = vpop.f32.mrb[0].mxu0
    %6014 = vdwg.mxu0
    %6015 = vmatprep.subr.mxu0 0.0
    %6016 = vmatpush1.msra.mxu0 %v5697
    %6017 = vmatprep.subr.mxu0 0.0
    %6018 = vmatpush1.msra.mxu0 %v5702
    %6019 = vmatprep.subr.mxu0 0.0
    %6020 = vmatpush1.msra.mxu0 %v5707
    %6021 = vmatprep.subr.mxu0 0.0
    %6022 = vmatpush1.msra.mxu0 %v5712
    %6023 = vmatprep.subr.mxu0 0.0
    %6024 = vmatpush1.msra.mxu0 %v5717
    %6025 = vmatprep.subr.mxu0 0.0
    %6026 = vmatpush1.msra.mxu0 %v5722
    %6027 = vmatprep.subr.mxu0 0.0
    %6028 = vmatpush1.msra.mxu0 %v5727
    %6029 = vmatprep.subr.mxu0 0.0
    %6030 = vmatpush1.msra.mxu0 %v5732
    %6031 = vmatprep.subr.mxu0 0.0
    %6032 = vmatpush1.msra.mxu0 %v5737
    %6033 = vmatprep.subr.mxu0 0.0
    %6034 = vmatpush1.msra.mxu0 %v5742
    %6035 = vmatprep.subr.mxu0 0.0
    %6036 = vmatpush1.msra.mxu0 %v5747
    %6037 = vmatprep.subr.mxu0 0.0
    %6038 = vmatpush1.msra.mxu0 %v5752
    %6039 = vmatprep.subr.mxu0 0.0
    %6040 = vmatpush1.msra.mxu0 %v5757
    %6041 = vmatprep.subr.mxu0 0.0
    %6042 = vmatpush1.msra.mxu0 %v5762
    %6043 = vmatprep.subr.mxu0 0.0
    %6044 = vmatpush1.msra.mxu0 %v5767
    %6045 = vmatprep.subr.mxu0 0.0
    %6046 = vmatpush1.msra.mxu0 %v5772
    %6047 = vmatprep.subr.mxu0 0.0
    %6048 = vmatpush1.msra.mxu0 %v5777
    %6049 = vmatprep.subr.mxu0 0.0
    %6050 = vmatpush1.msra.mxu0 %v5782
    %6051 = vmatprep.subr.mxu0 0.0
    %6052 = vmatpush1.msra.mxu0 %v5787
    %6053 = vmatprep.subr.mxu0 0.0
    %6054 = vmatpush1.msra.mxu0 %v5792
    %6055 = vmatprep.subr.mxu0 0.0
    %6056 = vmatpush1.msra.mxu0 %v5797
    %6057 = vmatprep.subr.mxu0 0.0
    %6058 = vmatpush1.msra.mxu0 %v5802
    %6059 = vmatprep.subr.mxu0 0.0
    %6060 = vmatpush1.msra.mxu0 %v5807
    %6061 = vmatprep.subr.mxu0 0.0
    %6062 = vmatpush1.msra.mxu0 %v5812
    %6063 = vmatprep.subr.mxu0 0.0
    %6064 = vmatpush1.msra.mxu0 %v5817
    %6065 = vmatprep.subr.mxu0 0.0
    %6066 = vmatpush1.msra.mxu0 %v5822
    %6067 = vmatprep.subr.mxu0 0.0
    %6068 = vmatpush1.msra.mxu0 %v5827
    %6069 = vmatprep.subr.mxu0 0.0
    %6070 = vmatpush1.msra.mxu0 %v5832
    %6071 = vmatprep.subr.mxu0 0.0
    %6072 = vmatpush1.msra.mxu0 %v5837
    %6073 = vmatprep.subr.mxu0 0.0
    %6074 = vmatpush1.msra.mxu0 %v5842
    %6075 = vmatprep.subr.mxu0 0.0
    %6076 = vmatpush1.msra.mxu0 %v5847
    %6077 = vmatprep.subr.mxu0 0.0
    %6078 = vmatpush1.msra.mxu0 %v5852
    %6079 = vmatprep.mubr.f32.mxu0 1.0
    %6080 = vmatmul.mubr.f32.gmra.mrb[0].mxu0 1.0
    %v6081 = vpop.f32.mrb[0].mxu0
    %v6082 = vadd.f32 0.0, %v6081
    %v6083 = vpop.f32.mrb[0].mxu0
    %6084 = vdwg.mxu0
    %6085 = vmatprep.subr.mxu0 0.0
    %6086 = vmatpush1.msra.mxu0 %v5857
    %6087 = vmatprep.subr.mxu0 0.0
    %6088 = vmatpush1.msra.mxu0 %v5862
    %6089 = vmatprep.subr.mxu0 0.0
    %6090 = vmatpush1.msra.mxu0 %v5867
    %6091 = vmatprep.subr.mxu0 0.0
    %6092 = vmatpush1.msra.mxu0 %v5872
    %6093 = vmatprep.subr.mxu0 0.0
    %6094 = vmatpush1.msra.mxu0 %v5877
    %6095 = vmatprep.subr.mxu0 0.0
    %6096 = vmatpush1.msra.mxu0 %v5882
    %6097 = vmatprep.subr.mxu0 0.0
    %6098 = vmatpush1.msra.mxu0 %v5887
    %6099 = vmatprep.subr.mxu0 0.0
    %6100 = vmatpush1.msra.mxu0 %v5892
    %6101 = vmatprep.subr.mxu0 0.0
    %6102 = vmatpush1.msra.mxu0 %v5897
    %6103 = vmatprep.subr.mxu0 0.0
    %6104 = vmatpush1.msra.mxu0 %v5902
    %6105 = vmatprep.subr.mxu0 0.0
    %6106 = vmatpush1.msra.mxu0 %v5907
    %6107 = vmatprep.subr.mxu0 0.0
    %6108 = vmatpush1.msra.mxu0 %v5912
    %6109 = vmatprep.subr.mxu0 0.0
    %6110 = vmatpush1.msra.mxu0 %v5917
    %6111 = vmatprep.subr.mxu0 0.0
    %6112 = vmatpush1.msra.mxu0 %v5922
    %6113 = vmatprep.subr.mxu0 0.0
    %6114 = vmatpush1.msra.mxu0 %v5927
    %6115 = vmatprep.subr.mxu0 0.0
    %6116 = vmatpush1.msra.mxu0 %v5932
    %6117 = vmatprep.subr.mxu0 0.0
    %6118 = vmatpush1.msra.mxu0 %v5937
    %6119 = vmatprep.subr.mxu0 0.0
    %6120 = vmatpush1.msra.mxu0 %v5942
    %6121 = vmatprep.subr.mxu0 0.0
    %6122 = vmatpush1.msra.mxu0 %v5947
    %6123 = vmatprep.subr.mxu0 0.0
    %6124 = vmatpush1.msra.mxu0 %v5952
    %6125 = vmatprep.subr.mxu0 0.0
    %6126 = vmatpush1.msra.mxu0 %v5957
    %6127 = vmatprep.subr.mxu0 0.0
    %6128 = vmatpush1.msra.mxu0 %v5962
    %6129 = vmatprep.subr.mxu0 0.0
    %6130 = vmatpush1.msra.mxu0 %v5967
    %6131 = vmatprep.subr.mxu0 0.0
    %6132 = vmatpush1.msra.mxu0 %v5972
    %6133 = vmatprep.subr.mxu0 0.0
    %6134 = vmatpush1.msra.mxu0 %v5977
    %6135 = vmatprep.subr.mxu0 0.0
    %6136 = vmatpush1.msra.mxu0 %v5982
    %6137 = vmatprep.subr.mxu0 0.0
    %6138 = vmatpush1.msra.mxu0 %v5987
    %6139 = vmatprep.subr.mxu0 0.0
    %6140 = vmatpush1.msra.mxu0 %v5992
    %6141 = vmatprep.subr.mxu0 0.0
    %6142 = vmatpush1.msra.mxu0 %v5997
    %6143 = vmatprep.subr.mxu0 0.0
    %6144 = vmatpush1.msra.mxu0 %v6002
    %6145 = vmatprep.subr.mxu0 0.0
    %6146 = vmatpush1.msra.mxu0 %v6007
    %6147 = vmatprep.subr.mxu0 0.0
    %6148 = vmatpush1.msra.mxu0 %v6012
    %6149 = vmatprep.mubr.f32.mxu0 1.0
    %6150 = vmatmul.mubr.f32.gmra.mrb[0].mxu0 1.0
    %v6151 = vpop.f32.mrb[0].mxu0
    %v6152 = vadd.f32 %v6082, %v6151
    %v6153 = vpop.f32.mrb[0].mxu0
    %6154 = vdwg.mxu0
    %v6155 = vmul.f32 %v5697, %v5697
    %v6156 = vmul.f32 %v5702, %v5702
    %v6157 = vmul.f32 %v5707, %v5707
    %v6158 = vmul.f32 %v5712, %v5712
    %v6159 = vmul.f32 %v5717, %v5717
    %v6160 = vmul.f32 %v5722, %v5722
    %v6161 = vmul.f32 %v5727, %v5727
    %v6162 = vmul.f32 %v5732, %v5732
    %v6163 = vmul.f32 %v5737, %v5737
    %v6164 = vmul.f32 %v5742, %v5742
    %v6165 = vmul.f32 %v5747, %v5747
    %v6166 = vmul.f32 %v5752, %v5752
    %v6167 = vmul.f32 %v5757, %v5757
    %v6168 = vmul.f32 %v5762, %v5762
    %v6169 = vmul.f32 %v5767, %v5767
    %v6170 = vmul.f32 %v5772, %v5772
    %v6171 = vmul.f32 %v5777, %v5777
    %v6172 = vmul.f32 %v5782, %v5782
    %v6173 = vmul.f32 %v5787, %v5787
    %v6174 = vmul.f32 %v5792, %v5792
    %v6175 = vmul.f32 %v5797, %v5797
    %v6176 = vmul.f32 %v5802, %v5802
    %v6177 = vmul.f32 %v5807, %v5807
    %v6178 = vmul.f32 %v5812, %v5812
    %v6179 = vmul.f32 %v5817, %v5817
    %v6180 = vmul.f32 %v5822, %v5822
    %v6181 = vmul.f32 %v5827, %v5827
    %v6182 = vmul.f32 %v5832, %v5832
    %v6183 = vmul.f32 %v5837, %v5837
    %v6184 = vmul.f32 %v5842, %v5842
    %v6185 = vmul.f32 %v5847, %v5847
    %v6186 = vmul.f32 %v5852, %v5852
    %v6187 = vmul.f32 %v5857, %v5857
    %v6188 = vmul.f32 %v5862, %v5862
    %v6189 = vmul.f32 %v5867, %v5867
    %v6190 = vmul.f32 %v5872, %v5872
    %v6191 = vmul.f32 %v5877, %v5877
    %v6192 = vmul.f32 %v5882, %v5882
    %v6193 = vmul.f32 %v5887, %v5887
    %v6194 = vmul.f32 %v5892, %v5892
    %v6195 = vmul.f32 %v5897, %v5897
    %v6196 = vmul.f32 %v5902, %v5902
    %v6197 = vmul.f32 %v5907, %v5907
    %v6198 = vmul.f32 %v5912, %v5912
    %v6199 = vmul.f32 %v5917, %v5917
    %v6200 = vmul.f32 %v5922, %v5922
    %v6201 = vmul.f32 %v5927, %v5927
    %v6202 = vmul.f32 %v5932, %v5932
    %v6203 = vmul.f32 %v5937, %v5937
    %v6204 = vmul.f32 %v5942, %v5942
    %v6205 = vmul.f32 %v5947, %v5947
    %v6206 = vmul.f32 %v5952, %v5952
    %v6207 = vmul.f32 %v5957, %v5957
    %v6208 = vmul.f32 %v5962, %v5962
    %v6209 = vmul.f32 %v5967, %v5967
    %v6210 = vmul.f32 %v5972, %v5972
    %v6211 = vmul.f32 %v5977, %v5977
    %v6212 = vmul.f32 %v5982, %v5982
    %v6213 = vmul.f32 %v5987, %v5987
    %v6214 = vmul.f32 %v5992, %v5992
    %v6215 = vmul.f32 %v5997, %v5997
    %v6216 = vmul.f32 %v6002, %v6002
    %v6217 = vmul.f32 %v6007, %v6007
    %v6218 = vmul.f32 %v6012, %v6012
    %6219 = vmatprep.subr.mxu0 0.0
    %6220 = vmatpush1.msra.mxu0 %v6155
    %6221 = vmatprep.subr.mxu0 0.0
    %6222 = vmatpush1.msra.mxu0 %v6156
    %6223 = vmatprep.subr.mxu0 0.0
    %6224 = vmatpush1.msra.mxu0 %v6157
    %6225 = vmatprep.subr.mxu0 0.0
    %6226 = vmatpush1.msra.mxu0 %v6158
    %6227 = vmatprep.subr.mxu0 0.0
    %6228 = vmatpush1.msra.mxu0 %v6159
    %6229 = vmatprep.subr.mxu0 0.0
    %6230 = vmatpush1.msra.mxu0 %v6160
    %6231 = vmatprep.subr.mxu0 0.0
    %6232 = vmatpush1.msra.mxu0 %v6161
    %6233 = vmatprep.subr.mxu0 0.0
    %6234 = vmatpush1.msra.mxu0 %v6162
    %6235 = vmatprep.subr.mxu0 0.0
    %6236 = vmatpush1.msra.mxu0 %v6163
    %6237 = vmatprep.subr.mxu0 0.0
    %6238 = vmatpush1.msra.mxu0 %v6164
    %6239 = vmatprep.subr.mxu0 0.0
    %6240 = vmatpush1.msra.mxu0 %v6165
    %6241 = vmatprep.subr.mxu0 0.0
    %6242 = vmatpush1.msra.mxu0 %v6166
    %6243 = vmatprep.subr.mxu0 0.0
    %6244 = vmatpush1.msra.mxu0 %v6167
    %6245 = vmatprep.subr.mxu0 0.0
    %6246 = vmatpush1.msra.mxu0 %v6168
    %6247 = vmatprep.subr.mxu0 0.0
    %6248 = vmatpush1.msra.mxu0 %v6169
    %6249 = vmatprep.subr.mxu0 0.0
    %6250 = vmatpush1.msra.mxu0 %v6170
    %6251 = vmatprep.subr.mxu0 0.0
    %6252 = vmatpush1.msra.mxu0 %v6171
    %6253 = vmatprep.subr.mxu0 0.0
    %6254 = vmatpush1.msra.mxu0 %v6172
    %6255 = vmatprep.subr.mxu0 0.0
    %6256 = vmatpush1.msra.mxu0 %v6173
    %6257 = vmatprep.subr.mxu0 0.0
    %6258 = vmatpush1.msra.mxu0 %v6174
    %6259 = vmatprep.subr.mxu0 0.0
    %6260 = vmatpush1.msra.mxu0 %v6175
    %6261 = vmatprep.subr.mxu0 0.0
    %6262 = vmatpush1.msra.mxu0 %v6176
    %6263 = vmatprep.subr.mxu0 0.0
    %6264 = vmatpush1.msra.mxu0 %v6177
    %6265 = vmatprep.subr.mxu0 0.0
    %6266 = vmatpush1.msra.mxu0 %v6178
    %6267 = vmatprep.subr.mxu0 0.0
    %6268 = vmatpush1.msra.mxu0 %v6179
    %6269 = vmatprep.subr.mxu0 0.0
    %6270 = vmatpush1.msra.mxu0 %v6180
    %6271 = vmatprep.subr.mxu0 0.0
    %6272 = vmatpush1.msra.mxu0 %v6181
    %6273 = vmatprep.subr.mxu0 0.0
    %6274 = vmatpush1.msra.mxu0 %v6182
    %6275 = vmatprep.subr.mxu0 0.0
    %6276 = vmatpush1.msra.mxu0 %v6183
    %6277 = vmatprep.subr.mxu0 0.0
    %6278 = vmatpush1.msra.mxu0 %v6184
    %6279 = vmatprep.subr.mxu0 0.0
    %6280 = vmatpush1.msra.mxu0 %v6185
    %6281 = vmatprep.subr.mxu0 0.0
    %6282 = vmatpush1.msra.mxu0 %v6186
    %6283 = vmatprep.mubr.f32.mxu0 1.0
    %6284 = vmatmul.mubr.f32.gmra.mrb[0].mxu0 1.0
    %v6285 = vpop.f32.mrb[0].mxu0
    %v6286 = vadd.f32 0.0, %v6285
    %v6287 = vpop.f32.mrb[0].mxu0
    %6288 = vdwg.mxu0
    %6289 = vmatprep.subr.mxu0 0.0
    %6290 = vmatpush1.msra.mxu0 %v6187
    %6291 = vmatprep.subr.mxu0 0.0
    %6292 = vmatpush1.msra.mxu0 %v6188
    %6293 = vmatprep.subr.mxu0 0.0
    %6294 = vmatpush1.msra.mxu0 %v6189
    %6295 = vmatprep.subr.mxu0 0.0
    %6296 = vmatpush1.msra.mxu0 %v6190
    %6297 = vmatprep.subr.mxu0 0.0
    %6298 = vmatpush1.msra.mxu0 %v6191
    %6299 = vmatprep.subr.mxu0 0.0
    %6300 = vmatpush1.msra.mxu0 %v6192
    %6301 = vmatprep.subr.mxu0 0.0
    %6302 = vmatpush1.msra.mxu0 %v6193
    %6303 = vmatprep.subr.mxu0 0.0
    %6304 = vmatpush1.msra.mxu0 %v6194
    %6305 = vmatprep.subr.mxu0 0.0
    %6306 = vmatpush1.msra.mxu0 %v6195
    %6307 = vmatprep.subr.mxu0 0.0
    %6308 = vmatpush1.msra.mxu0 %v6196
    %6309 = vmatprep.subr.mxu0 0.0
    %6310 = vmatpush1.msra.mxu0 %v6197
    %6311 = vmatprep.subr.mxu0 0.0
    %6312 = vmatpush1.msra.mxu0 %v6198
    %6313 = vmatprep.subr.mxu0 0.0
    %6314 = vmatpush1.msra.mxu0 %v6199
    %6315 = vmatprep.subr.mxu0 0.0
    %6316 = vmatpush1.msra.mxu0 %v6200
    %6317 = vmatprep.subr.mxu0 0.0
    %6318 = vmatpush1.msra.mxu0 %v6201
    %6319 = vmatprep.subr.mxu0 0.0
    %6320 = vmatpush1.msra.mxu0 %v6202
    %6321 = vmatprep.subr.mxu0 0.0
    %6322 = vmatpush1.msra.mxu0 %v6203
    %6323 = vmatprep.subr.mxu0 0.0
    %6324 = vmatpush1.msra.mxu0 %v6204
    %6325 = vmatprep.subr.mxu0 0.0
    %6326 = vmatpush1.msra.mxu0 %v6205
    %6327 = vmatprep.subr.mxu0 0.0
    %6328 = vmatpush1.msra.mxu0 %v6206
    %6329 = vmatprep.subr.mxu0 0.0
    %6330 = vmatpush1.msra.mxu0 %v6207
    %6331 = vmatprep.subr.mxu0 0.0
    %6332 = vmatpush1.msra.mxu0 %v6208
    %6333 = vmatprep.subr.mxu0 0.0
    %6334 = vmatpush1.msra.mxu0 %v6209
    %6335 = vmatprep.subr.mxu0 0.0
    %6336 = vmatpush1.msra.mxu0 %v6210
    %6337 = vmatprep.subr.mxu0 0.0
    %6338 = vmatpush1.msra.mxu0 %v6211
    %6339 = vmatprep.subr.mxu0 0.0
    %6340 = vmatpush1.msra.mxu0 %v6212
    %6341 = vmatprep.subr.mxu0 0.0
    %6342 = vmatpush1.msra.mxu0 %v6213
    %6343 = vmatprep.subr.mxu0 0.0
    %6344 = vmatpush1.msra.mxu0 %v6214
    %6345 = vmatprep.subr.mxu0 0.0
    %6346 = vmatpush1.msra.mxu0 %v6215
    %6347 = vmatprep.subr.mxu0 0.0
    %6348 = vmatpush1.msra.mxu0 %v6216
    %6349 = vmatprep.subr.mxu0 0.0
    %6350 = vmatpush1.msra.mxu0 %v6217
    %6351 = vmatprep.subr.mxu0 0.0
    %6352 = vmatpush1.msra.mxu0 %v6218
    %6353 = vmatprep.mubr.f32.mxu0 1.0
    %6354 = vmatmul.mubr.f32.gmra.mrb[0].mxu0 1.0
    %v6355 = vpop.f32.mrb[0].mxu0
    %v6356 = vadd.f32 %v6286, %v6355
    %v6357 = vpop.f32.mrb[0].mxu0
    %6358 = vdwg.mxu0
    %v6359 = vmul.f32 %v6152, 0.001953125
    %v6360 = vmul.f32 %v6356, 0.001953125
    %v6361 = vmul.f32 %v6359, %v6359
    %v6362 = vsub.f32 %v6360, %v6361
    %v6363 = vld [vmem:[%s8] sm:$0x1]
    %v6364 = vadd.f32 %v6362, 1e-05
    %v6365 = vrsqrt.pop %v6364
    %v6366 = vmul.f32 %v6363, %v6365
    %v6367 = vld [vmem:[%s9] sm:$0x1]
    %v6368 = vmul.f32 %v6359, %v6366
    %v6369 = vsub.f32 %v6367, %v6368
    %v6371 = vlaneseq
    %v6372 = vshrl.u32 %v6371, 7
    %v6373 = vsub.s32 0, %v6372
    %v6374 = vrot.slane %v6366, %v6373
    %v6376 = vmul.f32 %v5697, %v6374
    %v6377 = vmul.f32 %v5702, %v6374
    %v6378 = vmul.f32 %v5707, %v6374
    %v6379 = vmul.f32 %v5712, %v6374
    %v6380 = vmul.f32 %v5717, %v6374
    %v6381 = vmul.f32 %v5722, %v6374
    %v6382 = vmul.f32 %v5727, %v6374
    %v6383 = vmul.f32 %v5732, %v6374
    %v6384 = vmul.f32 %v5737, %v6374
    %v6385 = vmul.f32 %v5742, %v6374
    %v6386 = vmul.f32 %v5747, %v6374
    %v6387 = vmul.f32 %v5752, %v6374
    %v6388 = vmul.f32 %v5757, %v6374
    %v6389 = vmul.f32 %v5762, %v6374
    %v6390 = vmul.f32 %v5767, %v6374
    %v6391 = vmul.f32 %v5772, %v6374
    %v6392 = vmul.f32 %v5777, %v6374
    %v6393 = vmul.f32 %v5782, %v6374
    %v6394 = vmul.f32 %v5787, %v6374
    %v6395 = vmul.f32 %v5792, %v6374
    %v6396 = vmul.f32 %v5797, %v6374
    %v6397 = vmul.f32 %v5802, %v6374
    %v6398 = vmul.f32 %v5807, %v6374
    %v6399 = vmul.f32 %v5812, %v6374
    %v6400 = vmul.f32 %v5817, %v6374
    %v6401 = vmul.f32 %v5822, %v6374
    %v6402 = vmul.f32 %v5827, %v6374
    %v6403 = vmul.f32 %v5832, %v6374
    %v6404 = vmul.f32 %v5837, %v6374
    %v6405 = vmul.f32 %v5842, %v6374
    %v6406 = vmul.f32 %v5847, %v6374
    %v6407 = vmul.f32 %v5852, %v6374
    %v6408 = vmul.f32 %v5857, %v6374
    %v6409 = vmul.f32 %v5862, %v6374
    %v6410 = vmul.f32 %v5867, %v6374
    %v6411 = vmul.f32 %v5872, %v6374
    %v6412 = vmul.f32 %v5877, %v6374
    %v6413 = vmul.f32 %v5882, %v6374
    %v6414 = vmul.f32 %v5887, %v6374
    %v6415 = vmul.f32 %v5892, %v6374
    %v6416 = vmul.f32 %v5897, %v6374
    %v6417 = vmul.f32 %v5902, %v6374
    %v6418 = vmul.f32 %v5907, %v6374
    %v6419 = vmul.f32 %v5912, %v6374
    %v6420 = vmul.f32 %v5917, %v6374
    %v6421 = vmul.f32 %v5922, %v6374
    %v6422 = vmul.f32 %v5927, %v6374
    %v6423 = vmul.f32 %v5932, %v6374
    %v6424 = vmul.f32 %v5937, %v6374
    %v6425 = vmul.f32 %v5942, %v6374
    %v6426 = vmul.f32 %v5947, %v6374
    %v6427 = vmul.f32 %v5952, %v6374
    %v6428 = vmul.f32 %v5957, %v6374
    %v6429 = vmul.f32 %v5962, %v6374
    %v6430 = vmul.f32 %v5967, %v6374
    %v6431 = vmul.f32 %v5972, %v6374
    %v6432 = vmul.f32 %v5977, %v6374
    %v6433 = vmul.f32 %v5982, %v6374
    %v6434 = vmul.f32 %v5987, %v6374
    %v6435 = vmul.f32 %v5992, %v6374
    %v6436 = vmul.f32 %v5997, %v6374
    %v6437 = vmul.f32 %v6002, %v6374
    %v6438 = vmul.f32 %v6007, %v6374
    %v6439 = vmul.f32 %v6012, %v6374
    %v6441 = vlaneseq
    %v6442 = vshrl.u32 %v6441, 7
    %v6443 = vsub.s32 0, %v6442
    %v6444 = vrot.slane %v6369, %v6443
    %v6446 = vadd.f32 %v6376, %v6444
    %v6447 = vadd.f32 %v6377, %v6444
    %v6448 = vadd.f32 %v6378, %v6444
    %v6449 = vadd.f32 %v6379, %v6444
    %v6450 = vadd.f32 %v6380, %v6444
    %v6451 = vadd.f32 %v6381, %v6444
    %v6452 = vadd.f32 %v6382, %v6444
    %v6453 = vadd.f32 %v6383, %v6444
    %v6454 = vadd.f32 %v6384, %v6444
    %v6455 = vadd.f32 %v6385, %v6444
    %v6456 = vadd.f32 %v6386, %v6444
    %v6457 = vadd.f32 %v6387, %v6444
    %v6458 = vadd.f32 %v6388, %v6444
    %v6459 = vadd.f32 %v6389, %v6444
    %v6460 = vadd.f32 %v6390, %v6444
    %v6461 = vadd.f32 %v6391, %v6444
    %v6462 = vadd.f32 %v6392, %v6444
    %v6463 = vadd.f32 %v6393, %v6444
    %v6464 = vadd.f32 %v6394, %v6444
    %v6465 = vadd.f32 %v6395, %v6444
    %v6466 = vadd.f32 %v6396, %v6444
    %v6467 = vadd.f32 %v6397, %v6444
    %v6468 = vadd.f32 %v6398, %v6444
    %v6469 = vadd.f32 %v6399, %v6444
    %v6470 = vadd.f32 %v6400, %v6444
    %v6471 = vadd.f32 %v6401, %v6444
    %v6472 = vadd.f32 %v6402, %v6444
    %v6473 = vadd.f32 %v6403, %v6444
    %v6474 = vadd.f32 %v6404, %v6444
    %v6475 = vadd.f32 %v6405, %v6444
    %v6476 = vadd.f32 %v6406, %v6444
    %v6477 = vadd.f32 %v6407, %v6444
    %v6478 = vadd.f32 %v6408, %v6444
    %v6479 = vadd.f32 %v6409, %v6444
    %v6480 = vadd.f32 %v6410, %v6444
    %v6481 = vadd.f32 %v6411, %v6444
    %v6482 = vadd.f32 %v6412, %v6444
    %v6483 = vadd.f32 %v6413, %v6444
    %v6484 = vadd.f32 %v6414, %v6444
    %v6485 = vadd.f32 %v6415, %v6444
    %v6486 = vadd.f32 %v6416, %v6444
    %v6487 = vadd.f32 %v6417, %v6444
    %v6488 = vadd.f32 %v6418, %v6444
    %v6489 = vadd.f32 %v6419, %v6444
    %v6490 = vadd.f32 %v6420, %v6444
    %v6491 = vadd.f32 %v6421, %v6444
    %v6492 = vadd.f32 %v6422, %v6444
    %v6493 = vadd.f32 %v6423, %v6444
    %v6494 = vadd.f32 %v6424, %v6444
    %v6495 = vadd.f32 %v6425, %v6444
    %v6496 = vadd.f32 %v6426, %v6444
    %v6497 = vadd.f32 %v6427, %v6444
    %v6498 = vadd.f32 %v6428, %v6444
    %v6499 = vadd.f32 %v6429, %v6444
    %v6500 = vadd.f32 %v6430, %v6444
    %v6501 = vadd.f32 %v6431, %v6444
    %v6502 = vadd.f32 %v6432, %v6444
    %v6503 = vadd.f32 %v6433, %v6444
    %v6504 = vadd.f32 %v6434, %v6444
    %v6505 = vadd.f32 %v6435, %v6444
    %v6506 = vadd.f32 %v6436, %v6444
    %v6507 = vadd.f32 %v6437, %v6444
    %v6508 = vadd.f32 %v6438, %v6444
    %v6509 = vadd.f32 %v6439, %v6444
    %v6510 = vadd.f32 %v6446, %v91
    %v6511 = vadd.f32 %v6447, %v92
    %v6512 = vadd.f32 %v6448, %v93
    %v6513 = vadd.f32 %v6449, %v94
    %v6514 = vadd.f32 %v6450, %v95
    %v6515 = vadd.f32 %v6451, %v96
    %v6516 = vadd.f32 %v6452, %v97
    %v6517 = vadd.f32 %v6453, %v98
    %v6518 = vadd.f32 %v6454, %v99
    %v6519 = vadd.f32 %v6455, %v100
    %v6520 = vadd.f32 %v6456, %v101
    %v6521 = vadd.f32 %v6457, %v102
    %v6522 = vadd.f32 %v6458, %v103
    %v6523 = vadd.f32 %v6459, %v104
    %v6524 = vadd.f32 %v6460, %v105
    %v6525 = vadd.f32 %v6461, %v106
    %v6526 = vadd.f32 %v6462, %v107
    %v6527 = vadd.f32 %v6463, %v108
    %v6528 = vadd.f32 %v6464, %v109
    %v6529 = vadd.f32 %v6465, %v110
    %v6530 = vadd.f32 %v6466, %v111
    %v6531 = vadd.f32 %v6467, %v112
    %v6532 = vadd.f32 %v6468, %v113
    %v6533 = vadd.f32 %v6469, %v114
    %v6534 = vadd.f32 %v6470, %v115
    %v6535 = vadd.f32 %v6471, %v116
    %v6536 = vadd.f32 %v6472, %v117
    %v6537 = vadd.f32 %v6473, %v118
    %v6538 = vadd.f32 %v6474, %v119
    %v6539 = vadd.f32 %v6475, %v120
    %v6540 = vadd.f32 %v6476, %v121
    %v6541 = vadd.f32 %v6477, %v122
    %v6542 = vadd.f32 %v6478, %v123
    %v6543 = vadd.f32 %v6479, %v124
    %v6544 = vadd.f32 %v6480, %v125
    %v6545 = vadd.f32 %v6481, %v126
    %v6546 = vadd.f32 %v6482, %v127
    %v6547 = vadd.f32 %v6483, %v128
    %v6548 = vadd.f32 %v6484, %v129
    %v6549 = vadd.f32 %v6485, %v130
    %v6550 = vadd.f32 %v6486, %v131
    %v6551 = vadd.f32 %v6487, %v132
    %v6552 = vadd.f32 %v6488, %v133
    %v6553 = vadd.f32 %v6489, %v134
    %v6554 = vadd.f32 %v6490, %v135
    %v6555 = vadd.f32 %v6491, %v136
    %v6556 = vadd.f32 %v6492, %v137
    %v6557 = vadd.f32 %v6493, %v138
    %v6558 = vadd.f32 %v6494, %v139
    %v6559 = vadd.f32 %v6495, %v140
    %v6560 = vadd.f32 %v6496, %v141
    %v6561 = vadd.f32 %v6497, %v142
    %v6562 = vadd.f32 %v6498, %v143
    %v6563 = vadd.f32 %v6499, %v144
    %v6564 = vadd.f32 %v6500, %v145
    %v6565 = vadd.f32 %v6501, %v146
    %v6566 = vadd.f32 %v6502, %v147
    %v6567 = vadd.f32 %v6503, %v148
    %v6568 = vadd.f32 %v6504, %v149
    %v6569 = vadd.f32 %v6505, %v150
    %v6570 = vadd.f32 %v6506, %v151
    %v6571 = vadd.f32 %v6507, %v152
    %v6572 = vadd.f32 %v6508, %v153
    %v6573 = vadd.f32 %v6509, %v154
    %v6574 = vmax.f32 %v6510, 0.0
    %v6575 = vmax.f32 %v6511, 0.0
    %v6576 = vmax.f32 %v6512, 0.0
    %v6577 = vmax.f32 %v6513, 0.0
    %v6578 = vmax.f32 %v6514, 0.0
    %v6579 = vmax.f32 %v6515, 0.0
    %v6580 = vmax.f32 %v6516, 0.0
    %v6581 = vmax.f32 %v6517, 0.0
    %v6582 = vmax.f32 %v6518, 0.0
    %v6583 = vmax.f32 %v6519, 0.0
    %v6584 = vmax.f32 %v6520, 0.0
    %v6585 = vmax.f32 %v6521, 0.0
    %v6586 = vmax.f32 %v6522, 0.0
    %v6587 = vmax.f32 %v6523, 0.0
    %v6588 = vmax.f32 %v6524, 0.0
    %v6589 = vmax.f32 %v6525, 0.0
    %v6590 = vmax.f32 %v6526, 0.0
    %v6591 = vmax.f32 %v6527, 0.0
    %v6592 = vmax.f32 %v6528, 0.0
    %v6593 = vmax.f32 %v6529, 0.0
    %v6594 = vmax.f32 %v6530, 0.0
    %v6595 = vmax.f32 %v6531, 0.0
    %v6596 = vmax.f32 %v6532, 0.0
    %v6597 = vmax.f32 %v6533, 0.0
    %v6598 = vmax.f32 %v6534, 0.0
    %v6599 = vmax.f32 %v6535, 0.0
    %v6600 = vmax.f32 %v6536, 0.0
    %v6601 = vmax.f32 %v6537, 0.0
    %v6602 = vmax.f32 %v6538, 0.0
    %v6603 = vmax.f32 %v6539, 0.0
    %v6604 = vmax.f32 %v6540, 0.0
    %v6605 = vmax.f32 %v6541, 0.0
    %v6606 = vmax.f32 %v6542, 0.0
    %v6607 = vmax.f32 %v6543, 0.0
    %v6608 = vmax.f32 %v6544, 0.0
    %v6609 = vmax.f32 %v6545, 0.0
    %v6610 = vmax.f32 %v6546, 0.0
    %v6611 = vmax.f32 %v6547, 0.0
    %v6612 = vmax.f32 %v6548, 0.0
    %v6613 = vmax.f32 %v6549, 0.0
    %v6614 = vmax.f32 %v6550, 0.0
    %v6615 = vmax.f32 %v6551, 0.0
    %v6616 = vmax.f32 %v6552, 0.0
    %v6617 = vmax.f32 %v6553, 0.0
    %v6618 = vmax.f32 %v6554, 0.0
    %v6619 = vmax.f32 %v6555, 0.0
    %v6620 = vmax.f32 %v6556, 0.0
    %v6621 = vmax.f32 %v6557, 0.0
    %v6622 = vmax.f32 %v6558, 0.0
    %v6623 = vmax.f32 %v6559, 0.0
    %v6624 = vmax.f32 %v6560, 0.0
    %v6625 = vmax.f32 %v6561, 0.0
    %v6626 = vmax.f32 %v6562, 0.0
    %v6627 = vmax.f32 %v6563, 0.0
    %v6628 = vmax.f32 %v6564, 0.0
    %v6629 = vmax.f32 %v6565, 0.0
    %v6630 = vmax.f32 %v6566, 0.0
    %v6631 = vmax.f32 %v6567, 0.0
    %v6632 = vmax.f32 %v6568, 0.0
    %v6633 = vmax.f32 %v6569, 0.0
    %v6634 = vmax.f32 %v6570, 0.0
    %v6635 = vmax.f32 %v6571, 0.0
    %v6636 = vmax.f32 %v6572, 0.0
    %v6637 = vmax.f32 %v6573, 0.0
    %6638 = vst [vmem:[#allocation12] sm:$0xff] %v6574
    %6639 = vst [vmem:[#allocation12 + $0x8] sm:$0xff] %v6575
    %6640 = vst [vmem:[#allocation12 + $0x10] sm:$0xff] %v6576
    %6641 = vst [vmem:[#allocation12 + $0x18] sm:$0xff] %v6577
    %6642 = vst [vmem:[#allocation12 + $0x20] sm:$0xff] %v6578
    %6643 = vst [vmem:[#allocation12 + $0x28] sm:$0xff] %v6579
    %6644 = vst [vmem:[#allocation12 + $0x30] sm:$0xff] %v6580
    %6645 = vst [vmem:[#allocation12 + $0x38] sm:$0xff] %v6581
    %6646 = vst [vmem:[#allocation12 + $0x40] sm:$0xff] %v6582
    %6647 = vst [vmem:[#allocation12 + $0x48] sm:$0xff] %v6583
    %6648 = vst [vmem:[#allocation12 + $0x50] sm:$0xff] %v6584
    %6649 = vst [vmem:[#allocation12 + $0x58] sm:$0xff] %v6585
    %6650 = vst [vmem:[#allocation12 + $0x60] sm:$0xff] %v6586
    %6651 = vst [vmem:[#allocation12 + $0x68] sm:$0xff] %v6587
    %6652 = vst [vmem:[#allocation12 + $0x70] sm:$0xff] %v6588
    %6653 = vst [vmem:[#allocation12 + $0x78] sm:$0xff] %v6589
    %6654 = vst [vmem:[#allocation12 + $0x80] sm:$0xff] %v6590
    %6655 = vst [vmem:[#allocation12 + $0x88] sm:$0xff] %v6591
    %6656 = vst [vmem:[#allocation12 + $0x90] sm:$0xff] %v6592
    %6657 = vst [vmem:[#allocation12 + $0x98] sm:$0xff] %v6593
    %6658 = vst [vmem:[#allocation12 + $0xa0] sm:$0xff] %v6594
    %6659 = vst [vmem:[#allocation12 + $0xa8] sm:$0xff] %v6595
    %6660 = vst [vmem:[#allocation12 + $0xb0] sm:$0xff] %v6596
    %6661 = vst [vmem:[#allocation12 + $0xb8] sm:$0xff] %v6597
    %6662 = vst [vmem:[#allocation12 + $0xc0] sm:$0xff] %v6598
    %6663 = vst [vmem:[#allocation12 + $0xc8] sm:$0xff] %v6599
    %6664 = vst [vmem:[#allocation12 + $0xd0] sm:$0xff] %v6600
    %6665 = vst [vmem:[#allocation12 + $0xd8] sm:$0xff] %v6601
    %6666 = vst [vmem:[#allocation12 + $0xe0] sm:$0xff] %v6602
    %6667 = vst [vmem:[#allocation12 + $0xe8] sm:$0xff] %v6603
    %6668 = vst [vmem:[#allocation12 + $0xf0] sm:$0xff] %v6604
    %6669 = vst [vmem:[#allocation12 + $0xf8] sm:$0xff] %v6605
    %6670 = vst [vmem:[#allocation12 + $0x100] sm:$0xff] %v6606
    %6671 = vst [vmem:[#allocation12 + $0x108] sm:$0xff] %v6607
    %6672 = vst [vmem:[#allocation12 + $0x110] sm:$0xff] %v6608
    %6673 = vst [vmem:[#allocation12 + $0x118] sm:$0xff] %v6609
    %6674 = vst [vmem:[#allocation12 + $0x120] sm:$0xff] %v6610
    %6675 = vst [vmem:[#allocation12 + $0x128] sm:$0xff] %v6611
    %6676 = vst [vmem:[#allocation12 + $0x130] sm:$0xff] %v6612
    %6677 = vst [vmem:[#allocation12 + $0x138] sm:$0xff] %v6613
    %6678 = vst [vmem:[#allocation12 + $0x140] sm:$0xff] %v6614
    %6679 = vst [vmem:[#allocation12 + $0x148] sm:$0xff] %v6615
    %6680 = vst [vmem:[#allocation12 + $0x150] sm:$0xff] %v6616
    %6681 = vst [vmem:[#allocation12 + $0x158] sm:$0xff] %v6617
    %6682 = vst [vmem:[#allocation12 + $0x160] sm:$0xff] %v6618
    %6683 = vst [vmem:[#allocation12 + $0x168] sm:$0xff] %v6619
    %6684 = vst [vmem:[#allocation12 + $0x170] sm:$0xff] %v6620
    %6685 = vst [vmem:[#allocation12 + $0x178] sm:$0xff] %v6621
    %6686 = vst [vmem:[#allocation12 + $0x180] sm:$0xff] %v6622
    %6687 = vst [vmem:[#allocation12 + $0x188] sm:$0xff] %v6623
    %6688 = vst [vmem:[#allocation12 + $0x190] sm:$0xff] %v6624
    %6689 = vst [vmem:[#allocation12 + $0x198] sm:$0xff] %v6625
    %6690 = vst [vmem:[#allocation12 + $0x1a0] sm:$0xff] %v6626
    %6691 = vst [vmem:[#allocation12 + $0x1a8] sm:$0xff] %v6627
    %6692 = vst [vmem:[#allocation12 + $0x1b0] sm:$0xff] %v6628
    %6693 = vst [vmem:[#allocation12 + $0x1b8] sm:$0xff] %v6629
    %6694 = vst [vmem:[#allocation12 + $0x1c0] sm:$0xff] %v6630
    %6695 = vst [vmem:[#allocation12 + $0x1c8] sm:$0xff] %v6631
    %6696 = vst [vmem:[#allocation12 + $0x1d0] sm:$0xff] %v6632
    %6697 = vst [vmem:[#allocation12 + $0x1d8] sm:$0xff] %v6633
    %6698 = vst [vmem:[#allocation12 + $0x1e0] sm:$0xff] %v6634
    %6699 = vst [vmem:[#allocation12 + $0x1e8] sm:$0xff] %v6635
    %6700 = vst [vmem:[#allocation12 + $0x1f0] sm:$0xff] %v6636
    %6701 = vst [vmem:[#allocation12 + $0x1f8] sm:$0xff] %v6637
    // Predicated region
    $region58: #{tpu_custom_call.1} parent=1 // pred_check
      _
    $region59: #{tpu_custom_call.1} parent=1 // pred_check_branch
      %6703 = sbr.rel (0) target = $region61
    $region60: #{tpu_custom_call.1} parent=1 // pred_region
      %s6705 = ssub.s32 8192, 8192
      %6706 = vsyncadd [#allocation6], %s6705
      %s6707 = sshll.u32 [#allocation12], 4
      %s6708 = int_to_ptr.vmem [resolvable:$true] %s6707
      %6713 = dma.vmem_to_hbm [thread:$0]  %s6708, 8192, %s10, [#allocation6], 128, 128, 8
    $region61: #{tpu_custom_call.1} parent=1 // pred_fallthru
      _
    // Predicated region
    $region62: #{tpu_custom_call.1} parent=1 // pred_check
      _
    $region63: #{tpu_custom_call.1} parent=1 // pred_check_branch
      %6715 = sbr.rel (0) target = $region65
    $region64: #{tpu_custom_call.1} parent=1 // pred_region
      %6716 = dma.done [#allocation6], 8192
    $region65: #{tpu_custom_call.1} parent=1 // pred_fallthru
      _
    %6717 = vsyncpa [#allocation5], 1
    %6718 = vsyncpa [#allocation8], 1
    %6719 = vsyncpa [#allocation11], 1
    %6720 = vsyncpa [#allocation6], 1

</llo_original>
